<compile_context>
chip_gen: v7x
topology: tpu7x:2x2x1
jax: 0.10.0
libtpu: 0.0.40
codegen_flags: <defaults>
</compile_context>

<pallas_src>
import functools

import jax
import jax.numpy as jnp
from jax.experimental import pallas as pl
from jax.experimental.pallas import tpu as pltpu


def _fused_bn_add_relu_conv_kernel(x_ref, skip_ref, gb_ref, w_ref, o_ref, *,
                                   eps):
    # x_ref, skip_ref : (TK, HW)   f32  -- Cin tile, full spatial extent resident
    # gb_ref          : (TK, 2)    f32  -- [:,0]=gamma, [:,1]=beta
    # w_ref           : (Cout, TK) f32  -- 1x1 conv weight, Cin tile
    # o_ref           : (Cout, HW) f32  -- resident accumulator (same block all k)
    k = pl.program_id(0)

    x = x_ref[...]                                     # (TK, HW) f32
    gamma = gb_ref[:, 0:1]                             # (TK, 1)
    beta = gb_ref[:, 1:2]                              # (TK, 1)

    # Training-mode BatchNorm statistics over the (full, resident) spatial
    # axis.  Lane-axis reductions -> XLU; rsqrt -> EUP; both off the critical
    # VPU/MXU slots and hidden under the activation DMA.
    inv_hw = jnp.float32(1.0 / x.shape[1])
    mean = jnp.sum(x, axis=1, keepdims=True) * inv_hw          # (TK, 1)
    xc = x - mean
    var = jnp.sum(xc * xc, axis=1, keepdims=True) * inv_hw     # biased (PyTorch)
    scale = gamma * jax.lax.rsqrt(var + eps)                   # (TK, 1)

    # BN apply + residual add + ReLU, all f32 on the VPU.
    y = jnp.maximum(xc * scale + beta + skip_ref[...], 0.0)    # (TK, HW)

    # 1x1 conv partial product on the MXU: bf16 inputs, f32 accumulation.
    part = jnp.dot(w_ref[...].astype(jnp.bfloat16),
                   y.astype(jnp.bfloat16),
                   preferred_element_type=jnp.float32)         # (Cout, HW)

    @pl.when(k == 0)
    def _():
        o_ref[...] = jnp.zeros_like(o_ref)

    o_ref[...] += part


def fused_forward(x229, x222, gamma, beta, conv_w, *, eps=1e-5):
    """x229, x222: (N, C, H, W) f32; conv_w: (Cout, Cin, 1, 1); gamma/beta: (C,)."""
    N, C, H, W = x229.shape
    Cout = conv_w.shape[0]
    HW = N * H * W

    # NCHW -> (C, N*H*W).  For N == 1 this is a pure reshape (no data movement).
    x_chw = jnp.transpose(x229, (1, 0, 2, 3)).reshape(C, HW)
    s_chw = jnp.transpose(x222, (1, 0, 2, 3)).reshape(C, HW)

    # Pack gamma/beta as a single (C, 2) array; BN stats are done in-kernel.
    gb = jnp.stack([gamma, beta], axis=1).astype(jnp.float32)          # (C, 2)
    # TODO(synk): running_mean/running_var momentum update is a training side
    # effect and does not affect this forward output, so it is not emitted.

    # (Cout, Cin, 1, 1) -> (Cout, Cin); out = W @ Y needs no weight transpose.
    w_mat = conv_w[:, :, 0, 0].astype(jnp.float32)

    # --- Tiling over the contraction axis Cin (grid = (2,) for C = 1024). ---
    TK = 512 if C % 512 == 0 else C
    KT = C // TK

    cost = pl.CostEstimate(
        flops=2 * C * HW * Cout + 8 * C * HW,
        transcendentals=C,
        bytes_accessed=2 * C * HW * 4 + Cout * C * 4 + Cout * HW * 4 + C * 2 * 4,
    )

    kernel = functools.partial(_fused_bn_add_relu_conv_kernel, eps=eps)

    out_rows = pl.pallas_call(
        kernel,
        out_shape=jax.ShapeDtypeStruct((Cout, HW), jnp.float32),
        grid_spec=pltpu.PrefetchScalarGridSpec(
            num_scalar_prefetch=0,
            grid=(KT,),
            in_specs=[
                pl.BlockSpec((TK, HW), lambda k: (k, 0)),    # x tile
                pl.BlockSpec((TK, HW), lambda k: (k, 0)),    # skip tile
                pl.BlockSpec((TK, 2), lambda k: (k, 0)),     # packed gamma/beta
                pl.BlockSpec((Cout, TK), lambda k: (0, k)),  # weight tile
            ],
            out_specs=pl.BlockSpec((Cout, HW), lambda k: (0, 0)),
        ),
        compiler_params=pltpu.CompilerParams(
            dimension_semantics=("arbitrary",)),
        cost_estimate=cost,
    )(x_chw, s_chw, gb, w_mat)

    # (Cout, N*H*W) -> (N, Cout, H, W); for N == 1 this is again a pure reshape.
    return jnp.transpose(out_rows.reshape(Cout, N, H, W), (1, 0, 2, 3))


def _reference_forward(x229, x222, gamma, beta, conv_w, *, eps=1e-5):
    """Pure-JAX f32 reference of the PyTorch module (training-mode BN)."""
    mean = jnp.mean(x229, axis=(0, 2, 3), keepdims=True)
    var = jnp.mean((x229 - mean) ** 2, axis=(0, 2, 3), keepdims=True)
    xn = (x229 - mean) * jax.lax.rsqrt(var + eps)
    bn = xn * gamma[None, :, None, None] + beta[None, :, None, None]
    y = jnp.maximum(bn + x222, 0.0)
    w = conv_w[:, :, 0, 0]                                       # (Cout, Cin)
    return jnp.einsum('oc,nchw->nohw', w, y)


if __name__ == "__main__":
    key = jax.random.PRNGKey(0)
    k1, k2, k3 = jax.random.split(key, 3)

    # Module's fixed shapes: BN(1024) -> add -> relu -> Conv2d(1024, 256, 1x1).
    N, C, H, W = 1, 1024, 28, 28
    Cout = 256

    x229 = jax.random.normal(k1, (N, C, H, W), dtype=jnp.float32)
    x222 = jax.random.normal(k2, (N, C, H, W), dtype=jnp.float32)

    gamma = jnp.ones((C,), dtype=jnp.float32)      # PyTorch BN defaults
    beta = jnp.zeros((C,), dtype=jnp.float32)
    conv_w = 0.02 * jax.random.normal(k3, (Cout, C, 1, 1), dtype=jnp.float32)

    fwd = jax.jit(fused_forward)
    out = fwd(x229, x222, gamma, beta, conv_w)
    jax.block_until_ready(out)

    assert out.shape == (N, Cout, H, W), out.shape
    assert bool(jnp.all(jnp.isfinite(out)))

    # Correctness vs. pure-JAX f32 reference (bf16 MXU inputs => ~1e-2 level).
    ref = _reference_forward(x229, x222, gamma, beta, conv_w)
    max_err = float(jnp.max(jnp.abs(out - ref)))
    assert max_err < 5e-2, f"max abs error {max_err}"

    print("KERNEL_OK")
</pallas_src>

<mosaic_0001>
module attributes {stable_mosaic.version = 11 : i64} {
  func.func @_fused_bn_add_relu_conv_kernel(%arg0: i32, %arg1: memref<512x784xf32, #tpu.memory_space<vmem>>, %arg2: memref<512x784xf32, #tpu.memory_space<vmem>>, %arg3: memref<512x2xf32, #tpu.memory_space<vmem>>, %arg4: memref<256x512xf32, #tpu.memory_space<vmem>>, %arg5: memref<256x784xf32, #tpu.memory_space<vmem>>) attributes {dimension_semantics = [#tpu.dimension_semantics<arbitrary>], iteration_bounds = array<i64: 2>, scalar_prefetch = 0 : i64, scratch_operands = 0 : i64, tpu.core_type = #tpu.core_type<tc>, window_params = [{transform_indices = @transform_0, window_bounds = array<i64: 512, 784>}, {transform_indices = @transform_1, window_bounds = array<i64: 512, 784>}, {transform_indices = @transform_2, window_bounds = array<i64: 512, 2>}, {transform_indices = @transform_3, window_bounds = array<i64: 256, 512>}, {pipeline_mode = #tpu.pipeline_mode<synchronous>, transform_indices = @transform_4, window_bounds = array<i64: 256, 784>}]} {
    %c0 = arith.constant 0 : index
    %c0_0 = arith.constant 0 : index
    %0 = vector.load %arg1[%c0, %c0_0] : memref<512x784xf32, #tpu.memory_space<vmem>>, vector<512x784xf32>
    %c0_1 = arith.constant 0 : index
    %c0_2 = arith.constant 0 : index
    %1 = vector.load %arg3[%c0_1, %c0_2] : memref<512x2xf32, #tpu.memory_space<vmem>>, vector<512x1xf32>
    %c0_3 = arith.constant 0 : index
    %c1 = arith.constant 1 : index
    %2 = vector.load %arg3[%c0_3, %c1] : memref<512x2xf32, #tpu.memory_space<vmem>>, vector<512x1xf32>
    %cst = arith.constant dense<0.000000e+00> : vector<512xf32>
    %3 = vector.multi_reduction <add>, %0, %cst [1] : vector<512x784xf32> to vector<512xf32>
    %4 = vector.shape_cast %3 : vector<512xf32> to vector<512x1xf32>
    %cst_4 = arith.constant 0.00127551018 : f32
    %5 = vector.broadcast %cst_4 : f32 to vector<512x1xf32>
    %6 = arith.mulf %4, %5 : vector<512x1xf32>
    %7 = vector.broadcast %6 : vector<512x1xf32> to vector<512x784xf32>
    %8 = arith.subf %0, %7 : vector<512x784xf32>
    %9 = arith.mulf %8, %8 : vector<512x784xf32>
    %cst_5 = arith.constant dense<0.000000e+00> : vector<512xf32>
    %10 = vector.multi_reduction <add>, %9, %cst_5 [1] : vector<512x784xf32> to vector<512xf32>
    %11 = vector.shape_cast %10 : vector<512xf32> to vector<512x1xf32>
    %cst_6 = arith.constant 0.00127551018 : f32
    %12 = vector.broadcast %cst_6 : f32 to vector<512x1xf32>
    %13 = arith.mulf %11, %12 : vector<512x1xf32>
    %cst_7 = arith.constant 9.99999974E-6 : f32
    %14 = vector.broadcast %cst_7 : f32 to vector<512x1xf32>
    %15 = arith.addf %13, %14 : vector<512x1xf32>
    %16 = math.rsqrt %15 : vector<512x1xf32>
    %17 = arith.mulf %1, %16 : vector<512x1xf32>
    %18 = vector.broadcast %17 : vector<512x1xf32> to vector<512x784xf32>
    %19 = arith.mulf %8, %18 : vector<512x784xf32>
    %20 = vector.broadcast %2 : vector<512x1xf32> to vector<512x784xf32>
    %21 = arith.addf %19, %20 : vector<512x784xf32>
    %c0_8 = arith.constant 0 : index
    %c0_9 = arith.constant 0 : index
    %22 = vector.load %arg2[%c0_8, %c0_9] : memref<512x784xf32, #tpu.memory_space<vmem>>, vector<512x784xf32>
    %23 = arith.addf %21, %22 : vector<512x784xf32>
    %cst_10 = arith.constant 0.000000e+00 : f32
    %24 = vector.broadcast %cst_10 : f32 to vector<512x784xf32>
    %25 = arith.maximumf %23, %24 : vector<512x784xf32>
    %c0_11 = arith.constant 0 : index
    %c0_12 = arith.constant 0 : index
    %26 = vector.load %arg4[%c0_11, %c0_12] : memref<256x512xf32, #tpu.memory_space<vmem>>, vector<256x512xf32>
    %27 = arith.truncf %26 : vector<256x512xf32> to vector<256x512xbf16>
    %28 = arith.truncf %25 : vector<512x784xf32> to vector<512x784xbf16>
    %cst_13 = arith.constant dense<0.000000e+00> : vector<256x784xf32>
    %29 = tpu.matmul %27, %28, %cst_13 {dimension_numbers = #tpu.dot_dimension_numbers<[1], [0], [0], [1], [0, 0, 1, 1], [], []>} : vector<256x512xbf16>, vector<512x784xbf16>, vector<256x784xf32> -> vector<256x784xf32>
    %c0_i32 = arith.constant 0 : i32
    %30 = arith.cmpi eq, %arg0, %c0_i32 : i32
    %31 = arith.extui %30 : i1 to i32
    %c0_i32_14 = arith.constant 0 : i32
    %32 = arith.cmpi ne, %31, %c0_i32_14 : i32
    scf.if %32 {
      %cst_19 = arith.constant 0.000000e+00 : f32
      %36 = vector.broadcast %cst_19 : f32 to vector<256x784xf32>
      %c0_20 = arith.constant 0 : index
      %c0_21 = arith.constant 0 : index
      %37 = vector.load %arg5[%c0_20, %c0_21] : memref<256x784xf32, #tpu.memory_space<vmem>>, vector<256x784xf32>
      tpu.vector_store %arg5[%c0_20, %c0_21], %36 {strides = array<i32>} : memref<256x784xf32, #tpu.memory_space<vmem>>, vector<256x784xf32>,
    } else {
    }
    %c0_15 = arith.constant 0 : index
    %c0_16 = arith.constant 0 : index
    %33 = vector.load %arg5[%c0_15, %c0_16] : memref<256x784xf32, #tpu.memory_space<vmem>>, vector<256x784xf32>
    %34 = arith.addf %33, %29 : vector<256x784xf32>
    %c0_17 = arith.constant 0 : index
    %c0_18 = arith.constant 0 : index
    %35 = vector.load %arg5[%c0_17, %c0_18] : memref<256x784xf32, #tpu.memory_space<vmem>>, vector<256x784xf32>
    tpu.vector_store %arg5[%c0_17, %c0_18], %34 {strides = array<i32>} : memref<256x784xf32, #tpu.memory_space<vmem>>, vector<256x784xf32>,
    return
  }
  func.func @transform_0(%arg0: i32) -> (i32, i32) {
    %c0_i32 = arith.constant 0 : i32
    %c0_i32_0 = arith.constant 0 : i32
    return %arg0, %c0_i32 : i32, i32
  }
  func.func @transform_1(%arg0: i32) -> (i32, i32) {
    %c0_i32 = arith.constant 0 : i32
    %c0_i32_0 = arith.constant 0 : i32
    return %arg0, %c0_i32 : i32, i32
  }
  func.func @transform_2(%arg0: i32) -> (i32, i32) {
    %c0_i32 = arith.constant 0 : i32
    %c0_i32_0 = arith.constant 0 : i32
    return %arg0, %c0_i32 : i32, i32
  }
  func.func @transform_3(%arg0: i32) -> (i32, i32) {
    %c0_i32 = arith.constant 0 : i32
    %c0_i32_0 = arith.constant 0 : i32
    return %c0_i32, %arg0 : i32, i32
  }
  func.func @transform_4(%arg0: i32) -> (i32, i32) {
    %c0_i32 = arith.constant 0 : i32
    %c0_i32_0 = arith.constant 0 : i32
    %c0_i32_1 = arith.constant 0 : i32
    return %c0_i32, %c0_i32_0 : i32, i32
  }
}

</mosaic_0001>

<llo_original>
// kernel: fused_forward.1
$region0: #{fused_forward.1}
  #allocation0 [shape = 'u32[]', space=smem, size = 0x4, offset = 0x4, fixed_abs, tag = 'smem constant byte address 0x4 - core index']
  #allocation1 [shape = 'u32[144,128]{1,0:T(1,128)}', space=vmem, size = 0x12000, scoped, tag = 'internal scratch']
  %s0 = inlined_call_operand.vmem [shape: f32[1024,784], index: 0, kind: input, shape index: {}]
  %s1 = inlined_call_operand.vmem [shape: f32[1024,784], index: 1, kind: input, shape index: {}]
  %s2 = inlined_call_operand.vmem [shape: f32[1024,2], index: 2, kind: input, shape index: {}]
  %s3 = inlined_call_operand.vmem [shape: f32[256,1024], index: 3, kind: input, shape index: {}]
  %s4 = inlined_call_operand.vmem [shape: f32[256,784], index: 4, kind: output, shape index: {}]
  %s5 = sld [smem:[#allocation0]]
  $region76: #{fused_forward.1} parent=0
    _
  %s7 = ssub.s32 1, %s5
  %s8 = scalar_select 0, %s7, %s5
  $region1: #{fused_forward.1} parent=0
    #allocation2 [shape = 'u8[1048576]{0}', space=vmem, size = 0x100000, scoped, tag = 'input window, operand 3']
    loop: start=0, step=1, limit=4
    $region2: #{fused_forward.1} parent=1 // loop_pre_header
      _
    $region3: #{fused_forward.1} parent=1 // loop_header
      %s10 = sphi 0, %s14
      %p11 = scmp.ge.s32.totalorder %s10, 4
      %s20 = sphi 0, %s22
      %s23 = sphi 0, %s20
      %s24 = sphi 0, %s23
      %s40 = sphi 0, %s24
      %s46 = sphi 0, %s48
      %s49 = sphi 0, %s46
      %s50 = sphi 0, %s49
      %s66 = sphi 0, %s50
      %s72 = sphi 0, %s74
      %s75 = sphi 0, %s72
      %s76 = sphi 0, %s75
      %s92 = sphi 0, %s76
      %s98 = sphi 0, %s100
      %s101 = sphi 0, %s98
      %s102 = sphi 0, %s101
      %s118 = sphi 0, %s102
      %s122 = sphi 0, %s122
      %s124 = sphi 0, %s122
      %s125 = sphi 0, %s124
      %s139 = sphi 0, %s125
    $region4: #{fused_forward.1} parent=1 // loop_header_branch
      %13 = sbr.rel (%p11) target = $region8
    $region5: #{fused_forward.1} parent=1 // loop_body
      %s15 = ssub.s32 %s10, 1
      %s16 = ssub.s32 %s10, 2
      %s17 = sadd.s32 %s10, 1
      %s18 = ssub.s32 %s10, %s17
      %p19 = scmp.eq.s32.totalorder %s18, 0
      %s21 = sadd.s32 %s20, 1
      %s22 = scalar_select %p19, %s20, %s21
      %p25 = pneg %p19
      %p26 = scmp.eq.s32.totalorder %s10, 1
      %p27 = por %p25, %p26
      %p28 = scmp.ne.s32.totalorder %s20, %s23
      %p29 = scmp.eq.s32.totalorder %s10, 0
      %p30 = por %p28, %p29
      %p31 = scmp.ne.s32.totalorder %s20, %s23
      %p32 = scmp.eq.s32.totalorder %s15, 1
      %p33 = por %p31, %p32
      %p34 = scmp.ne.s32.totalorder %s23, %s24
      %p35 = scmp.eq.s32.totalorder %s15, 0
      %p36 = por %p34, %p35
      %p37 = scmp.ne.s32.totalorder %s23, %s24
      %p38 = scmp.eq.s32.totalorder %s16, 1
      %p39 = por %p37, %p38
      %p41 = scmp.ne.s32.totalorder %s24, %s40
      %p42 = scmp.eq.s32.totalorder %s16, 0
      %p43 = por %p41, %p42
      %s44 = ssub.s32 %s10, %s17
      %p45 = scmp.eq.s32.totalorder %s44, 0
      %s47 = sadd.s32 %s46, 1
      %s48 = scalar_select %p45, %s46, %s47
      %p51 = pneg %p45
      %p52 = scmp.eq.s32.totalorder %s10, 1
      %p53 = por %p51, %p52
      %p54 = scmp.ne.s32.totalorder %s46, %s49
      %p55 = scmp.eq.s32.totalorder %s10, 0
      %p56 = por %p54, %p55
      %p57 = scmp.ne.s32.totalorder %s46, %s49
      %p58 = scmp.eq.s32.totalorder %s15, 1
      %p59 = por %p57, %p58
      %p60 = scmp.ne.s32.totalorder %s49, %s50
      %p61 = scmp.eq.s32.totalorder %s15, 0
      %p62 = por %p60, %p61
      %p63 = scmp.ne.s32.totalorder %s49, %s50
      %p64 = scmp.eq.s32.totalorder %s16, 1
      %p65 = por %p63, %p64
      %p67 = scmp.ne.s32.totalorder %s50, %s66
      %p68 = scmp.eq.s32.totalorder %s16, 0
      %p69 = por %p67, %p68
      %s70 = ssub.s32 %s10, %s17
      %p71 = scmp.eq.s32.totalorder %s70, 0
      %s73 = sadd.s32 %s72, 1
      %s74 = scalar_select %p71, %s72, %s73
      %p77 = pneg %p71
      %p78 = scmp.eq.s32.totalorder %s10, 1
      %p79 = por %p77, %p78
      %p80 = scmp.ne.s32.totalorder %s72, %s75
      %p81 = scmp.eq.s32.totalorder %s10, 0
      %p82 = por %p80, %p81
      %p83 = scmp.ne.s32.totalorder %s72, %s75
      %p84 = scmp.eq.s32.totalorder %s15, 1
      %p85 = por %p83, %p84
      %p86 = scmp.ne.s32.totalorder %s75, %s76
      %p87 = scmp.eq.s32.totalorder %s15, 0
      %p88 = por %p86, %p87
      %p89 = scmp.ne.s32.totalorder %s75, %s76
      %p90 = scmp.eq.s32.totalorder %s16, 1
      %p91 = por %p89, %p90
      %p93 = scmp.ne.s32.totalorder %s76, %s92
      %p94 = scmp.eq.s32.totalorder %s16, 0
      %p95 = por %p93, %p94
      %s96 = ssub.s32 %s10, %s17
      %p97 = scmp.eq.s32.totalorder %s96, 0
      %s99 = sadd.s32 %s98, 1
      %s100 = scalar_select %p97, %s98, %s99
      %p103 = pneg %p97
      %p104 = scmp.eq.s32.totalorder %s10, 1
      %p105 = por %p103, %p104
      %p106 = scmp.ne.s32.totalorder %s98, %s101
      %p107 = scmp.eq.s32.totalorder %s10, 0
      %p108 = por %p106, %p107
      %p109 = scmp.ne.s32.totalorder %s98, %s101
      %p110 = scmp.eq.s32.totalorder %s15, 1
      %p111 = por %p109, %p110
      %p112 = scmp.ne.s32.totalorder %s101, %s102
      %p113 = scmp.eq.s32.totalorder %s15, 0
      %p114 = por %p112, %p113
      %p115 = scmp.ne.s32.totalorder %s101, %s102
      %p116 = scmp.eq.s32.totalorder %s16, 1
      %p117 = por %p115, %p116
      %p119 = scmp.ne.s32.totalorder %s102, %s118
      %p120 = scmp.eq.s32.totalorder %s16, 0
      %p121 = por %p119, %p120
      %s123 = sadd.s32 %s122, 1
      %p126 = scmp.eq.s32.totalorder %s10, 1
      %p127 = scmp.ne.s32.totalorder %s122, %s124
      %p128 = scmp.eq.s32.totalorder %s10, 0
      %p129 = por %p127, %p128
      %p130 = scmp.ne.s32.totalorder %s122, %s124
      %p131 = scmp.eq.s32.totalorder %s15, 1
      %p132 = por %p130, %p131
      %p133 = scmp.ne.s32.totalorder %s124, %s125
      %p134 = scmp.eq.s32.totalorder %s15, 0
      %p135 = por %p133, %p134
      %p136 = scmp.ne.s32.totalorder %s124, %s125
      %p137 = scmp.eq.s32.totalorder %s16, 1
      %p138 = por %p136, %p137
      %p140 = scmp.ne.s32.totalorder %s125, %s139
      %p141 = scmp.eq.s32.totalorder %s16, 0
      %p142 = por %p140, %p141
      %p143 = scmp.le.s32.totalorder 1, %s10
      %p144 = scmp.lt.s32.totalorder %s10, 3
      %p145 = pnand %p143, %p144
      %p146 = pneg %p145
      // Predicated region
      $region9: #{fused_forward.1} parent=5 // pred_check
        _
      $region10: #{fused_forward.1} parent=5 // pred_check_branch
        %148 = sbr.rel (%p145) target = $region12
      $region11: #{fused_forward.1} parent=5 // pred_region
        %s149 = ssub.s32 %s10, 1
      $region12: #{fused_forward.1} parent=5 // pred_fallthru
        _
      %p150 = scmp.lt.s32.totalorder %s10, 2
      // Predicated region
      $region13: #{fused_forward.1} parent=5 // pred_check
        %p151 = pneg %p150
      $region14: #{fused_forward.1} parent=5 // pred_check_branch
        %153 = sbr.rel (%p151) target = $region16
      $region15: #{fused_forward.1} parent=5 // pred_region
        // Predicated region
        $region17: #{fused_forward.1} parent=15 // pred_check
          %p154 = pneg %p30
        $region18: #{fused_forward.1} parent=15 // pred_check_branch
          %156 = sbr.rel (%p154) target = $region20
        $region19: #{fused_forward.1} parent=15 // pred_region
          %s157 = smul.u32 64, %s10
          %p158 = scmp.lt.s32.totalorder %s157, 127
          %s159 = scalar_select %p158, %s157, 127
          %s160 = smul.addr %s159, 7
          %s161 = smul.addr %s160, 8
          %s162 = scalar_lea.vmem %s0, %s161
          %s163 = smul.u32 64, %s10
        $region20: #{fused_forward.1} parent=15 // pred_fallthru
          _
        // Predicated region
        $region21: #{fused_forward.1} parent=15 // pred_check
          %p164 = pneg %p56
        $region22: #{fused_forward.1} parent=15 // pred_check_branch
          %166 = sbr.rel (%p164) target = $region24
        $region23: #{fused_forward.1} parent=15 // pred_region
          %s167 = smul.u32 64, %s10
          %p168 = scmp.lt.s32.totalorder %s167, 127
          %s169 = scalar_select %p168, %s167, 127
          %s170 = smul.addr %s169, 7
          %s171 = smul.addr %s170, 8
          %s172 = scalar_lea.vmem %s1, %s171
          %s173 = smul.u32 64, %s10
        $region24: #{fused_forward.1} parent=15 // pred_fallthru
          _
        // Predicated region
        $region25: #{fused_forward.1} parent=15 // pred_check
          %p174 = pneg %p82
        $region26: #{fused_forward.1} parent=15 // pred_check_branch
          %176 = sbr.rel (%p174) target = $region28
        $region27: #{fused_forward.1} parent=15 // pred_region
          %s177 = smul.u32 64, %s10
          %p178 = scmp.lt.s32.totalorder %s177, 127
          %s179 = scalar_select %p178, %s177, 127
          %s180 = smul.addr %s179, 8
          %s181 = scalar_lea.vmem %s2, %s180
          %s182 = smul.u32 64, %s10
        $region28: #{fused_forward.1} parent=15 // pred_fallthru
          _
        // Predicated region
        $region29: #{fused_forward.1} parent=15 // pred_check
          %p183 = pneg %p108
        $region30: #{fused_forward.1} parent=15 // pred_check_branch
          %185 = sbr.rel (%p183) target = $region32
        $region31: #{fused_forward.1} parent=15 // pred_region
          %s186 = sand.u32 %s98, 1
          %s187 = sand.u32 %s98, 1
          %s188 = smul.addr %s187, 1024
          %s189 = scalar_lea.vmem [#allocation2], %s188
          %s190 = smul.u32 4, %s10
          %s191 = smul.addr %s190, 8
          %s192 = scalar_lea.vmem %s3, %s191
          // Predicated region
          $region33: #{fused_forward.1} parent=31 // pred_check
            _
          $region34: #{fused_forward.1} parent=31 // pred_check_branch
            %194 = sbr.rel (0) target = $region36
          $region35: #{fused_forward.1} parent=31 // pred_region
            // Predicated region
            $region37: #{fused_forward.1} parent=35 // pred_check
              _
            $region38: #{fused_forward.1} parent=35 // pred_check_branch
              %196 = sbr.rel (0) target = $region40
            $region39: #{fused_forward.1} parent=35 // pred_region
              loop: start=0, step=1, limit=1
              $region41: #{fused_forward.1} parent=39 // loop_pre_header
                _
              $region42: #{fused_forward.1} parent=39 // loop_header
                %s198 = sphi 0, %s202
                %p199 = scmp.ge.s32.totalorder %s198, 1
                %s203 = sphi %s192, %s192
                %s204 = sphi %s189, %s189
              $region43: #{fused_forward.1} parent=39 // loop_header_branch
                %201 = sbr.rel (%p199) target = $region47
              $region44: #{fused_forward.1} parent=39 // loop_body
                %v205 = vld [vmem:[%s203] sm:$0xff]
                %206 = vst [vmem:[%s204] sm:$0xff] %v205
                %v207 = vld [vmem:[%s203 + $0x8] sm:$0xff]
                %208 = vst [vmem:[%s204 + $0x8] sm:$0xff] %v207
                %v209 = vld [vmem:[%s203 + $0x10] sm:$0xff]
                %210 = vst [vmem:[%s204 + $0x10] sm:$0xff] %v209
                %v211 = vld [vmem:[%s203 + $0x18] sm:$0xff]
                %212 = vst [vmem:[%s204 + $0x18] sm:$0xff] %v211
                %v213 = vld [vmem:[%s203 + $0x40] sm:$0xff]
                %214 = vst [vmem:[%s204 + $0x20] sm:$0xff] %v213
                %v215 = vld [vmem:[%s203 + $0x48] sm:$0xff]
                %216 = vst [vmem:[%s204 + $0x28] sm:$0xff] %v215
                %v217 = vld [vmem:[%s203 + $0x50] sm:$0xff]
                %218 = vst [vmem:[%s204 + $0x30] sm:$0xff] %v217
                %v219 = vld [vmem:[%s203 + $0x58] sm:$0xff]
                %220 = vst [vmem:[%s204 + $0x38] sm:$0xff] %v219
                %v221 = vld [vmem:[%s203 + $0x80] sm:$0xff]
                %222 = vst [vmem:[%s204 + $0x40] sm:$0xff] %v221
                %v223 = vld [vmem:[%s203 + $0x88] sm:$0xff]
                %224 = vst [vmem:[%s204 + $0x48] sm:$0xff] %v223
                %v225 = vld [vmem:[%s203 + $0x90] sm:$0xff]
                %226 = vst [vmem:[%s204 + $0x50] sm:$0xff] %v225
                %v227 = vld [vmem:[%s203 + $0x98] sm:$0xff]
                %228 = vst [vmem:[%s204 + $0x58] sm:$0xff] %v227
                %v229 = vld [vmem:[%s203 + $0xc0] sm:$0xff]
                %230 = vst [vmem:[%s204 + $0x60] sm:$0xff] %v229
                %v231 = vld [vmem:[%s203 + $0xc8] sm:$0xff]
                %232 = vst [vmem:[%s204 + $0x68] sm:$0xff] %v231
                %v233 = vld [vmem:[%s203 + $0xd0] sm:$0xff]
                %234 = vst [vmem:[%s204 + $0x70] sm:$0xff] %v233
                %v235 = vld [vmem:[%s203 + $0xd8] sm:$0xff]
                %236 = vst [vmem:[%s204 + $0x78] sm:$0xff] %v235
                %v237 = vld [vmem:[%s203 + $0x100] sm:$0xff]
                %238 = vst [vmem:[%s204 + $0x80] sm:$0xff] %v237
                %v239 = vld [vmem:[%s203 + $0x108] sm:$0xff]
                %240 = vst [vmem:[%s204 + $0x88] sm:$0xff] %v239
                %v241 = vld [vmem:[%s203 + $0x110] sm:$0xff]
                %242 = vst [vmem:[%s204 + $0x90] sm:$0xff] %v241
                %v243 = vld [vmem:[%s203 + $0x118] sm:$0xff]
                %244 = vst [vmem:[%s204 + $0x98] sm:$0xff] %v243
                %v245 = vld [vmem:[%s203 + $0x140] sm:$0xff]
                %246 = vst [vmem:[%s204 + $0xa0] sm:$0xff] %v245
                %v247 = vld [vmem:[%s203 + $0x148] sm:$0xff]
                %248 = vst [vmem:[%s204 + $0xa8] sm:$0xff] %v247
                %v249 = vld [vmem:[%s203 + $0x150] sm:$0xff]
                %250 = vst [vmem:[%s204 + $0xb0] sm:$0xff] %v249
                %v251 = vld [vmem:[%s203 + $0x158] sm:$0xff]
                %252 = vst [vmem:[%s204 + $0xb8] sm:$0xff] %v251
                %v253 = vld [vmem:[%s203 + $0x180] sm:$0xff]
                %254 = vst [vmem:[%s204 + $0xc0] sm:$0xff] %v253
                %v255 = vld [vmem:[%s203 + $0x188] sm:$0xff]
                %256 = vst [vmem:[%s204 + $0xc8] sm:$0xff] %v255
                %v257 = vld [vmem:[%s203 + $0x190] sm:$0xff]
                %258 = vst [vmem:[%s204 + $0xd0] sm:$0xff] %v257
                %v259 = vld [vmem:[%s203 + $0x198] sm:$0xff]
                %260 = vst [vmem:[%s204 + $0xd8] sm:$0xff] %v259
                %v261 = vld [vmem:[%s203 + $0x1c0] sm:$0xff]
                %262 = vst [vmem:[%s204 + $0xe0] sm:$0xff] %v261
                %v263 = vld [vmem:[%s203 + $0x1c8] sm:$0xff]
                %264 = vst [vmem:[%s204 + $0xe8] sm:$0xff] %v263
                %v265 = vld [vmem:[%s203 + $0x1d0] sm:$0xff]
                %266 = vst [vmem:[%s204 + $0xf0] sm:$0xff] %v265
                %v267 = vld [vmem:[%s203 + $0x1d8] sm:$0xff]
                %268 = vst [vmem:[%s204 + $0xf8] sm:$0xff] %v267
                %v269 = vld [vmem:[%s203 + $0x200] sm:$0xff]
                %270 = vst [vmem:[%s204 + $0x100] sm:$0xff] %v269
                %v271 = vld [vmem:[%s203 + $0x208] sm:$0xff]
                %272 = vst [vmem:[%s204 + $0x108] sm:$0xff] %v271
                %v273 = vld [vmem:[%s203 + $0x210] sm:$0xff]
                %274 = vst [vmem:[%s204 + $0x110] sm:$0xff] %v273
                %v275 = vld [vmem:[%s203 + $0x218] sm:$0xff]
                %276 = vst [vmem:[%s204 + $0x118] sm:$0xff] %v275
                %v277 = vld [vmem:[%s203 + $0x240] sm:$0xff]
                %278 = vst [vmem:[%s204 + $0x120] sm:$0xff] %v277
                %v279 = vld [vmem:[%s203 + $0x248] sm:$0xff]
                %280 = vst [vmem:[%s204 + $0x128] sm:$0xff] %v279
                %v281 = vld [vmem:[%s203 + $0x250] sm:$0xff]
                %282 = vst [vmem:[%s204 + $0x130] sm:$0xff] %v281
                %v283 = vld [vmem:[%s203 + $0x258] sm:$0xff]
                %284 = vst [vmem:[%s204 + $0x138] sm:$0xff] %v283
                %v285 = vld [vmem:[%s203 + $0x280] sm:$0xff]
                %286 = vst [vmem:[%s204 + $0x140] sm:$0xff] %v285
                %v287 = vld [vmem:[%s203 + $0x288] sm:$0xff]
                %288 = vst [vmem:[%s204 + $0x148] sm:$0xff] %v287
                %v289 = vld [vmem:[%s203 + $0x290] sm:$0xff]
                %290 = vst [vmem:[%s204 + $0x150] sm:$0xff] %v289
                %v291 = vld [vmem:[%s203 + $0x298] sm:$0xff]
                %292 = vst [vmem:[%s204 + $0x158] sm:$0xff] %v291
                %v293 = vld [vmem:[%s203 + $0x2c0] sm:$0xff]
                %294 = vst [vmem:[%s204 + $0x160] sm:$0xff] %v293
                %v295 = vld [vmem:[%s203 + $0x2c8] sm:$0xff]
                %296 = vst [vmem:[%s204 + $0x168] sm:$0xff] %v295
                %v297 = vld [vmem:[%s203 + $0x2d0] sm:$0xff]
                %298 = vst [vmem:[%s204 + $0x170] sm:$0xff] %v297
                %v299 = vld [vmem:[%s203 + $0x2d8] sm:$0xff]
                %300 = vst [vmem:[%s204 + $0x178] sm:$0xff] %v299
                %v301 = vld [vmem:[%s203 + $0x300] sm:$0xff]
                %302 = vst [vmem:[%s204 + $0x180] sm:$0xff] %v301
                %v303 = vld [vmem:[%s203 + $0x308] sm:$0xff]
                %304 = vst [vmem:[%s204 + $0x188] sm:$0xff] %v303
                %v305 = vld [vmem:[%s203 + $0x310] sm:$0xff]
                %306 = vst [vmem:[%s204 + $0x190] sm:$0xff] %v305
                %v307 = vld [vmem:[%s203 + $0x318] sm:$0xff]
                %308 = vst [vmem:[%s204 + $0x198] sm:$0xff] %v307
                %v309 = vld [vmem:[%s203 + $0x340] sm:$0xff]
                %310 = vst [vmem:[%s204 + $0x1a0] sm:$0xff] %v309
                %v311 = vld [vmem:[%s203 + $0x348] sm:$0xff]
                %312 = vst [vmem:[%s204 + $0x1a8] sm:$0xff] %v311
                %v313 = vld [vmem:[%s203 + $0x350] sm:$0xff]
                %314 = vst [vmem:[%s204 + $0x1b0] sm:$0xff] %v313
                %v315 = vld [vmem:[%s203 + $0x358] sm:$0xff]
                %316 = vst [vmem:[%s204 + $0x1b8] sm:$0xff] %v315
                %v317 = vld [vmem:[%s203 + $0x380] sm:$0xff]
                %318 = vst [vmem:[%s204 + $0x1c0] sm:$0xff] %v317
                %v319 = vld [vmem:[%s203 + $0x388] sm:$0xff]
                %320 = vst [vmem:[%s204 + $0x1c8] sm:$0xff] %v319
                %v321 = vld [vmem:[%s203 + $0x390] sm:$0xff]
                %322 = vst [vmem:[%s204 + $0x1d0] sm:$0xff] %v321
                %v323 = vld [vmem:[%s203 + $0x398] sm:$0xff]
                %324 = vst [vmem:[%s204 + $0x1d8] sm:$0xff] %v323
                %v325 = vld [vmem:[%s203 + $0x3c0] sm:$0xff]
                %326 = vst [vmem:[%s204 + $0x1e0] sm:$0xff] %v325
                %v327 = vld [vmem:[%s203 + $0x3c8] sm:$0xff]
                %328 = vst [vmem:[%s204 + $0x1e8] sm:$0xff] %v327
                %v329 = vld [vmem:[%s203 + $0x3d0] sm:$0xff]
                %330 = vst [vmem:[%s204 + $0x1f0] sm:$0xff] %v329
                %v331 = vld [vmem:[%s203 + $0x3d8] sm:$0xff]
                %332 = vst [vmem:[%s204 + $0x1f8] sm:$0xff] %v331
                %v333 = vld [vmem:[%s203 + $0x400] sm:$0xff]
                %334 = vst [vmem:[%s204 + $0x200] sm:$0xff] %v333
                %v335 = vld [vmem:[%s203 + $0x408] sm:$0xff]
                %336 = vst [vmem:[%s204 + $0x208] sm:$0xff] %v335
                %v337 = vld [vmem:[%s203 + $0x410] sm:$0xff]
                %338 = vst [vmem:[%s204 + $0x210] sm:$0xff] %v337
                %v339 = vld [vmem:[%s203 + $0x418] sm:$0xff]
                %340 = vst [vmem:[%s204 + $0x218] sm:$0xff] %v339
                %v341 = vld [vmem:[%s203 + $0x440] sm:$0xff]
                %342 = vst [vmem:[%s204 + $0x220] sm:$0xff] %v341
                %v343 = vld [vmem:[%s203 + $0x448] sm:$0xff]
                %344 = vst [vmem:[%s204 + $0x228] sm:$0xff] %v343
                %v345 = vld [vmem:[%s203 + $0x450] sm:$0xff]
                %346 = vst [vmem:[%s204 + $0x230] sm:$0xff] %v345
                %v347 = vld [vmem:[%s203 + $0x458] sm:$0xff]
                %348 = vst [vmem:[%s204 + $0x238] sm:$0xff] %v347
                %v349 = vld [vmem:[%s203 + $0x480] sm:$0xff]
                %350 = vst [vmem:[%s204 + $0x240] sm:$0xff] %v349
                %v351 = vld [vmem:[%s203 + $0x488] sm:$0xff]
                %352 = vst [vmem:[%s204 + $0x248] sm:$0xff] %v351
                %v353 = vld [vmem:[%s203 + $0x490] sm:$0xff]
                %354 = vst [vmem:[%s204 + $0x250] sm:$0xff] %v353
                %v355 = vld [vmem:[%s203 + $0x498] sm:$0xff]
                %356 = vst [vmem:[%s204 + $0x258] sm:$0xff] %v355
                %v357 = vld [vmem:[%s203 + $0x4c0] sm:$0xff]
                %358 = vst [vmem:[%s204 + $0x260] sm:$0xff] %v357
                %v359 = vld [vmem:[%s203 + $0x4c8] sm:$0xff]
                %360 = vst [vmem:[%s204 + $0x268] sm:$0xff] %v359
                %v361 = vld [vmem:[%s203 + $0x4d0] sm:$0xff]
                %362 = vst [vmem:[%s204 + $0x270] sm:$0xff] %v361
                %v363 = vld [vmem:[%s203 + $0x4d8] sm:$0xff]
                %364 = vst [vmem:[%s204 + $0x278] sm:$0xff] %v363
                %v365 = vld [vmem:[%s203 + $0x500] sm:$0xff]
                %366 = vst [vmem:[%s204 + $0x280] sm:$0xff] %v365
                %v367 = vld [vmem:[%s203 + $0x508] sm:$0xff]
                %368 = vst [vmem:[%s204 + $0x288] sm:$0xff] %v367
                %v369 = vld [vmem:[%s203 + $0x510] sm:$0xff]
                %370 = vst [vmem:[%s204 + $0x290] sm:$0xff] %v369
                %v371 = vld [vmem:[%s203 + $0x518] sm:$0xff]
                %372 = vst [vmem:[%s204 + $0x298] sm:$0xff] %v371
                %v373 = vld [vmem:[%s203 + $0x540] sm:$0xff]
                %374 = vst [vmem:[%s204 + $0x2a0] sm:$0xff] %v373
                %v375 = vld [vmem:[%s203 + $0x548] sm:$0xff]
                %376 = vst [vmem:[%s204 + $0x2a8] sm:$0xff] %v375
                %v377 = vld [vmem:[%s203 + $0x550] sm:$0xff]
                %378 = vst [vmem:[%s204 + $0x2b0] sm:$0xff] %v377
                %v379 = vld [vmem:[%s203 + $0x558] sm:$0xff]
                %380 = vst [vmem:[%s204 + $0x2b8] sm:$0xff] %v379
                %v381 = vld [vmem:[%s203 + $0x580] sm:$0xff]
                %382 = vst [vmem:[%s204 + $0x2c0] sm:$0xff] %v381
                %v383 = vld [vmem:[%s203 + $0x588] sm:$0xff]
                %384 = vst [vmem:[%s204 + $0x2c8] sm:$0xff] %v383
                %v385 = vld [vmem:[%s203 + $0x590] sm:$0xff]
                %386 = vst [vmem:[%s204 + $0x2d0] sm:$0xff] %v385
                %v387 = vld [vmem:[%s203 + $0x598] sm:$0xff]
                %388 = vst [vmem:[%s204 + $0x2d8] sm:$0xff] %v387
                %v389 = vld [vmem:[%s203 + $0x5c0] sm:$0xff]
                %390 = vst [vmem:[%s204 + $0x2e0] sm:$0xff] %v389
                %v391 = vld [vmem:[%s203 + $0x5c8] sm:$0xff]
                %392 = vst [vmem:[%s204 + $0x2e8] sm:$0xff] %v391
                %v393 = vld [vmem:[%s203 + $0x5d0] sm:$0xff]
                %394 = vst [vmem:[%s204 + $0x2f0] sm:$0xff] %v393
                %v395 = vld [vmem:[%s203 + $0x5d8] sm:$0xff]
                %396 = vst [vmem:[%s204 + $0x2f8] sm:$0xff] %v395
                %v397 = vld [vmem:[%s203 + $0x600] sm:$0xff]
                %398 = vst [vmem:[%s204 + $0x300] sm:$0xff] %v397
                %v399 = vld [vmem:[%s203 + $0x608] sm:$0xff]
                %400 = vst [vmem:[%s204 + $0x308] sm:$0xff] %v399
                %v401 = vld [vmem:[%s203 + $0x610] sm:$0xff]
                %402 = vst [vmem:[%s204 + $0x310] sm:$0xff] %v401
                %v403 = vld [vmem:[%s203 + $0x618] sm:$0xff]
                %404 = vst [vmem:[%s204 + $0x318] sm:$0xff] %v403
                %v405 = vld [vmem:[%s203 + $0x640] sm:$0xff]
                %406 = vst [vmem:[%s204 + $0x320] sm:$0xff] %v405
                %v407 = vld [vmem:[%s203 + $0x648] sm:$0xff]
                %408 = vst [vmem:[%s204 + $0x328] sm:$0xff] %v407
                %v409 = vld [vmem:[%s203 + $0x650] sm:$0xff]
                %410 = vst [vmem:[%s204 + $0x330] sm:$0xff] %v409
                %v411 = vld [vmem:[%s203 + $0x658] sm:$0xff]
                %412 = vst [vmem:[%s204 + $0x338] sm:$0xff] %v411
                %v413 = vld [vmem:[%s203 + $0x680] sm:$0xff]
                %414 = vst [vmem:[%s204 + $0x340] sm:$0xff] %v413
                %v415 = vld [vmem:[%s203 + $0x688] sm:$0xff]
                %416 = vst [vmem:[%s204 + $0x348] sm:$0xff] %v415
                %v417 = vld [vmem:[%s203 + $0x690] sm:$0xff]
                %418 = vst [vmem:[%s204 + $0x350] sm:$0xff] %v417
                %v419 = vld [vmem:[%s203 + $0x698] sm:$0xff]
                %420 = vst [vmem:[%s204 + $0x358] sm:$0xff] %v419
                %v421 = vld [vmem:[%s203 + $0x6c0] sm:$0xff]
                %422 = vst [vmem:[%s204 + $0x360] sm:$0xff] %v421
                %v423 = vld [vmem:[%s203 + $0x6c8] sm:$0xff]
                %424 = vst [vmem:[%s204 + $0x368] sm:$0xff] %v423
                %v425 = vld [vmem:[%s203 + $0x6d0] sm:$0xff]
                %426 = vst [vmem:[%s204 + $0x370] sm:$0xff] %v425
                %v427 = vld [vmem:[%s203 + $0x6d8] sm:$0xff]
                %428 = vst [vmem:[%s204 + $0x378] sm:$0xff] %v427
                %v429 = vld [vmem:[%s203 + $0x700] sm:$0xff]
                %430 = vst [vmem:[%s204 + $0x380] sm:$0xff] %v429
                %v431 = vld [vmem:[%s203 + $0x708] sm:$0xff]
                %432 = vst [vmem:[%s204 + $0x388] sm:$0xff] %v431
                %v433 = vld [vmem:[%s203 + $0x710] sm:$0xff]
                %434 = vst [vmem:[%s204 + $0x390] sm:$0xff] %v433
                %v435 = vld [vmem:[%s203 + $0x718] sm:$0xff]
                %436 = vst [vmem:[%s204 + $0x398] sm:$0xff] %v435
                %v437 = vld [vmem:[%s203 + $0x740] sm:$0xff]
                %438 = vst [vmem:[%s204 + $0x3a0] sm:$0xff] %v437
                %v439 = vld [vmem:[%s203 + $0x748] sm:$0xff]
                %440 = vst [vmem:[%s204 + $0x3a8] sm:$0xff] %v439
                %v441 = vld [vmem:[%s203 + $0x750] sm:$0xff]
                %442 = vst [vmem:[%s204 + $0x3b0] sm:$0xff] %v441
                %v443 = vld [vmem:[%s203 + $0x758] sm:$0xff]
                %444 = vst [vmem:[%s204 + $0x3b8] sm:$0xff] %v443
                %v445 = vld [vmem:[%s203 + $0x780] sm:$0xff]
                %446 = vst [vmem:[%s204 + $0x3c0] sm:$0xff] %v445
                %v447 = vld [vmem:[%s203 + $0x788] sm:$0xff]
                %448 = vst [vmem:[%s204 + $0x3c8] sm:$0xff] %v447
                %v449 = vld [vmem:[%s203 + $0x790] sm:$0xff]
                %450 = vst [vmem:[%s204 + $0x3d0] sm:$0xff] %v449
                %v451 = vld [vmem:[%s203 + $0x798] sm:$0xff]
                %452 = vst [vmem:[%s204 + $0x3d8] sm:$0xff] %v451
                %v453 = vld [vmem:[%s203 + $0x7c0] sm:$0xff]
                %454 = vst [vmem:[%s204 + $0x3e0] sm:$0xff] %v453
                %v455 = vld [vmem:[%s203 + $0x7c8] sm:$0xff]
                %456 = vst [vmem:[%s204 + $0x3e8] sm:$0xff] %v455
                %v457 = vld [vmem:[%s203 + $0x7d0] sm:$0xff]
                %458 = vst [vmem:[%s204 + $0x3f0] sm:$0xff] %v457
                %v459 = vld [vmem:[%s203 + $0x7d8] sm:$0xff]
                %460 = vst [vmem:[%s204 + $0x3f8] sm:$0xff] %v459
              $region45: #{fused_forward.1} parent=39 // loop_footer
                %s202 = sadd.s32 1, %s198
              $region46: #{fused_forward.1} parent=39 // loop_footer_branch
                %197 = sbr.rel target = $region42
              $region47: #{fused_forward.1} parent=39 // loop_exit
                _
            $region40: #{fused_forward.1} parent=35 // pred_fallthru
              _
            // Predicated region
            $region48: #{fused_forward.1} parent=35 // pred_check
              _
            $region49: #{fused_forward.1} parent=35 // pred_check_branch
              %462 = sbr.rel target = $region51
            $region50: #{fused_forward.1} parent=35 // pred_region
              _
            $region51: #{fused_forward.1} parent=35 // pred_fallthru
              _
          $region36: #{fused_forward.1} parent=31 // pred_fallthru
            _
          %463 = vnop
        $region32: #{fused_forward.1} parent=15 // pred_fallthru
          _
      $region16: #{fused_forward.1} parent=5 // pred_fallthru
        _
      %p464 = scmp.le.s32.totalorder 1, %s10
      %p465 = scmp.lt.s32.totalorder %s10, 3
      %p466 = pnand %p464, %p465
      %p467 = pneg %p466
      // Predicated region
      $region52: #{fused_forward.1} parent=5 // pred_check
        _
      $region53: #{fused_forward.1} parent=5 // pred_check_branch
        %469 = sbr.rel (%p466) target = $region55
      $region54: #{fused_forward.1} parent=5 // pred_region
        %s470 = ssub.s32 %s10, 1
        %s471 = sand.u32 %s101, 1
        %s472 = sand.u32 %s101, 1
        %s473 = smul.addr %s472, 1024
        %s474 = scalar_lea.vmem [#allocation2], %s473
        // Predicated region
        $region56: #{fused_forward.1} parent=54 // pred_check
          %p475 = pneg %p114
        $region57: #{fused_forward.1} parent=54 // pred_check_branch
          %477 = sbr.rel (%p475) target = $region59
        $region58: #{fused_forward.1} parent=54 // pred_region
          _
        $region59: #{fused_forward.1} parent=54 // pred_fallthru
          _
        %s478 = smul.u32 64, %s15
        %p479 = scmp.lt.s32.totalorder %s478, 127
        %s480 = scalar_select %p479, %s478, 127
        %s481 = smul.addr %s480, 7
        %s482 = smul.addr %s481, 8
        %s483 = scalar_lea.vmem %s0, %s482
        %p484 = pneg %p36
        %p485 = pneg %p33
        %s486 = smul.u32 64, %s15
        %p487 = scmp.lt.s32.totalorder %s486, 127
        %s488 = scalar_select %p487, %s486, 127
        %s489 = smul.addr %s488, 7
        %s490 = smul.addr %s489, 8
        %s491 = scalar_lea.vmem %s1, %s490
        %p492 = pneg %p62
        %p493 = pneg %p59
        %s494 = smul.u32 64, %s15
        %p495 = scmp.lt.s32.totalorder %s494, 127
        %s496 = scalar_select %p495, %s494, 127
        %s497 = smul.addr %s496, 8
        %s498 = scalar_lea.vmem %s2, %s497
        %p499 = pneg %p88
        %p500 = pneg %p85
        %s501 = sand.u32 %s101, 1
        %s502 = sand.u32 %s101, 1
        %s503 = smul.addr %s502, 1024
        %s504 = scalar_lea.vmem [#allocation2], %s503
        %p505 = pneg %p114
        %p506 = pneg %p111
        %p507 = pneg %p135
        %p508 = pneg %p132
        %s509 = smul.u32 64, %s15
        %p510 = scmp.lt.s32.totalorder %s509, 127
        %s511 = scalar_select %p510, %s509, 127
        %s512 = smul.addr %s511, 7
        %s513 = smul.addr %s512, 8
        %s514 = scalar_lea.vmem %s0, %s513
        %s515 = smul.u32 64, %s15
        %s516 = smul.u32 64, %s15
        %p517 = scmp.lt.s32.totalorder %s516, 127
        %s518 = scalar_select %p517, %s516, 127
        %s519 = smul.addr %s518, 7
        %s520 = smul.addr %s519, 8
        %s521 = scalar_lea.vmem %s1, %s520
        %s522 = smul.u32 64, %s15
        %s523 = smul.u32 64, %s15
        %p524 = scmp.lt.s32.totalorder %s523, 127
        %s525 = scalar_select %p524, %s523, 127
        %s526 = smul.addr %s525, 8
        %s527 = scalar_lea.vmem %s2, %s526
        %s528 = smul.u32 64, %s15
        %s529 = smul.u32 4, %s15
        %v531 = vld [vmem:[%s514] sm:$0xff]
        %v532 = vld [vmem:[%s514 + $0x8] sm:$0xff]
        %v533 = vld [vmem:[%s514 + $0x10] sm:$0xff]
        %v534 = vld [vmem:[%s514 + $0x18] sm:$0xff]
        %v535 = vld [vmem:[%s514 + $0x20] sm:$0xff]
        %v536 = vld [vmem:[%s514 + $0x28] sm:$0xff]
        %v537 = vld [vmem:[%s514 + $0x30] sm:$0xff]
        %v538 = vld [vmem:[%s514 + $0x38] sm:$0xff]
        %v539 = vld [vmem:[%s514 + $0x40] sm:$0xff]
        %v540 = vld [vmem:[%s514 + $0x48] sm:$0xff]
        %v541 = vld [vmem:[%s514 + $0x50] sm:$0xff]
        %v542 = vld [vmem:[%s514 + $0x58] sm:$0xff]
        %v543 = vld [vmem:[%s514 + $0x60] sm:$0xff]
        %v544 = vld [vmem:[%s514 + $0x68] sm:$0xff]
        %v545 = vld [vmem:[%s514 + $0x70] sm:$0xff]
        %v546 = vld [vmem:[%s514 + $0x78] sm:$0xff]
        %v547 = vld [vmem:[%s514 + $0x80] sm:$0xff]
        %v548 = vld [vmem:[%s514 + $0x88] sm:$0xff]
        %v549 = vld [vmem:[%s514 + $0x90] sm:$0xff]
        %v550 = vld [vmem:[%s514 + $0x98] sm:$0xff]
        %v551 = vld [vmem:[%s514 + $0xa0] sm:$0xff]
        %v552 = vld [vmem:[%s514 + $0xa8] sm:$0xff]
        %v553 = vld [vmem:[%s514 + $0xb0] sm:$0xff]
        %v554 = vld [vmem:[%s514 + $0xb8] sm:$0xff]
        %v555 = vld [vmem:[%s514 + $0xc0] sm:$0xff]
        %v556 = vld [vmem:[%s514 + $0xc8] sm:$0xff]
        %v557 = vld [vmem:[%s514 + $0xd0] sm:$0xff]
        %v558 = vld [vmem:[%s514 + $0xd8] sm:$0xff]
        %v559 = vld [vmem:[%s514 + $0xe0] sm:$0xff]
        %v560 = vld [vmem:[%s514 + $0xe8] sm:$0xff]
        %v561 = vld [vmem:[%s514 + $0xf0] sm:$0xff]
        %v562 = vld [vmem:[%s514 + $0xf8] sm:$0xff]
        %v563 = vld [vmem:[%s514 + $0x100] sm:$0xff]
        %v564 = vld [vmem:[%s514 + $0x108] sm:$0xff]
        %v565 = vld [vmem:[%s514 + $0x110] sm:$0xff]
        %v566 = vld [vmem:[%s514 + $0x118] sm:$0xff]
        %v567 = vld [vmem:[%s514 + $0x120] sm:$0xff]
        %v568 = vld [vmem:[%s514 + $0x128] sm:$0xff]
        %v569 = vld [vmem:[%s514 + $0x130] sm:$0xff]
        %v570 = vld [vmem:[%s514 + $0x138] sm:$0xff]
        %v571 = vld [vmem:[%s514 + $0x140] sm:$0xff]
        %v572 = vld [vmem:[%s514 + $0x148] sm:$0xff]
        %v573 = vld [vmem:[%s514 + $0x150] sm:$0xff]
        %v574 = vld [vmem:[%s514 + $0x158] sm:$0xff]
        %v575 = vld [vmem:[%s514 + $0x160] sm:$0xff]
        %v576 = vld [vmem:[%s514 + $0x168] sm:$0xff]
        %v577 = vld [vmem:[%s514 + $0x170] sm:$0xff]
        %v578 = vld [vmem:[%s514 + $0x178] sm:$0xff]
        %v579 = vld [vmem:[%s514 + $0x180] sm:$0xff]
        %v580 = vld [vmem:[%s514 + $0x188] sm:$0xff]
        %v581 = vld [vmem:[%s514 + $0x190] sm:$0xff]
        %v582 = vld [vmem:[%s514 + $0x198] sm:$0xff]
        %v583 = vld [vmem:[%s514 + $0x1a0] sm:$0xff]
        %v584 = vld [vmem:[%s514 + $0x1a8] sm:$0xff]
        %v585 = vld [vmem:[%s514 + $0x1b0] sm:$0xff]
        %v586 = vld [vmem:[%s514 + $0x1b8] sm:$0xff]
        %v587 = vld [vmem:[%s514 + $0x1c0] sm:$0xff]
        %v588 = vld [vmem:[%s514 + $0x1c8] sm:$0xff]
        %v589 = vld [vmem:[%s514 + $0x1d0] sm:$0xff]
        %v590 = vld [vmem:[%s514 + $0x1d8] sm:$0xff]
        %v591 = vld [vmem:[%s514 + $0x1e0] sm:$0xff]
        %v592 = vld [vmem:[%s514 + $0x1e8] sm:$0xff]
        %v593 = vld [vmem:[%s514 + $0x1f0] sm:$0xff]
        %v594 = vld [vmem:[%s514 + $0x1f8] sm:$0xff]
        %v595 = vld [vmem:[%s514 + $0x200] sm:$0xff]
        %v596 = vld [vmem:[%s514 + $0x208] sm:$0xff]
        %v597 = vld [vmem:[%s514 + $0x210] sm:$0xff]
        %v598 = vld [vmem:[%s514 + $0x218] sm:$0xff]
        %v599 = vld [vmem:[%s514 + $0x220] sm:$0xff]
        %v600 = vld [vmem:[%s514 + $0x228] sm:$0xff]
        %v601 = vld [vmem:[%s514 + $0x230] sm:$0xff]
        %v602 = vld [vmem:[%s514 + $0x238] sm:$0xff]
        %v603 = vld [vmem:[%s514 + $0x240] sm:$0xff]
        %v604 = vld [vmem:[%s514 + $0x248] sm:$0xff]
        %v605 = vld [vmem:[%s514 + $0x250] sm:$0xff]
        %v606 = vld [vmem:[%s514 + $0x258] sm:$0xff]
        %v607 = vld [vmem:[%s514 + $0x260] sm:$0xff]
        %v608 = vld [vmem:[%s514 + $0x268] sm:$0xff]
        %v609 = vld [vmem:[%s514 + $0x270] sm:$0xff]
        %v610 = vld [vmem:[%s514 + $0x278] sm:$0xff]
        %v611 = vld [vmem:[%s514 + $0x280] sm:$0xff]
        %v612 = vld [vmem:[%s514 + $0x288] sm:$0xff]
        %v613 = vld [vmem:[%s514 + $0x290] sm:$0xff]
        %v614 = vld [vmem:[%s514 + $0x298] sm:$0xff]
        %v615 = vld [vmem:[%s514 + $0x2a0] sm:$0xff]
        %v616 = vld [vmem:[%s514 + $0x2a8] sm:$0xff]
        %v617 = vld [vmem:[%s514 + $0x2b0] sm:$0xff]
        %v618 = vld [vmem:[%s514 + $0x2b8] sm:$0xff]
        %v619 = vld [vmem:[%s514 + $0x2c0] sm:$0xff]
        %v620 = vld [vmem:[%s514 + $0x2c8] sm:$0xff]
        %v621 = vld [vmem:[%s514 + $0x2d0] sm:$0xff]
        %v622 = vld [vmem:[%s514 + $0x2d8] sm:$0xff]
        %v623 = vld [vmem:[%s514 + $0x2e0] sm:$0xff]
        %v624 = vld [vmem:[%s514 + $0x2e8] sm:$0xff]
        %v625 = vld [vmem:[%s514 + $0x2f0] sm:$0xff]
        %v626 = vld [vmem:[%s514 + $0x2f8] sm:$0xff]
        %v627 = vld [vmem:[%s514 + $0x300] sm:$0xff]
        %v628 = vld [vmem:[%s514 + $0x308] sm:$0xff]
        %v629 = vld [vmem:[%s514 + $0x310] sm:$0xff]
        %v630 = vld [vmem:[%s514 + $0x318] sm:$0xff]
        %v631 = vld [vmem:[%s514 + $0x320] sm:$0xff]
        %v632 = vld [vmem:[%s514 + $0x328] sm:$0xff]
        %v633 = vld [vmem:[%s514 + $0x330] sm:$0xff]
        %v634 = vld [vmem:[%s514 + $0x338] sm:$0xff]
        %v635 = vld [vmem:[%s514 + $0x340] sm:$0xff]
        %v636 = vld [vmem:[%s514 + $0x348] sm:$0xff]
        %v637 = vld [vmem:[%s514 + $0x350] sm:$0xff]
        %v638 = vld [vmem:[%s514 + $0x358] sm:$0xff]
        %v639 = vld [vmem:[%s514 + $0x360] sm:$0xff]
        %v640 = vld [vmem:[%s514 + $0x368] sm:$0xff]
        %v641 = vld [vmem:[%s514 + $0x370] sm:$0xff]
        %v642 = vld [vmem:[%s514 + $0x378] sm:$0xff]
        %v643 = vld [vmem:[%s514 + $0x380] sm:$0xff]
        %v644 = vld [vmem:[%s514 + $0x388] sm:$0xff]
        %v645 = vld [vmem:[%s514 + $0x390] sm:$0xff]
        %v646 = vld [vmem:[%s514 + $0x398] sm:$0xff]
        %v647 = vld [vmem:[%s514 + $0x3a0] sm:$0xff]
        %v648 = vld [vmem:[%s514 + $0x3a8] sm:$0xff]
        %v649 = vld [vmem:[%s514 + $0x3b0] sm:$0xff]
        %v650 = vld [vmem:[%s514 + $0x3b8] sm:$0xff]
        %v651 = vld [vmem:[%s514 + $0x3c0] sm:$0xff]
        %v652 = vld [vmem:[%s514 + $0x3c8] sm:$0xff]
        %v653 = vld [vmem:[%s514 + $0x3d0] sm:$0xff]
        %v654 = vld [vmem:[%s514 + $0x3d8] sm:$0xff]
        %v655 = vld [vmem:[%s514 + $0x3e0] sm:$0xff]
        %v656 = vld [vmem:[%s514 + $0x3e8] sm:$0xff]
        %v657 = vld [vmem:[%s514 + $0x3f0] sm:$0xff]
        %v658 = vld [vmem:[%s514 + $0x3f8] sm:$0xff]
        %v659 = vld [vmem:[%s514 + $0x400] sm:$0xff]
        %v660 = vld [vmem:[%s514 + $0x408] sm:$0xff]
        %v661 = vld [vmem:[%s514 + $0x410] sm:$0xff]
        %v662 = vld [vmem:[%s514 + $0x418] sm:$0xff]
        %v663 = vld [vmem:[%s514 + $0x420] sm:$0xff]
        %v664 = vld [vmem:[%s514 + $0x428] sm:$0xff]
        %v665 = vld [vmem:[%s514 + $0x430] sm:$0xff]
        %v666 = vld [vmem:[%s514 + $0x438] sm:$0xff]
        %v667 = vld [vmem:[%s514 + $0x440] sm:$0xff]
        %v668 = vld [vmem:[%s514 + $0x448] sm:$0xff]
        %v669 = vld [vmem:[%s514 + $0x450] sm:$0xff]
        %v670 = vld [vmem:[%s514 + $0x458] sm:$0xff]
        %v671 = vld [vmem:[%s514 + $0x460] sm:$0xff]
        %v672 = vld [vmem:[%s514 + $0x468] sm:$0xff]
        %v673 = vld [vmem:[%s514 + $0x470] sm:$0xff]
        %v674 = vld [vmem:[%s514 + $0x478] sm:$0xff]
        %v675 = vld [vmem:[%s514 + $0x480] sm:$0xff]
        %v676 = vld [vmem:[%s514 + $0x488] sm:$0xff]
        %v677 = vld [vmem:[%s514 + $0x490] sm:$0xff]
        %v678 = vld [vmem:[%s514 + $0x498] sm:$0xff]
        %v679 = vld [vmem:[%s514 + $0x4a0] sm:$0xff]
        %v680 = vld [vmem:[%s514 + $0x4a8] sm:$0xff]
        %v681 = vld [vmem:[%s514 + $0x4b0] sm:$0xff]
        %v682 = vld [vmem:[%s514 + $0x4b8] sm:$0xff]
        %v683 = vld [vmem:[%s514 + $0x4c0] sm:$0xff]
        %v684 = vld [vmem:[%s514 + $0x4c8] sm:$0xff]
        %v685 = vld [vmem:[%s514 + $0x4d0] sm:$0xff]
        %v686 = vld [vmem:[%s514 + $0x4d8] sm:$0xff]
        %v687 = vld [vmem:[%s514 + $0x4e0] sm:$0xff]
        %v688 = vld [vmem:[%s514 + $0x4e8] sm:$0xff]
        %v689 = vld [vmem:[%s514 + $0x4f0] sm:$0xff]
        %v690 = vld [vmem:[%s514 + $0x4f8] sm:$0xff]
        %v691 = vld [vmem:[%s514 + $0x500] sm:$0xff]
        %v692 = vld [vmem:[%s514 + $0x508] sm:$0xff]
        %v693 = vld [vmem:[%s514 + $0x510] sm:$0xff]
        %v694 = vld [vmem:[%s514 + $0x518] sm:$0xff]
        %v695 = vld [vmem:[%s514 + $0x520] sm:$0xff]
        %v696 = vld [vmem:[%s514 + $0x528] sm:$0xff]
        %v697 = vld [vmem:[%s514 + $0x530] sm:$0xff]
        %v698 = vld [vmem:[%s514 + $0x538] sm:$0xff]
        %v699 = vld [vmem:[%s514 + $0x540] sm:$0xff]
        %v700 = vld [vmem:[%s514 + $0x548] sm:$0xff]
        %v701 = vld [vmem:[%s514 + $0x550] sm:$0xff]
        %v702 = vld [vmem:[%s514 + $0x558] sm:$0xff]
        %v703 = vld [vmem:[%s514 + $0x560] sm:$0xff]
        %v704 = vld [vmem:[%s514 + $0x568] sm:$0xff]
        %v705 = vld [vmem:[%s514 + $0x570] sm:$0xff]
        %v706 = vld [vmem:[%s514 + $0x578] sm:$0xff]
        %v707 = vld [vmem:[%s514 + $0x580] sm:$0xff]
        %v708 = vld [vmem:[%s514 + $0x588] sm:$0xff]
        %v709 = vld [vmem:[%s514 + $0x590] sm:$0xff]
        %v710 = vld [vmem:[%s514 + $0x598] sm:$0xff]
        %v711 = vld [vmem:[%s514 + $0x5a0] sm:$0xff]
        %v712 = vld [vmem:[%s514 + $0x5a8] sm:$0xff]
        %v713 = vld [vmem:[%s514 + $0x5b0] sm:$0xff]
        %v714 = vld [vmem:[%s514 + $0x5b8] sm:$0xff]
        %v715 = vld [vmem:[%s514 + $0x5c0] sm:$0xff]
        %v716 = vld [vmem:[%s514 + $0x5c8] sm:$0xff]
        %v717 = vld [vmem:[%s514 + $0x5d0] sm:$0xff]
        %v718 = vld [vmem:[%s514 + $0x5d8] sm:$0xff]
        %v719 = vld [vmem:[%s514 + $0x5e0] sm:$0xff]
        %v720 = vld [vmem:[%s514 + $0x5e8] sm:$0xff]
        %v721 = vld [vmem:[%s514 + $0x5f0] sm:$0xff]
        %v722 = vld [vmem:[%s514 + $0x5f8] sm:$0xff]
        %v723 = vld [vmem:[%s514 + $0x600] sm:$0xff]
        %v724 = vld [vmem:[%s514 + $0x608] sm:$0xff]
        %v725 = vld [vmem:[%s514 + $0x610] sm:$0xff]
        %v726 = vld [vmem:[%s514 + $0x618] sm:$0xff]
        %v727 = vld [vmem:[%s514 + $0x620] sm:$0xff]
        %v728 = vld [vmem:[%s514 + $0x628] sm:$0xff]
        %v729 = vld [vmem:[%s514 + $0x630] sm:$0xff]
        %v730 = vld [vmem:[%s514 + $0x638] sm:$0xff]
        %v731 = vld [vmem:[%s514 + $0x640] sm:$0xff]
        %v732 = vld [vmem:[%s514 + $0x648] sm:$0xff]
        %v733 = vld [vmem:[%s514 + $0x650] sm:$0xff]
        %v734 = vld [vmem:[%s514 + $0x658] sm:$0xff]
        %v735 = vld [vmem:[%s514 + $0x660] sm:$0xff]
        %v736 = vld [vmem:[%s514 + $0x668] sm:$0xff]
        %v737 = vld [vmem:[%s514 + $0x670] sm:$0xff]
        %v738 = vld [vmem:[%s514 + $0x678] sm:$0xff]
        %v739 = vld [vmem:[%s514 + $0x680] sm:$0xff]
        %v740 = vld [vmem:[%s514 + $0x688] sm:$0xff]
        %v741 = vld [vmem:[%s514 + $0x690] sm:$0xff]
        %v742 = vld [vmem:[%s514 + $0x698] sm:$0xff]
        %v743 = vld [vmem:[%s514 + $0x6a0] sm:$0xff]
        %v744 = vld [vmem:[%s514 + $0x6a8] sm:$0xff]
        %v745 = vld [vmem:[%s514 + $0x6b0] sm:$0xff]
        %v746 = vld [vmem:[%s514 + $0x6b8] sm:$0xff]
        %v747 = vld [vmem:[%s514 + $0x6c0] sm:$0xff]
        %v748 = vld [vmem:[%s514 + $0x6c8] sm:$0xff]
        %v749 = vld [vmem:[%s514 + $0x6d0] sm:$0xff]
        %v750 = vld [vmem:[%s514 + $0x6d8] sm:$0xff]
        %v751 = vld [vmem:[%s514 + $0x6e0] sm:$0xff]
        %v752 = vld [vmem:[%s514 + $0x6e8] sm:$0xff]
        %v753 = vld [vmem:[%s514 + $0x6f0] sm:$0xff]
        %v754 = vld [vmem:[%s514 + $0x6f8] sm:$0xff]
        %v755 = vld [vmem:[%s514 + $0x700] sm:$0xff]
        %v756 = vld [vmem:[%s514 + $0x708] sm:$0xff]
        %v757 = vld [vmem:[%s514 + $0x710] sm:$0xff]
        %v758 = vld [vmem:[%s514 + $0x718] sm:$0xff]
        %v759 = vld [vmem:[%s514 + $0x720] sm:$0xff]
        %v760 = vld [vmem:[%s514 + $0x728] sm:$0xff]
        %v761 = vld [vmem:[%s514 + $0x730] sm:$0xff]
        %v762 = vld [vmem:[%s514 + $0x738] sm:$0xff]
        %v763 = vld [vmem:[%s514 + $0x740] sm:$0xff]
        %v764 = vld [vmem:[%s514 + $0x748] sm:$0xff]
        %v765 = vld [vmem:[%s514 + $0x750] sm:$0xff]
        %v766 = vld [vmem:[%s514 + $0x758] sm:$0xff]
        %v767 = vld [vmem:[%s514 + $0x760] sm:$0xff]
        %v768 = vld [vmem:[%s514 + $0x768] sm:$0xff]
        %v769 = vld [vmem:[%s514 + $0x770] sm:$0xff]
        %v770 = vld [vmem:[%s514 + $0x778] sm:$0xff]
        %v771 = vld [vmem:[%s514 + $0x780] sm:$0xff]
        %v772 = vld [vmem:[%s514 + $0x788] sm:$0xff]
        %v773 = vld [vmem:[%s514 + $0x790] sm:$0xff]
        %v774 = vld [vmem:[%s514 + $0x798] sm:$0xff]
        %v775 = vld [vmem:[%s514 + $0x7a0] sm:$0xff]
        %v776 = vld [vmem:[%s514 + $0x7a8] sm:$0xff]
        %v777 = vld [vmem:[%s514 + $0x7b0] sm:$0xff]
        %v778 = vld [vmem:[%s514 + $0x7b8] sm:$0xff]
        %v779 = vld [vmem:[%s514 + $0x7c0] sm:$0xff]
        %v780 = vld [vmem:[%s514 + $0x7c8] sm:$0xff]
        %v781 = vld [vmem:[%s514 + $0x7d0] sm:$0xff]
        %v782 = vld [vmem:[%s514 + $0x7d8] sm:$0xff]
        %v783 = vld [vmem:[%s514 + $0x7e0] sm:$0xff]
        %v784 = vld [vmem:[%s514 + $0x7e8] sm:$0xff]
        %v785 = vld [vmem:[%s514 + $0x7f0] sm:$0xff]
        %v786 = vld [vmem:[%s514 + $0x7f8] sm:$0xff]
        %v787 = vld [vmem:[%s514 + $0x800] sm:$0xff]
        %v788 = vld [vmem:[%s514 + $0x808] sm:$0xff]
        %v789 = vld [vmem:[%s514 + $0x810] sm:$0xff]
        %v790 = vld [vmem:[%s514 + $0x818] sm:$0xff]
        %v791 = vld [vmem:[%s514 + $0x820] sm:$0xff]
        %v792 = vld [vmem:[%s514 + $0x828] sm:$0xff]
        %v793 = vld [vmem:[%s514 + $0x830] sm:$0xff]
        %v794 = vld [vmem:[%s514 + $0x838] sm:$0xff]
        %v795 = vld [vmem:[%s514 + $0x840] sm:$0xff]
        %v796 = vld [vmem:[%s514 + $0x848] sm:$0xff]
        %v797 = vld [vmem:[%s514 + $0x850] sm:$0xff]
        %v798 = vld [vmem:[%s514 + $0x858] sm:$0xff]
        %v799 = vld [vmem:[%s514 + $0x860] sm:$0xff]
        %v800 = vld [vmem:[%s514 + $0x868] sm:$0xff]
        %v801 = vld [vmem:[%s514 + $0x870] sm:$0xff]
        %v802 = vld [vmem:[%s514 + $0x878] sm:$0xff]
        %v803 = vld [vmem:[%s514 + $0x880] sm:$0xff]
        %v804 = vld [vmem:[%s514 + $0x888] sm:$0xff]
        %v805 = vld [vmem:[%s514 + $0x890] sm:$0xff]
        %v806 = vld [vmem:[%s514 + $0x898] sm:$0xff]
        %v807 = vld [vmem:[%s514 + $0x8a0] sm:$0xff]
        %v808 = vld [vmem:[%s514 + $0x8a8] sm:$0xff]
        %v809 = vld [vmem:[%s514 + $0x8b0] sm:$0xff]
        %v810 = vld [vmem:[%s514 + $0x8b8] sm:$0xff]
        %v811 = vld [vmem:[%s514 + $0x8c0] sm:$0xff]
        %v812 = vld [vmem:[%s514 + $0x8c8] sm:$0xff]
        %v813 = vld [vmem:[%s514 + $0x8d0] sm:$0xff]
        %v814 = vld [vmem:[%s514 + $0x8d8] sm:$0xff]
        %v815 = vld [vmem:[%s514 + $0x8e0] sm:$0xff]
        %v816 = vld [vmem:[%s514 + $0x8e8] sm:$0xff]
        %v817 = vld [vmem:[%s514 + $0x8f0] sm:$0xff]
        %v818 = vld [vmem:[%s514 + $0x8f8] sm:$0xff]
        %v819 = vld [vmem:[%s514 + $0x900] sm:$0xff]
        %v820 = vld [vmem:[%s514 + $0x908] sm:$0xff]
        %v821 = vld [vmem:[%s514 + $0x910] sm:$0xff]
        %v822 = vld [vmem:[%s514 + $0x918] sm:$0xff]
        %v823 = vld [vmem:[%s514 + $0x920] sm:$0xff]
        %v824 = vld [vmem:[%s514 + $0x928] sm:$0xff]
        %v825 = vld [vmem:[%s514 + $0x930] sm:$0xff]
        %v826 = vld [vmem:[%s514 + $0x938] sm:$0xff]
        %v827 = vld [vmem:[%s514 + $0x940] sm:$0xff]
        %v828 = vld [vmem:[%s514 + $0x948] sm:$0xff]
        %v829 = vld [vmem:[%s514 + $0x950] sm:$0xff]
        %v830 = vld [vmem:[%s514 + $0x958] sm:$0xff]
        %v831 = vld [vmem:[%s514 + $0x960] sm:$0xff]
        %v832 = vld [vmem:[%s514 + $0x968] sm:$0xff]
        %v833 = vld [vmem:[%s514 + $0x970] sm:$0xff]
        %v834 = vld [vmem:[%s514 + $0x978] sm:$0xff]
        %v835 = vld [vmem:[%s514 + $0x980] sm:$0xff]
        %v836 = vld [vmem:[%s514 + $0x988] sm:$0xff]
        %v837 = vld [vmem:[%s514 + $0x990] sm:$0xff]
        %v838 = vld [vmem:[%s514 + $0x998] sm:$0xff]
        %v839 = vld [vmem:[%s514 + $0x9a0] sm:$0xff]
        %v840 = vld [vmem:[%s514 + $0x9a8] sm:$0xff]
        %v841 = vld [vmem:[%s514 + $0x9b0] sm:$0xff]
        %v842 = vld [vmem:[%s514 + $0x9b8] sm:$0xff]
        %v843 = vld [vmem:[%s514 + $0x9c0] sm:$0xff]
        %v844 = vld [vmem:[%s514 + $0x9c8] sm:$0xff]
        %v845 = vld [vmem:[%s514 + $0x9d0] sm:$0xff]
        %v846 = vld [vmem:[%s514 + $0x9d8] sm:$0xff]
        %v847 = vld [vmem:[%s514 + $0x9e0] sm:$0xff]
        %v848 = vld [vmem:[%s514 + $0x9e8] sm:$0xff]
        %v849 = vld [vmem:[%s514 + $0x9f0] sm:$0xff]
        %v850 = vld [vmem:[%s514 + $0x9f8] sm:$0xff]
        %v851 = vld [vmem:[%s514 + $0xa00] sm:$0xff]
        %v852 = vld [vmem:[%s514 + $0xa08] sm:$0xff]
        %v853 = vld [vmem:[%s514 + $0xa10] sm:$0xff]
        %v854 = vld [vmem:[%s514 + $0xa18] sm:$0xff]
        %v855 = vld [vmem:[%s514 + $0xa20] sm:$0xff]
        %v856 = vld [vmem:[%s514 + $0xa28] sm:$0xff]
        %v857 = vld [vmem:[%s514 + $0xa30] sm:$0xff]
        %v858 = vld [vmem:[%s514 + $0xa38] sm:$0xff]
        %v859 = vld [vmem:[%s514 + $0xa40] sm:$0xff]
        %v860 = vld [vmem:[%s514 + $0xa48] sm:$0xff]
        %v861 = vld [vmem:[%s514 + $0xa50] sm:$0xff]
        %v862 = vld [vmem:[%s514 + $0xa58] sm:$0xff]
        %v863 = vld [vmem:[%s514 + $0xa60] sm:$0xff]
        %v864 = vld [vmem:[%s514 + $0xa68] sm:$0xff]
        %v865 = vld [vmem:[%s514 + $0xa70] sm:$0xff]
        %v866 = vld [vmem:[%s514 + $0xa78] sm:$0xff]
        %v867 = vld [vmem:[%s514 + $0xa80] sm:$0xff]
        %v868 = vld [vmem:[%s514 + $0xa88] sm:$0xff]
        %v869 = vld [vmem:[%s514 + $0xa90] sm:$0xff]
        %v870 = vld [vmem:[%s514 + $0xa98] sm:$0xff]
        %v871 = vld [vmem:[%s514 + $0xaa0] sm:$0xff]
        %v872 = vld [vmem:[%s514 + $0xaa8] sm:$0xff]
        %v873 = vld [vmem:[%s514 + $0xab0] sm:$0xff]
        %v874 = vld [vmem:[%s514 + $0xab8] sm:$0xff]
        %v875 = vld [vmem:[%s514 + $0xac0] sm:$0xff]
        %v876 = vld [vmem:[%s514 + $0xac8] sm:$0xff]
        %v877 = vld [vmem:[%s514 + $0xad0] sm:$0xff]
        %v878 = vld [vmem:[%s514 + $0xad8] sm:$0xff]
        %v879 = vld [vmem:[%s514 + $0xae0] sm:$0xff]
        %v880 = vld [vmem:[%s514 + $0xae8] sm:$0xff]
        %v881 = vld [vmem:[%s514 + $0xaf0] sm:$0xff]
        %v882 = vld [vmem:[%s514 + $0xaf8] sm:$0xff]
        %v883 = vld [vmem:[%s514 + $0xb00] sm:$0xff]
        %v884 = vld [vmem:[%s514 + $0xb08] sm:$0xff]
        %v885 = vld [vmem:[%s514 + $0xb10] sm:$0xff]
        %v886 = vld [vmem:[%s514 + $0xb18] sm:$0xff]
        %v887 = vld [vmem:[%s514 + $0xb20] sm:$0xff]
        %v888 = vld [vmem:[%s514 + $0xb28] sm:$0xff]
        %v889 = vld [vmem:[%s514 + $0xb30] sm:$0xff]
        %v890 = vld [vmem:[%s514 + $0xb38] sm:$0xff]
        %v891 = vld [vmem:[%s514 + $0xb40] sm:$0xff]
        %v892 = vld [vmem:[%s514 + $0xb48] sm:$0xff]
        %v893 = vld [vmem:[%s514 + $0xb50] sm:$0xff]
        %v894 = vld [vmem:[%s514 + $0xb58] sm:$0xff]
        %v895 = vld [vmem:[%s514 + $0xb60] sm:$0xff]
        %v896 = vld [vmem:[%s514 + $0xb68] sm:$0xff]
        %v897 = vld [vmem:[%s514 + $0xb70] sm:$0xff]
        %v898 = vld [vmem:[%s514 + $0xb78] sm:$0xff]
        %v899 = vld [vmem:[%s514 + $0xb80] sm:$0xff]
        %v900 = vld [vmem:[%s514 + $0xb88] sm:$0xff]
        %v901 = vld [vmem:[%s514 + $0xb90] sm:$0xff]
        %v902 = vld [vmem:[%s514 + $0xb98] sm:$0xff]
        %v903 = vld [vmem:[%s514 + $0xba0] sm:$0xff]
        %v904 = vld [vmem:[%s514 + $0xba8] sm:$0xff]
        %v905 = vld [vmem:[%s514 + $0xbb0] sm:$0xff]
        %v906 = vld [vmem:[%s514 + $0xbb8] sm:$0xff]
        %v907 = vld [vmem:[%s514 + $0xbc0] sm:$0xff]
        %v908 = vld [vmem:[%s514 + $0xbc8] sm:$0xff]
        %v909 = vld [vmem:[%s514 + $0xbd0] sm:$0xff]
        %v910 = vld [vmem:[%s514 + $0xbd8] sm:$0xff]
        %v911 = vld [vmem:[%s514 + $0xbe0] sm:$0xff]
        %v912 = vld [vmem:[%s514 + $0xbe8] sm:$0xff]
        %v913 = vld [vmem:[%s514 + $0xbf0] sm:$0xff]
        %v914 = vld [vmem:[%s514 + $0xbf8] sm:$0xff]
        %v915 = vld [vmem:[%s514 + $0xc00] sm:$0xff]
        %v916 = vld [vmem:[%s514 + $0xc08] sm:$0xff]
        %v917 = vld [vmem:[%s514 + $0xc10] sm:$0xff]
        %v918 = vld [vmem:[%s514 + $0xc18] sm:$0xff]
        %v919 = vld [vmem:[%s514 + $0xc20] sm:$0xff]
        %v920 = vld [vmem:[%s514 + $0xc28] sm:$0xff]
        %v921 = vld [vmem:[%s514 + $0xc30] sm:$0xff]
        %v922 = vld [vmem:[%s514 + $0xc38] sm:$0xff]
        %v923 = vld [vmem:[%s514 + $0xc40] sm:$0xff]
        %v924 = vld [vmem:[%s514 + $0xc48] sm:$0xff]
        %v925 = vld [vmem:[%s514 + $0xc50] sm:$0xff]
        %v926 = vld [vmem:[%s514 + $0xc58] sm:$0xff]
        %v927 = vld [vmem:[%s514 + $0xc60] sm:$0xff]
        %v928 = vld [vmem:[%s514 + $0xc68] sm:$0xff]
        %v929 = vld [vmem:[%s514 + $0xc70] sm:$0xff]
        %v930 = vld [vmem:[%s514 + $0xc78] sm:$0xff]
        %v931 = vld [vmem:[%s514 + $0xc80] sm:$0xff]
        %v932 = vld [vmem:[%s514 + $0xc88] sm:$0xff]
        %v933 = vld [vmem:[%s514 + $0xc90] sm:$0xff]
        %v934 = vld [vmem:[%s514 + $0xc98] sm:$0xff]
        %v935 = vld [vmem:[%s514 + $0xca0] sm:$0xff]
        %v936 = vld [vmem:[%s514 + $0xca8] sm:$0xff]
        %v937 = vld [vmem:[%s514 + $0xcb0] sm:$0xff]
        %v938 = vld [vmem:[%s514 + $0xcb8] sm:$0xff]
        %v939 = vld [vmem:[%s514 + $0xcc0] sm:$0xff]
        %v940 = vld [vmem:[%s514 + $0xcc8] sm:$0xff]
        %v941 = vld [vmem:[%s514 + $0xcd0] sm:$0xff]
        %v942 = vld [vmem:[%s514 + $0xcd8] sm:$0xff]
        %v943 = vld [vmem:[%s514 + $0xce0] sm:$0xff]
        %v944 = vld [vmem:[%s514 + $0xce8] sm:$0xff]
        %v945 = vld [vmem:[%s514 + $0xcf0] sm:$0xff]
        %v946 = vld [vmem:[%s514 + $0xcf8] sm:$0xff]
        %v947 = vld [vmem:[%s514 + $0xd00] sm:$0xff]
        %v948 = vld [vmem:[%s514 + $0xd08] sm:$0xff]
        %v949 = vld [vmem:[%s514 + $0xd10] sm:$0xff]
        %v950 = vld [vmem:[%s514 + $0xd18] sm:$0xff]
        %v951 = vld [vmem:[%s514 + $0xd20] sm:$0xff]
        %v952 = vld [vmem:[%s514 + $0xd28] sm:$0xff]
        %v953 = vld [vmem:[%s514 + $0xd30] sm:$0xff]
        %v954 = vld [vmem:[%s514 + $0xd38] sm:$0xff]
        %v955 = vld [vmem:[%s514 + $0xd40] sm:$0xff]
        %v956 = vld [vmem:[%s514 + $0xd48] sm:$0xff]
        %v957 = vld [vmem:[%s514 + $0xd50] sm:$0xff]
        %v958 = vld [vmem:[%s514 + $0xd58] sm:$0xff]
        %v959 = vld [vmem:[%s514 + $0xd60] sm:$0xff]
        %v960 = vld [vmem:[%s514 + $0xd68] sm:$0xff]
        %v961 = vld [vmem:[%s514 + $0xd70] sm:$0xff]
        %v962 = vld [vmem:[%s514 + $0xd78] sm:$0xff]
        %v963 = vld [vmem:[%s514 + $0xd80] sm:$0xff]
        %v964 = vld [vmem:[%s514 + $0xd88] sm:$0xff]
        %v965 = vld [vmem:[%s514 + $0xd90] sm:$0xff]
        %v966 = vld [vmem:[%s514 + $0xd98] sm:$0xff]
        %v967 = vld [vmem:[%s514 + $0xda0] sm:$0xff]
        %v968 = vld [vmem:[%s514 + $0xda8] sm:$0xff]
        %v969 = vld [vmem:[%s514 + $0xdb0] sm:$0xff]
        %v970 = vld [vmem:[%s514 + $0xdb8] sm:$0xff]
        %v971 = vld [vmem:[%s514 + $0xdc0] sm:$0xff]
        %v972 = vld [vmem:[%s514 + $0xdc8] sm:$0xff]
        %v973 = vld [vmem:[%s514 + $0xdd0] sm:$0xff]
        %v974 = vld [vmem:[%s514 + $0xdd8] sm:$0xff]
        %v975 = vld [vmem:[%s514 + $0xde0] sm:$0xff]
        %v976 = vld [vmem:[%s514 + $0xde8] sm:$0xff]
        %v977 = vld [vmem:[%s514 + $0xdf0] sm:$0xff]
        %v978 = vld [vmem:[%s514 + $0xdf8] sm:$0xff]
        %v979 = vld [vmem:[%s527] sm:$0xff]
        %v980 = vld [vmem:[%s527 + $0x8] sm:$0xff]
        %v981 = vld [vmem:[%s527 + $0x10] sm:$0xff]
        %v982 = vld [vmem:[%s527 + $0x18] sm:$0xff]
        %v983 = vld [vmem:[%s527 + $0x20] sm:$0xff]
        %v984 = vld [vmem:[%s527 + $0x28] sm:$0xff]
        %v985 = vld [vmem:[%s527 + $0x30] sm:$0xff]
        %v986 = vld [vmem:[%s527 + $0x38] sm:$0xff]
        %v987 = vld [vmem:[%s527 + $0x40] sm:$0xff]
        %v988 = vld [vmem:[%s527 + $0x48] sm:$0xff]
        %v989 = vld [vmem:[%s527 + $0x50] sm:$0xff]
        %v990 = vld [vmem:[%s527 + $0x58] sm:$0xff]
        %v991 = vld [vmem:[%s527 + $0x60] sm:$0xff]
        %v992 = vld [vmem:[%s527 + $0x68] sm:$0xff]
        %v993 = vld [vmem:[%s527 + $0x70] sm:$0xff]
        %v994 = vld [vmem:[%s527 + $0x78] sm:$0xff]
        %v995 = vld [vmem:[%s527 + $0x80] sm:$0xff]
        %v996 = vld [vmem:[%s527 + $0x88] sm:$0xff]
        %v997 = vld [vmem:[%s527 + $0x90] sm:$0xff]
        %v998 = vld [vmem:[%s527 + $0x98] sm:$0xff]
        %v999 = vld [vmem:[%s527 + $0xa0] sm:$0xff]
        %v1000 = vld [vmem:[%s527 + $0xa8] sm:$0xff]
        %v1001 = vld [vmem:[%s527 + $0xb0] sm:$0xff]
        %v1002 = vld [vmem:[%s527 + $0xb8] sm:$0xff]
        %v1003 = vld [vmem:[%s527 + $0xc0] sm:$0xff]
        %v1004 = vld [vmem:[%s527 + $0xc8] sm:$0xff]
        %v1005 = vld [vmem:[%s527 + $0xd0] sm:$0xff]
        %v1006 = vld [vmem:[%s527 + $0xd8] sm:$0xff]
        %v1007 = vld [vmem:[%s527 + $0xe0] sm:$0xff]
        %v1008 = vld [vmem:[%s527 + $0xe8] sm:$0xff]
        %v1009 = vld [vmem:[%s527 + $0xf0] sm:$0xff]
        %v1010 = vld [vmem:[%s527 + $0xf8] sm:$0xff]
        %v1011 = vld [vmem:[%s527 + $0x100] sm:$0xff]
        %v1012 = vld [vmem:[%s527 + $0x108] sm:$0xff]
        %v1013 = vld [vmem:[%s527 + $0x110] sm:$0xff]
        %v1014 = vld [vmem:[%s527 + $0x118] sm:$0xff]
        %v1015 = vld [vmem:[%s527 + $0x120] sm:$0xff]
        %v1016 = vld [vmem:[%s527 + $0x128] sm:$0xff]
        %v1017 = vld [vmem:[%s527 + $0x130] sm:$0xff]
        %v1018 = vld [vmem:[%s527 + $0x138] sm:$0xff]
        %v1019 = vld [vmem:[%s527 + $0x140] sm:$0xff]
        %v1020 = vld [vmem:[%s527 + $0x148] sm:$0xff]
        %v1021 = vld [vmem:[%s527 + $0x150] sm:$0xff]
        %v1022 = vld [vmem:[%s527 + $0x158] sm:$0xff]
        %v1023 = vld [vmem:[%s527 + $0x160] sm:$0xff]
        %v1024 = vld [vmem:[%s527 + $0x168] sm:$0xff]
        %v1025 = vld [vmem:[%s527 + $0x170] sm:$0xff]
        %v1026 = vld [vmem:[%s527 + $0x178] sm:$0xff]
        %v1027 = vld [vmem:[%s527 + $0x180] sm:$0xff]
        %v1028 = vld [vmem:[%s527 + $0x188] sm:$0xff]
        %v1029 = vld [vmem:[%s527 + $0x190] sm:$0xff]
        %v1030 = vld [vmem:[%s527 + $0x198] sm:$0xff]
        %v1031 = vld [vmem:[%s527 + $0x1a0] sm:$0xff]
        %v1032 = vld [vmem:[%s527 + $0x1a8] sm:$0xff]
        %v1033 = vld [vmem:[%s527 + $0x1b0] sm:$0xff]
        %v1034 = vld [vmem:[%s527 + $0x1b8] sm:$0xff]
        %v1035 = vld [vmem:[%s527 + $0x1c0] sm:$0xff]
        %v1036 = vld [vmem:[%s527 + $0x1c8] sm:$0xff]
        %v1037 = vld [vmem:[%s527 + $0x1d0] sm:$0xff]
        %v1038 = vld [vmem:[%s527 + $0x1d8] sm:$0xff]
        %v1039 = vld [vmem:[%s527 + $0x1e0] sm:$0xff]
        %v1040 = vld [vmem:[%s527 + $0x1e8] sm:$0xff]
        %v1041 = vld [vmem:[%s527 + $0x1f0] sm:$0xff]
        %v1042 = vld [vmem:[%s527 + $0x1f8] sm:$0xff]
        %v1043 = vadd.f32 %v531, %v532
        %v1044 = vadd.f32 %v1043, %v533
        %v1045 = vadd.f32 %v1044, %v534
        %v1046 = vadd.f32 %v1045, %v535
        %v1047 = vadd.f32 %v1046, %v536
        %vm1048 = vcmask 130048
        %v1049 = vsel %vm1048, %v537, 0.0
        %v1050 = vadd.f32 %v1047, %v1049
        %1051 = vadd.xlane.f32.xlu0 %v1050
        %v1052 = vpop.xlane.xlu0 %1051
        %v1053 = vadd.f32 %v538, %v539
        %v1054 = vadd.f32 %v1053, %v540
        %v1055 = vadd.f32 %v1054, %v541
        %v1056 = vadd.f32 %v1055, %v542
        %v1057 = vadd.f32 %v1056, %v543
        %v1058 = vsel %vm1048, %v544, 0.0
        %v1059 = vadd.f32 %v1057, %v1058
        %1060 = vadd.xlane.f32.xlu0 %v1059
        %v1061 = vpop.xlane.xlu0 %1060
        %v1062 = vadd.f32 %v545, %v546
        %v1063 = vadd.f32 %v1062, %v547
        %v1064 = vadd.f32 %v1063, %v548
        %v1065 = vadd.f32 %v1064, %v549
        %v1066 = vadd.f32 %v1065, %v550
        %v1067 = vsel %vm1048, %v551, 0.0
        %v1068 = vadd.f32 %v1066, %v1067
        %1069 = vadd.xlane.f32.xlu0 %v1068
        %v1070 = vpop.xlane.xlu0 %1069
        %v1071 = vadd.f32 %v552, %v553
        %v1072 = vadd.f32 %v1071, %v554
        %v1073 = vadd.f32 %v1072, %v555
        %v1074 = vadd.f32 %v1073, %v556
        %v1075 = vadd.f32 %v1074, %v557
        %v1076 = vsel %vm1048, %v558, 0.0
        %v1077 = vadd.f32 %v1075, %v1076
        %1078 = vadd.xlane.f32.xlu0 %v1077
        %v1079 = vpop.xlane.xlu0 %1078
        %v1080 = vadd.f32 %v559, %v560
        %v1081 = vadd.f32 %v1080, %v561
        %v1082 = vadd.f32 %v1081, %v562
        %v1083 = vadd.f32 %v1082, %v563
        %v1084 = vadd.f32 %v1083, %v564
        %v1085 = vsel %vm1048, %v565, 0.0
        %v1086 = vadd.f32 %v1084, %v1085
        %1087 = vadd.xlane.f32.xlu0 %v1086
        %v1088 = vpop.xlane.xlu0 %1087
        %v1089 = vadd.f32 %v566, %v567
        %v1090 = vadd.f32 %v1089, %v568
        %v1091 = vadd.f32 %v1090, %v569
        %v1092 = vadd.f32 %v1091, %v570
        %v1093 = vadd.f32 %v1092, %v571
        %v1094 = vsel %vm1048, %v572, 0.0
        %v1095 = vadd.f32 %v1093, %v1094
        %1096 = vadd.xlane.f32.xlu0 %v1095
        %v1097 = vpop.xlane.xlu0 %1096
        %v1098 = vadd.f32 %v573, %v574
        %v1099 = vadd.f32 %v1098, %v575
        %v1100 = vadd.f32 %v1099, %v576
        %v1101 = vadd.f32 %v1100, %v577
        %v1102 = vadd.f32 %v1101, %v578
        %v1103 = vsel %vm1048, %v579, 0.0
        %v1104 = vadd.f32 %v1102, %v1103
        %1105 = vadd.xlane.f32.xlu0 %v1104
        %v1106 = vpop.xlane.xlu0 %1105
        %v1107 = vadd.f32 %v580, %v581
        %v1108 = vadd.f32 %v1107, %v582
        %v1109 = vadd.f32 %v1108, %v583
        %v1110 = vadd.f32 %v1109, %v584
        %v1111 = vadd.f32 %v1110, %v585
        %v1112 = vsel %vm1048, %v586, 0.0
        %v1113 = vadd.f32 %v1111, %v1112
        %1114 = vadd.xlane.f32.xlu0 %v1113
        %v1115 = vpop.xlane.xlu0 %1114
        %v1116 = vadd.f32 %v587, %v588
        %v1117 = vadd.f32 %v1116, %v589
        %v1118 = vadd.f32 %v1117, %v590
        %v1119 = vadd.f32 %v1118, %v591
        %v1120 = vadd.f32 %v1119, %v592
        %v1121 = vsel %vm1048, %v593, 0.0
        %v1122 = vadd.f32 %v1120, %v1121
        %1123 = vadd.xlane.f32.xlu0 %v1122
        %v1124 = vpop.xlane.xlu0 %1123
        %v1125 = vadd.f32 %v594, %v595
        %v1126 = vadd.f32 %v1125, %v596
        %v1127 = vadd.f32 %v1126, %v597
        %v1128 = vadd.f32 %v1127, %v598
        %v1129 = vadd.f32 %v1128, %v599
        %v1130 = vsel %vm1048, %v600, 0.0
        %v1131 = vadd.f32 %v1129, %v1130
        %1132 = vadd.xlane.f32.xlu0 %v1131
        %v1133 = vpop.xlane.xlu0 %1132
        %v1134 = vadd.f32 %v601, %v602
        %v1135 = vadd.f32 %v1134, %v603
        %v1136 = vadd.f32 %v1135, %v604
        %v1137 = vadd.f32 %v1136, %v605
        %v1138 = vadd.f32 %v1137, %v606
        %v1139 = vsel %vm1048, %v607, 0.0
        %v1140 = vadd.f32 %v1138, %v1139
        %1141 = vadd.xlane.f32.xlu0 %v1140
        %v1142 = vpop.xlane.xlu0 %1141
        %v1143 = vadd.f32 %v608, %v609
        %v1144 = vadd.f32 %v1143, %v610
        %v1145 = vadd.f32 %v1144, %v611
        %v1146 = vadd.f32 %v1145, %v612
        %v1147 = vadd.f32 %v1146, %v613
        %v1148 = vsel %vm1048, %v614, 0.0
        %v1149 = vadd.f32 %v1147, %v1148
        %1150 = vadd.xlane.f32.xlu0 %v1149
        %v1151 = vpop.xlane.xlu0 %1150
        %v1152 = vadd.f32 %v615, %v616
        %v1153 = vadd.f32 %v1152, %v617
        %v1154 = vadd.f32 %v1153, %v618
        %v1155 = vadd.f32 %v1154, %v619
        %v1156 = vadd.f32 %v1155, %v620
        %v1157 = vsel %vm1048, %v621, 0.0
        %v1158 = vadd.f32 %v1156, %v1157
        %1159 = vadd.xlane.f32.xlu0 %v1158
        %v1160 = vpop.xlane.xlu0 %1159
        %v1161 = vadd.f32 %v622, %v623
        %v1162 = vadd.f32 %v1161, %v624
        %v1163 = vadd.f32 %v1162, %v625
        %v1164 = vadd.f32 %v1163, %v626
        %v1165 = vadd.f32 %v1164, %v627
        %v1166 = vsel %vm1048, %v628, 0.0
        %v1167 = vadd.f32 %v1165, %v1166
        %1168 = vadd.xlane.f32.xlu0 %v1167
        %v1169 = vpop.xlane.xlu0 %1168
        %v1170 = vadd.f32 %v629, %v630
        %v1171 = vadd.f32 %v1170, %v631
        %v1172 = vadd.f32 %v1171, %v632
        %v1173 = vadd.f32 %v1172, %v633
        %v1174 = vadd.f32 %v1173, %v634
        %v1175 = vsel %vm1048, %v635, 0.0
        %v1176 = vadd.f32 %v1174, %v1175
        %1177 = vadd.xlane.f32.xlu0 %v1176
        %v1178 = vpop.xlane.xlu0 %1177
        %v1179 = vadd.f32 %v636, %v637
        %v1180 = vadd.f32 %v1179, %v638
        %v1181 = vadd.f32 %v1180, %v639
        %v1182 = vadd.f32 %v1181, %v640
        %v1183 = vadd.f32 %v1182, %v641
        %v1184 = vsel %vm1048, %v642, 0.0
        %v1185 = vadd.f32 %v1183, %v1184
        %1186 = vadd.xlane.f32.xlu0 %v1185
        %v1187 = vpop.xlane.xlu0 %1186
        %v1188 = vadd.f32 %v643, %v644
        %v1189 = vadd.f32 %v1188, %v645
        %v1190 = vadd.f32 %v1189, %v646
        %v1191 = vadd.f32 %v1190, %v647
        %v1192 = vadd.f32 %v1191, %v648
        %v1193 = vsel %vm1048, %v649, 0.0
        %v1194 = vadd.f32 %v1192, %v1193
        %1195 = vadd.xlane.f32.xlu0 %v1194
        %v1196 = vpop.xlane.xlu0 %1195
        %v1197 = vadd.f32 %v650, %v651
        %v1198 = vadd.f32 %v1197, %v652
        %v1199 = vadd.f32 %v1198, %v653
        %v1200 = vadd.f32 %v1199, %v654
        %v1201 = vadd.f32 %v1200, %v655
        %v1202 = vsel %vm1048, %v656, 0.0
        %v1203 = vadd.f32 %v1201, %v1202
        %1204 = vadd.xlane.f32.xlu0 %v1203
        %v1205 = vpop.xlane.xlu0 %1204
        %v1206 = vadd.f32 %v657, %v658
        %v1207 = vadd.f32 %v1206, %v659
        %v1208 = vadd.f32 %v1207, %v660
        %v1209 = vadd.f32 %v1208, %v661
        %v1210 = vadd.f32 %v1209, %v662
        %v1211 = vsel %vm1048, %v663, 0.0
        %v1212 = vadd.f32 %v1210, %v1211
        %1213 = vadd.xlane.f32.xlu0 %v1212
        %v1214 = vpop.xlane.xlu0 %1213
        %v1215 = vadd.f32 %v664, %v665
        %v1216 = vadd.f32 %v1215, %v666
        %v1217 = vadd.f32 %v1216, %v667
        %v1218 = vadd.f32 %v1217, %v668
        %v1219 = vadd.f32 %v1218, %v669
        %v1220 = vsel %vm1048, %v670, 0.0
        %v1221 = vadd.f32 %v1219, %v1220
        %1222 = vadd.xlane.f32.xlu0 %v1221
        %v1223 = vpop.xlane.xlu0 %1222
        %v1224 = vadd.f32 %v671, %v672
        %v1225 = vadd.f32 %v1224, %v673
        %v1226 = vadd.f32 %v1225, %v674
        %v1227 = vadd.f32 %v1226, %v675
        %v1228 = vadd.f32 %v1227, %v676
        %v1229 = vsel %vm1048, %v677, 0.0
        %v1230 = vadd.f32 %v1228, %v1229
        %1231 = vadd.xlane.f32.xlu0 %v1230
        %v1232 = vpop.xlane.xlu0 %1231
        %v1233 = vadd.f32 %v678, %v679
        %v1234 = vadd.f32 %v1233, %v680
        %v1235 = vadd.f32 %v1234, %v681
        %v1236 = vadd.f32 %v1235, %v682
        %v1237 = vadd.f32 %v1236, %v683
        %v1238 = vsel %vm1048, %v684, 0.0
        %v1239 = vadd.f32 %v1237, %v1238
        %1240 = vadd.xlane.f32.xlu0 %v1239
        %v1241 = vpop.xlane.xlu0 %1240
        %v1242 = vadd.f32 %v685, %v686
        %v1243 = vadd.f32 %v1242, %v687
        %v1244 = vadd.f32 %v1243, %v688
        %v1245 = vadd.f32 %v1244, %v689
        %v1246 = vadd.f32 %v1245, %v690
        %v1247 = vsel %vm1048, %v691, 0.0
        %v1248 = vadd.f32 %v1246, %v1247
        %1249 = vadd.xlane.f32.xlu0 %v1248
        %v1250 = vpop.xlane.xlu0 %1249
        %v1251 = vadd.f32 %v692, %v693
        %v1252 = vadd.f32 %v1251, %v694
        %v1253 = vadd.f32 %v1252, %v695
        %v1254 = vadd.f32 %v1253, %v696
        %v1255 = vadd.f32 %v1254, %v697
        %v1256 = vsel %vm1048, %v698, 0.0
        %v1257 = vadd.f32 %v1255, %v1256
        %1258 = vadd.xlane.f32.xlu0 %v1257
        %v1259 = vpop.xlane.xlu0 %1258
        %v1260 = vadd.f32 %v699, %v700
        %v1261 = vadd.f32 %v1260, %v701
        %v1262 = vadd.f32 %v1261, %v702
        %v1263 = vadd.f32 %v1262, %v703
        %v1264 = vadd.f32 %v1263, %v704
        %v1265 = vsel %vm1048, %v705, 0.0
        %v1266 = vadd.f32 %v1264, %v1265
        %1267 = vadd.xlane.f32.xlu0 %v1266
        %v1268 = vpop.xlane.xlu0 %1267
        %v1269 = vadd.f32 %v706, %v707
        %v1270 = vadd.f32 %v1269, %v708
        %v1271 = vadd.f32 %v1270, %v709
        %v1272 = vadd.f32 %v1271, %v710
        %v1273 = vadd.f32 %v1272, %v711
        %v1274 = vsel %vm1048, %v712, 0.0
        %v1275 = vadd.f32 %v1273, %v1274
        %1276 = vadd.xlane.f32.xlu0 %v1275
        %v1277 = vpop.xlane.xlu0 %1276
        %v1278 = vadd.f32 %v713, %v714
        %v1279 = vadd.f32 %v1278, %v715
        %v1280 = vadd.f32 %v1279, %v716
        %v1281 = vadd.f32 %v1280, %v717
        %v1282 = vadd.f32 %v1281, %v718
        %v1283 = vsel %vm1048, %v719, 0.0
        %v1284 = vadd.f32 %v1282, %v1283
        %1285 = vadd.xlane.f32.xlu0 %v1284
        %v1286 = vpop.xlane.xlu0 %1285
        %v1287 = vadd.f32 %v720, %v721
        %v1288 = vadd.f32 %v1287, %v722
        %v1289 = vadd.f32 %v1288, %v723
        %v1290 = vadd.f32 %v1289, %v724
        %v1291 = vadd.f32 %v1290, %v725
        %v1292 = vsel %vm1048, %v726, 0.0
        %v1293 = vadd.f32 %v1291, %v1292
        %1294 = vadd.xlane.f32.xlu0 %v1293
        %v1295 = vpop.xlane.xlu0 %1294
        %v1296 = vadd.f32 %v727, %v728
        %v1297 = vadd.f32 %v1296, %v729
        %v1298 = vadd.f32 %v1297, %v730
        %v1299 = vadd.f32 %v1298, %v731
        %v1300 = vadd.f32 %v1299, %v732
        %v1301 = vsel %vm1048, %v733, 0.0
        %v1302 = vadd.f32 %v1300, %v1301
        %1303 = vadd.xlane.f32.xlu0 %v1302
        %v1304 = vpop.xlane.xlu0 %1303
        %v1305 = vadd.f32 %v734, %v735
        %v1306 = vadd.f32 %v1305, %v736
        %v1307 = vadd.f32 %v1306, %v737
        %v1308 = vadd.f32 %v1307, %v738
        %v1309 = vadd.f32 %v1308, %v739
        %v1310 = vsel %vm1048, %v740, 0.0
        %v1311 = vadd.f32 %v1309, %v1310
        %1312 = vadd.xlane.f32.xlu0 %v1311
        %v1313 = vpop.xlane.xlu0 %1312
        %v1314 = vadd.f32 %v741, %v742
        %v1315 = vadd.f32 %v1314, %v743
        %v1316 = vadd.f32 %v1315, %v744
        %v1317 = vadd.f32 %v1316, %v745
        %v1318 = vadd.f32 %v1317, %v746
        %v1319 = vsel %vm1048, %v747, 0.0
        %v1320 = vadd.f32 %v1318, %v1319
        %1321 = vadd.xlane.f32.xlu0 %v1320
        %v1322 = vpop.xlane.xlu0 %1321
        %v1323 = vadd.f32 %v748, %v749
        %v1324 = vadd.f32 %v1323, %v750
        %v1325 = vadd.f32 %v1324, %v751
        %v1326 = vadd.f32 %v1325, %v752
        %v1327 = vadd.f32 %v1326, %v753
        %v1328 = vsel %vm1048, %v754, 0.0
        %v1329 = vadd.f32 %v1327, %v1328
        %1330 = vadd.xlane.f32.xlu0 %v1329
        %v1331 = vpop.xlane.xlu0 %1330
        %v1332 = vadd.f32 %v755, %v756
        %v1333 = vadd.f32 %v1332, %v757
        %v1334 = vadd.f32 %v1333, %v758
        %v1335 = vadd.f32 %v1334, %v759
        %v1336 = vadd.f32 %v1335, %v760
        %v1337 = vsel %vm1048, %v761, 0.0
        %v1338 = vadd.f32 %v1336, %v1337
        %1339 = vadd.xlane.f32.xlu0 %v1338
        %v1340 = vpop.xlane.xlu0 %1339
        %v1341 = vadd.f32 %v762, %v763
        %v1342 = vadd.f32 %v1341, %v764
        %v1343 = vadd.f32 %v1342, %v765
        %v1344 = vadd.f32 %v1343, %v766
        %v1345 = vadd.f32 %v1344, %v767
        %v1346 = vsel %vm1048, %v768, 0.0
        %v1347 = vadd.f32 %v1345, %v1346
        %1348 = vadd.xlane.f32.xlu0 %v1347
        %v1349 = vpop.xlane.xlu0 %1348
        %v1350 = vadd.f32 %v769, %v770
        %v1351 = vadd.f32 %v1350, %v771
        %v1352 = vadd.f32 %v1351, %v772
        %v1353 = vadd.f32 %v1352, %v773
        %v1354 = vadd.f32 %v1353, %v774
        %v1355 = vsel %vm1048, %v775, 0.0
        %v1356 = vadd.f32 %v1354, %v1355
        %1357 = vadd.xlane.f32.xlu0 %v1356
        %v1358 = vpop.xlane.xlu0 %1357
        %v1359 = vadd.f32 %v776, %v777
        %v1360 = vadd.f32 %v1359, %v778
        %v1361 = vadd.f32 %v1360, %v779
        %v1362 = vadd.f32 %v1361, %v780
        %v1363 = vadd.f32 %v1362, %v781
        %v1364 = vsel %vm1048, %v782, 0.0
        %v1365 = vadd.f32 %v1363, %v1364
        %1366 = vadd.xlane.f32.xlu0 %v1365
        %v1367 = vpop.xlane.xlu0 %1366
        %v1368 = vadd.f32 %v783, %v784
        %v1369 = vadd.f32 %v1368, %v785
        %v1370 = vadd.f32 %v1369, %v786
        %v1371 = vadd.f32 %v1370, %v787
        %v1372 = vadd.f32 %v1371, %v788
        %v1373 = vsel %vm1048, %v789, 0.0
        %v1374 = vadd.f32 %v1372, %v1373
        %1375 = vadd.xlane.f32.xlu0 %v1374
        %v1376 = vpop.xlane.xlu0 %1375
        %v1377 = vadd.f32 %v790, %v791
        %v1378 = vadd.f32 %v1377, %v792
        %v1379 = vadd.f32 %v1378, %v793
        %v1380 = vadd.f32 %v1379, %v794
        %v1381 = vadd.f32 %v1380, %v795
        %v1382 = vsel %vm1048, %v796, 0.0
        %v1383 = vadd.f32 %v1381, %v1382
        %1384 = vadd.xlane.f32.xlu0 %v1383
        %v1385 = vpop.xlane.xlu0 %1384
        %v1386 = vadd.f32 %v797, %v798
        %v1387 = vadd.f32 %v1386, %v799
        %v1388 = vadd.f32 %v1387, %v800
        %v1389 = vadd.f32 %v1388, %v801
        %v1390 = vadd.f32 %v1389, %v802
        %v1391 = vsel %vm1048, %v803, 0.0
        %v1392 = vadd.f32 %v1390, %v1391
        %1393 = vadd.xlane.f32.xlu0 %v1392
        %v1394 = vpop.xlane.xlu0 %1393
        %v1395 = vadd.f32 %v804, %v805
        %v1396 = vadd.f32 %v1395, %v806
        %v1397 = vadd.f32 %v1396, %v807
        %v1398 = vadd.f32 %v1397, %v808
        %v1399 = vadd.f32 %v1398, %v809
        %v1400 = vsel %vm1048, %v810, 0.0
        %v1401 = vadd.f32 %v1399, %v1400
        %1402 = vadd.xlane.f32.xlu0 %v1401
        %v1403 = vpop.xlane.xlu0 %1402
        %v1404 = vadd.f32 %v811, %v812
        %v1405 = vadd.f32 %v1404, %v813
        %v1406 = vadd.f32 %v1405, %v814
        %v1407 = vadd.f32 %v1406, %v815
        %v1408 = vadd.f32 %v1407, %v816
        %v1409 = vsel %vm1048, %v817, 0.0
        %v1410 = vadd.f32 %v1408, %v1409
        %1411 = vadd.xlane.f32.xlu0 %v1410
        %v1412 = vpop.xlane.xlu0 %1411
        %v1413 = vadd.f32 %v818, %v819
        %v1414 = vadd.f32 %v1413, %v820
        %v1415 = vadd.f32 %v1414, %v821
        %v1416 = vadd.f32 %v1415, %v822
        %v1417 = vadd.f32 %v1416, %v823
        %v1418 = vsel %vm1048, %v824, 0.0
        %v1419 = vadd.f32 %v1417, %v1418
        %1420 = vadd.xlane.f32.xlu0 %v1419
        %v1421 = vpop.xlane.xlu0 %1420
        %v1422 = vadd.f32 %v825, %v826
        %v1423 = vadd.f32 %v1422, %v827
        %v1424 = vadd.f32 %v1423, %v828
        %v1425 = vadd.f32 %v1424, %v829
        %v1426 = vadd.f32 %v1425, %v830
        %v1427 = vsel %vm1048, %v831, 0.0
        %v1428 = vadd.f32 %v1426, %v1427
        %1429 = vadd.xlane.f32.xlu0 %v1428
        %v1430 = vpop.xlane.xlu0 %1429
        %v1431 = vadd.f32 %v832, %v833
        %v1432 = vadd.f32 %v1431, %v834
        %v1433 = vadd.f32 %v1432, %v835
        %v1434 = vadd.f32 %v1433, %v836
        %v1435 = vadd.f32 %v1434, %v837
        %v1436 = vsel %vm1048, %v838, 0.0
        %v1437 = vadd.f32 %v1435, %v1436
        %1438 = vadd.xlane.f32.xlu0 %v1437
        %v1439 = vpop.xlane.xlu0 %1438
        %v1440 = vadd.f32 %v839, %v840
        %v1441 = vadd.f32 %v1440, %v841
        %v1442 = vadd.f32 %v1441, %v842
        %v1443 = vadd.f32 %v1442, %v843
        %v1444 = vadd.f32 %v1443, %v844
        %v1445 = vsel %vm1048, %v845, 0.0
        %v1446 = vadd.f32 %v1444, %v1445
        %1447 = vadd.xlane.f32.xlu0 %v1446
        %v1448 = vpop.xlane.xlu0 %1447
        %v1449 = vadd.f32 %v846, %v847
        %v1450 = vadd.f32 %v1449, %v848
        %v1451 = vadd.f32 %v1450, %v849
        %v1452 = vadd.f32 %v1451, %v850
        %v1453 = vadd.f32 %v1452, %v851
        %v1454 = vsel %vm1048, %v852, 0.0
        %v1455 = vadd.f32 %v1453, %v1454
        %1456 = vadd.xlane.f32.xlu0 %v1455
        %v1457 = vpop.xlane.xlu0 %1456
        %v1458 = vadd.f32 %v853, %v854
        %v1459 = vadd.f32 %v1458, %v855
        %v1460 = vadd.f32 %v1459, %v856
        %v1461 = vadd.f32 %v1460, %v857
        %v1462 = vadd.f32 %v1461, %v858
        %v1463 = vsel %vm1048, %v859, 0.0
        %v1464 = vadd.f32 %v1462, %v1463
        %1465 = vadd.xlane.f32.xlu0 %v1464
        %v1466 = vpop.xlane.xlu0 %1465
        %v1467 = vadd.f32 %v860, %v861
        %v1468 = vadd.f32 %v1467, %v862
        %v1469 = vadd.f32 %v1468, %v863
        %v1470 = vadd.f32 %v1469, %v864
        %v1471 = vadd.f32 %v1470, %v865
        %v1472 = vsel %vm1048, %v866, 0.0
        %v1473 = vadd.f32 %v1471, %v1472
        %1474 = vadd.xlane.f32.xlu0 %v1473
        %v1475 = vpop.xlane.xlu0 %1474
        %v1476 = vadd.f32 %v867, %v868
        %v1477 = vadd.f32 %v1476, %v869
        %v1478 = vadd.f32 %v1477, %v870
        %v1479 = vadd.f32 %v1478, %v871
        %v1480 = vadd.f32 %v1479, %v872
        %v1481 = vsel %vm1048, %v873, 0.0
        %v1482 = vadd.f32 %v1480, %v1481
        %1483 = vadd.xlane.f32.xlu0 %v1482
        %v1484 = vpop.xlane.xlu0 %1483
        %v1485 = vadd.f32 %v874, %v875
        %v1486 = vadd.f32 %v1485, %v876
        %v1487 = vadd.f32 %v1486, %v877
        %v1488 = vadd.f32 %v1487, %v878
        %v1489 = vadd.f32 %v1488, %v879
        %v1490 = vsel %vm1048, %v880, 0.0
        %v1491 = vadd.f32 %v1489, %v1490
        %1492 = vadd.xlane.f32.xlu0 %v1491
        %v1493 = vpop.xlane.xlu0 %1492
        %v1494 = vadd.f32 %v881, %v882
        %v1495 = vadd.f32 %v1494, %v883
        %v1496 = vadd.f32 %v1495, %v884
        %v1497 = vadd.f32 %v1496, %v885
        %v1498 = vadd.f32 %v1497, %v886
        %v1499 = vsel %vm1048, %v887, 0.0
        %v1500 = vadd.f32 %v1498, %v1499
        %1501 = vadd.xlane.f32.xlu0 %v1500
        %v1502 = vpop.xlane.xlu0 %1501
        %v1503 = vadd.f32 %v888, %v889
        %v1504 = vadd.f32 %v1503, %v890
        %v1505 = vadd.f32 %v1504, %v891
        %v1506 = vadd.f32 %v1505, %v892
        %v1507 = vadd.f32 %v1506, %v893
        %v1508 = vsel %vm1048, %v894, 0.0
        %v1509 = vadd.f32 %v1507, %v1508
        %1510 = vadd.xlane.f32.xlu0 %v1509
        %v1511 = vpop.xlane.xlu0 %1510
        %v1512 = vadd.f32 %v895, %v896
        %v1513 = vadd.f32 %v1512, %v897
        %v1514 = vadd.f32 %v1513, %v898
        %v1515 = vadd.f32 %v1514, %v899
        %v1516 = vadd.f32 %v1515, %v900
        %v1517 = vsel %vm1048, %v901, 0.0
        %v1518 = vadd.f32 %v1516, %v1517
        %1519 = vadd.xlane.f32.xlu0 %v1518
        %v1520 = vpop.xlane.xlu0 %1519
        %v1521 = vadd.f32 %v902, %v903
        %v1522 = vadd.f32 %v1521, %v904
        %v1523 = vadd.f32 %v1522, %v905
        %v1524 = vadd.f32 %v1523, %v906
        %v1525 = vadd.f32 %v1524, %v907
        %v1526 = vsel %vm1048, %v908, 0.0
        %v1527 = vadd.f32 %v1525, %v1526
        %1528 = vadd.xlane.f32.xlu0 %v1527
        %v1529 = vpop.xlane.xlu0 %1528
        %v1530 = vadd.f32 %v909, %v910
        %v1531 = vadd.f32 %v1530, %v911
        %v1532 = vadd.f32 %v1531, %v912
        %v1533 = vadd.f32 %v1532, %v913
        %v1534 = vadd.f32 %v1533, %v914
        %v1535 = vsel %vm1048, %v915, 0.0
        %v1536 = vadd.f32 %v1534, %v1535
        %1537 = vadd.xlane.f32.xlu0 %v1536
        %v1538 = vpop.xlane.xlu0 %1537
        %v1539 = vadd.f32 %v916, %v917
        %v1540 = vadd.f32 %v1539, %v918
        %v1541 = vadd.f32 %v1540, %v919
        %v1542 = vadd.f32 %v1541, %v920
        %v1543 = vadd.f32 %v1542, %v921
        %v1544 = vsel %vm1048, %v922, 0.0
        %v1545 = vadd.f32 %v1543, %v1544
        %1546 = vadd.xlane.f32.xlu0 %v1545
        %v1547 = vpop.xlane.xlu0 %1546
        %v1548 = vadd.f32 %v923, %v924
        %v1549 = vadd.f32 %v1548, %v925
        %v1550 = vadd.f32 %v1549, %v926
        %v1551 = vadd.f32 %v1550, %v927
        %v1552 = vadd.f32 %v1551, %v928
        %v1553 = vsel %vm1048, %v929, 0.0
        %v1554 = vadd.f32 %v1552, %v1553
        %1555 = vadd.xlane.f32.xlu0 %v1554
        %v1556 = vpop.xlane.xlu0 %1555
        %v1557 = vadd.f32 %v930, %v931
        %v1558 = vadd.f32 %v1557, %v932
        %v1559 = vadd.f32 %v1558, %v933
        %v1560 = vadd.f32 %v1559, %v934
        %v1561 = vadd.f32 %v1560, %v935
        %v1562 = vsel %vm1048, %v936, 0.0
        %v1563 = vadd.f32 %v1561, %v1562
        %1564 = vadd.xlane.f32.xlu0 %v1563
        %v1565 = vpop.xlane.xlu0 %1564
        %v1566 = vadd.f32 %v937, %v938
        %v1567 = vadd.f32 %v1566, %v939
        %v1568 = vadd.f32 %v1567, %v940
        %v1569 = vadd.f32 %v1568, %v941
        %v1570 = vadd.f32 %v1569, %v942
        %v1571 = vsel %vm1048, %v943, 0.0
        %v1572 = vadd.f32 %v1570, %v1571
        %1573 = vadd.xlane.f32.xlu0 %v1572
        %v1574 = vpop.xlane.xlu0 %1573
        %v1575 = vadd.f32 %v944, %v945
        %v1576 = vadd.f32 %v1575, %v946
        %v1577 = vadd.f32 %v1576, %v947
        %v1578 = vadd.f32 %v1577, %v948
        %v1579 = vadd.f32 %v1578, %v949
        %v1580 = vsel %vm1048, %v950, 0.0
        %v1581 = vadd.f32 %v1579, %v1580
        %1582 = vadd.xlane.f32.xlu0 %v1581
        %v1583 = vpop.xlane.xlu0 %1582
        %v1584 = vadd.f32 %v951, %v952
        %v1585 = vadd.f32 %v1584, %v953
        %v1586 = vadd.f32 %v1585, %v954
        %v1587 = vadd.f32 %v1586, %v955
        %v1588 = vadd.f32 %v1587, %v956
        %v1589 = vsel %vm1048, %v957, 0.0
        %v1590 = vadd.f32 %v1588, %v1589
        %1591 = vadd.xlane.f32.xlu0 %v1590
        %v1592 = vpop.xlane.xlu0 %1591
        %v1593 = vadd.f32 %v958, %v959
        %v1594 = vadd.f32 %v1593, %v960
        %v1595 = vadd.f32 %v1594, %v961
        %v1596 = vadd.f32 %v1595, %v962
        %v1597 = vadd.f32 %v1596, %v963
        %v1598 = vsel %vm1048, %v964, 0.0
        %v1599 = vadd.f32 %v1597, %v1598
        %1600 = vadd.xlane.f32.xlu0 %v1599
        %v1601 = vpop.xlane.xlu0 %1600
        %v1602 = vadd.f32 %v965, %v966
        %v1603 = vadd.f32 %v1602, %v967
        %v1604 = vadd.f32 %v1603, %v968
        %v1605 = vadd.f32 %v1604, %v969
        %v1606 = vadd.f32 %v1605, %v970
        %v1607 = vsel %vm1048, %v971, 0.0
        %v1608 = vadd.f32 %v1606, %v1607
        %1609 = vadd.xlane.f32.xlu0 %v1608
        %v1610 = vpop.xlane.xlu0 %1609
        %v1611 = vadd.f32 %v972, %v973
        %v1612 = vadd.f32 %v1611, %v974
        %v1613 = vadd.f32 %v1612, %v975
        %v1614 = vadd.f32 %v1613, %v976
        %v1615 = vadd.f32 %v1614, %v977
        %v1616 = vsel %vm1048, %v978, 0.0
        %v1617 = vadd.f32 %v1615, %v1616
        %1618 = vadd.xlane.f32.xlu0 %v1617
        %v1619 = vpop.xlane.xlu0 %1618
        %v1620 = vmul.f32 %v1052, 0.0012755102
        %v1621 = vmul.f32 %v1061, 0.0012755102
        %v1622 = vmul.f32 %v1070, 0.0012755102
        %v1623 = vmul.f32 %v1079, 0.0012755102
        %v1624 = vmul.f32 %v1088, 0.0012755102
        %v1625 = vmul.f32 %v1097, 0.0012755102
        %v1626 = vmul.f32 %v1106, 0.0012755102
        %v1627 = vmul.f32 %v1115, 0.0012755102
        %v1628 = vmul.f32 %v1124, 0.0012755102
        %v1629 = vmul.f32 %v1133, 0.0012755102
        %v1630 = vmul.f32 %v1142, 0.0012755102
        %v1631 = vmul.f32 %v1151, 0.0012755102
        %v1632 = vmul.f32 %v1160, 0.0012755102
        %v1633 = vmul.f32 %v1169, 0.0012755102
        %v1634 = vmul.f32 %v1178, 0.0012755102
        %v1635 = vmul.f32 %v1187, 0.0012755102
        %v1636 = vmul.f32 %v1196, 0.0012755102
        %v1637 = vmul.f32 %v1205, 0.0012755102
        %v1638 = vmul.f32 %v1214, 0.0012755102
        %v1639 = vmul.f32 %v1223, 0.0012755102
        %v1640 = vmul.f32 %v1232, 0.0012755102
        %v1641 = vmul.f32 %v1241, 0.0012755102
        %v1642 = vmul.f32 %v1250, 0.0012755102
        %v1643 = vmul.f32 %v1259, 0.0012755102
        %v1644 = vmul.f32 %v1268, 0.0012755102
        %v1645 = vmul.f32 %v1277, 0.0012755102
        %v1646 = vmul.f32 %v1286, 0.0012755102
        %v1647 = vmul.f32 %v1295, 0.0012755102
        %v1648 = vmul.f32 %v1304, 0.0012755102
        %v1649 = vmul.f32 %v1313, 0.0012755102
        %v1650 = vmul.f32 %v1322, 0.0012755102
        %v1651 = vmul.f32 %v1331, 0.0012755102
        %v1652 = vmul.f32 %v1340, 0.0012755102
        %v1653 = vmul.f32 %v1349, 0.0012755102
        %v1654 = vmul.f32 %v1358, 0.0012755102
        %v1655 = vmul.f32 %v1367, 0.0012755102
        %v1656 = vmul.f32 %v1376, 0.0012755102
        %v1657 = vmul.f32 %v1385, 0.0012755102
        %v1658 = vmul.f32 %v1394, 0.0012755102
        %v1659 = vmul.f32 %v1403, 0.0012755102
        %v1660 = vmul.f32 %v1412, 0.0012755102
        %v1661 = vmul.f32 %v1421, 0.0012755102
        %v1662 = vmul.f32 %v1430, 0.0012755102
        %v1663 = vmul.f32 %v1439, 0.0012755102
        %v1664 = vmul.f32 %v1448, 0.0012755102
        %v1665 = vmul.f32 %v1457, 0.0012755102
        %v1666 = vmul.f32 %v1466, 0.0012755102
        %v1667 = vmul.f32 %v1475, 0.0012755102
        %v1668 = vmul.f32 %v1484, 0.0012755102
        %v1669 = vmul.f32 %v1493, 0.0012755102
        %v1670 = vmul.f32 %v1502, 0.0012755102
        %v1671 = vmul.f32 %v1511, 0.0012755102
        %v1672 = vmul.f32 %v1520, 0.0012755102
        %v1673 = vmul.f32 %v1529, 0.0012755102
        %v1674 = vmul.f32 %v1538, 0.0012755102
        %v1675 = vmul.f32 %v1547, 0.0012755102
        %v1676 = vmul.f32 %v1556, 0.0012755102
        %v1677 = vmul.f32 %v1565, 0.0012755102
        %v1678 = vmul.f32 %v1574, 0.0012755102
        %v1679 = vmul.f32 %v1583, 0.0012755102
        %v1680 = vmul.f32 %v1592, 0.0012755102
        %v1681 = vmul.f32 %v1601, 0.0012755102
        %v1682 = vmul.f32 %v1610, 0.0012755102
        %v1683 = vmul.f32 %v1619, 0.0012755102
        %v1684 = vsub.f32 %v531, %v1620
        %v1685 = vsub.f32 %v532, %v1620
        %v1686 = vsub.f32 %v533, %v1620
        %v1687 = vsub.f32 %v534, %v1620
        %v1688 = vsub.f32 %v535, %v1620
        %v1689 = vsub.f32 %v536, %v1620
        %v1690 = vsub.f32 %v537, %v1620
        %v1691 = vsub.f32 %v538, %v1621
        %v1692 = vsub.f32 %v539, %v1621
        %v1693 = vsub.f32 %v540, %v1621
        %v1694 = vsub.f32 %v541, %v1621
        %v1695 = vsub.f32 %v542, %v1621
        %v1696 = vsub.f32 %v543, %v1621
        %v1697 = vsub.f32 %v544, %v1621
        %v1698 = vsub.f32 %v545, %v1622
        %v1699 = vsub.f32 %v546, %v1622
        %v1700 = vsub.f32 %v547, %v1622
        %v1701 = vsub.f32 %v548, %v1622
        %v1702 = vsub.f32 %v549, %v1622
        %v1703 = vsub.f32 %v550, %v1622
        %v1704 = vsub.f32 %v551, %v1622
        %v1705 = vsub.f32 %v552, %v1623
        %v1706 = vsub.f32 %v553, %v1623
        %v1707 = vsub.f32 %v554, %v1623
        %v1708 = vsub.f32 %v555, %v1623
        %v1709 = vsub.f32 %v556, %v1623
        %v1710 = vsub.f32 %v557, %v1623
        %v1711 = vsub.f32 %v558, %v1623
        %v1712 = vsub.f32 %v559, %v1624
        %v1713 = vsub.f32 %v560, %v1624
        %v1714 = vsub.f32 %v561, %v1624
        %v1715 = vsub.f32 %v562, %v1624
        %v1716 = vsub.f32 %v563, %v1624
        %v1717 = vsub.f32 %v564, %v1624
        %v1718 = vsub.f32 %v565, %v1624
        %v1719 = vsub.f32 %v566, %v1625
        %v1720 = vsub.f32 %v567, %v1625
        %v1721 = vsub.f32 %v568, %v1625
        %v1722 = vsub.f32 %v569, %v1625
        %v1723 = vsub.f32 %v570, %v1625
        %v1724 = vsub.f32 %v571, %v1625
        %v1725 = vsub.f32 %v572, %v1625
        %v1726 = vsub.f32 %v573, %v1626
        %v1727 = vsub.f32 %v574, %v1626
        %v1728 = vsub.f32 %v575, %v1626
        %v1729 = vsub.f32 %v576, %v1626
        %v1730 = vsub.f32 %v577, %v1626
        %v1731 = vsub.f32 %v578, %v1626
        %v1732 = vsub.f32 %v579, %v1626
        %v1733 = vsub.f32 %v580, %v1627
        %v1734 = vsub.f32 %v581, %v1627
        %v1735 = vsub.f32 %v582, %v1627
        %v1736 = vsub.f32 %v583, %v1627
        %v1737 = vsub.f32 %v584, %v1627
        %v1738 = vsub.f32 %v585, %v1627
        %v1739 = vsub.f32 %v586, %v1627
        %v1740 = vsub.f32 %v587, %v1628
        %v1741 = vsub.f32 %v588, %v1628
        %v1742 = vsub.f32 %v589, %v1628
        %v1743 = vsub.f32 %v590, %v1628
        %v1744 = vsub.f32 %v591, %v1628
        %v1745 = vsub.f32 %v592, %v1628
        %v1746 = vsub.f32 %v593, %v1628
        %v1747 = vsub.f32 %v594, %v1629
        %v1748 = vsub.f32 %v595, %v1629
        %v1749 = vsub.f32 %v596, %v1629
        %v1750 = vsub.f32 %v597, %v1629
        %v1751 = vsub.f32 %v598, %v1629
        %v1752 = vsub.f32 %v599, %v1629
        %v1753 = vsub.f32 %v600, %v1629
        %v1754 = vsub.f32 %v601, %v1630
        %v1755 = vsub.f32 %v602, %v1630
        %v1756 = vsub.f32 %v603, %v1630
        %v1757 = vsub.f32 %v604, %v1630
        %v1758 = vsub.f32 %v605, %v1630
        %v1759 = vsub.f32 %v606, %v1630
        %v1760 = vsub.f32 %v607, %v1630
        %v1761 = vsub.f32 %v608, %v1631
        %v1762 = vsub.f32 %v609, %v1631
        %v1763 = vsub.f32 %v610, %v1631
        %v1764 = vsub.f32 %v611, %v1631
        %v1765 = vsub.f32 %v612, %v1631
        %v1766 = vsub.f32 %v613, %v1631
        %v1767 = vsub.f32 %v614, %v1631
        %v1768 = vsub.f32 %v615, %v1632
        %v1769 = vsub.f32 %v616, %v1632
        %v1770 = vsub.f32 %v617, %v1632
        %v1771 = vsub.f32 %v618, %v1632
        %v1772 = vsub.f32 %v619, %v1632
        %v1773 = vsub.f32 %v620, %v1632
        %v1774 = vsub.f32 %v621, %v1632
        %v1775 = vsub.f32 %v622, %v1633
        %v1776 = vsub.f32 %v623, %v1633
        %v1777 = vsub.f32 %v624, %v1633
        %v1778 = vsub.f32 %v625, %v1633
        %v1779 = vsub.f32 %v626, %v1633
        %v1780 = vsub.f32 %v627, %v1633
        %v1781 = vsub.f32 %v628, %v1633
        %v1782 = vsub.f32 %v629, %v1634
        %v1783 = vsub.f32 %v630, %v1634
        %v1784 = vsub.f32 %v631, %v1634
        %v1785 = vsub.f32 %v632, %v1634
        %v1786 = vsub.f32 %v633, %v1634
        %v1787 = vsub.f32 %v634, %v1634
        %v1788 = vsub.f32 %v635, %v1634
        %v1789 = vsub.f32 %v636, %v1635
        %v1790 = vsub.f32 %v637, %v1635
        %v1791 = vsub.f32 %v638, %v1635
        %v1792 = vsub.f32 %v639, %v1635
        %v1793 = vsub.f32 %v640, %v1635
        %v1794 = vsub.f32 %v641, %v1635
        %v1795 = vsub.f32 %v642, %v1635
        %v1796 = vsub.f32 %v643, %v1636
        %v1797 = vsub.f32 %v644, %v1636
        %v1798 = vsub.f32 %v645, %v1636
        %v1799 = vsub.f32 %v646, %v1636
        %v1800 = vsub.f32 %v647, %v1636
        %v1801 = vsub.f32 %v648, %v1636
        %v1802 = vsub.f32 %v649, %v1636
        %v1803 = vsub.f32 %v650, %v1637
        %v1804 = vsub.f32 %v651, %v1637
        %v1805 = vsub.f32 %v652, %v1637
        %v1806 = vsub.f32 %v653, %v1637
        %v1807 = vsub.f32 %v654, %v1637
        %v1808 = vsub.f32 %v655, %v1637
        %v1809 = vsub.f32 %v656, %v1637
        %v1810 = vsub.f32 %v657, %v1638
        %v1811 = vsub.f32 %v658, %v1638
        %v1812 = vsub.f32 %v659, %v1638
        %v1813 = vsub.f32 %v660, %v1638
        %v1814 = vsub.f32 %v661, %v1638
        %v1815 = vsub.f32 %v662, %v1638
        %v1816 = vsub.f32 %v663, %v1638
        %v1817 = vsub.f32 %v664, %v1639
        %v1818 = vsub.f32 %v665, %v1639
        %v1819 = vsub.f32 %v666, %v1639
        %v1820 = vsub.f32 %v667, %v1639
        %v1821 = vsub.f32 %v668, %v1639
        %v1822 = vsub.f32 %v669, %v1639
        %v1823 = vsub.f32 %v670, %v1639
        %v1824 = vsub.f32 %v671, %v1640
        %v1825 = vsub.f32 %v672, %v1640
        %v1826 = vsub.f32 %v673, %v1640
        %v1827 = vsub.f32 %v674, %v1640
        %v1828 = vsub.f32 %v675, %v1640
        %v1829 = vsub.f32 %v676, %v1640
        %v1830 = vsub.f32 %v677, %v1640
        %v1831 = vsub.f32 %v678, %v1641
        %v1832 = vsub.f32 %v679, %v1641
        %v1833 = vsub.f32 %v680, %v1641
        %v1834 = vsub.f32 %v681, %v1641
        %v1835 = vsub.f32 %v682, %v1641
        %v1836 = vsub.f32 %v683, %v1641
        %v1837 = vsub.f32 %v684, %v1641
        %v1838 = vsub.f32 %v685, %v1642
        %v1839 = vsub.f32 %v686, %v1642
        %v1840 = vsub.f32 %v687, %v1642
        %v1841 = vsub.f32 %v688, %v1642
        %v1842 = vsub.f32 %v689, %v1642
        %v1843 = vsub.f32 %v690, %v1642
        %v1844 = vsub.f32 %v691, %v1642
        %v1845 = vsub.f32 %v692, %v1643
        %v1846 = vsub.f32 %v693, %v1643
        %v1847 = vsub.f32 %v694, %v1643
        %v1848 = vsub.f32 %v695, %v1643
        %v1849 = vsub.f32 %v696, %v1643
        %v1850 = vsub.f32 %v697, %v1643
        %v1851 = vsub.f32 %v698, %v1643
        %v1852 = vsub.f32 %v699, %v1644
        %v1853 = vsub.f32 %v700, %v1644
        %v1854 = vsub.f32 %v701, %v1644
        %v1855 = vsub.f32 %v702, %v1644
        %v1856 = vsub.f32 %v703, %v1644
        %v1857 = vsub.f32 %v704, %v1644
        %v1858 = vsub.f32 %v705, %v1644
        %v1859 = vsub.f32 %v706, %v1645
        %v1860 = vsub.f32 %v707, %v1645
        %v1861 = vsub.f32 %v708, %v1645
        %v1862 = vsub.f32 %v709, %v1645
        %v1863 = vsub.f32 %v710, %v1645
        %v1864 = vsub.f32 %v711, %v1645
        %v1865 = vsub.f32 %v712, %v1645
        %v1866 = vsub.f32 %v713, %v1646
        %v1867 = vsub.f32 %v714, %v1646
        %v1868 = vsub.f32 %v715, %v1646
        %v1869 = vsub.f32 %v716, %v1646
        %v1870 = vsub.f32 %v717, %v1646
        %v1871 = vsub.f32 %v718, %v1646
        %v1872 = vsub.f32 %v719, %v1646
        %v1873 = vsub.f32 %v720, %v1647
        %v1874 = vsub.f32 %v721, %v1647
        %v1875 = vsub.f32 %v722, %v1647
        %v1876 = vsub.f32 %v723, %v1647
        %v1877 = vsub.f32 %v724, %v1647
        %v1878 = vsub.f32 %v725, %v1647
        %v1879 = vsub.f32 %v726, %v1647
        %v1880 = vsub.f32 %v727, %v1648
        %v1881 = vsub.f32 %v728, %v1648
        %v1882 = vsub.f32 %v729, %v1648
        %v1883 = vsub.f32 %v730, %v1648
        %v1884 = vsub.f32 %v731, %v1648
        %v1885 = vsub.f32 %v732, %v1648
        %v1886 = vsub.f32 %v733, %v1648
        %v1887 = vsub.f32 %v734, %v1649
        %v1888 = vsub.f32 %v735, %v1649
        %v1889 = vsub.f32 %v736, %v1649
        %v1890 = vsub.f32 %v737, %v1649
        %v1891 = vsub.f32 %v738, %v1649
        %v1892 = vsub.f32 %v739, %v1649
        %v1893 = vsub.f32 %v740, %v1649
        %v1894 = vsub.f32 %v741, %v1650
        %v1895 = vsub.f32 %v742, %v1650
        %v1896 = vsub.f32 %v743, %v1650
        %v1897 = vsub.f32 %v744, %v1650
        %v1898 = vsub.f32 %v745, %v1650
        %v1899 = vsub.f32 %v746, %v1650
        %v1900 = vsub.f32 %v747, %v1650
        %v1901 = vsub.f32 %v748, %v1651
        %v1902 = vsub.f32 %v749, %v1651
        %v1903 = vsub.f32 %v750, %v1651
        %v1904 = vsub.f32 %v751, %v1651
        %v1905 = vsub.f32 %v752, %v1651
        %v1906 = vsub.f32 %v753, %v1651
        %v1907 = vsub.f32 %v754, %v1651
        %v1908 = vsub.f32 %v755, %v1652
        %v1909 = vsub.f32 %v756, %v1652
        %v1910 = vsub.f32 %v757, %v1652
        %v1911 = vsub.f32 %v758, %v1652
        %v1912 = vsub.f32 %v759, %v1652
        %v1913 = vsub.f32 %v760, %v1652
        %v1914 = vsub.f32 %v761, %v1652
        %v1915 = vsub.f32 %v762, %v1653
        %v1916 = vsub.f32 %v763, %v1653
        %v1917 = vsub.f32 %v764, %v1653
        %v1918 = vsub.f32 %v765, %v1653
        %v1919 = vsub.f32 %v766, %v1653
        %v1920 = vsub.f32 %v767, %v1653
        %v1921 = vsub.f32 %v768, %v1653
        %v1922 = vsub.f32 %v769, %v1654
        %v1923 = vsub.f32 %v770, %v1654
        %v1924 = vsub.f32 %v771, %v1654
        %v1925 = vsub.f32 %v772, %v1654
        %v1926 = vsub.f32 %v773, %v1654
        %v1927 = vsub.f32 %v774, %v1654
        %v1928 = vsub.f32 %v775, %v1654
        %v1929 = vsub.f32 %v776, %v1655
        %v1930 = vsub.f32 %v777, %v1655
        %v1931 = vsub.f32 %v778, %v1655
        %v1932 = vsub.f32 %v779, %v1655
        %v1933 = vsub.f32 %v780, %v1655
        %v1934 = vsub.f32 %v781, %v1655
        %v1935 = vsub.f32 %v782, %v1655
        %v1936 = vsub.f32 %v783, %v1656
        %v1937 = vsub.f32 %v784, %v1656
        %v1938 = vsub.f32 %v785, %v1656
        %v1939 = vsub.f32 %v786, %v1656
        %v1940 = vsub.f32 %v787, %v1656
        %v1941 = vsub.f32 %v788, %v1656
        %v1942 = vsub.f32 %v789, %v1656
        %v1943 = vsub.f32 %v790, %v1657
        %v1944 = vsub.f32 %v791, %v1657
        %v1945 = vsub.f32 %v792, %v1657
        %v1946 = vsub.f32 %v793, %v1657
        %v1947 = vsub.f32 %v794, %v1657
        %v1948 = vsub.f32 %v795, %v1657
        %v1949 = vsub.f32 %v796, %v1657
        %v1950 = vsub.f32 %v797, %v1658
        %v1951 = vsub.f32 %v798, %v1658
        %v1952 = vsub.f32 %v799, %v1658
        %v1953 = vsub.f32 %v800, %v1658
        %v1954 = vsub.f32 %v801, %v1658
        %v1955 = vsub.f32 %v802, %v1658
        %v1956 = vsub.f32 %v803, %v1658
        %v1957 = vsub.f32 %v804, %v1659
        %v1958 = vsub.f32 %v805, %v1659
        %v1959 = vsub.f32 %v806, %v1659
        %v1960 = vsub.f32 %v807, %v1659
        %v1961 = vsub.f32 %v808, %v1659
        %v1962 = vsub.f32 %v809, %v1659
        %v1963 = vsub.f32 %v810, %v1659
        %v1964 = vsub.f32 %v811, %v1660
        %v1965 = vsub.f32 %v812, %v1660
        %v1966 = vsub.f32 %v813, %v1660
        %v1967 = vsub.f32 %v814, %v1660
        %v1968 = vsub.f32 %v815, %v1660
        %v1969 = vsub.f32 %v816, %v1660
        %v1970 = vsub.f32 %v817, %v1660
        %v1971 = vsub.f32 %v818, %v1661
        %v1972 = vsub.f32 %v819, %v1661
        %v1973 = vsub.f32 %v820, %v1661
        %v1974 = vsub.f32 %v821, %v1661
        %v1975 = vsub.f32 %v822, %v1661
        %v1976 = vsub.f32 %v823, %v1661
        %v1977 = vsub.f32 %v824, %v1661
        %v1978 = vsub.f32 %v825, %v1662
        %v1979 = vsub.f32 %v826, %v1662
        %v1980 = vsub.f32 %v827, %v1662
        %v1981 = vsub.f32 %v828, %v1662
        %v1982 = vsub.f32 %v829, %v1662
        %v1983 = vsub.f32 %v830, %v1662
        %v1984 = vsub.f32 %v831, %v1662
        %v1985 = vsub.f32 %v832, %v1663
        %v1986 = vsub.f32 %v833, %v1663
        %v1987 = vsub.f32 %v834, %v1663
        %v1988 = vsub.f32 %v835, %v1663
        %v1989 = vsub.f32 %v836, %v1663
        %v1990 = vsub.f32 %v837, %v1663
        %v1991 = vsub.f32 %v838, %v1663
        %v1992 = vsub.f32 %v839, %v1664
        %v1993 = vsub.f32 %v840, %v1664
        %v1994 = vsub.f32 %v841, %v1664
        %v1995 = vsub.f32 %v842, %v1664
        %v1996 = vsub.f32 %v843, %v1664
        %v1997 = vsub.f32 %v844, %v1664
        %v1998 = vsub.f32 %v845, %v1664
        %v1999 = vsub.f32 %v846, %v1665
        %v2000 = vsub.f32 %v847, %v1665
        %v2001 = vsub.f32 %v848, %v1665
        %v2002 = vsub.f32 %v849, %v1665
        %v2003 = vsub.f32 %v850, %v1665
        %v2004 = vsub.f32 %v851, %v1665
        %v2005 = vsub.f32 %v852, %v1665
        %v2006 = vsub.f32 %v853, %v1666
        %v2007 = vsub.f32 %v854, %v1666
        %v2008 = vsub.f32 %v855, %v1666
        %v2009 = vsub.f32 %v856, %v1666
        %v2010 = vsub.f32 %v857, %v1666
        %v2011 = vsub.f32 %v858, %v1666
        %v2012 = vsub.f32 %v859, %v1666
        %v2013 = vsub.f32 %v860, %v1667
        %v2014 = vsub.f32 %v861, %v1667
        %v2015 = vsub.f32 %v862, %v1667
        %v2016 = vsub.f32 %v863, %v1667
        %v2017 = vsub.f32 %v864, %v1667
        %v2018 = vsub.f32 %v865, %v1667
        %v2019 = vsub.f32 %v866, %v1667
        %v2020 = vsub.f32 %v867, %v1668
        %v2021 = vsub.f32 %v868, %v1668
        %v2022 = vsub.f32 %v869, %v1668
        %v2023 = vsub.f32 %v870, %v1668
        %v2024 = vsub.f32 %v871, %v1668
        %v2025 = vsub.f32 %v872, %v1668
        %v2026 = vsub.f32 %v873, %v1668
        %v2027 = vsub.f32 %v874, %v1669
        %v2028 = vsub.f32 %v875, %v1669
        %v2029 = vsub.f32 %v876, %v1669
        %v2030 = vsub.f32 %v877, %v1669
        %v2031 = vsub.f32 %v878, %v1669
        %v2032 = vsub.f32 %v879, %v1669
        %v2033 = vsub.f32 %v880, %v1669
        %v2034 = vsub.f32 %v881, %v1670
        %v2035 = vsub.f32 %v882, %v1670
        %v2036 = vsub.f32 %v883, %v1670
        %v2037 = vsub.f32 %v884, %v1670
        %v2038 = vsub.f32 %v885, %v1670
        %v2039 = vsub.f32 %v886, %v1670
        %v2040 = vsub.f32 %v887, %v1670
        %v2041 = vsub.f32 %v888, %v1671
        %v2042 = vsub.f32 %v889, %v1671
        %v2043 = vsub.f32 %v890, %v1671
        %v2044 = vsub.f32 %v891, %v1671
        %v2045 = vsub.f32 %v892, %v1671
        %v2046 = vsub.f32 %v893, %v1671
        %v2047 = vsub.f32 %v894, %v1671
        %v2048 = vsub.f32 %v895, %v1672
        %v2049 = vsub.f32 %v896, %v1672
        %v2050 = vsub.f32 %v897, %v1672
        %v2051 = vsub.f32 %v898, %v1672
        %v2052 = vsub.f32 %v899, %v1672
        %v2053 = vsub.f32 %v900, %v1672
        %v2054 = vsub.f32 %v901, %v1672
        %v2055 = vsub.f32 %v902, %v1673
        %v2056 = vsub.f32 %v903, %v1673
        %v2057 = vsub.f32 %v904, %v1673
        %v2058 = vsub.f32 %v905, %v1673
        %v2059 = vsub.f32 %v906, %v1673
        %v2060 = vsub.f32 %v907, %v1673
        %v2061 = vsub.f32 %v908, %v1673
        %v2062 = vsub.f32 %v909, %v1674
        %v2063 = vsub.f32 %v910, %v1674
        %v2064 = vsub.f32 %v911, %v1674
        %v2065 = vsub.f32 %v912, %v1674
        %v2066 = vsub.f32 %v913, %v1674
        %v2067 = vsub.f32 %v914, %v1674
        %v2068 = vsub.f32 %v915, %v1674
        %v2069 = vsub.f32 %v916, %v1675
        %v2070 = vsub.f32 %v917, %v1675
        %v2071 = vsub.f32 %v918, %v1675
        %v2072 = vsub.f32 %v919, %v1675
        %v2073 = vsub.f32 %v920, %v1675
        %v2074 = vsub.f32 %v921, %v1675
        %v2075 = vsub.f32 %v922, %v1675
        %v2076 = vsub.f32 %v923, %v1676
        %v2077 = vsub.f32 %v924, %v1676
        %v2078 = vsub.f32 %v925, %v1676
        %v2079 = vsub.f32 %v926, %v1676
        %v2080 = vsub.f32 %v927, %v1676
        %v2081 = vsub.f32 %v928, %v1676
        %v2082 = vsub.f32 %v929, %v1676
        %v2083 = vsub.f32 %v930, %v1677
        %v2084 = vsub.f32 %v931, %v1677
        %v2085 = vsub.f32 %v932, %v1677
        %v2086 = vsub.f32 %v933, %v1677
        %v2087 = vsub.f32 %v934, %v1677
        %v2088 = vsub.f32 %v935, %v1677
        %v2089 = vsub.f32 %v936, %v1677
        %v2090 = vsub.f32 %v937, %v1678
        %v2091 = vsub.f32 %v938, %v1678
        %v2092 = vsub.f32 %v939, %v1678
        %v2093 = vsub.f32 %v940, %v1678
        %v2094 = vsub.f32 %v941, %v1678
        %v2095 = vsub.f32 %v942, %v1678
        %v2096 = vsub.f32 %v943, %v1678
        %v2097 = vsub.f32 %v944, %v1679
        %v2098 = vsub.f32 %v945, %v1679
        %v2099 = vsub.f32 %v946, %v1679
        %v2100 = vsub.f32 %v947, %v1679
        %v2101 = vsub.f32 %v948, %v1679
        %v2102 = vsub.f32 %v949, %v1679
        %v2103 = vsub.f32 %v950, %v1679
        %v2104 = vsub.f32 %v951, %v1680
        %v2105 = vsub.f32 %v952, %v1680
        %v2106 = vsub.f32 %v953, %v1680
        %v2107 = vsub.f32 %v954, %v1680
        %v2108 = vsub.f32 %v955, %v1680
        %v2109 = vsub.f32 %v956, %v1680
        %v2110 = vsub.f32 %v957, %v1680
        %v2111 = vsub.f32 %v958, %v1681
        %v2112 = vsub.f32 %v959, %v1681
        %v2113 = vsub.f32 %v960, %v1681
        %v2114 = vsub.f32 %v961, %v1681
        %v2115 = vsub.f32 %v962, %v1681
        %v2116 = vsub.f32 %v963, %v1681
        %v2117 = vsub.f32 %v964, %v1681
        %v2118 = vsub.f32 %v965, %v1682
        %v2119 = vsub.f32 %v966, %v1682
        %v2120 = vsub.f32 %v967, %v1682
        %v2121 = vsub.f32 %v968, %v1682
        %v2122 = vsub.f32 %v969, %v1682
        %v2123 = vsub.f32 %v970, %v1682
        %v2124 = vsub.f32 %v971, %v1682
        %v2125 = vsub.f32 %v972, %v1683
        %v2126 = vsub.f32 %v973, %v1683
        %v2127 = vsub.f32 %v974, %v1683
        %v2128 = vsub.f32 %v975, %v1683
        %v2129 = vsub.f32 %v976, %v1683
        %v2130 = vsub.f32 %v977, %v1683
        %v2131 = vsub.f32 %v978, %v1683
        %v2132 = vmul.f32 %v1684, %v1684
        %v2133 = vmul.f32 %v1685, %v1685
        %v2134 = vmul.f32 %v1686, %v1686
        %v2135 = vmul.f32 %v1687, %v1687
        %v2136 = vmul.f32 %v1688, %v1688
        %v2137 = vmul.f32 %v1689, %v1689
        %v2138 = vmul.f32 %v1690, %v1690
        %v2139 = vmul.f32 %v1691, %v1691
        %v2140 = vmul.f32 %v1692, %v1692
        %v2141 = vmul.f32 %v1693, %v1693
        %v2142 = vmul.f32 %v1694, %v1694
        %v2143 = vmul.f32 %v1695, %v1695
        %v2144 = vmul.f32 %v1696, %v1696
        %v2145 = vmul.f32 %v1697, %v1697
        %v2146 = vmul.f32 %v1698, %v1698
        %v2147 = vmul.f32 %v1699, %v1699
        %v2148 = vmul.f32 %v1700, %v1700
        %v2149 = vmul.f32 %v1701, %v1701
        %v2150 = vmul.f32 %v1702, %v1702
        %v2151 = vmul.f32 %v1703, %v1703
        %v2152 = vmul.f32 %v1704, %v1704
        %v2153 = vmul.f32 %v1705, %v1705
        %v2154 = vmul.f32 %v1706, %v1706
        %v2155 = vmul.f32 %v1707, %v1707
        %v2156 = vmul.f32 %v1708, %v1708
        %v2157 = vmul.f32 %v1709, %v1709
        %v2158 = vmul.f32 %v1710, %v1710
        %v2159 = vmul.f32 %v1711, %v1711
        %v2160 = vmul.f32 %v1712, %v1712
        %v2161 = vmul.f32 %v1713, %v1713
        %v2162 = vmul.f32 %v1714, %v1714
        %v2163 = vmul.f32 %v1715, %v1715
        %v2164 = vmul.f32 %v1716, %v1716
        %v2165 = vmul.f32 %v1717, %v1717
        %v2166 = vmul.f32 %v1718, %v1718
        %v2167 = vmul.f32 %v1719, %v1719
        %v2168 = vmul.f32 %v1720, %v1720
        %v2169 = vmul.f32 %v1721, %v1721
        %v2170 = vmul.f32 %v1722, %v1722
        %v2171 = vmul.f32 %v1723, %v1723
        %v2172 = vmul.f32 %v1724, %v1724
        %v2173 = vmul.f32 %v1725, %v1725
        %v2174 = vmul.f32 %v1726, %v1726
        %v2175 = vmul.f32 %v1727, %v1727
        %v2176 = vmul.f32 %v1728, %v1728
        %v2177 = vmul.f32 %v1729, %v1729
        %v2178 = vmul.f32 %v1730, %v1730
        %v2179 = vmul.f32 %v1731, %v1731
        %v2180 = vmul.f32 %v1732, %v1732
        %v2181 = vmul.f32 %v1733, %v1733
        %v2182 = vmul.f32 %v1734, %v1734
        %v2183 = vmul.f32 %v1735, %v1735
        %v2184 = vmul.f32 %v1736, %v1736
        %v2185 = vmul.f32 %v1737, %v1737
        %v2186 = vmul.f32 %v1738, %v1738
        %v2187 = vmul.f32 %v1739, %v1739
        %v2188 = vmul.f32 %v1740, %v1740
        %v2189 = vmul.f32 %v1741, %v1741
        %v2190 = vmul.f32 %v1742, %v1742
        %v2191 = vmul.f32 %v1743, %v1743
        %v2192 = vmul.f32 %v1744, %v1744
        %v2193 = vmul.f32 %v1745, %v1745
        %v2194 = vmul.f32 %v1746, %v1746
        %v2195 = vmul.f32 %v1747, %v1747
        %v2196 = vmul.f32 %v1748, %v1748
        %v2197 = vmul.f32 %v1749, %v1749
        %v2198 = vmul.f32 %v1750, %v1750
        %v2199 = vmul.f32 %v1751, %v1751
        %v2200 = vmul.f32 %v1752, %v1752
        %v2201 = vmul.f32 %v1753, %v1753
        %v2202 = vmul.f32 %v1754, %v1754
        %v2203 = vmul.f32 %v1755, %v1755
        %v2204 = vmul.f32 %v1756, %v1756
        %v2205 = vmul.f32 %v1757, %v1757
        %v2206 = vmul.f32 %v1758, %v1758
        %v2207 = vmul.f32 %v1759, %v1759
        %v2208 = vmul.f32 %v1760, %v1760
        %v2209 = vmul.f32 %v1761, %v1761
        %v2210 = vmul.f32 %v1762, %v1762
        %v2211 = vmul.f32 %v1763, %v1763
        %v2212 = vmul.f32 %v1764, %v1764
        %v2213 = vmul.f32 %v1765, %v1765
        %v2214 = vmul.f32 %v1766, %v1766
        %v2215 = vmul.f32 %v1767, %v1767
        %v2216 = vmul.f32 %v1768, %v1768
        %v2217 = vmul.f32 %v1769, %v1769
        %v2218 = vmul.f32 %v1770, %v1770
        %v2219 = vmul.f32 %v1771, %v1771
        %v2220 = vmul.f32 %v1772, %v1772
        %v2221 = vmul.f32 %v1773, %v1773
        %v2222 = vmul.f32 %v1774, %v1774
        %v2223 = vmul.f32 %v1775, %v1775
        %v2224 = vmul.f32 %v1776, %v1776
        %v2225 = vmul.f32 %v1777, %v1777
        %v2226 = vmul.f32 %v1778, %v1778
        %v2227 = vmul.f32 %v1779, %v1779
        %v2228 = vmul.f32 %v1780, %v1780
        %v2229 = vmul.f32 %v1781, %v1781
        %v2230 = vmul.f32 %v1782, %v1782
        %v2231 = vmul.f32 %v1783, %v1783
        %v2232 = vmul.f32 %v1784, %v1784
        %v2233 = vmul.f32 %v1785, %v1785
        %v2234 = vmul.f32 %v1786, %v1786
        %v2235 = vmul.f32 %v1787, %v1787
        %v2236 = vmul.f32 %v1788, %v1788
        %v2237 = vmul.f32 %v1789, %v1789
        %v2238 = vmul.f32 %v1790, %v1790
        %v2239 = vmul.f32 %v1791, %v1791
        %v2240 = vmul.f32 %v1792, %v1792
        %v2241 = vmul.f32 %v1793, %v1793
        %v2242 = vmul.f32 %v1794, %v1794
        %v2243 = vmul.f32 %v1795, %v1795
        %v2244 = vmul.f32 %v1796, %v1796
        %v2245 = vmul.f32 %v1797, %v1797
        %v2246 = vmul.f32 %v1798, %v1798
        %v2247 = vmul.f32 %v1799, %v1799
        %v2248 = vmul.f32 %v1800, %v1800
        %v2249 = vmul.f32 %v1801, %v1801
        %v2250 = vmul.f32 %v1802, %v1802
        %v2251 = vmul.f32 %v1803, %v1803
        %v2252 = vmul.f32 %v1804, %v1804
        %v2253 = vmul.f32 %v1805, %v1805
        %v2254 = vmul.f32 %v1806, %v1806
        %v2255 = vmul.f32 %v1807, %v1807
        %v2256 = vmul.f32 %v1808, %v1808
        %v2257 = vmul.f32 %v1809, %v1809
        %v2258 = vmul.f32 %v1810, %v1810
        %v2259 = vmul.f32 %v1811, %v1811
        %v2260 = vmul.f32 %v1812, %v1812
        %v2261 = vmul.f32 %v1813, %v1813
        %v2262 = vmul.f32 %v1814, %v1814
        %v2263 = vmul.f32 %v1815, %v1815
        %v2264 = vmul.f32 %v1816, %v1816
        %v2265 = vmul.f32 %v1817, %v1817
        %v2266 = vmul.f32 %v1818, %v1818
        %v2267 = vmul.f32 %v1819, %v1819
        %v2268 = vmul.f32 %v1820, %v1820
        %v2269 = vmul.f32 %v1821, %v1821
        %v2270 = vmul.f32 %v1822, %v1822
        %v2271 = vmul.f32 %v1823, %v1823
        %v2272 = vmul.f32 %v1824, %v1824
        %v2273 = vmul.f32 %v1825, %v1825
        %v2274 = vmul.f32 %v1826, %v1826
        %v2275 = vmul.f32 %v1827, %v1827
        %v2276 = vmul.f32 %v1828, %v1828
        %v2277 = vmul.f32 %v1829, %v1829
        %v2278 = vmul.f32 %v1830, %v1830
        %v2279 = vmul.f32 %v1831, %v1831
        %v2280 = vmul.f32 %v1832, %v1832
        %v2281 = vmul.f32 %v1833, %v1833
        %v2282 = vmul.f32 %v1834, %v1834
        %v2283 = vmul.f32 %v1835, %v1835
        %v2284 = vmul.f32 %v1836, %v1836
        %v2285 = vmul.f32 %v1837, %v1837
        %v2286 = vmul.f32 %v1838, %v1838
        %v2287 = vmul.f32 %v1839, %v1839
        %v2288 = vmul.f32 %v1840, %v1840
        %v2289 = vmul.f32 %v1841, %v1841
        %v2290 = vmul.f32 %v1842, %v1842
        %v2291 = vmul.f32 %v1843, %v1843
        %v2292 = vmul.f32 %v1844, %v1844
        %v2293 = vmul.f32 %v1845, %v1845
        %v2294 = vmul.f32 %v1846, %v1846
        %v2295 = vmul.f32 %v1847, %v1847
        %v2296 = vmul.f32 %v1848, %v1848
        %v2297 = vmul.f32 %v1849, %v1849
        %v2298 = vmul.f32 %v1850, %v1850
        %v2299 = vmul.f32 %v1851, %v1851
        %v2300 = vmul.f32 %v1852, %v1852
        %v2301 = vmul.f32 %v1853, %v1853
        %v2302 = vmul.f32 %v1854, %v1854
        %v2303 = vmul.f32 %v1855, %v1855
        %v2304 = vmul.f32 %v1856, %v1856
        %v2305 = vmul.f32 %v1857, %v1857
        %v2306 = vmul.f32 %v1858, %v1858
        %v2307 = vmul.f32 %v1859, %v1859
        %v2308 = vmul.f32 %v1860, %v1860
        %v2309 = vmul.f32 %v1861, %v1861
        %v2310 = vmul.f32 %v1862, %v1862
        %v2311 = vmul.f32 %v1863, %v1863
        %v2312 = vmul.f32 %v1864, %v1864
        %v2313 = vmul.f32 %v1865, %v1865
        %v2314 = vmul.f32 %v1866, %v1866
        %v2315 = vmul.f32 %v1867, %v1867
        %v2316 = vmul.f32 %v1868, %v1868
        %v2317 = vmul.f32 %v1869, %v1869
        %v2318 = vmul.f32 %v1870, %v1870
        %v2319 = vmul.f32 %v1871, %v1871
        %v2320 = vmul.f32 %v1872, %v1872
        %v2321 = vmul.f32 %v1873, %v1873
        %v2322 = vmul.f32 %v1874, %v1874
        %v2323 = vmul.f32 %v1875, %v1875
        %v2324 = vmul.f32 %v1876, %v1876
        %v2325 = vmul.f32 %v1877, %v1877
        %v2326 = vmul.f32 %v1878, %v1878
        %v2327 = vmul.f32 %v1879, %v1879
        %v2328 = vmul.f32 %v1880, %v1880
        %v2329 = vmul.f32 %v1881, %v1881
        %v2330 = vmul.f32 %v1882, %v1882
        %v2331 = vmul.f32 %v1883, %v1883
        %v2332 = vmul.f32 %v1884, %v1884
        %v2333 = vmul.f32 %v1885, %v1885
        %v2334 = vmul.f32 %v1886, %v1886
        %v2335 = vmul.f32 %v1887, %v1887
        %v2336 = vmul.f32 %v1888, %v1888
        %v2337 = vmul.f32 %v1889, %v1889
        %v2338 = vmul.f32 %v1890, %v1890
        %v2339 = vmul.f32 %v1891, %v1891
        %v2340 = vmul.f32 %v1892, %v1892
        %v2341 = vmul.f32 %v1893, %v1893
        %v2342 = vmul.f32 %v1894, %v1894
        %v2343 = vmul.f32 %v1895, %v1895
        %v2344 = vmul.f32 %v1896, %v1896
        %v2345 = vmul.f32 %v1897, %v1897
        %v2346 = vmul.f32 %v1898, %v1898
        %v2347 = vmul.f32 %v1899, %v1899
        %v2348 = vmul.f32 %v1900, %v1900
        %v2349 = vmul.f32 %v1901, %v1901
        %v2350 = vmul.f32 %v1902, %v1902
        %v2351 = vmul.f32 %v1903, %v1903
        %v2352 = vmul.f32 %v1904, %v1904
        %v2353 = vmul.f32 %v1905, %v1905
        %v2354 = vmul.f32 %v1906, %v1906
        %v2355 = vmul.f32 %v1907, %v1907
        %v2356 = vmul.f32 %v1908, %v1908
        %v2357 = vmul.f32 %v1909, %v1909
        %v2358 = vmul.f32 %v1910, %v1910
        %v2359 = vmul.f32 %v1911, %v1911
        %v2360 = vmul.f32 %v1912, %v1912
        %v2361 = vmul.f32 %v1913, %v1913
        %v2362 = vmul.f32 %v1914, %v1914
        %v2363 = vmul.f32 %v1915, %v1915
        %v2364 = vmul.f32 %v1916, %v1916
        %v2365 = vmul.f32 %v1917, %v1917
        %v2366 = vmul.f32 %v1918, %v1918
        %v2367 = vmul.f32 %v1919, %v1919
        %v2368 = vmul.f32 %v1920, %v1920
        %v2369 = vmul.f32 %v1921, %v1921
        %v2370 = vmul.f32 %v1922, %v1922
        %v2371 = vmul.f32 %v1923, %v1923
        %v2372 = vmul.f32 %v1924, %v1924
        %v2373 = vmul.f32 %v1925, %v1925
        %v2374 = vmul.f32 %v1926, %v1926
        %v2375 = vmul.f32 %v1927, %v1927
        %v2376 = vmul.f32 %v1928, %v1928
        %v2377 = vmul.f32 %v1929, %v1929
        %v2378 = vmul.f32 %v1930, %v1930
        %v2379 = vmul.f32 %v1931, %v1931
        %v2380 = vmul.f32 %v1932, %v1932
        %v2381 = vmul.f32 %v1933, %v1933
        %v2382 = vmul.f32 %v1934, %v1934
        %v2383 = vmul.f32 %v1935, %v1935
        %v2384 = vmul.f32 %v1936, %v1936
        %v2385 = vmul.f32 %v1937, %v1937
        %v2386 = vmul.f32 %v1938, %v1938
        %v2387 = vmul.f32 %v1939, %v1939
        %v2388 = vmul.f32 %v1940, %v1940
        %v2389 = vmul.f32 %v1941, %v1941
        %v2390 = vmul.f32 %v1942, %v1942
        %v2391 = vmul.f32 %v1943, %v1943
        %v2392 = vmul.f32 %v1944, %v1944
        %v2393 = vmul.f32 %v1945, %v1945
        %v2394 = vmul.f32 %v1946, %v1946
        %v2395 = vmul.f32 %v1947, %v1947
        %v2396 = vmul.f32 %v1948, %v1948
        %v2397 = vmul.f32 %v1949, %v1949
        %v2398 = vmul.f32 %v1950, %v1950
        %v2399 = vmul.f32 %v1951, %v1951
        %v2400 = vmul.f32 %v1952, %v1952
        %v2401 = vmul.f32 %v1953, %v1953
        %v2402 = vmul.f32 %v1954, %v1954
        %v2403 = vmul.f32 %v1955, %v1955
        %v2404 = vmul.f32 %v1956, %v1956
        %v2405 = vmul.f32 %v1957, %v1957
        %v2406 = vmul.f32 %v1958, %v1958
        %v2407 = vmul.f32 %v1959, %v1959
        %v2408 = vmul.f32 %v1960, %v1960
        %v2409 = vmul.f32 %v1961, %v1961
        %v2410 = vmul.f32 %v1962, %v1962
        %v2411 = vmul.f32 %v1963, %v1963
        %v2412 = vmul.f32 %v1964, %v1964
        %v2413 = vmul.f32 %v1965, %v1965
        %v2414 = vmul.f32 %v1966, %v1966
        %v2415 = vmul.f32 %v1967, %v1967
        %v2416 = vmul.f32 %v1968, %v1968
        %v2417 = vmul.f32 %v1969, %v1969
        %v2418 = vmul.f32 %v1970, %v1970
        %v2419 = vmul.f32 %v1971, %v1971
        %v2420 = vmul.f32 %v1972, %v1972
        %v2421 = vmul.f32 %v1973, %v1973
        %v2422 = vmul.f32 %v1974, %v1974
        %v2423 = vmul.f32 %v1975, %v1975
        %v2424 = vmul.f32 %v1976, %v1976
        %v2425 = vmul.f32 %v1977, %v1977
        %v2426 = vmul.f32 %v1978, %v1978
        %v2427 = vmul.f32 %v1979, %v1979
        %v2428 = vmul.f32 %v1980, %v1980
        %v2429 = vmul.f32 %v1981, %v1981
        %v2430 = vmul.f32 %v1982, %v1982
        %v2431 = vmul.f32 %v1983, %v1983
        %v2432 = vmul.f32 %v1984, %v1984
        %v2433 = vmul.f32 %v1985, %v1985
        %v2434 = vmul.f32 %v1986, %v1986
        %v2435 = vmul.f32 %v1987, %v1987
        %v2436 = vmul.f32 %v1988, %v1988
        %v2437 = vmul.f32 %v1989, %v1989
        %v2438 = vmul.f32 %v1990, %v1990
        %v2439 = vmul.f32 %v1991, %v1991
        %v2440 = vmul.f32 %v1992, %v1992
        %v2441 = vmul.f32 %v1993, %v1993
        %v2442 = vmul.f32 %v1994, %v1994
        %v2443 = vmul.f32 %v1995, %v1995
        %v2444 = vmul.f32 %v1996, %v1996
        %v2445 = vmul.f32 %v1997, %v1997
        %v2446 = vmul.f32 %v1998, %v1998
        %v2447 = vmul.f32 %v1999, %v1999
        %v2448 = vmul.f32 %v2000, %v2000
        %v2449 = vmul.f32 %v2001, %v2001
        %v2450 = vmul.f32 %v2002, %v2002
        %v2451 = vmul.f32 %v2003, %v2003
        %v2452 = vmul.f32 %v2004, %v2004
        %v2453 = vmul.f32 %v2005, %v2005
        %v2454 = vmul.f32 %v2006, %v2006
        %v2455 = vmul.f32 %v2007, %v2007
        %v2456 = vmul.f32 %v2008, %v2008
        %v2457 = vmul.f32 %v2009, %v2009
        %v2458 = vmul.f32 %v2010, %v2010
        %v2459 = vmul.f32 %v2011, %v2011
        %v2460 = vmul.f32 %v2012, %v2012
        %v2461 = vmul.f32 %v2013, %v2013
        %v2462 = vmul.f32 %v2014, %v2014
        %v2463 = vmul.f32 %v2015, %v2015
        %v2464 = vmul.f32 %v2016, %v2016
        %v2465 = vmul.f32 %v2017, %v2017
        %v2466 = vmul.f32 %v2018, %v2018
        %v2467 = vmul.f32 %v2019, %v2019
        %v2468 = vmul.f32 %v2020, %v2020
        %v2469 = vmul.f32 %v2021, %v2021
        %v2470 = vmul.f32 %v2022, %v2022
        %v2471 = vmul.f32 %v2023, %v2023
        %v2472 = vmul.f32 %v2024, %v2024
        %v2473 = vmul.f32 %v2025, %v2025
        %v2474 = vmul.f32 %v2026, %v2026
        %v2475 = vmul.f32 %v2027, %v2027
        %v2476 = vmul.f32 %v2028, %v2028
        %v2477 = vmul.f32 %v2029, %v2029
        %v2478 = vmul.f32 %v2030, %v2030
        %v2479 = vmul.f32 %v2031, %v2031
        %v2480 = vmul.f32 %v2032, %v2032
        %v2481 = vmul.f32 %v2033, %v2033
        %v2482 = vmul.f32 %v2034, %v2034
        %v2483 = vmul.f32 %v2035, %v2035
        %v2484 = vmul.f32 %v2036, %v2036
        %v2485 = vmul.f32 %v2037, %v2037
        %v2486 = vmul.f32 %v2038, %v2038
        %v2487 = vmul.f32 %v2039, %v2039
        %v2488 = vmul.f32 %v2040, %v2040
        %v2489 = vmul.f32 %v2041, %v2041
        %v2490 = vmul.f32 %v2042, %v2042
        %v2491 = vmul.f32 %v2043, %v2043
        %v2492 = vmul.f32 %v2044, %v2044
        %v2493 = vmul.f32 %v2045, %v2045
        %v2494 = vmul.f32 %v2046, %v2046
        %v2495 = vmul.f32 %v2047, %v2047
        %v2496 = vmul.f32 %v2048, %v2048
        %v2497 = vmul.f32 %v2049, %v2049
        %v2498 = vmul.f32 %v2050, %v2050
        %v2499 = vmul.f32 %v2051, %v2051
        %v2500 = vmul.f32 %v2052, %v2052
        %v2501 = vmul.f32 %v2053, %v2053
        %v2502 = vmul.f32 %v2054, %v2054
        %v2503 = vmul.f32 %v2055, %v2055
        %v2504 = vmul.f32 %v2056, %v2056
        %v2505 = vmul.f32 %v2057, %v2057
        %v2506 = vmul.f32 %v2058, %v2058
        %v2507 = vmul.f32 %v2059, %v2059
        %v2508 = vmul.f32 %v2060, %v2060
        %v2509 = vmul.f32 %v2061, %v2061
        %v2510 = vmul.f32 %v2062, %v2062
        %v2511 = vmul.f32 %v2063, %v2063
        %v2512 = vmul.f32 %v2064, %v2064
        %v2513 = vmul.f32 %v2065, %v2065
        %v2514 = vmul.f32 %v2066, %v2066
        %v2515 = vmul.f32 %v2067, %v2067
        %v2516 = vmul.f32 %v2068, %v2068
        %v2517 = vmul.f32 %v2069, %v2069
        %v2518 = vmul.f32 %v2070, %v2070
        %v2519 = vmul.f32 %v2071, %v2071
        %v2520 = vmul.f32 %v2072, %v2072
        %v2521 = vmul.f32 %v2073, %v2073
        %v2522 = vmul.f32 %v2074, %v2074
        %v2523 = vmul.f32 %v2075, %v2075
        %v2524 = vmul.f32 %v2076, %v2076
        %v2525 = vmul.f32 %v2077, %v2077
        %v2526 = vmul.f32 %v2078, %v2078
        %v2527 = vmul.f32 %v2079, %v2079
        %v2528 = vmul.f32 %v2080, %v2080
        %v2529 = vmul.f32 %v2081, %v2081
        %v2530 = vmul.f32 %v2082, %v2082
        %v2531 = vmul.f32 %v2083, %v2083
        %v2532 = vmul.f32 %v2084, %v2084
        %v2533 = vmul.f32 %v2085, %v2085
        %v2534 = vmul.f32 %v2086, %v2086
        %v2535 = vmul.f32 %v2087, %v2087
        %v2536 = vmul.f32 %v2088, %v2088
        %v2537 = vmul.f32 %v2089, %v2089
        %v2538 = vmul.f32 %v2090, %v2090
        %v2539 = vmul.f32 %v2091, %v2091
        %v2540 = vmul.f32 %v2092, %v2092
        %v2541 = vmul.f32 %v2093, %v2093
        %v2542 = vmul.f32 %v2094, %v2094
        %v2543 = vmul.f32 %v2095, %v2095
        %v2544 = vmul.f32 %v2096, %v2096
        %v2545 = vmul.f32 %v2097, %v2097
        %v2546 = vmul.f32 %v2098, %v2098
        %v2547 = vmul.f32 %v2099, %v2099
        %v2548 = vmul.f32 %v2100, %v2100
        %v2549 = vmul.f32 %v2101, %v2101
        %v2550 = vmul.f32 %v2102, %v2102
        %v2551 = vmul.f32 %v2103, %v2103
        %v2552 = vmul.f32 %v2104, %v2104
        %v2553 = vmul.f32 %v2105, %v2105
        %v2554 = vmul.f32 %v2106, %v2106
        %v2555 = vmul.f32 %v2107, %v2107
        %v2556 = vmul.f32 %v2108, %v2108
        %v2557 = vmul.f32 %v2109, %v2109
        %v2558 = vmul.f32 %v2110, %v2110
        %v2559 = vmul.f32 %v2111, %v2111
        %v2560 = vmul.f32 %v2112, %v2112
        %v2561 = vmul.f32 %v2113, %v2113
        %v2562 = vmul.f32 %v2114, %v2114
        %v2563 = vmul.f32 %v2115, %v2115
        %v2564 = vmul.f32 %v2116, %v2116
        %v2565 = vmul.f32 %v2117, %v2117
        %v2566 = vmul.f32 %v2118, %v2118
        %v2567 = vmul.f32 %v2119, %v2119
        %v2568 = vmul.f32 %v2120, %v2120
        %v2569 = vmul.f32 %v2121, %v2121
        %v2570 = vmul.f32 %v2122, %v2122
        %v2571 = vmul.f32 %v2123, %v2123
        %v2572 = vmul.f32 %v2124, %v2124
        %v2573 = vmul.f32 %v2125, %v2125
        %v2574 = vmul.f32 %v2126, %v2126
        %v2575 = vmul.f32 %v2127, %v2127
        %v2576 = vmul.f32 %v2128, %v2128
        %v2577 = vmul.f32 %v2129, %v2129
        %v2578 = vmul.f32 %v2130, %v2130
        %v2579 = vmul.f32 %v2131, %v2131
        %v2580 = vadd.f32 %v2132, %v2133
        %v2581 = vadd.f32 %v2580, %v2134
        %v2582 = vadd.f32 %v2581, %v2135
        %v2583 = vadd.f32 %v2582, %v2136
        %v2584 = vadd.f32 %v2583, %v2137
        %v2585 = vsel %vm1048, %v2138, 0.0
        %v2586 = vadd.f32 %v2584, %v2585
        %2587 = vadd.xlane.f32.xlu0 %v2586
        %v2588 = vpop.xlane.xlu0 %2587
        %v2589 = vadd.f32 %v2139, %v2140
        %v2590 = vadd.f32 %v2589, %v2141
        %v2591 = vadd.f32 %v2590, %v2142
        %v2592 = vadd.f32 %v2591, %v2143
        %v2593 = vadd.f32 %v2592, %v2144
        %v2594 = vsel %vm1048, %v2145, 0.0
        %v2595 = vadd.f32 %v2593, %v2594
        %2596 = vadd.xlane.f32.xlu0 %v2595
        %v2597 = vpop.xlane.xlu0 %2596
        %v2598 = vadd.f32 %v2146, %v2147
        %v2599 = vadd.f32 %v2598, %v2148
        %v2600 = vadd.f32 %v2599, %v2149
        %v2601 = vadd.f32 %v2600, %v2150
        %v2602 = vadd.f32 %v2601, %v2151
        %v2603 = vsel %vm1048, %v2152, 0.0
        %v2604 = vadd.f32 %v2602, %v2603
        %2605 = vadd.xlane.f32.xlu0 %v2604
        %v2606 = vpop.xlane.xlu0 %2605
        %v2607 = vadd.f32 %v2153, %v2154
        %v2608 = vadd.f32 %v2607, %v2155
        %v2609 = vadd.f32 %v2608, %v2156
        %v2610 = vadd.f32 %v2609, %v2157
        %v2611 = vadd.f32 %v2610, %v2158
        %v2612 = vsel %vm1048, %v2159, 0.0
        %v2613 = vadd.f32 %v2611, %v2612
        %2614 = vadd.xlane.f32.xlu0 %v2613
        %v2615 = vpop.xlane.xlu0 %2614
        %v2616 = vadd.f32 %v2160, %v2161
        %v2617 = vadd.f32 %v2616, %v2162
        %v2618 = vadd.f32 %v2617, %v2163
        %v2619 = vadd.f32 %v2618, %v2164
        %v2620 = vadd.f32 %v2619, %v2165
        %v2621 = vsel %vm1048, %v2166, 0.0
        %v2622 = vadd.f32 %v2620, %v2621
        %2623 = vadd.xlane.f32.xlu0 %v2622
        %v2624 = vpop.xlane.xlu0 %2623
        %v2625 = vadd.f32 %v2167, %v2168
        %v2626 = vadd.f32 %v2625, %v2169
        %v2627 = vadd.f32 %v2626, %v2170
        %v2628 = vadd.f32 %v2627, %v2171
        %v2629 = vadd.f32 %v2628, %v2172
        %v2630 = vsel %vm1048, %v2173, 0.0
        %v2631 = vadd.f32 %v2629, %v2630
        %2632 = vadd.xlane.f32.xlu0 %v2631
        %v2633 = vpop.xlane.xlu0 %2632
        %v2634 = vadd.f32 %v2174, %v2175
        %v2635 = vadd.f32 %v2634, %v2176
        %v2636 = vadd.f32 %v2635, %v2177
        %v2637 = vadd.f32 %v2636, %v2178
        %v2638 = vadd.f32 %v2637, %v2179
        %v2639 = vsel %vm1048, %v2180, 0.0
        %v2640 = vadd.f32 %v2638, %v2639
        %2641 = vadd.xlane.f32.xlu0 %v2640
        %v2642 = vpop.xlane.xlu0 %2641
        %v2643 = vadd.f32 %v2181, %v2182
        %v2644 = vadd.f32 %v2643, %v2183
        %v2645 = vadd.f32 %v2644, %v2184
        %v2646 = vadd.f32 %v2645, %v2185
        %v2647 = vadd.f32 %v2646, %v2186
        %v2648 = vsel %vm1048, %v2187, 0.0
        %v2649 = vadd.f32 %v2647, %v2648
        %2650 = vadd.xlane.f32.xlu0 %v2649
        %v2651 = vpop.xlane.xlu0 %2650
        %v2652 = vadd.f32 %v2188, %v2189
        %v2653 = vadd.f32 %v2652, %v2190
        %v2654 = vadd.f32 %v2653, %v2191
        %v2655 = vadd.f32 %v2654, %v2192
        %v2656 = vadd.f32 %v2655, %v2193
        %v2657 = vsel %vm1048, %v2194, 0.0
        %v2658 = vadd.f32 %v2656, %v2657
        %2659 = vadd.xlane.f32.xlu0 %v2658
        %v2660 = vpop.xlane.xlu0 %2659
        %v2661 = vadd.f32 %v2195, %v2196
        %v2662 = vadd.f32 %v2661, %v2197
        %v2663 = vadd.f32 %v2662, %v2198
        %v2664 = vadd.f32 %v2663, %v2199
        %v2665 = vadd.f32 %v2664, %v2200
        %v2666 = vsel %vm1048, %v2201, 0.0
        %v2667 = vadd.f32 %v2665, %v2666
        %2668 = vadd.xlane.f32.xlu0 %v2667
        %v2669 = vpop.xlane.xlu0 %2668
        %v2670 = vadd.f32 %v2202, %v2203
        %v2671 = vadd.f32 %v2670, %v2204
        %v2672 = vadd.f32 %v2671, %v2205
        %v2673 = vadd.f32 %v2672, %v2206
        %v2674 = vadd.f32 %v2673, %v2207
        %v2675 = vsel %vm1048, %v2208, 0.0
        %v2676 = vadd.f32 %v2674, %v2675
        %2677 = vadd.xlane.f32.xlu0 %v2676
        %v2678 = vpop.xlane.xlu0 %2677
        %v2679 = vadd.f32 %v2209, %v2210
        %v2680 = vadd.f32 %v2679, %v2211
        %v2681 = vadd.f32 %v2680, %v2212
        %v2682 = vadd.f32 %v2681, %v2213
        %v2683 = vadd.f32 %v2682, %v2214
        %v2684 = vsel %vm1048, %v2215, 0.0
        %v2685 = vadd.f32 %v2683, %v2684
        %2686 = vadd.xlane.f32.xlu0 %v2685
        %v2687 = vpop.xlane.xlu0 %2686
        %v2688 = vadd.f32 %v2216, %v2217
        %v2689 = vadd.f32 %v2688, %v2218
        %v2690 = vadd.f32 %v2689, %v2219
        %v2691 = vadd.f32 %v2690, %v2220
        %v2692 = vadd.f32 %v2691, %v2221
        %v2693 = vsel %vm1048, %v2222, 0.0
        %v2694 = vadd.f32 %v2692, %v2693
        %2695 = vadd.xlane.f32.xlu0 %v2694
        %v2696 = vpop.xlane.xlu0 %2695
        %v2697 = vadd.f32 %v2223, %v2224
        %v2698 = vadd.f32 %v2697, %v2225
        %v2699 = vadd.f32 %v2698, %v2226
        %v2700 = vadd.f32 %v2699, %v2227
        %v2701 = vadd.f32 %v2700, %v2228
        %v2702 = vsel %vm1048, %v2229, 0.0
        %v2703 = vadd.f32 %v2701, %v2702
        %2704 = vadd.xlane.f32.xlu0 %v2703
        %v2705 = vpop.xlane.xlu0 %2704
        %v2706 = vadd.f32 %v2230, %v2231
        %v2707 = vadd.f32 %v2706, %v2232
        %v2708 = vadd.f32 %v2707, %v2233
        %v2709 = vadd.f32 %v2708, %v2234
        %v2710 = vadd.f32 %v2709, %v2235
        %v2711 = vsel %vm1048, %v2236, 0.0
        %v2712 = vadd.f32 %v2710, %v2711
        %2713 = vadd.xlane.f32.xlu0 %v2712
        %v2714 = vpop.xlane.xlu0 %2713
        %v2715 = vadd.f32 %v2237, %v2238
        %v2716 = vadd.f32 %v2715, %v2239
        %v2717 = vadd.f32 %v2716, %v2240
        %v2718 = vadd.f32 %v2717, %v2241
        %v2719 = vadd.f32 %v2718, %v2242
        %v2720 = vsel %vm1048, %v2243, 0.0
        %v2721 = vadd.f32 %v2719, %v2720
        %2722 = vadd.xlane.f32.xlu0 %v2721
        %v2723 = vpop.xlane.xlu0 %2722
        %v2724 = vadd.f32 %v2244, %v2245
        %v2725 = vadd.f32 %v2724, %v2246
        %v2726 = vadd.f32 %v2725, %v2247
        %v2727 = vadd.f32 %v2726, %v2248
        %v2728 = vadd.f32 %v2727, %v2249
        %v2729 = vsel %vm1048, %v2250, 0.0
        %v2730 = vadd.f32 %v2728, %v2729
        %2731 = vadd.xlane.f32.xlu0 %v2730
        %v2732 = vpop.xlane.xlu0 %2731
        %v2733 = vadd.f32 %v2251, %v2252
        %v2734 = vadd.f32 %v2733, %v2253
        %v2735 = vadd.f32 %v2734, %v2254
        %v2736 = vadd.f32 %v2735, %v2255
        %v2737 = vadd.f32 %v2736, %v2256
        %v2738 = vsel %vm1048, %v2257, 0.0
        %v2739 = vadd.f32 %v2737, %v2738
        %2740 = vadd.xlane.f32.xlu0 %v2739
        %v2741 = vpop.xlane.xlu0 %2740
        %v2742 = vadd.f32 %v2258, %v2259
        %v2743 = vadd.f32 %v2742, %v2260
        %v2744 = vadd.f32 %v2743, %v2261
        %v2745 = vadd.f32 %v2744, %v2262
        %v2746 = vadd.f32 %v2745, %v2263
        %v2747 = vsel %vm1048, %v2264, 0.0
        %v2748 = vadd.f32 %v2746, %v2747
        %2749 = vadd.xlane.f32.xlu0 %v2748
        %v2750 = vpop.xlane.xlu0 %2749
        %v2751 = vadd.f32 %v2265, %v2266
        %v2752 = vadd.f32 %v2751, %v2267
        %v2753 = vadd.f32 %v2752, %v2268
        %v2754 = vadd.f32 %v2753, %v2269
        %v2755 = vadd.f32 %v2754, %v2270
        %v2756 = vsel %vm1048, %v2271, 0.0
        %v2757 = vadd.f32 %v2755, %v2756
        %2758 = vadd.xlane.f32.xlu0 %v2757
        %v2759 = vpop.xlane.xlu0 %2758
        %v2760 = vadd.f32 %v2272, %v2273
        %v2761 = vadd.f32 %v2760, %v2274
        %v2762 = vadd.f32 %v2761, %v2275
        %v2763 = vadd.f32 %v2762, %v2276
        %v2764 = vadd.f32 %v2763, %v2277
        %v2765 = vsel %vm1048, %v2278, 0.0
        %v2766 = vadd.f32 %v2764, %v2765
        %2767 = vadd.xlane.f32.xlu0 %v2766
        %v2768 = vpop.xlane.xlu0 %2767
        %v2769 = vadd.f32 %v2279, %v2280
        %v2770 = vadd.f32 %v2769, %v2281
        %v2771 = vadd.f32 %v2770, %v2282
        %v2772 = vadd.f32 %v2771, %v2283
        %v2773 = vadd.f32 %v2772, %v2284
        %v2774 = vsel %vm1048, %v2285, 0.0
        %v2775 = vadd.f32 %v2773, %v2774
        %2776 = vadd.xlane.f32.xlu0 %v2775
        %v2777 = vpop.xlane.xlu0 %2776
        %v2778 = vadd.f32 %v2286, %v2287
        %v2779 = vadd.f32 %v2778, %v2288
        %v2780 = vadd.f32 %v2779, %v2289
        %v2781 = vadd.f32 %v2780, %v2290
        %v2782 = vadd.f32 %v2781, %v2291
        %v2783 = vsel %vm1048, %v2292, 0.0
        %v2784 = vadd.f32 %v2782, %v2783
        %2785 = vadd.xlane.f32.xlu0 %v2784
        %v2786 = vpop.xlane.xlu0 %2785
        %v2787 = vadd.f32 %v2293, %v2294
        %v2788 = vadd.f32 %v2787, %v2295
        %v2789 = vadd.f32 %v2788, %v2296
        %v2790 = vadd.f32 %v2789, %v2297
        %v2791 = vadd.f32 %v2790, %v2298
        %v2792 = vsel %vm1048, %v2299, 0.0
        %v2793 = vadd.f32 %v2791, %v2792
        %2794 = vadd.xlane.f32.xlu0 %v2793
        %v2795 = vpop.xlane.xlu0 %2794
        %v2796 = vadd.f32 %v2300, %v2301
        %v2797 = vadd.f32 %v2796, %v2302
        %v2798 = vadd.f32 %v2797, %v2303
        %v2799 = vadd.f32 %v2798, %v2304
        %v2800 = vadd.f32 %v2799, %v2305
        %v2801 = vsel %vm1048, %v2306, 0.0
        %v2802 = vadd.f32 %v2800, %v2801
        %2803 = vadd.xlane.f32.xlu0 %v2802
        %v2804 = vpop.xlane.xlu0 %2803
        %v2805 = vadd.f32 %v2307, %v2308
        %v2806 = vadd.f32 %v2805, %v2309
        %v2807 = vadd.f32 %v2806, %v2310
        %v2808 = vadd.f32 %v2807, %v2311
        %v2809 = vadd.f32 %v2808, %v2312
        %v2810 = vsel %vm1048, %v2313, 0.0
        %v2811 = vadd.f32 %v2809, %v2810
        %2812 = vadd.xlane.f32.xlu0 %v2811
        %v2813 = vpop.xlane.xlu0 %2812
        %v2814 = vadd.f32 %v2314, %v2315
        %v2815 = vadd.f32 %v2814, %v2316
        %v2816 = vadd.f32 %v2815, %v2317
        %v2817 = vadd.f32 %v2816, %v2318
        %v2818 = vadd.f32 %v2817, %v2319
        %v2819 = vsel %vm1048, %v2320, 0.0
        %v2820 = vadd.f32 %v2818, %v2819
        %2821 = vadd.xlane.f32.xlu0 %v2820
        %v2822 = vpop.xlane.xlu0 %2821
        %v2823 = vadd.f32 %v2321, %v2322
        %v2824 = vadd.f32 %v2823, %v2323
        %v2825 = vadd.f32 %v2824, %v2324
        %v2826 = vadd.f32 %v2825, %v2325
        %v2827 = vadd.f32 %v2826, %v2326
        %v2828 = vsel %vm1048, %v2327, 0.0
        %v2829 = vadd.f32 %v2827, %v2828
        %2830 = vadd.xlane.f32.xlu0 %v2829
        %v2831 = vpop.xlane.xlu0 %2830
        %v2832 = vadd.f32 %v2328, %v2329
        %v2833 = vadd.f32 %v2832, %v2330
        %v2834 = vadd.f32 %v2833, %v2331
        %v2835 = vadd.f32 %v2834, %v2332
        %v2836 = vadd.f32 %v2835, %v2333
        %v2837 = vsel %vm1048, %v2334, 0.0
        %v2838 = vadd.f32 %v2836, %v2837
        %2839 = vadd.xlane.f32.xlu0 %v2838
        %v2840 = vpop.xlane.xlu0 %2839
        %v2841 = vadd.f32 %v2335, %v2336
        %v2842 = vadd.f32 %v2841, %v2337
        %v2843 = vadd.f32 %v2842, %v2338
        %v2844 = vadd.f32 %v2843, %v2339
        %v2845 = vadd.f32 %v2844, %v2340
        %v2846 = vsel %vm1048, %v2341, 0.0
        %v2847 = vadd.f32 %v2845, %v2846
        %2848 = vadd.xlane.f32.xlu0 %v2847
        %v2849 = vpop.xlane.xlu0 %2848
        %v2850 = vadd.f32 %v2342, %v2343
        %v2851 = vadd.f32 %v2850, %v2344
        %v2852 = vadd.f32 %v2851, %v2345
        %v2853 = vadd.f32 %v2852, %v2346
        %v2854 = vadd.f32 %v2853, %v2347
        %v2855 = vsel %vm1048, %v2348, 0.0
        %v2856 = vadd.f32 %v2854, %v2855
        %2857 = vadd.xlane.f32.xlu0 %v2856
        %v2858 = vpop.xlane.xlu0 %2857
        %v2859 = vadd.f32 %v2349, %v2350
        %v2860 = vadd.f32 %v2859, %v2351
        %v2861 = vadd.f32 %v2860, %v2352
        %v2862 = vadd.f32 %v2861, %v2353
        %v2863 = vadd.f32 %v2862, %v2354
        %v2864 = vsel %vm1048, %v2355, 0.0
        %v2865 = vadd.f32 %v2863, %v2864
        %2866 = vadd.xlane.f32.xlu0 %v2865
        %v2867 = vpop.xlane.xlu0 %2866
        %v2868 = vadd.f32 %v2356, %v2357
        %v2869 = vadd.f32 %v2868, %v2358
        %v2870 = vadd.f32 %v2869, %v2359
        %v2871 = vadd.f32 %v2870, %v2360
        %v2872 = vadd.f32 %v2871, %v2361
        %v2873 = vsel %vm1048, %v2362, 0.0
        %v2874 = vadd.f32 %v2872, %v2873
        %2875 = vadd.xlane.f32.xlu0 %v2874
        %v2876 = vpop.xlane.xlu0 %2875
        %v2877 = vadd.f32 %v2363, %v2364
        %v2878 = vadd.f32 %v2877, %v2365
        %v2879 = vadd.f32 %v2878, %v2366
        %v2880 = vadd.f32 %v2879, %v2367
        %v2881 = vadd.f32 %v2880, %v2368
        %v2882 = vsel %vm1048, %v2369, 0.0
        %v2883 = vadd.f32 %v2881, %v2882
        %2884 = vadd.xlane.f32.xlu0 %v2883
        %v2885 = vpop.xlane.xlu0 %2884
        %v2886 = vadd.f32 %v2370, %v2371
        %v2887 = vadd.f32 %v2886, %v2372
        %v2888 = vadd.f32 %v2887, %v2373
        %v2889 = vadd.f32 %v2888, %v2374
        %v2890 = vadd.f32 %v2889, %v2375
        %v2891 = vsel %vm1048, %v2376, 0.0
        %v2892 = vadd.f32 %v2890, %v2891
        %2893 = vadd.xlane.f32.xlu0 %v2892
        %v2894 = vpop.xlane.xlu0 %2893
        %v2895 = vadd.f32 %v2377, %v2378
        %v2896 = vadd.f32 %v2895, %v2379
        %v2897 = vadd.f32 %v2896, %v2380
        %v2898 = vadd.f32 %v2897, %v2381
        %v2899 = vadd.f32 %v2898, %v2382
        %v2900 = vsel %vm1048, %v2383, 0.0
        %v2901 = vadd.f32 %v2899, %v2900
        %2902 = vadd.xlane.f32.xlu0 %v2901
        %v2903 = vpop.xlane.xlu0 %2902
        %v2904 = vadd.f32 %v2384, %v2385
        %v2905 = vadd.f32 %v2904, %v2386
        %v2906 = vadd.f32 %v2905, %v2387
        %v2907 = vadd.f32 %v2906, %v2388
        %v2908 = vadd.f32 %v2907, %v2389
        %v2909 = vsel %vm1048, %v2390, 0.0
        %v2910 = vadd.f32 %v2908, %v2909
        %2911 = vadd.xlane.f32.xlu0 %v2910
        %v2912 = vpop.xlane.xlu0 %2911
        %v2913 = vadd.f32 %v2391, %v2392
        %v2914 = vadd.f32 %v2913, %v2393
        %v2915 = vadd.f32 %v2914, %v2394
        %v2916 = vadd.f32 %v2915, %v2395
        %v2917 = vadd.f32 %v2916, %v2396
        %v2918 = vsel %vm1048, %v2397, 0.0
        %v2919 = vadd.f32 %v2917, %v2918
        %2920 = vadd.xlane.f32.xlu0 %v2919
        %v2921 = vpop.xlane.xlu0 %2920
        %v2922 = vadd.f32 %v2398, %v2399
        %v2923 = vadd.f32 %v2922, %v2400
        %v2924 = vadd.f32 %v2923, %v2401
        %v2925 = vadd.f32 %v2924, %v2402
        %v2926 = vadd.f32 %v2925, %v2403
        %v2927 = vsel %vm1048, %v2404, 0.0
        %v2928 = vadd.f32 %v2926, %v2927
        %2929 = vadd.xlane.f32.xlu0 %v2928
        %v2930 = vpop.xlane.xlu0 %2929
        %v2931 = vadd.f32 %v2405, %v2406
        %v2932 = vadd.f32 %v2931, %v2407
        %v2933 = vadd.f32 %v2932, %v2408
        %v2934 = vadd.f32 %v2933, %v2409
        %v2935 = vadd.f32 %v2934, %v2410
        %v2936 = vsel %vm1048, %v2411, 0.0
        %v2937 = vadd.f32 %v2935, %v2936
        %2938 = vadd.xlane.f32.xlu0 %v2937
        %v2939 = vpop.xlane.xlu0 %2938
        %v2940 = vadd.f32 %v2412, %v2413
        %v2941 = vadd.f32 %v2940, %v2414
        %v2942 = vadd.f32 %v2941, %v2415
        %v2943 = vadd.f32 %v2942, %v2416
        %v2944 = vadd.f32 %v2943, %v2417
        %v2945 = vsel %vm1048, %v2418, 0.0
        %v2946 = vadd.f32 %v2944, %v2945
        %2947 = vadd.xlane.f32.xlu0 %v2946
        %v2948 = vpop.xlane.xlu0 %2947
        %v2949 = vadd.f32 %v2419, %v2420
        %v2950 = vadd.f32 %v2949, %v2421
        %v2951 = vadd.f32 %v2950, %v2422
        %v2952 = vadd.f32 %v2951, %v2423
        %v2953 = vadd.f32 %v2952, %v2424
        %v2954 = vsel %vm1048, %v2425, 0.0
        %v2955 = vadd.f32 %v2953, %v2954
        %2956 = vadd.xlane.f32.xlu0 %v2955
        %v2957 = vpop.xlane.xlu0 %2956
        %v2958 = vadd.f32 %v2426, %v2427
        %v2959 = vadd.f32 %v2958, %v2428
        %v2960 = vadd.f32 %v2959, %v2429
        %v2961 = vadd.f32 %v2960, %v2430
        %v2962 = vadd.f32 %v2961, %v2431
        %v2963 = vsel %vm1048, %v2432, 0.0
        %v2964 = vadd.f32 %v2962, %v2963
        %2965 = vadd.xlane.f32.xlu0 %v2964
        %v2966 = vpop.xlane.xlu0 %2965
        %v2967 = vadd.f32 %v2433, %v2434
        %v2968 = vadd.f32 %v2967, %v2435
        %v2969 = vadd.f32 %v2968, %v2436
        %v2970 = vadd.f32 %v2969, %v2437
        %v2971 = vadd.f32 %v2970, %v2438
        %v2972 = vsel %vm1048, %v2439, 0.0
        %v2973 = vadd.f32 %v2971, %v2972
        %2974 = vadd.xlane.f32.xlu0 %v2973
        %v2975 = vpop.xlane.xlu0 %2974
        %v2976 = vadd.f32 %v2440, %v2441
        %v2977 = vadd.f32 %v2976, %v2442
        %v2978 = vadd.f32 %v2977, %v2443
        %v2979 = vadd.f32 %v2978, %v2444
        %v2980 = vadd.f32 %v2979, %v2445
        %v2981 = vsel %vm1048, %v2446, 0.0
        %v2982 = vadd.f32 %v2980, %v2981
        %2983 = vadd.xlane.f32.xlu0 %v2982
        %v2984 = vpop.xlane.xlu0 %2983
        %v2985 = vadd.f32 %v2447, %v2448
        %v2986 = vadd.f32 %v2985, %v2449
        %v2987 = vadd.f32 %v2986, %v2450
        %v2988 = vadd.f32 %v2987, %v2451
        %v2989 = vadd.f32 %v2988, %v2452
        %v2990 = vsel %vm1048, %v2453, 0.0
        %v2991 = vadd.f32 %v2989, %v2990
        %2992 = vadd.xlane.f32.xlu0 %v2991
        %v2993 = vpop.xlane.xlu0 %2992
        %v2994 = vadd.f32 %v2454, %v2455
        %v2995 = vadd.f32 %v2994, %v2456
        %v2996 = vadd.f32 %v2995, %v2457
        %v2997 = vadd.f32 %v2996, %v2458
        %v2998 = vadd.f32 %v2997, %v2459
        %v2999 = vsel %vm1048, %v2460, 0.0
        %v3000 = vadd.f32 %v2998, %v2999
        %3001 = vadd.xlane.f32.xlu0 %v3000
        %v3002 = vpop.xlane.xlu0 %3001
        %v3003 = vadd.f32 %v2461, %v2462
        %v3004 = vadd.f32 %v3003, %v2463
        %v3005 = vadd.f32 %v3004, %v2464
        %v3006 = vadd.f32 %v3005, %v2465
        %v3007 = vadd.f32 %v3006, %v2466
        %v3008 = vsel %vm1048, %v2467, 0.0
        %v3009 = vadd.f32 %v3007, %v3008
        %3010 = vadd.xlane.f32.xlu0 %v3009
        %v3011 = vpop.xlane.xlu0 %3010
        %v3012 = vadd.f32 %v2468, %v2469
        %v3013 = vadd.f32 %v3012, %v2470
        %v3014 = vadd.f32 %v3013, %v2471
        %v3015 = vadd.f32 %v3014, %v2472
        %v3016 = vadd.f32 %v3015, %v2473
        %v3017 = vsel %vm1048, %v2474, 0.0
        %v3018 = vadd.f32 %v3016, %v3017
        %3019 = vadd.xlane.f32.xlu0 %v3018
        %v3020 = vpop.xlane.xlu0 %3019
        %v3021 = vadd.f32 %v2475, %v2476
        %v3022 = vadd.f32 %v3021, %v2477
        %v3023 = vadd.f32 %v3022, %v2478
        %v3024 = vadd.f32 %v3023, %v2479
        %v3025 = vadd.f32 %v3024, %v2480
        %v3026 = vsel %vm1048, %v2481, 0.0
        %v3027 = vadd.f32 %v3025, %v3026
        %3028 = vadd.xlane.f32.xlu0 %v3027
        %v3029 = vpop.xlane.xlu0 %3028
        %v3030 = vadd.f32 %v2482, %v2483
        %v3031 = vadd.f32 %v3030, %v2484
        %v3032 = vadd.f32 %v3031, %v2485
        %v3033 = vadd.f32 %v3032, %v2486
        %v3034 = vadd.f32 %v3033, %v2487
        %v3035 = vsel %vm1048, %v2488, 0.0
        %v3036 = vadd.f32 %v3034, %v3035
        %3037 = vadd.xlane.f32.xlu0 %v3036
        %v3038 = vpop.xlane.xlu0 %3037
        %v3039 = vadd.f32 %v2489, %v2490
        %v3040 = vadd.f32 %v3039, %v2491
        %v3041 = vadd.f32 %v3040, %v2492
        %v3042 = vadd.f32 %v3041, %v2493
        %v3043 = vadd.f32 %v3042, %v2494
        %v3044 = vsel %vm1048, %v2495, 0.0
        %v3045 = vadd.f32 %v3043, %v3044
        %3046 = vadd.xlane.f32.xlu0 %v3045
        %v3047 = vpop.xlane.xlu0 %3046
        %v3048 = vadd.f32 %v2496, %v2497
        %v3049 = vadd.f32 %v3048, %v2498
        %v3050 = vadd.f32 %v3049, %v2499
        %v3051 = vadd.f32 %v3050, %v2500
        %v3052 = vadd.f32 %v3051, %v2501
        %v3053 = vsel %vm1048, %v2502, 0.0
        %v3054 = vadd.f32 %v3052, %v3053
        %3055 = vadd.xlane.f32.xlu0 %v3054
        %v3056 = vpop.xlane.xlu0 %3055
        %v3057 = vadd.f32 %v2503, %v2504
        %v3058 = vadd.f32 %v3057, %v2505
        %v3059 = vadd.f32 %v3058, %v2506
        %v3060 = vadd.f32 %v3059, %v2507
        %v3061 = vadd.f32 %v3060, %v2508
        %v3062 = vsel %vm1048, %v2509, 0.0
        %v3063 = vadd.f32 %v3061, %v3062
        %3064 = vadd.xlane.f32.xlu0 %v3063
        %v3065 = vpop.xlane.xlu0 %3064
        %v3066 = vadd.f32 %v2510, %v2511
        %v3067 = vadd.f32 %v3066, %v2512
        %v3068 = vadd.f32 %v3067, %v2513
        %v3069 = vadd.f32 %v3068, %v2514
        %v3070 = vadd.f32 %v3069, %v2515
        %v3071 = vsel %vm1048, %v2516, 0.0
        %v3072 = vadd.f32 %v3070, %v3071
        %3073 = vadd.xlane.f32.xlu0 %v3072
        %v3074 = vpop.xlane.xlu0 %3073
        %v3075 = vadd.f32 %v2517, %v2518
        %v3076 = vadd.f32 %v3075, %v2519
        %v3077 = vadd.f32 %v3076, %v2520
        %v3078 = vadd.f32 %v3077, %v2521
        %v3079 = vadd.f32 %v3078, %v2522
        %v3080 = vsel %vm1048, %v2523, 0.0
        %v3081 = vadd.f32 %v3079, %v3080
        %3082 = vadd.xlane.f32.xlu0 %v3081
        %v3083 = vpop.xlane.xlu0 %3082
        %v3084 = vadd.f32 %v2524, %v2525
        %v3085 = vadd.f32 %v3084, %v2526
        %v3086 = vadd.f32 %v3085, %v2527
        %v3087 = vadd.f32 %v3086, %v2528
        %v3088 = vadd.f32 %v3087, %v2529
        %v3089 = vsel %vm1048, %v2530, 0.0
        %v3090 = vadd.f32 %v3088, %v3089
        %3091 = vadd.xlane.f32.xlu0 %v3090
        %v3092 = vpop.xlane.xlu0 %3091
        %v3093 = vadd.f32 %v2531, %v2532
        %v3094 = vadd.f32 %v3093, %v2533
        %v3095 = vadd.f32 %v3094, %v2534
        %v3096 = vadd.f32 %v3095, %v2535
        %v3097 = vadd.f32 %v3096, %v2536
        %v3098 = vsel %vm1048, %v2537, 0.0
        %v3099 = vadd.f32 %v3097, %v3098
        %3100 = vadd.xlane.f32.xlu0 %v3099
        %v3101 = vpop.xlane.xlu0 %3100
        %v3102 = vadd.f32 %v2538, %v2539
        %v3103 = vadd.f32 %v3102, %v2540
        %v3104 = vadd.f32 %v3103, %v2541
        %v3105 = vadd.f32 %v3104, %v2542
        %v3106 = vadd.f32 %v3105, %v2543
        %v3107 = vsel %vm1048, %v2544, 0.0
        %v3108 = vadd.f32 %v3106, %v3107
        %3109 = vadd.xlane.f32.xlu0 %v3108
        %v3110 = vpop.xlane.xlu0 %3109
        %v3111 = vadd.f32 %v2545, %v2546
        %v3112 = vadd.f32 %v3111, %v2547
        %v3113 = vadd.f32 %v3112, %v2548
        %v3114 = vadd.f32 %v3113, %v2549
        %v3115 = vadd.f32 %v3114, %v2550
        %v3116 = vsel %vm1048, %v2551, 0.0
        %v3117 = vadd.f32 %v3115, %v3116
        %3118 = vadd.xlane.f32.xlu0 %v3117
        %v3119 = vpop.xlane.xlu0 %3118
        %v3120 = vadd.f32 %v2552, %v2553
        %v3121 = vadd.f32 %v3120, %v2554
        %v3122 = vadd.f32 %v3121, %v2555
        %v3123 = vadd.f32 %v3122, %v2556
        %v3124 = vadd.f32 %v3123, %v2557
        %v3125 = vsel %vm1048, %v2558, 0.0
        %v3126 = vadd.f32 %v3124, %v3125
        %3127 = vadd.xlane.f32.xlu0 %v3126
        %v3128 = vpop.xlane.xlu0 %3127
        %v3129 = vadd.f32 %v2559, %v2560
        %v3130 = vadd.f32 %v3129, %v2561
        %v3131 = vadd.f32 %v3130, %v2562
        %v3132 = vadd.f32 %v3131, %v2563
        %v3133 = vadd.f32 %v3132, %v2564
        %v3134 = vsel %vm1048, %v2565, 0.0
        %v3135 = vadd.f32 %v3133, %v3134
        %3136 = vadd.xlane.f32.xlu0 %v3135
        %v3137 = vpop.xlane.xlu0 %3136
        %v3138 = vadd.f32 %v2566, %v2567
        %v3139 = vadd.f32 %v3138, %v2568
        %v3140 = vadd.f32 %v3139, %v2569
        %v3141 = vadd.f32 %v3140, %v2570
        %v3142 = vadd.f32 %v3141, %v2571
        %v3143 = vsel %vm1048, %v2572, 0.0
        %v3144 = vadd.f32 %v3142, %v3143
        %3145 = vadd.xlane.f32.xlu0 %v3144
        %v3146 = vpop.xlane.xlu0 %3145
        %v3147 = vadd.f32 %v2573, %v2574
        %v3148 = vadd.f32 %v3147, %v2575
        %v3149 = vadd.f32 %v3148, %v2576
        %v3150 = vadd.f32 %v3149, %v2577
        %v3151 = vadd.f32 %v3150, %v2578
        %v3152 = vsel %vm1048, %v2579, 0.0
        %v3153 = vadd.f32 %v3151, %v3152
        %3154 = vadd.xlane.f32.xlu0 %v3153
        %v3155 = vpop.xlane.xlu0 %3154
        %v3156 = vmul.f32 %v2588, 0.0012755102
        %v3157 = vmul.f32 %v2597, 0.0012755102
        %v3158 = vmul.f32 %v2606, 0.0012755102
        %v3159 = vmul.f32 %v2615, 0.0012755102
        %v3160 = vmul.f32 %v2624, 0.0012755102
        %v3161 = vmul.f32 %v2633, 0.0012755102
        %v3162 = vmul.f32 %v2642, 0.0012755102
        %v3163 = vmul.f32 %v2651, 0.0012755102
        %v3164 = vmul.f32 %v2660, 0.0012755102
        %v3165 = vmul.f32 %v2669, 0.0012755102
        %v3166 = vmul.f32 %v2678, 0.0012755102
        %v3167 = vmul.f32 %v2687, 0.0012755102
        %v3168 = vmul.f32 %v2696, 0.0012755102
        %v3169 = vmul.f32 %v2705, 0.0012755102
        %v3170 = vmul.f32 %v2714, 0.0012755102
        %v3171 = vmul.f32 %v2723, 0.0012755102
        %v3172 = vmul.f32 %v2732, 0.0012755102
        %v3173 = vmul.f32 %v2741, 0.0012755102
        %v3174 = vmul.f32 %v2750, 0.0012755102
        %v3175 = vmul.f32 %v2759, 0.0012755102
        %v3176 = vmul.f32 %v2768, 0.0012755102
        %v3177 = vmul.f32 %v2777, 0.0012755102
        %v3178 = vmul.f32 %v2786, 0.0012755102
        %v3179 = vmul.f32 %v2795, 0.0012755102
        %v3180 = vmul.f32 %v2804, 0.0012755102
        %v3181 = vmul.f32 %v2813, 0.0012755102
        %v3182 = vmul.f32 %v2822, 0.0012755102
        %v3183 = vmul.f32 %v2831, 0.0012755102
        %v3184 = vmul.f32 %v2840, 0.0012755102
        %v3185 = vmul.f32 %v2849, 0.0012755102
        %v3186 = vmul.f32 %v2858, 0.0012755102
        %v3187 = vmul.f32 %v2867, 0.0012755102
        %v3188 = vmul.f32 %v2876, 0.0012755102
        %v3189 = vmul.f32 %v2885, 0.0012755102
        %v3190 = vmul.f32 %v2894, 0.0012755102
        %v3191 = vmul.f32 %v2903, 0.0012755102
        %v3192 = vmul.f32 %v2912, 0.0012755102
        %v3193 = vmul.f32 %v2921, 0.0012755102
        %v3194 = vmul.f32 %v2930, 0.0012755102
        %v3195 = vmul.f32 %v2939, 0.0012755102
        %v3196 = vmul.f32 %v2948, 0.0012755102
        %v3197 = vmul.f32 %v2957, 0.0012755102
        %v3198 = vmul.f32 %v2966, 0.0012755102
        %v3199 = vmul.f32 %v2975, 0.0012755102
        %v3200 = vmul.f32 %v2984, 0.0012755102
        %v3201 = vmul.f32 %v2993, 0.0012755102
        %v3202 = vmul.f32 %v3002, 0.0012755102
        %v3203 = vmul.f32 %v3011, 0.0012755102
        %v3204 = vmul.f32 %v3020, 0.0012755102
        %v3205 = vmul.f32 %v3029, 0.0012755102
        %v3206 = vmul.f32 %v3038, 0.0012755102
        %v3207 = vmul.f32 %v3047, 0.0012755102
        %v3208 = vmul.f32 %v3056, 0.0012755102
        %v3209 = vmul.f32 %v3065, 0.0012755102
        %v3210 = vmul.f32 %v3074, 0.0012755102
        %v3211 = vmul.f32 %v3083, 0.0012755102
        %v3212 = vmul.f32 %v3092, 0.0012755102
        %v3213 = vmul.f32 %v3101, 0.0012755102
        %v3214 = vmul.f32 %v3110, 0.0012755102
        %v3215 = vmul.f32 %v3119, 0.0012755102
        %v3216 = vmul.f32 %v3128, 0.0012755102
        %v3217 = vmul.f32 %v3137, 0.0012755102
        %v3218 = vmul.f32 %v3146, 0.0012755102
        %v3219 = vmul.f32 %v3155, 0.0012755102
        %v3220 = vadd.f32 %v3156, 1e-05
        %v3221 = vadd.f32 %v3157, 1e-05
        %v3222 = vadd.f32 %v3158, 1e-05
        %v3223 = vadd.f32 %v3159, 1e-05
        %v3224 = vadd.f32 %v3160, 1e-05
        %v3225 = vadd.f32 %v3161, 1e-05
        %v3226 = vadd.f32 %v3162, 1e-05
        %v3227 = vadd.f32 %v3163, 1e-05
        %v3228 = vadd.f32 %v3164, 1e-05
        %v3229 = vadd.f32 %v3165, 1e-05
        %v3230 = vadd.f32 %v3166, 1e-05
        %v3231 = vadd.f32 %v3167, 1e-05
        %v3232 = vadd.f32 %v3168, 1e-05
        %v3233 = vadd.f32 %v3169, 1e-05
        %v3234 = vadd.f32 %v3170, 1e-05
        %v3235 = vadd.f32 %v3171, 1e-05
        %v3236 = vadd.f32 %v3172, 1e-05
        %v3237 = vadd.f32 %v3173, 1e-05
        %v3238 = vadd.f32 %v3174, 1e-05
        %v3239 = vadd.f32 %v3175, 1e-05
        %v3240 = vadd.f32 %v3176, 1e-05
        %v3241 = vadd.f32 %v3177, 1e-05
        %v3242 = vadd.f32 %v3178, 1e-05
        %v3243 = vadd.f32 %v3179, 1e-05
        %v3244 = vadd.f32 %v3180, 1e-05
        %v3245 = vadd.f32 %v3181, 1e-05
        %v3246 = vadd.f32 %v3182, 1e-05
        %v3247 = vadd.f32 %v3183, 1e-05
        %v3248 = vadd.f32 %v3184, 1e-05
        %v3249 = vadd.f32 %v3185, 1e-05
        %v3250 = vadd.f32 %v3186, 1e-05
        %v3251 = vadd.f32 %v3187, 1e-05
        %v3252 = vadd.f32 %v3188, 1e-05
        %v3253 = vadd.f32 %v3189, 1e-05
        %v3254 = vadd.f32 %v3190, 1e-05
        %v3255 = vadd.f32 %v3191, 1e-05
        %v3256 = vadd.f32 %v3192, 1e-05
        %v3257 = vadd.f32 %v3193, 1e-05
        %v3258 = vadd.f32 %v3194, 1e-05
        %v3259 = vadd.f32 %v3195, 1e-05
        %v3260 = vadd.f32 %v3196, 1e-05
        %v3261 = vadd.f32 %v3197, 1e-05
        %v3262 = vadd.f32 %v3198, 1e-05
        %v3263 = vadd.f32 %v3199, 1e-05
        %v3264 = vadd.f32 %v3200, 1e-05
        %v3265 = vadd.f32 %v3201, 1e-05
        %v3266 = vadd.f32 %v3202, 1e-05
        %v3267 = vadd.f32 %v3203, 1e-05
        %v3268 = vadd.f32 %v3204, 1e-05
        %v3269 = vadd.f32 %v3205, 1e-05
        %v3270 = vadd.f32 %v3206, 1e-05
        %v3271 = vadd.f32 %v3207, 1e-05
        %v3272 = vadd.f32 %v3208, 1e-05
        %v3273 = vadd.f32 %v3209, 1e-05
        %v3274 = vadd.f32 %v3210, 1e-05
        %v3275 = vadd.f32 %v3211, 1e-05
        %v3276 = vadd.f32 %v3212, 1e-05
        %v3277 = vadd.f32 %v3213, 1e-05
        %v3278 = vadd.f32 %v3214, 1e-05
        %v3279 = vadd.f32 %v3215, 1e-05
        %v3280 = vadd.f32 %v3216, 1e-05
        %v3281 = vadd.f32 %v3217, 1e-05
        %v3282 = vadd.f32 %v3218, 1e-05
        %v3283 = vadd.f32 %v3219, 1e-05
        %v3284 = vrsqrt.pop %v3220
        %v3285 = vrsqrt.pop %v3221
        %v3286 = vrsqrt.pop %v3222
        %v3287 = vrsqrt.pop %v3223
        %v3288 = vrsqrt.pop %v3224
        %v3289 = vrsqrt.pop %v3225
        %v3290 = vrsqrt.pop %v3226
        %v3291 = vrsqrt.pop %v3227
        %v3292 = vrsqrt.pop %v3228
        %v3293 = vrsqrt.pop %v3229
        %v3294 = vrsqrt.pop %v3230
        %v3295 = vrsqrt.pop %v3231
        %v3296 = vrsqrt.pop %v3232
        %v3297 = vrsqrt.pop %v3233
        %v3298 = vrsqrt.pop %v3234
        %v3299 = vrsqrt.pop %v3235
        %v3300 = vrsqrt.pop %v3236
        %v3301 = vrsqrt.pop %v3237
        %v3302 = vrsqrt.pop %v3238
        %v3303 = vrsqrt.pop %v3239
        %v3304 = vrsqrt.pop %v3240
        %v3305 = vrsqrt.pop %v3241
        %v3306 = vrsqrt.pop %v3242
        %v3307 = vrsqrt.pop %v3243
        %v3308 = vrsqrt.pop %v3244
        %v3309 = vrsqrt.pop %v3245
        %v3310 = vrsqrt.pop %v3246
        %v3311 = vrsqrt.pop %v3247
        %v3312 = vrsqrt.pop %v3248
        %v3313 = vrsqrt.pop %v3249
        %v3314 = vrsqrt.pop %v3250
        %v3315 = vrsqrt.pop %v3251
        %v3316 = vrsqrt.pop %v3252
        %v3317 = vrsqrt.pop %v3253
        %v3318 = vrsqrt.pop %v3254
        %v3319 = vrsqrt.pop %v3255
        %v3320 = vrsqrt.pop %v3256
        %v3321 = vrsqrt.pop %v3257
        %v3322 = vrsqrt.pop %v3258
        %v3323 = vrsqrt.pop %v3259
        %v3324 = vrsqrt.pop %v3260
        %v3325 = vrsqrt.pop %v3261
        %v3326 = vrsqrt.pop %v3262
        %v3327 = vrsqrt.pop %v3263
        %v3328 = vrsqrt.pop %v3264
        %v3329 = vrsqrt.pop %v3265
        %v3330 = vrsqrt.pop %v3266
        %v3331 = vrsqrt.pop %v3267
        %v3332 = vrsqrt.pop %v3268
        %v3333 = vrsqrt.pop %v3269
        %v3334 = vrsqrt.pop %v3270
        %v3335 = vrsqrt.pop %v3271
        %v3336 = vrsqrt.pop %v3272
        %v3337 = vrsqrt.pop %v3273
        %v3338 = vrsqrt.pop %v3274
        %v3339 = vrsqrt.pop %v3275
        %v3340 = vrsqrt.pop %v3276
        %v3341 = vrsqrt.pop %v3277
        %v3342 = vrsqrt.pop %v3278
        %v3343 = vrsqrt.pop %v3279
        %v3344 = vrsqrt.pop %v3280
        %v3345 = vrsqrt.pop %v3281
        %v3346 = vrsqrt.pop %v3282
        %v3347 = vrsqrt.pop %v3283
        %v3348 = vmul.f32 %v979, %v3284
        %v3349 = vmul.f32 %v980, %v3285
        %v3350 = vmul.f32 %v981, %v3286
        %v3351 = vmul.f32 %v982, %v3287
        %v3352 = vmul.f32 %v983, %v3288
        %v3353 = vmul.f32 %v984, %v3289
        %v3354 = vmul.f32 %v985, %v3290
        %v3355 = vmul.f32 %v986, %v3291
        %v3356 = vmul.f32 %v987, %v3292
        %v3357 = vmul.f32 %v988, %v3293
        %v3358 = vmul.f32 %v989, %v3294
        %v3359 = vmul.f32 %v990, %v3295
        %v3360 = vmul.f32 %v991, %v3296
        %v3361 = vmul.f32 %v992, %v3297
        %v3362 = vmul.f32 %v993, %v3298
        %v3363 = vmul.f32 %v994, %v3299
        %v3364 = vmul.f32 %v995, %v3300
        %v3365 = vmul.f32 %v996, %v3301
        %v3366 = vmul.f32 %v997, %v3302
        %v3367 = vmul.f32 %v998, %v3303
        %v3368 = vmul.f32 %v999, %v3304
        %v3369 = vmul.f32 %v1000, %v3305
        %v3370 = vmul.f32 %v1001, %v3306
        %v3371 = vmul.f32 %v1002, %v3307
        %v3372 = vmul.f32 %v1003, %v3308
        %v3373 = vmul.f32 %v1004, %v3309
        %v3374 = vmul.f32 %v1005, %v3310
        %v3375 = vmul.f32 %v1006, %v3311
        %v3376 = vmul.f32 %v1007, %v3312
        %v3377 = vmul.f32 %v1008, %v3313
        %v3378 = vmul.f32 %v1009, %v3314
        %v3379 = vmul.f32 %v1010, %v3315
        %v3380 = vmul.f32 %v1011, %v3316
        %v3381 = vmul.f32 %v1012, %v3317
        %v3382 = vmul.f32 %v1013, %v3318
        %v3383 = vmul.f32 %v1014, %v3319
        %v3384 = vmul.f32 %v1015, %v3320
        %v3385 = vmul.f32 %v1016, %v3321
        %v3386 = vmul.f32 %v1017, %v3322
        %v3387 = vmul.f32 %v1018, %v3323
        %v3388 = vmul.f32 %v1019, %v3324
        %v3389 = vmul.f32 %v1020, %v3325
        %v3390 = vmul.f32 %v1021, %v3326
        %v3391 = vmul.f32 %v1022, %v3327
        %v3392 = vmul.f32 %v1023, %v3328
        %v3393 = vmul.f32 %v1024, %v3329
        %v3394 = vmul.f32 %v1025, %v3330
        %v3395 = vmul.f32 %v1026, %v3331
        %v3396 = vmul.f32 %v1027, %v3332
        %v3397 = vmul.f32 %v1028, %v3333
        %v3398 = vmul.f32 %v1029, %v3334
        %v3399 = vmul.f32 %v1030, %v3335
        %v3400 = vmul.f32 %v1031, %v3336
        %v3401 = vmul.f32 %v1032, %v3337
        %v3402 = vmul.f32 %v1033, %v3338
        %v3403 = vmul.f32 %v1034, %v3339
        %v3404 = vmul.f32 %v1035, %v3340
        %v3405 = vmul.f32 %v1036, %v3341
        %v3406 = vmul.f32 %v1037, %v3342
        %v3407 = vmul.f32 %v1038, %v3343
        %v3408 = vmul.f32 %v1039, %v3344
        %v3409 = vmul.f32 %v1040, %v3345
        %v3410 = vmul.f32 %v1041, %v3346
        %v3411 = vmul.f32 %v1042, %v3347
        %3413 = vset.pattern.permute.xlu0 0
        %3414 = vperm.xlu0 %3413, %v3348
        %v3415 = vpop.permute.xlu0 %3414
        %3418 = vset.pattern.permute.xlu0 0
        %3419 = vperm.xlu0 %3418, %v3349
        %v3420 = vpop.permute.xlu0 %3419
        %3423 = vset.pattern.permute.xlu0 0
        %3424 = vperm.xlu0 %3423, %v3350
        %v3425 = vpop.permute.xlu0 %3424
        %3428 = vset.pattern.permute.xlu0 0
        %3429 = vperm.xlu0 %3428, %v3351
        %v3430 = vpop.permute.xlu0 %3429
        %3433 = vset.pattern.permute.xlu0 0
        %3434 = vperm.xlu0 %3433, %v3352
        %v3435 = vpop.permute.xlu0 %3434
        %3438 = vset.pattern.permute.xlu0 0
        %3439 = vperm.xlu0 %3438, %v3353
        %v3440 = vpop.permute.xlu0 %3439
        %3443 = vset.pattern.permute.xlu0 0
        %3444 = vperm.xlu0 %3443, %v3354
        %v3445 = vpop.permute.xlu0 %3444
        %3448 = vset.pattern.permute.xlu0 0
        %3449 = vperm.xlu0 %3448, %v3355
        %v3450 = vpop.permute.xlu0 %3449
        %3453 = vset.pattern.permute.xlu0 0
        %3454 = vperm.xlu0 %3453, %v3356
        %v3455 = vpop.permute.xlu0 %3454
        %3458 = vset.pattern.permute.xlu0 0
        %3459 = vperm.xlu0 %3458, %v3357
        %v3460 = vpop.permute.xlu0 %3459
        %3463 = vset.pattern.permute.xlu0 0
        %3464 = vperm.xlu0 %3463, %v3358
        %v3465 = vpop.permute.xlu0 %3464
        %3468 = vset.pattern.permute.xlu0 0
        %3469 = vperm.xlu0 %3468, %v3359
        %v3470 = vpop.permute.xlu0 %3469
        %3473 = vset.pattern.permute.xlu0 0
        %3474 = vperm.xlu0 %3473, %v3360
        %v3475 = vpop.permute.xlu0 %3474
        %3478 = vset.pattern.permute.xlu0 0
        %3479 = vperm.xlu0 %3478, %v3361
        %v3480 = vpop.permute.xlu0 %3479
        %3483 = vset.pattern.permute.xlu0 0
        %3484 = vperm.xlu0 %3483, %v3362
        %v3485 = vpop.permute.xlu0 %3484
        %3488 = vset.pattern.permute.xlu0 0
        %3489 = vperm.xlu0 %3488, %v3363
        %v3490 = vpop.permute.xlu0 %3489
        %3493 = vset.pattern.permute.xlu0 0
        %3494 = vperm.xlu0 %3493, %v3364
        %v3495 = vpop.permute.xlu0 %3494
        %3498 = vset.pattern.permute.xlu0 0
        %3499 = vperm.xlu0 %3498, %v3365
        %v3500 = vpop.permute.xlu0 %3499
        %3503 = vset.pattern.permute.xlu0 0
        %3504 = vperm.xlu0 %3503, %v3366
        %v3505 = vpop.permute.xlu0 %3504
        %3508 = vset.pattern.permute.xlu0 0
        %3509 = vperm.xlu0 %3508, %v3367
        %v3510 = vpop.permute.xlu0 %3509
        %3513 = vset.pattern.permute.xlu0 0
        %3514 = vperm.xlu0 %3513, %v3368
        %v3515 = vpop.permute.xlu0 %3514
        %3518 = vset.pattern.permute.xlu0 0
        %3519 = vperm.xlu0 %3518, %v3369
        %v3520 = vpop.permute.xlu0 %3519
        %3523 = vset.pattern.permute.xlu0 0
        %3524 = vperm.xlu0 %3523, %v3370
        %v3525 = vpop.permute.xlu0 %3524
        %3528 = vset.pattern.permute.xlu0 0
        %3529 = vperm.xlu0 %3528, %v3371
        %v3530 = vpop.permute.xlu0 %3529
        %3533 = vset.pattern.permute.xlu0 0
        %3534 = vperm.xlu0 %3533, %v3372
        %v3535 = vpop.permute.xlu0 %3534
        %3538 = vset.pattern.permute.xlu0 0
        %3539 = vperm.xlu0 %3538, %v3373
        %v3540 = vpop.permute.xlu0 %3539
        %3543 = vset.pattern.permute.xlu0 0
        %3544 = vperm.xlu0 %3543, %v3374
        %v3545 = vpop.permute.xlu0 %3544
        %3548 = vset.pattern.permute.xlu0 0
        %3549 = vperm.xlu0 %3548, %v3375
        %v3550 = vpop.permute.xlu0 %3549
        %3553 = vset.pattern.permute.xlu0 0
        %3554 = vperm.xlu0 %3553, %v3376
        %v3555 = vpop.permute.xlu0 %3554
        %3558 = vset.pattern.permute.xlu0 0
        %3559 = vperm.xlu0 %3558, %v3377
        %v3560 = vpop.permute.xlu0 %3559
        %3563 = vset.pattern.permute.xlu0 0
        %3564 = vperm.xlu0 %3563, %v3378
        %v3565 = vpop.permute.xlu0 %3564
        %3568 = vset.pattern.permute.xlu0 0
        %3569 = vperm.xlu0 %3568, %v3379
        %v3570 = vpop.permute.xlu0 %3569
        %3573 = vset.pattern.permute.xlu0 0
        %3574 = vperm.xlu0 %3573, %v3380
        %v3575 = vpop.permute.xlu0 %3574
        %3578 = vset.pattern.permute.xlu0 0
        %3579 = vperm.xlu0 %3578, %v3381
        %v3580 = vpop.permute.xlu0 %3579
        %3583 = vset.pattern.permute.xlu0 0
        %3584 = vperm.xlu0 %3583, %v3382
        %v3585 = vpop.permute.xlu0 %3584
        %3588 = vset.pattern.permute.xlu0 0
        %3589 = vperm.xlu0 %3588, %v3383
        %v3590 = vpop.permute.xlu0 %3589
        %3593 = vset.pattern.permute.xlu0 0
        %3594 = vperm.xlu0 %3593, %v3384
        %v3595 = vpop.permute.xlu0 %3594
        %3598 = vset.pattern.permute.xlu0 0
        %3599 = vperm.xlu0 %3598, %v3385
        %v3600 = vpop.permute.xlu0 %3599
        %3603 = vset.pattern.permute.xlu0 0
        %3604 = vperm.xlu0 %3603, %v3386
        %v3605 = vpop.permute.xlu0 %3604
        %3608 = vset.pattern.permute.xlu0 0
        %3609 = vperm.xlu0 %3608, %v3387
        %v3610 = vpop.permute.xlu0 %3609
        %3613 = vset.pattern.permute.xlu0 0
        %3614 = vperm.xlu0 %3613, %v3388
        %v3615 = vpop.permute.xlu0 %3614
        %3618 = vset.pattern.permute.xlu0 0
        %3619 = vperm.xlu0 %3618, %v3389
        %v3620 = vpop.permute.xlu0 %3619
        %3623 = vset.pattern.permute.xlu0 0
        %3624 = vperm.xlu0 %3623, %v3390
        %v3625 = vpop.permute.xlu0 %3624
        %3628 = vset.pattern.permute.xlu0 0
        %3629 = vperm.xlu0 %3628, %v3391
        %v3630 = vpop.permute.xlu0 %3629
        %3633 = vset.pattern.permute.xlu0 0
        %3634 = vperm.xlu0 %3633, %v3392
        %v3635 = vpop.permute.xlu0 %3634
        %3638 = vset.pattern.permute.xlu0 0
        %3639 = vperm.xlu0 %3638, %v3393
        %v3640 = vpop.permute.xlu0 %3639
        %3643 = vset.pattern.permute.xlu0 0
        %3644 = vperm.xlu0 %3643, %v3394
        %v3645 = vpop.permute.xlu0 %3644
        %3648 = vset.pattern.permute.xlu0 0
        %3649 = vperm.xlu0 %3648, %v3395
        %v3650 = vpop.permute.xlu0 %3649
        %3653 = vset.pattern.permute.xlu0 0
        %3654 = vperm.xlu0 %3653, %v3396
        %v3655 = vpop.permute.xlu0 %3654
        %3658 = vset.pattern.permute.xlu0 0
        %3659 = vperm.xlu0 %3658, %v3397
        %v3660 = vpop.permute.xlu0 %3659
        %3663 = vset.pattern.permute.xlu0 0
        %3664 = vperm.xlu0 %3663, %v3398
        %v3665 = vpop.permute.xlu0 %3664
        %3668 = vset.pattern.permute.xlu0 0
        %3669 = vperm.xlu0 %3668, %v3399
        %v3670 = vpop.permute.xlu0 %3669
        %3673 = vset.pattern.permute.xlu0 0
        %3674 = vperm.xlu0 %3673, %v3400
        %v3675 = vpop.permute.xlu0 %3674
        %3678 = vset.pattern.permute.xlu0 0
        %3679 = vperm.xlu0 %3678, %v3401
        %v3680 = vpop.permute.xlu0 %3679
        %3683 = vset.pattern.permute.xlu0 0
        %3684 = vperm.xlu0 %3683, %v3402
        %v3685 = vpop.permute.xlu0 %3684
        %3688 = vset.pattern.permute.xlu0 0
        %3689 = vperm.xlu0 %3688, %v3403
        %v3690 = vpop.permute.xlu0 %3689
        %3693 = vset.pattern.permute.xlu0 0
        %3694 = vperm.xlu0 %3693, %v3404
        %v3695 = vpop.permute.xlu0 %3694
        %3698 = vset.pattern.permute.xlu0 0
        %3699 = vperm.xlu0 %3698, %v3405
        %v3700 = vpop.permute.xlu0 %3699
        %3703 = vset.pattern.permute.xlu0 0
        %3704 = vperm.xlu0 %3703, %v3406
        %v3705 = vpop.permute.xlu0 %3704
        %3708 = vset.pattern.permute.xlu0 0
        %3709 = vperm.xlu0 %3708, %v3407
        %v3710 = vpop.permute.xlu0 %3709
        %3713 = vset.pattern.permute.xlu0 0
        %3714 = vperm.xlu0 %3713, %v3408
        %v3715 = vpop.permute.xlu0 %3714
        %3718 = vset.pattern.permute.xlu0 0
        %3719 = vperm.xlu0 %3718, %v3409
        %v3720 = vpop.permute.xlu0 %3719
        %3723 = vset.pattern.permute.xlu0 0
        %3724 = vperm.xlu0 %3723, %v3410
        %v3725 = vpop.permute.xlu0 %3724
        %3728 = vset.pattern.permute.xlu0 0
        %3729 = vperm.xlu0 %3728, %v3411
        %v3730 = vpop.permute.xlu0 %3729
        %v3732 = vmul.f32 %v1684, %v3415
        %v3733 = vmul.f32 %v1685, %v3415
        %v3734 = vmul.f32 %v1686, %v3415
        %v3735 = vmul.f32 %v1687, %v3415
        %v3736 = vmul.f32 %v1688, %v3415
        %v3737 = vmul.f32 %v1689, %v3415
        %v3738 = vmul.f32 %v1690, %v3415
        %v3739 = vmul.f32 %v1691, %v3420
        %v3740 = vmul.f32 %v1692, %v3420
        %v3741 = vmul.f32 %v1693, %v3420
        %v3742 = vmul.f32 %v1694, %v3420
        %v3743 = vmul.f32 %v1695, %v3420
        %v3744 = vmul.f32 %v1696, %v3420
        %v3745 = vmul.f32 %v1697, %v3420
        %v3746 = vmul.f32 %v1698, %v3425
        %v3747 = vmul.f32 %v1699, %v3425
        %v3748 = vmul.f32 %v1700, %v3425
        %v3749 = vmul.f32 %v1701, %v3425
        %v3750 = vmul.f32 %v1702, %v3425
        %v3751 = vmul.f32 %v1703, %v3425
        %v3752 = vmul.f32 %v1704, %v3425
        %v3753 = vmul.f32 %v1705, %v3430
        %v3754 = vmul.f32 %v1706, %v3430
        %v3755 = vmul.f32 %v1707, %v3430
        %v3756 = vmul.f32 %v1708, %v3430
        %v3757 = vmul.f32 %v1709, %v3430
        %v3758 = vmul.f32 %v1710, %v3430
        %v3759 = vmul.f32 %v1711, %v3430
        %v3760 = vmul.f32 %v1712, %v3435
        %v3761 = vmul.f32 %v1713, %v3435
        %v3762 = vmul.f32 %v1714, %v3435
        %v3763 = vmul.f32 %v1715, %v3435
        %v3764 = vmul.f32 %v1716, %v3435
        %v3765 = vmul.f32 %v1717, %v3435
        %v3766 = vmul.f32 %v1718, %v3435
        %v3767 = vmul.f32 %v1719, %v3440
        %v3768 = vmul.f32 %v1720, %v3440
        %v3769 = vmul.f32 %v1721, %v3440
        %v3770 = vmul.f32 %v1722, %v3440
        %v3771 = vmul.f32 %v1723, %v3440
        %v3772 = vmul.f32 %v1724, %v3440
        %v3773 = vmul.f32 %v1725, %v3440
        %v3774 = vmul.f32 %v1726, %v3445
        %v3775 = vmul.f32 %v1727, %v3445
        %v3776 = vmul.f32 %v1728, %v3445
        %v3777 = vmul.f32 %v1729, %v3445
        %v3778 = vmul.f32 %v1730, %v3445
        %v3779 = vmul.f32 %v1731, %v3445
        %v3780 = vmul.f32 %v1732, %v3445
        %v3781 = vmul.f32 %v1733, %v3450
        %v3782 = vmul.f32 %v1734, %v3450
        %v3783 = vmul.f32 %v1735, %v3450
        %v3784 = vmul.f32 %v1736, %v3450
        %v3785 = vmul.f32 %v1737, %v3450
        %v3786 = vmul.f32 %v1738, %v3450
        %v3787 = vmul.f32 %v1739, %v3450
        %v3788 = vmul.f32 %v1740, %v3455
        %v3789 = vmul.f32 %v1741, %v3455
        %v3790 = vmul.f32 %v1742, %v3455
        %v3791 = vmul.f32 %v1743, %v3455
        %v3792 = vmul.f32 %v1744, %v3455
        %v3793 = vmul.f32 %v1745, %v3455
        %v3794 = vmul.f32 %v1746, %v3455
        %v3795 = vmul.f32 %v1747, %v3460
        %v3796 = vmul.f32 %v1748, %v3460
        %v3797 = vmul.f32 %v1749, %v3460
        %v3798 = vmul.f32 %v1750, %v3460
        %v3799 = vmul.f32 %v1751, %v3460
        %v3800 = vmul.f32 %v1752, %v3460
        %v3801 = vmul.f32 %v1753, %v3460
        %v3802 = vmul.f32 %v1754, %v3465
        %v3803 = vmul.f32 %v1755, %v3465
        %v3804 = vmul.f32 %v1756, %v3465
        %v3805 = vmul.f32 %v1757, %v3465
        %v3806 = vmul.f32 %v1758, %v3465
        %v3807 = vmul.f32 %v1759, %v3465
        %v3808 = vmul.f32 %v1760, %v3465
        %v3809 = vmul.f32 %v1761, %v3470
        %v3810 = vmul.f32 %v1762, %v3470
        %v3811 = vmul.f32 %v1763, %v3470
        %v3812 = vmul.f32 %v1764, %v3470
        %v3813 = vmul.f32 %v1765, %v3470
        %v3814 = vmul.f32 %v1766, %v3470
        %v3815 = vmul.f32 %v1767, %v3470
        %v3816 = vmul.f32 %v1768, %v3475
        %v3817 = vmul.f32 %v1769, %v3475
        %v3818 = vmul.f32 %v1770, %v3475
        %v3819 = vmul.f32 %v1771, %v3475
        %v3820 = vmul.f32 %v1772, %v3475
        %v3821 = vmul.f32 %v1773, %v3475
        %v3822 = vmul.f32 %v1774, %v3475
        %v3823 = vmul.f32 %v1775, %v3480
        %v3824 = vmul.f32 %v1776, %v3480
        %v3825 = vmul.f32 %v1777, %v3480
        %v3826 = vmul.f32 %v1778, %v3480
        %v3827 = vmul.f32 %v1779, %v3480
        %v3828 = vmul.f32 %v1780, %v3480
        %v3829 = vmul.f32 %v1781, %v3480
        %v3830 = vmul.f32 %v1782, %v3485
        %v3831 = vmul.f32 %v1783, %v3485
        %v3832 = vmul.f32 %v1784, %v3485
        %v3833 = vmul.f32 %v1785, %v3485
        %v3834 = vmul.f32 %v1786, %v3485
        %v3835 = vmul.f32 %v1787, %v3485
        %v3836 = vmul.f32 %v1788, %v3485
        %v3837 = vmul.f32 %v1789, %v3490
        %v3838 = vmul.f32 %v1790, %v3490
        %v3839 = vmul.f32 %v1791, %v3490
        %v3840 = vmul.f32 %v1792, %v3490
        %v3841 = vmul.f32 %v1793, %v3490
        %v3842 = vmul.f32 %v1794, %v3490
        %v3843 = vmul.f32 %v1795, %v3490
        %v3844 = vmul.f32 %v1796, %v3495
        %v3845 = vmul.f32 %v1797, %v3495
        %v3846 = vmul.f32 %v1798, %v3495
        %v3847 = vmul.f32 %v1799, %v3495
        %v3848 = vmul.f32 %v1800, %v3495
        %v3849 = vmul.f32 %v1801, %v3495
        %v3850 = vmul.f32 %v1802, %v3495
        %v3851 = vmul.f32 %v1803, %v3500
        %v3852 = vmul.f32 %v1804, %v3500
        %v3853 = vmul.f32 %v1805, %v3500
        %v3854 = vmul.f32 %v1806, %v3500
        %v3855 = vmul.f32 %v1807, %v3500
        %v3856 = vmul.f32 %v1808, %v3500
        %v3857 = vmul.f32 %v1809, %v3500
        %v3858 = vmul.f32 %v1810, %v3505
        %v3859 = vmul.f32 %v1811, %v3505
        %v3860 = vmul.f32 %v1812, %v3505
        %v3861 = vmul.f32 %v1813, %v3505
        %v3862 = vmul.f32 %v1814, %v3505
        %v3863 = vmul.f32 %v1815, %v3505
        %v3864 = vmul.f32 %v1816, %v3505
        %v3865 = vmul.f32 %v1817, %v3510
        %v3866 = vmul.f32 %v1818, %v3510
        %v3867 = vmul.f32 %v1819, %v3510
        %v3868 = vmul.f32 %v1820, %v3510
        %v3869 = vmul.f32 %v1821, %v3510
        %v3870 = vmul.f32 %v1822, %v3510
        %v3871 = vmul.f32 %v1823, %v3510
        %v3872 = vmul.f32 %v1824, %v3515
        %v3873 = vmul.f32 %v1825, %v3515
        %v3874 = vmul.f32 %v1826, %v3515
        %v3875 = vmul.f32 %v1827, %v3515
        %v3876 = vmul.f32 %v1828, %v3515
        %v3877 = vmul.f32 %v1829, %v3515
        %v3878 = vmul.f32 %v1830, %v3515
        %v3879 = vmul.f32 %v1831, %v3520
        %v3880 = vmul.f32 %v1832, %v3520
        %v3881 = vmul.f32 %v1833, %v3520
        %v3882 = vmul.f32 %v1834, %v3520
        %v3883 = vmul.f32 %v1835, %v3520
        %v3884 = vmul.f32 %v1836, %v3520
        %v3885 = vmul.f32 %v1837, %v3520
        %v3886 = vmul.f32 %v1838, %v3525
        %v3887 = vmul.f32 %v1839, %v3525
        %v3888 = vmul.f32 %v1840, %v3525
        %v3889 = vmul.f32 %v1841, %v3525
        %v3890 = vmul.f32 %v1842, %v3525
        %v3891 = vmul.f32 %v1843, %v3525
        %v3892 = vmul.f32 %v1844, %v3525
        %v3893 = vmul.f32 %v1845, %v3530
        %v3894 = vmul.f32 %v1846, %v3530
        %v3895 = vmul.f32 %v1847, %v3530
        %v3896 = vmul.f32 %v1848, %v3530
        %v3897 = vmul.f32 %v1849, %v3530
        %v3898 = vmul.f32 %v1850, %v3530
        %v3899 = vmul.f32 %v1851, %v3530
        %v3900 = vmul.f32 %v1852, %v3535
        %v3901 = vmul.f32 %v1853, %v3535
        %v3902 = vmul.f32 %v1854, %v3535
        %v3903 = vmul.f32 %v1855, %v3535
        %v3904 = vmul.f32 %v1856, %v3535
        %v3905 = vmul.f32 %v1857, %v3535
        %v3906 = vmul.f32 %v1858, %v3535
        %v3907 = vmul.f32 %v1859, %v3540
        %v3908 = vmul.f32 %v1860, %v3540
        %v3909 = vmul.f32 %v1861, %v3540
        %v3910 = vmul.f32 %v1862, %v3540
        %v3911 = vmul.f32 %v1863, %v3540
        %v3912 = vmul.f32 %v1864, %v3540
        %v3913 = vmul.f32 %v1865, %v3540
        %v3914 = vmul.f32 %v1866, %v3545
        %v3915 = vmul.f32 %v1867, %v3545
        %v3916 = vmul.f32 %v1868, %v3545
        %v3917 = vmul.f32 %v1869, %v3545
        %v3918 = vmul.f32 %v1870, %v3545
        %v3919 = vmul.f32 %v1871, %v3545
        %v3920 = vmul.f32 %v1872, %v3545
        %v3921 = vmul.f32 %v1873, %v3550
        %v3922 = vmul.f32 %v1874, %v3550
        %v3923 = vmul.f32 %v1875, %v3550
        %v3924 = vmul.f32 %v1876, %v3550
        %v3925 = vmul.f32 %v1877, %v3550
        %v3926 = vmul.f32 %v1878, %v3550
        %v3927 = vmul.f32 %v1879, %v3550
        %v3928 = vmul.f32 %v1880, %v3555
        %v3929 = vmul.f32 %v1881, %v3555
        %v3930 = vmul.f32 %v1882, %v3555
        %v3931 = vmul.f32 %v1883, %v3555
        %v3932 = vmul.f32 %v1884, %v3555
        %v3933 = vmul.f32 %v1885, %v3555
        %v3934 = vmul.f32 %v1886, %v3555
        %v3935 = vmul.f32 %v1887, %v3560
        %v3936 = vmul.f32 %v1888, %v3560
        %v3937 = vmul.f32 %v1889, %v3560
        %v3938 = vmul.f32 %v1890, %v3560
        %v3939 = vmul.f32 %v1891, %v3560
        %v3940 = vmul.f32 %v1892, %v3560
        %v3941 = vmul.f32 %v1893, %v3560
        %v3942 = vmul.f32 %v1894, %v3565
        %v3943 = vmul.f32 %v1895, %v3565
        %v3944 = vmul.f32 %v1896, %v3565
        %v3945 = vmul.f32 %v1897, %v3565
        %v3946 = vmul.f32 %v1898, %v3565
        %v3947 = vmul.f32 %v1899, %v3565
        %v3948 = vmul.f32 %v1900, %v3565
        %v3949 = vmul.f32 %v1901, %v3570
        %v3950 = vmul.f32 %v1902, %v3570
        %v3951 = vmul.f32 %v1903, %v3570
        %v3952 = vmul.f32 %v1904, %v3570
        %v3953 = vmul.f32 %v1905, %v3570
        %v3954 = vmul.f32 %v1906, %v3570
        %v3955 = vmul.f32 %v1907, %v3570
        %v3956 = vmul.f32 %v1908, %v3575
        %v3957 = vmul.f32 %v1909, %v3575
        %v3958 = vmul.f32 %v1910, %v3575
        %v3959 = vmul.f32 %v1911, %v3575
        %v3960 = vmul.f32 %v1912, %v3575
        %v3961 = vmul.f32 %v1913, %v3575
        %v3962 = vmul.f32 %v1914, %v3575
        %v3963 = vmul.f32 %v1915, %v3580
        %v3964 = vmul.f32 %v1916, %v3580
        %v3965 = vmul.f32 %v1917, %v3580
        %v3966 = vmul.f32 %v1918, %v3580
        %v3967 = vmul.f32 %v1919, %v3580
        %v3968 = vmul.f32 %v1920, %v3580
        %v3969 = vmul.f32 %v1921, %v3580
        %v3970 = vmul.f32 %v1922, %v3585
        %v3971 = vmul.f32 %v1923, %v3585
        %v3972 = vmul.f32 %v1924, %v3585
        %v3973 = vmul.f32 %v1925, %v3585
        %v3974 = vmul.f32 %v1926, %v3585
        %v3975 = vmul.f32 %v1927, %v3585
        %v3976 = vmul.f32 %v1928, %v3585
        %v3977 = vmul.f32 %v1929, %v3590
        %v3978 = vmul.f32 %v1930, %v3590
        %v3979 = vmul.f32 %v1931, %v3590
        %v3980 = vmul.f32 %v1932, %v3590
        %v3981 = vmul.f32 %v1933, %v3590
        %v3982 = vmul.f32 %v1934, %v3590
        %v3983 = vmul.f32 %v1935, %v3590
        %v3984 = vmul.f32 %v1936, %v3595
        %v3985 = vmul.f32 %v1937, %v3595
        %v3986 = vmul.f32 %v1938, %v3595
        %v3987 = vmul.f32 %v1939, %v3595
        %v3988 = vmul.f32 %v1940, %v3595
        %v3989 = vmul.f32 %v1941, %v3595
        %v3990 = vmul.f32 %v1942, %v3595
        %v3991 = vmul.f32 %v1943, %v3600
        %v3992 = vmul.f32 %v1944, %v3600
        %v3993 = vmul.f32 %v1945, %v3600
        %v3994 = vmul.f32 %v1946, %v3600
        %v3995 = vmul.f32 %v1947, %v3600
        %v3996 = vmul.f32 %v1948, %v3600
        %v3997 = vmul.f32 %v1949, %v3600
        %v3998 = vmul.f32 %v1950, %v3605
        %v3999 = vmul.f32 %v1951, %v3605
        %v4000 = vmul.f32 %v1952, %v3605
        %v4001 = vmul.f32 %v1953, %v3605
        %v4002 = vmul.f32 %v1954, %v3605
        %v4003 = vmul.f32 %v1955, %v3605
        %v4004 = vmul.f32 %v1956, %v3605
        %v4005 = vmul.f32 %v1957, %v3610
        %v4006 = vmul.f32 %v1958, %v3610
        %v4007 = vmul.f32 %v1959, %v3610
        %v4008 = vmul.f32 %v1960, %v3610
        %v4009 = vmul.f32 %v1961, %v3610
        %v4010 = vmul.f32 %v1962, %v3610
        %v4011 = vmul.f32 %v1963, %v3610
        %v4012 = vmul.f32 %v1964, %v3615
        %v4013 = vmul.f32 %v1965, %v3615
        %v4014 = vmul.f32 %v1966, %v3615
        %v4015 = vmul.f32 %v1967, %v3615
        %v4016 = vmul.f32 %v1968, %v3615
        %v4017 = vmul.f32 %v1969, %v3615
        %v4018 = vmul.f32 %v1970, %v3615
        %v4019 = vmul.f32 %v1971, %v3620
        %v4020 = vmul.f32 %v1972, %v3620
        %v4021 = vmul.f32 %v1973, %v3620
        %v4022 = vmul.f32 %v1974, %v3620
        %v4023 = vmul.f32 %v1975, %v3620
        %v4024 = vmul.f32 %v1976, %v3620
        %v4025 = vmul.f32 %v1977, %v3620
        %v4026 = vmul.f32 %v1978, %v3625
        %v4027 = vmul.f32 %v1979, %v3625
        %v4028 = vmul.f32 %v1980, %v3625
        %v4029 = vmul.f32 %v1981, %v3625
        %v4030 = vmul.f32 %v1982, %v3625
        %v4031 = vmul.f32 %v1983, %v3625
        %v4032 = vmul.f32 %v1984, %v3625
        %v4033 = vmul.f32 %v1985, %v3630
        %v4034 = vmul.f32 %v1986, %v3630
        %v4035 = vmul.f32 %v1987, %v3630
        %v4036 = vmul.f32 %v1988, %v3630
        %v4037 = vmul.f32 %v1989, %v3630
        %v4038 = vmul.f32 %v1990, %v3630
        %v4039 = vmul.f32 %v1991, %v3630
        %v4040 = vmul.f32 %v1992, %v3635
        %v4041 = vmul.f32 %v1993, %v3635
        %v4042 = vmul.f32 %v1994, %v3635
        %v4043 = vmul.f32 %v1995, %v3635
        %v4044 = vmul.f32 %v1996, %v3635
        %v4045 = vmul.f32 %v1997, %v3635
        %v4046 = vmul.f32 %v1998, %v3635
        %v4047 = vmul.f32 %v1999, %v3640
        %v4048 = vmul.f32 %v2000, %v3640
        %v4049 = vmul.f32 %v2001, %v3640
        %v4050 = vmul.f32 %v2002, %v3640
        %v4051 = vmul.f32 %v2003, %v3640
        %v4052 = vmul.f32 %v2004, %v3640
        %v4053 = vmul.f32 %v2005, %v3640
        %v4054 = vmul.f32 %v2006, %v3645
        %v4055 = vmul.f32 %v2007, %v3645
        %v4056 = vmul.f32 %v2008, %v3645
        %v4057 = vmul.f32 %v2009, %v3645
        %v4058 = vmul.f32 %v2010, %v3645
        %v4059 = vmul.f32 %v2011, %v3645
        %v4060 = vmul.f32 %v2012, %v3645
        %v4061 = vmul.f32 %v2013, %v3650
        %v4062 = vmul.f32 %v2014, %v3650
        %v4063 = vmul.f32 %v2015, %v3650
        %v4064 = vmul.f32 %v2016, %v3650
        %v4065 = vmul.f32 %v2017, %v3650
        %v4066 = vmul.f32 %v2018, %v3650
        %v4067 = vmul.f32 %v2019, %v3650
        %v4068 = vmul.f32 %v2020, %v3655
        %v4069 = vmul.f32 %v2021, %v3655
        %v4070 = vmul.f32 %v2022, %v3655
        %v4071 = vmul.f32 %v2023, %v3655
        %v4072 = vmul.f32 %v2024, %v3655
        %v4073 = vmul.f32 %v2025, %v3655
        %v4074 = vmul.f32 %v2026, %v3655
        %v4075 = vmul.f32 %v2027, %v3660
        %v4076 = vmul.f32 %v2028, %v3660
        %v4077 = vmul.f32 %v2029, %v3660
        %v4078 = vmul.f32 %v2030, %v3660
        %v4079 = vmul.f32 %v2031, %v3660
        %v4080 = vmul.f32 %v2032, %v3660
        %v4081 = vmul.f32 %v2033, %v3660
        %v4082 = vmul.f32 %v2034, %v3665
        %v4083 = vmul.f32 %v2035, %v3665
        %v4084 = vmul.f32 %v2036, %v3665
        %v4085 = vmul.f32 %v2037, %v3665
        %v4086 = vmul.f32 %v2038, %v3665
        %v4087 = vmul.f32 %v2039, %v3665
        %v4088 = vmul.f32 %v2040, %v3665
        %v4089 = vmul.f32 %v2041, %v3670
        %v4090 = vmul.f32 %v2042, %v3670
        %v4091 = vmul.f32 %v2043, %v3670
        %v4092 = vmul.f32 %v2044, %v3670
        %v4093 = vmul.f32 %v2045, %v3670
        %v4094 = vmul.f32 %v2046, %v3670
        %v4095 = vmul.f32 %v2047, %v3670
        %v4096 = vmul.f32 %v2048, %v3675
        %v4097 = vmul.f32 %v2049, %v3675
        %v4098 = vmul.f32 %v2050, %v3675
        %v4099 = vmul.f32 %v2051, %v3675
        %v4100 = vmul.f32 %v2052, %v3675
        %v4101 = vmul.f32 %v2053, %v3675
        %v4102 = vmul.f32 %v2054, %v3675
        %v4103 = vmul.f32 %v2055, %v3680
        %v4104 = vmul.f32 %v2056, %v3680
        %v4105 = vmul.f32 %v2057, %v3680
        %v4106 = vmul.f32 %v2058, %v3680
        %v4107 = vmul.f32 %v2059, %v3680
        %v4108 = vmul.f32 %v2060, %v3680
        %v4109 = vmul.f32 %v2061, %v3680
        %v4110 = vmul.f32 %v2062, %v3685
        %v4111 = vmul.f32 %v2063, %v3685
        %v4112 = vmul.f32 %v2064, %v3685
        %v4113 = vmul.f32 %v2065, %v3685
        %v4114 = vmul.f32 %v2066, %v3685
        %v4115 = vmul.f32 %v2067, %v3685
        %v4116 = vmul.f32 %v2068, %v3685
        %v4117 = vmul.f32 %v2069, %v3690
        %v4118 = vmul.f32 %v2070, %v3690
        %v4119 = vmul.f32 %v2071, %v3690
        %v4120 = vmul.f32 %v2072, %v3690
        %v4121 = vmul.f32 %v2073, %v3690
        %v4122 = vmul.f32 %v2074, %v3690
        %v4123 = vmul.f32 %v2075, %v3690
        %v4124 = vmul.f32 %v2076, %v3695
        %v4125 = vmul.f32 %v2077, %v3695
        %v4126 = vmul.f32 %v2078, %v3695
        %v4127 = vmul.f32 %v2079, %v3695
        %v4128 = vmul.f32 %v2080, %v3695
        %v4129 = vmul.f32 %v2081, %v3695
        %v4130 = vmul.f32 %v2082, %v3695
        %v4131 = vmul.f32 %v2083, %v3700
        %v4132 = vmul.f32 %v2084, %v3700
        %v4133 = vmul.f32 %v2085, %v3700
        %v4134 = vmul.f32 %v2086, %v3700
        %v4135 = vmul.f32 %v2087, %v3700
        %v4136 = vmul.f32 %v2088, %v3700
        %v4137 = vmul.f32 %v2089, %v3700
        %v4138 = vmul.f32 %v2090, %v3705
        %v4139 = vmul.f32 %v2091, %v3705
        %v4140 = vmul.f32 %v2092, %v3705
        %v4141 = vmul.f32 %v2093, %v3705
        %v4142 = vmul.f32 %v2094, %v3705
        %v4143 = vmul.f32 %v2095, %v3705
        %v4144 = vmul.f32 %v2096, %v3705
        %v4145 = vmul.f32 %v2097, %v3710
        %v4146 = vmul.f32 %v2098, %v3710
        %v4147 = vmul.f32 %v2099, %v3710
        %v4148 = vmul.f32 %v2100, %v3710
        %v4149 = vmul.f32 %v2101, %v3710
        %v4150 = vmul.f32 %v2102, %v3710
        %v4151 = vmul.f32 %v2103, %v3710
        %v4152 = vmul.f32 %v2104, %v3715
        %v4153 = vmul.f32 %v2105, %v3715
        %v4154 = vmul.f32 %v2106, %v3715
        %v4155 = vmul.f32 %v2107, %v3715
        %v4156 = vmul.f32 %v2108, %v3715
        %v4157 = vmul.f32 %v2109, %v3715
        %v4158 = vmul.f32 %v2110, %v3715
        %v4159 = vmul.f32 %v2111, %v3720
        %v4160 = vmul.f32 %v2112, %v3720
        %v4161 = vmul.f32 %v2113, %v3720
        %v4162 = vmul.f32 %v2114, %v3720
        %v4163 = vmul.f32 %v2115, %v3720
        %v4164 = vmul.f32 %v2116, %v3720
        %v4165 = vmul.f32 %v2117, %v3720
        %v4166 = vmul.f32 %v2118, %v3725
        %v4167 = vmul.f32 %v2119, %v3725
        %v4168 = vmul.f32 %v2120, %v3725
        %v4169 = vmul.f32 %v2121, %v3725
        %v4170 = vmul.f32 %v2122, %v3725
        %v4171 = vmul.f32 %v2123, %v3725
        %v4172 = vmul.f32 %v2124, %v3725
        %v4173 = vmul.f32 %v2125, %v3730
        %v4174 = vmul.f32 %v2126, %v3730
        %v4175 = vmul.f32 %v2127, %v3730
        %v4176 = vmul.f32 %v2128, %v3730
        %v4177 = vmul.f32 %v2129, %v3730
        %v4178 = vmul.f32 %v2130, %v3730
        %v4179 = vmul.f32 %v2131, %v3730
        %4181 = vset.pattern.permute.xlu0 1
        %4182 = vperm.xlu0 %4181, %v979
        %v4183 = vpop.permute.xlu0 %4182
        %4186 = vset.pattern.permute.xlu0 1
        %4187 = vperm.xlu0 %4186, %v980
        %v4188 = vpop.permute.xlu0 %4187
        %4191 = vset.pattern.permute.xlu0 1
        %4192 = vperm.xlu0 %4191, %v981
        %v4193 = vpop.permute.xlu0 %4192
        %4196 = vset.pattern.permute.xlu0 1
        %4197 = vperm.xlu0 %4196, %v982
        %v4198 = vpop.permute.xlu0 %4197
        %4201 = vset.pattern.permute.xlu0 1
        %4202 = vperm.xlu0 %4201, %v983
        %v4203 = vpop.permute.xlu0 %4202
        %4206 = vset.pattern.permute.xlu0 1
        %4207 = vperm.xlu0 %4206, %v984
        %v4208 = vpop.permute.xlu0 %4207
        %4211 = vset.pattern.permute.xlu0 1
        %4212 = vperm.xlu0 %4211, %v985
        %v4213 = vpop.permute.xlu0 %4212
        %4216 = vset.pattern.permute.xlu0 1
        %4217 = vperm.xlu0 %4216, %v986
        %v4218 = vpop.permute.xlu0 %4217
        %4221 = vset.pattern.permute.xlu0 1
        %4222 = vperm.xlu0 %4221, %v987
        %v4223 = vpop.permute.xlu0 %4222
        %4226 = vset.pattern.permute.xlu0 1
        %4227 = vperm.xlu0 %4226, %v988
        %v4228 = vpop.permute.xlu0 %4227
        %4231 = vset.pattern.permute.xlu0 1
        %4232 = vperm.xlu0 %4231, %v989
        %v4233 = vpop.permute.xlu0 %4232
        %4236 = vset.pattern.permute.xlu0 1
        %4237 = vperm.xlu0 %4236, %v990
        %v4238 = vpop.permute.xlu0 %4237
        %4241 = vset.pattern.permute.xlu0 1
        %4242 = vperm.xlu0 %4241, %v991
        %v4243 = vpop.permute.xlu0 %4242
        %4246 = vset.pattern.permute.xlu0 1
        %4247 = vperm.xlu0 %4246, %v992
        %v4248 = vpop.permute.xlu0 %4247
        %4251 = vset.pattern.permute.xlu0 1
        %4252 = vperm.xlu0 %4251, %v993
        %v4253 = vpop.permute.xlu0 %4252
        %4256 = vset.pattern.permute.xlu0 1
        %4257 = vperm.xlu0 %4256, %v994
        %v4258 = vpop.permute.xlu0 %4257
        %4261 = vset.pattern.permute.xlu0 1
        %4262 = vperm.xlu0 %4261, %v995
        %v4263 = vpop.permute.xlu0 %4262
        %4266 = vset.pattern.permute.xlu0 1
        %4267 = vperm.xlu0 %4266, %v996
        %v4268 = vpop.permute.xlu0 %4267
        %4271 = vset.pattern.permute.xlu0 1
        %4272 = vperm.xlu0 %4271, %v997
        %v4273 = vpop.permute.xlu0 %4272
        %4276 = vset.pattern.permute.xlu0 1
        %4277 = vperm.xlu0 %4276, %v998
        %v4278 = vpop.permute.xlu0 %4277
        %4281 = vset.pattern.permute.xlu0 1
        %4282 = vperm.xlu0 %4281, %v999
        %v4283 = vpop.permute.xlu0 %4282
        %4286 = vset.pattern.permute.xlu0 1
        %4287 = vperm.xlu0 %4286, %v1000
        %v4288 = vpop.permute.xlu0 %4287
        %4291 = vset.pattern.permute.xlu0 1
        %4292 = vperm.xlu0 %4291, %v1001
        %v4293 = vpop.permute.xlu0 %4292
        %4296 = vset.pattern.permute.xlu0 1
        %4297 = vperm.xlu0 %4296, %v1002
        %v4298 = vpop.permute.xlu0 %4297
        %4301 = vset.pattern.permute.xlu0 1
        %4302 = vperm.xlu0 %4301, %v1003
        %v4303 = vpop.permute.xlu0 %4302
        %4306 = vset.pattern.permute.xlu0 1
        %4307 = vperm.xlu0 %4306, %v1004
        %v4308 = vpop.permute.xlu0 %4307
        %4311 = vset.pattern.permute.xlu0 1
        %4312 = vperm.xlu0 %4311, %v1005
        %v4313 = vpop.permute.xlu0 %4312
        %4316 = vset.pattern.permute.xlu0 1
        %4317 = vperm.xlu0 %4316, %v1006
        %v4318 = vpop.permute.xlu0 %4317
        %4321 = vset.pattern.permute.xlu0 1
        %4322 = vperm.xlu0 %4321, %v1007
        %v4323 = vpop.permute.xlu0 %4322
        %4326 = vset.pattern.permute.xlu0 1
        %4327 = vperm.xlu0 %4326, %v1008
        %v4328 = vpop.permute.xlu0 %4327
        %4331 = vset.pattern.permute.xlu0 1
        %4332 = vperm.xlu0 %4331, %v1009
        %v4333 = vpop.permute.xlu0 %4332
        %4336 = vset.pattern.permute.xlu0 1
        %4337 = vperm.xlu0 %4336, %v1010
        %v4338 = vpop.permute.xlu0 %4337
        %4341 = vset.pattern.permute.xlu0 1
        %4342 = vperm.xlu0 %4341, %v1011
        %v4343 = vpop.permute.xlu0 %4342
        %4346 = vset.pattern.permute.xlu0 1
        %4347 = vperm.xlu0 %4346, %v1012
        %v4348 = vpop.permute.xlu0 %4347
        %4351 = vset.pattern.permute.xlu0 1
        %4352 = vperm.xlu0 %4351, %v1013
        %v4353 = vpop.permute.xlu0 %4352
        %4356 = vset.pattern.permute.xlu0 1
        %4357 = vperm.xlu0 %4356, %v1014
        %v4358 = vpop.permute.xlu0 %4357
        %4361 = vset.pattern.permute.xlu0 1
        %4362 = vperm.xlu0 %4361, %v1015
        %v4363 = vpop.permute.xlu0 %4362
        %4366 = vset.pattern.permute.xlu0 1
        %4367 = vperm.xlu0 %4366, %v1016
        %v4368 = vpop.permute.xlu0 %4367
        %4371 = vset.pattern.permute.xlu0 1
        %4372 = vperm.xlu0 %4371, %v1017
        %v4373 = vpop.permute.xlu0 %4372
        %4376 = vset.pattern.permute.xlu0 1
        %4377 = vperm.xlu0 %4376, %v1018
        %v4378 = vpop.permute.xlu0 %4377
        %4381 = vset.pattern.permute.xlu0 1
        %4382 = vperm.xlu0 %4381, %v1019
        %v4383 = vpop.permute.xlu0 %4382
        %4386 = vset.pattern.permute.xlu0 1
        %4387 = vperm.xlu0 %4386, %v1020
        %v4388 = vpop.permute.xlu0 %4387
        %4391 = vset.pattern.permute.xlu0 1
        %4392 = vperm.xlu0 %4391, %v1021
        %v4393 = vpop.permute.xlu0 %4392
        %4396 = vset.pattern.permute.xlu0 1
        %4397 = vperm.xlu0 %4396, %v1022
        %v4398 = vpop.permute.xlu0 %4397
        %4401 = vset.pattern.permute.xlu0 1
        %4402 = vperm.xlu0 %4401, %v1023
        %v4403 = vpop.permute.xlu0 %4402
        %4406 = vset.pattern.permute.xlu0 1
        %4407 = vperm.xlu0 %4406, %v1024
        %v4408 = vpop.permute.xlu0 %4407
        %4411 = vset.pattern.permute.xlu0 1
        %4412 = vperm.xlu0 %4411, %v1025
        %v4413 = vpop.permute.xlu0 %4412
        %4416 = vset.pattern.permute.xlu0 1
        %4417 = vperm.xlu0 %4416, %v1026
        %v4418 = vpop.permute.xlu0 %4417
        %4421 = vset.pattern.permute.xlu0 1
        %4422 = vperm.xlu0 %4421, %v1027
        %v4423 = vpop.permute.xlu0 %4422
        %4426 = vset.pattern.permute.xlu0 1
        %4427 = vperm.xlu0 %4426, %v1028
        %v4428 = vpop.permute.xlu0 %4427
        %4431 = vset.pattern.permute.xlu0 1
        %4432 = vperm.xlu0 %4431, %v1029
        %v4433 = vpop.permute.xlu0 %4432
        %4436 = vset.pattern.permute.xlu0 1
        %4437 = vperm.xlu0 %4436, %v1030
        %v4438 = vpop.permute.xlu0 %4437
        %4441 = vset.pattern.permute.xlu0 1
        %4442 = vperm.xlu0 %4441, %v1031
        %v4443 = vpop.permute.xlu0 %4442
        %4446 = vset.pattern.permute.xlu0 1
        %4447 = vperm.xlu0 %4446, %v1032
        %v4448 = vpop.permute.xlu0 %4447
        %4451 = vset.pattern.permute.xlu0 1
        %4452 = vperm.xlu0 %4451, %v1033
        %v4453 = vpop.permute.xlu0 %4452
        %4456 = vset.pattern.permute.xlu0 1
        %4457 = vperm.xlu0 %4456, %v1034
        %v4458 = vpop.permute.xlu0 %4457
        %4461 = vset.pattern.permute.xlu0 1
        %4462 = vperm.xlu0 %4461, %v1035
        %v4463 = vpop.permute.xlu0 %4462
        %4466 = vset.pattern.permute.xlu0 1
        %4467 = vperm.xlu0 %4466, %v1036
        %v4468 = vpop.permute.xlu0 %4467
        %4471 = vset.pattern.permute.xlu0 1
        %4472 = vperm.xlu0 %4471, %v1037
        %v4473 = vpop.permute.xlu0 %4472
        %4476 = vset.pattern.permute.xlu0 1
        %4477 = vperm.xlu0 %4476, %v1038
        %v4478 = vpop.permute.xlu0 %4477
        %4481 = vset.pattern.permute.xlu0 1
        %4482 = vperm.xlu0 %4481, %v1039
        %v4483 = vpop.permute.xlu0 %4482
        %4486 = vset.pattern.permute.xlu0 1
        %4487 = vperm.xlu0 %4486, %v1040
        %v4488 = vpop.permute.xlu0 %4487
        %4491 = vset.pattern.permute.xlu0 1
        %4492 = vperm.xlu0 %4491, %v1041
        %v4493 = vpop.permute.xlu0 %4492
        %4496 = vset.pattern.permute.xlu0 1
        %4497 = vperm.xlu0 %4496, %v1042
        %v4498 = vpop.permute.xlu0 %4497
        %v4500 = vadd.f32 %v3732, %v4183
        %v4501 = vadd.f32 %v3733, %v4183
        %v4502 = vadd.f32 %v3734, %v4183
        %v4503 = vadd.f32 %v3735, %v4183
        %v4504 = vadd.f32 %v3736, %v4183
        %v4505 = vadd.f32 %v3737, %v4183
        %v4506 = vadd.f32 %v3738, %v4183
        %v4507 = vadd.f32 %v3739, %v4188
        %v4508 = vadd.f32 %v3740, %v4188
        %v4509 = vadd.f32 %v3741, %v4188
        %v4510 = vadd.f32 %v3742, %v4188
        %v4511 = vadd.f32 %v3743, %v4188
        %v4512 = vadd.f32 %v3744, %v4188
        %v4513 = vadd.f32 %v3745, %v4188
        %v4514 = vadd.f32 %v3746, %v4193
        %v4515 = vadd.f32 %v3747, %v4193
        %v4516 = vadd.f32 %v3748, %v4193
        %v4517 = vadd.f32 %v3749, %v4193
        %v4518 = vadd.f32 %v3750, %v4193
        %v4519 = vadd.f32 %v3751, %v4193
        %v4520 = vadd.f32 %v3752, %v4193
        %v4521 = vadd.f32 %v3753, %v4198
        %v4522 = vadd.f32 %v3754, %v4198
        %v4523 = vadd.f32 %v3755, %v4198
        %v4524 = vadd.f32 %v3756, %v4198
        %v4525 = vadd.f32 %v3757, %v4198
        %v4526 = vadd.f32 %v3758, %v4198
        %v4527 = vadd.f32 %v3759, %v4198
        %v4528 = vadd.f32 %v3760, %v4203
        %v4529 = vadd.f32 %v3761, %v4203
        %v4530 = vadd.f32 %v3762, %v4203
        %v4531 = vadd.f32 %v3763, %v4203
        %v4532 = vadd.f32 %v3764, %v4203
        %v4533 = vadd.f32 %v3765, %v4203
        %v4534 = vadd.f32 %v3766, %v4203
        %v4535 = vadd.f32 %v3767, %v4208
        %v4536 = vadd.f32 %v3768, %v4208
        %v4537 = vadd.f32 %v3769, %v4208
        %v4538 = vadd.f32 %v3770, %v4208
        %v4539 = vadd.f32 %v3771, %v4208
        %v4540 = vadd.f32 %v3772, %v4208
        %v4541 = vadd.f32 %v3773, %v4208
        %v4542 = vadd.f32 %v3774, %v4213
        %v4543 = vadd.f32 %v3775, %v4213
        %v4544 = vadd.f32 %v3776, %v4213
        %v4545 = vadd.f32 %v3777, %v4213
        %v4546 = vadd.f32 %v3778, %v4213
        %v4547 = vadd.f32 %v3779, %v4213
        %v4548 = vadd.f32 %v3780, %v4213
        %v4549 = vadd.f32 %v3781, %v4218
        %v4550 = vadd.f32 %v3782, %v4218
        %v4551 = vadd.f32 %v3783, %v4218
        %v4552 = vadd.f32 %v3784, %v4218
        %v4553 = vadd.f32 %v3785, %v4218
        %v4554 = vadd.f32 %v3786, %v4218
        %v4555 = vadd.f32 %v3787, %v4218
        %v4556 = vadd.f32 %v3788, %v4223
        %v4557 = vadd.f32 %v3789, %v4223
        %v4558 = vadd.f32 %v3790, %v4223
        %v4559 = vadd.f32 %v3791, %v4223
        %v4560 = vadd.f32 %v3792, %v4223
        %v4561 = vadd.f32 %v3793, %v4223
        %v4562 = vadd.f32 %v3794, %v4223
        %v4563 = vadd.f32 %v3795, %v4228
        %v4564 = vadd.f32 %v3796, %v4228
        %v4565 = vadd.f32 %v3797, %v4228
        %v4566 = vadd.f32 %v3798, %v4228
        %v4567 = vadd.f32 %v3799, %v4228
        %v4568 = vadd.f32 %v3800, %v4228
        %v4569 = vadd.f32 %v3801, %v4228
        %v4570 = vadd.f32 %v3802, %v4233
        %v4571 = vadd.f32 %v3803, %v4233
        %v4572 = vadd.f32 %v3804, %v4233
        %v4573 = vadd.f32 %v3805, %v4233
        %v4574 = vadd.f32 %v3806, %v4233
        %v4575 = vadd.f32 %v3807, %v4233
        %v4576 = vadd.f32 %v3808, %v4233
        %v4577 = vadd.f32 %v3809, %v4238
        %v4578 = vadd.f32 %v3810, %v4238
        %v4579 = vadd.f32 %v3811, %v4238
        %v4580 = vadd.f32 %v3812, %v4238
        %v4581 = vadd.f32 %v3813, %v4238
        %v4582 = vadd.f32 %v3814, %v4238
        %v4583 = vadd.f32 %v3815, %v4238
        %v4584 = vadd.f32 %v3816, %v4243
        %v4585 = vadd.f32 %v3817, %v4243
        %v4586 = vadd.f32 %v3818, %v4243
        %v4587 = vadd.f32 %v3819, %v4243
        %v4588 = vadd.f32 %v3820, %v4243
        %v4589 = vadd.f32 %v3821, %v4243
        %v4590 = vadd.f32 %v3822, %v4243
        %v4591 = vadd.f32 %v3823, %v4248
        %v4592 = vadd.f32 %v3824, %v4248
        %v4593 = vadd.f32 %v3825, %v4248
        %v4594 = vadd.f32 %v3826, %v4248
        %v4595 = vadd.f32 %v3827, %v4248
        %v4596 = vadd.f32 %v3828, %v4248
        %v4597 = vadd.f32 %v3829, %v4248
        %v4598 = vadd.f32 %v3830, %v4253
        %v4599 = vadd.f32 %v3831, %v4253
        %v4600 = vadd.f32 %v3832, %v4253
        %v4601 = vadd.f32 %v3833, %v4253
        %v4602 = vadd.f32 %v3834, %v4253
        %v4603 = vadd.f32 %v3835, %v4253
        %v4604 = vadd.f32 %v3836, %v4253
        %v4605 = vadd.f32 %v3837, %v4258
        %v4606 = vadd.f32 %v3838, %v4258
        %v4607 = vadd.f32 %v3839, %v4258
        %v4608 = vadd.f32 %v3840, %v4258
        %v4609 = vadd.f32 %v3841, %v4258
        %v4610 = vadd.f32 %v3842, %v4258
        %v4611 = vadd.f32 %v3843, %v4258
        %v4612 = vadd.f32 %v3844, %v4263
        %v4613 = vadd.f32 %v3845, %v4263
        %v4614 = vadd.f32 %v3846, %v4263
        %v4615 = vadd.f32 %v3847, %v4263
        %v4616 = vadd.f32 %v3848, %v4263
        %v4617 = vadd.f32 %v3849, %v4263
        %v4618 = vadd.f32 %v3850, %v4263
        %v4619 = vadd.f32 %v3851, %v4268
        %v4620 = vadd.f32 %v3852, %v4268
        %v4621 = vadd.f32 %v3853, %v4268
        %v4622 = vadd.f32 %v3854, %v4268
        %v4623 = vadd.f32 %v3855, %v4268
        %v4624 = vadd.f32 %v3856, %v4268
        %v4625 = vadd.f32 %v3857, %v4268
        %v4626 = vadd.f32 %v3858, %v4273
        %v4627 = vadd.f32 %v3859, %v4273
        %v4628 = vadd.f32 %v3860, %v4273
        %v4629 = vadd.f32 %v3861, %v4273
        %v4630 = vadd.f32 %v3862, %v4273
        %v4631 = vadd.f32 %v3863, %v4273
        %v4632 = vadd.f32 %v3864, %v4273
        %v4633 = vadd.f32 %v3865, %v4278
        %v4634 = vadd.f32 %v3866, %v4278
        %v4635 = vadd.f32 %v3867, %v4278
        %v4636 = vadd.f32 %v3868, %v4278
        %v4637 = vadd.f32 %v3869, %v4278
        %v4638 = vadd.f32 %v3870, %v4278
        %v4639 = vadd.f32 %v3871, %v4278
        %v4640 = vadd.f32 %v3872, %v4283
        %v4641 = vadd.f32 %v3873, %v4283
        %v4642 = vadd.f32 %v3874, %v4283
        %v4643 = vadd.f32 %v3875, %v4283
        %v4644 = vadd.f32 %v3876, %v4283
        %v4645 = vadd.f32 %v3877, %v4283
        %v4646 = vadd.f32 %v3878, %v4283
        %v4647 = vadd.f32 %v3879, %v4288
        %v4648 = vadd.f32 %v3880, %v4288
        %v4649 = vadd.f32 %v3881, %v4288
        %v4650 = vadd.f32 %v3882, %v4288
        %v4651 = vadd.f32 %v3883, %v4288
        %v4652 = vadd.f32 %v3884, %v4288
        %v4653 = vadd.f32 %v3885, %v4288
        %v4654 = vadd.f32 %v3886, %v4293
        %v4655 = vadd.f32 %v3887, %v4293
        %v4656 = vadd.f32 %v3888, %v4293
        %v4657 = vadd.f32 %v3889, %v4293
        %v4658 = vadd.f32 %v3890, %v4293
        %v4659 = vadd.f32 %v3891, %v4293
        %v4660 = vadd.f32 %v3892, %v4293
        %v4661 = vadd.f32 %v3893, %v4298
        %v4662 = vadd.f32 %v3894, %v4298
        %v4663 = vadd.f32 %v3895, %v4298
        %v4664 = vadd.f32 %v3896, %v4298
        %v4665 = vadd.f32 %v3897, %v4298
        %v4666 = vadd.f32 %v3898, %v4298
        %v4667 = vadd.f32 %v3899, %v4298
        %v4668 = vadd.f32 %v3900, %v4303
        %v4669 = vadd.f32 %v3901, %v4303
        %v4670 = vadd.f32 %v3902, %v4303
        %v4671 = vadd.f32 %v3903, %v4303
        %v4672 = vadd.f32 %v3904, %v4303
        %v4673 = vadd.f32 %v3905, %v4303
        %v4674 = vadd.f32 %v3906, %v4303
        %v4675 = vadd.f32 %v3907, %v4308
        %v4676 = vadd.f32 %v3908, %v4308
        %v4677 = vadd.f32 %v3909, %v4308
        %v4678 = vadd.f32 %v3910, %v4308
        %v4679 = vadd.f32 %v3911, %v4308
        %v4680 = vadd.f32 %v3912, %v4308
        %v4681 = vadd.f32 %v3913, %v4308
        %v4682 = vadd.f32 %v3914, %v4313
        %v4683 = vadd.f32 %v3915, %v4313
        %v4684 = vadd.f32 %v3916, %v4313
        %v4685 = vadd.f32 %v3917, %v4313
        %v4686 = vadd.f32 %v3918, %v4313
        %v4687 = vadd.f32 %v3919, %v4313
        %v4688 = vadd.f32 %v3920, %v4313
        %v4689 = vadd.f32 %v3921, %v4318
        %v4690 = vadd.f32 %v3922, %v4318
        %v4691 = vadd.f32 %v3923, %v4318
        %v4692 = vadd.f32 %v3924, %v4318
        %v4693 = vadd.f32 %v3925, %v4318
        %v4694 = vadd.f32 %v3926, %v4318
        %v4695 = vadd.f32 %v3927, %v4318
        %v4696 = vadd.f32 %v3928, %v4323
        %v4697 = vadd.f32 %v3929, %v4323
        %v4698 = vadd.f32 %v3930, %v4323
        %v4699 = vadd.f32 %v3931, %v4323
        %v4700 = vadd.f32 %v3932, %v4323
        %v4701 = vadd.f32 %v3933, %v4323
        %v4702 = vadd.f32 %v3934, %v4323
        %v4703 = vadd.f32 %v3935, %v4328
        %v4704 = vadd.f32 %v3936, %v4328
        %v4705 = vadd.f32 %v3937, %v4328
        %v4706 = vadd.f32 %v3938, %v4328
        %v4707 = vadd.f32 %v3939, %v4328
        %v4708 = vadd.f32 %v3940, %v4328
        %v4709 = vadd.f32 %v3941, %v4328
        %v4710 = vadd.f32 %v3942, %v4333
        %v4711 = vadd.f32 %v3943, %v4333
        %v4712 = vadd.f32 %v3944, %v4333
        %v4713 = vadd.f32 %v3945, %v4333
        %v4714 = vadd.f32 %v3946, %v4333
        %v4715 = vadd.f32 %v3947, %v4333
        %v4716 = vadd.f32 %v3948, %v4333
        %v4717 = vadd.f32 %v3949, %v4338
        %v4718 = vadd.f32 %v3950, %v4338
        %v4719 = vadd.f32 %v3951, %v4338
        %v4720 = vadd.f32 %v3952, %v4338
        %v4721 = vadd.f32 %v3953, %v4338
        %v4722 = vadd.f32 %v3954, %v4338
        %v4723 = vadd.f32 %v3955, %v4338
        %v4724 = vadd.f32 %v3956, %v4343
        %v4725 = vadd.f32 %v3957, %v4343
        %v4726 = vadd.f32 %v3958, %v4343
        %v4727 = vadd.f32 %v3959, %v4343
        %v4728 = vadd.f32 %v3960, %v4343
        %v4729 = vadd.f32 %v3961, %v4343
        %v4730 = vadd.f32 %v3962, %v4343
        %v4731 = vadd.f32 %v3963, %v4348
        %v4732 = vadd.f32 %v3964, %v4348
        %v4733 = vadd.f32 %v3965, %v4348
        %v4734 = vadd.f32 %v3966, %v4348
        %v4735 = vadd.f32 %v3967, %v4348
        %v4736 = vadd.f32 %v3968, %v4348
        %v4737 = vadd.f32 %v3969, %v4348
        %v4738 = vadd.f32 %v3970, %v4353
        %v4739 = vadd.f32 %v3971, %v4353
        %v4740 = vadd.f32 %v3972, %v4353
        %v4741 = vadd.f32 %v3973, %v4353
        %v4742 = vadd.f32 %v3974, %v4353
        %v4743 = vadd.f32 %v3975, %v4353
        %v4744 = vadd.f32 %v3976, %v4353
        %v4745 = vadd.f32 %v3977, %v4358
        %v4746 = vadd.f32 %v3978, %v4358
        %v4747 = vadd.f32 %v3979, %v4358
        %v4748 = vadd.f32 %v3980, %v4358
        %v4749 = vadd.f32 %v3981, %v4358
        %v4750 = vadd.f32 %v3982, %v4358
        %v4751 = vadd.f32 %v3983, %v4358
        %v4752 = vadd.f32 %v3984, %v4363
        %v4753 = vadd.f32 %v3985, %v4363
        %v4754 = vadd.f32 %v3986, %v4363
        %v4755 = vadd.f32 %v3987, %v4363
        %v4756 = vadd.f32 %v3988, %v4363
        %v4757 = vadd.f32 %v3989, %v4363
        %v4758 = vadd.f32 %v3990, %v4363
        %v4759 = vadd.f32 %v3991, %v4368
        %v4760 = vadd.f32 %v3992, %v4368
        %v4761 = vadd.f32 %v3993, %v4368
        %v4762 = vadd.f32 %v3994, %v4368
        %v4763 = vadd.f32 %v3995, %v4368
        %v4764 = vadd.f32 %v3996, %v4368
        %v4765 = vadd.f32 %v3997, %v4368
        %v4766 = vadd.f32 %v3998, %v4373
        %v4767 = vadd.f32 %v3999, %v4373
        %v4768 = vadd.f32 %v4000, %v4373
        %v4769 = vadd.f32 %v4001, %v4373
        %v4770 = vadd.f32 %v4002, %v4373
        %v4771 = vadd.f32 %v4003, %v4373
        %v4772 = vadd.f32 %v4004, %v4373
        %v4773 = vadd.f32 %v4005, %v4378
        %v4774 = vadd.f32 %v4006, %v4378
        %v4775 = vadd.f32 %v4007, %v4378
        %v4776 = vadd.f32 %v4008, %v4378
        %v4777 = vadd.f32 %v4009, %v4378
        %v4778 = vadd.f32 %v4010, %v4378
        %v4779 = vadd.f32 %v4011, %v4378
        %v4780 = vadd.f32 %v4012, %v4383
        %v4781 = vadd.f32 %v4013, %v4383
        %v4782 = vadd.f32 %v4014, %v4383
        %v4783 = vadd.f32 %v4015, %v4383
        %v4784 = vadd.f32 %v4016, %v4383
        %v4785 = vadd.f32 %v4017, %v4383
        %v4786 = vadd.f32 %v4018, %v4383
        %v4787 = vadd.f32 %v4019, %v4388
        %v4788 = vadd.f32 %v4020, %v4388
        %v4789 = vadd.f32 %v4021, %v4388
        %v4790 = vadd.f32 %v4022, %v4388
        %v4791 = vadd.f32 %v4023, %v4388
        %v4792 = vadd.f32 %v4024, %v4388
        %v4793 = vadd.f32 %v4025, %v4388
        %v4794 = vadd.f32 %v4026, %v4393
        %v4795 = vadd.f32 %v4027, %v4393
        %v4796 = vadd.f32 %v4028, %v4393
        %v4797 = vadd.f32 %v4029, %v4393
        %v4798 = vadd.f32 %v4030, %v4393
        %v4799 = vadd.f32 %v4031, %v4393
        %v4800 = vadd.f32 %v4032, %v4393
        %v4801 = vadd.f32 %v4033, %v4398
        %v4802 = vadd.f32 %v4034, %v4398
        %v4803 = vadd.f32 %v4035, %v4398
        %v4804 = vadd.f32 %v4036, %v4398
        %v4805 = vadd.f32 %v4037, %v4398
        %v4806 = vadd.f32 %v4038, %v4398
        %v4807 = vadd.f32 %v4039, %v4398
        %v4808 = vadd.f32 %v4040, %v4403
        %v4809 = vadd.f32 %v4041, %v4403
        %v4810 = vadd.f32 %v4042, %v4403
        %v4811 = vadd.f32 %v4043, %v4403
        %v4812 = vadd.f32 %v4044, %v4403
        %v4813 = vadd.f32 %v4045, %v4403
        %v4814 = vadd.f32 %v4046, %v4403
        %v4815 = vadd.f32 %v4047, %v4408
        %v4816 = vadd.f32 %v4048, %v4408
        %v4817 = vadd.f32 %v4049, %v4408
        %v4818 = vadd.f32 %v4050, %v4408
        %v4819 = vadd.f32 %v4051, %v4408
        %v4820 = vadd.f32 %v4052, %v4408
        %v4821 = vadd.f32 %v4053, %v4408
        %v4822 = vadd.f32 %v4054, %v4413
        %v4823 = vadd.f32 %v4055, %v4413
        %v4824 = vadd.f32 %v4056, %v4413
        %v4825 = vadd.f32 %v4057, %v4413
        %v4826 = vadd.f32 %v4058, %v4413
        %v4827 = vadd.f32 %v4059, %v4413
        %v4828 = vadd.f32 %v4060, %v4413
        %v4829 = vadd.f32 %v4061, %v4418
        %v4830 = vadd.f32 %v4062, %v4418
        %v4831 = vadd.f32 %v4063, %v4418
        %v4832 = vadd.f32 %v4064, %v4418
        %v4833 = vadd.f32 %v4065, %v4418
        %v4834 = vadd.f32 %v4066, %v4418
        %v4835 = vadd.f32 %v4067, %v4418
        %v4836 = vadd.f32 %v4068, %v4423
        %v4837 = vadd.f32 %v4069, %v4423
        %v4838 = vadd.f32 %v4070, %v4423
        %v4839 = vadd.f32 %v4071, %v4423
        %v4840 = vadd.f32 %v4072, %v4423
        %v4841 = vadd.f32 %v4073, %v4423
        %v4842 = vadd.f32 %v4074, %v4423
        %v4843 = vadd.f32 %v4075, %v4428
        %v4844 = vadd.f32 %v4076, %v4428
        %v4845 = vadd.f32 %v4077, %v4428
        %v4846 = vadd.f32 %v4078, %v4428
        %v4847 = vadd.f32 %v4079, %v4428
        %v4848 = vadd.f32 %v4080, %v4428
        %v4849 = vadd.f32 %v4081, %v4428
        %v4850 = vadd.f32 %v4082, %v4433
        %v4851 = vadd.f32 %v4083, %v4433
        %v4852 = vadd.f32 %v4084, %v4433
        %v4853 = vadd.f32 %v4085, %v4433
        %v4854 = vadd.f32 %v4086, %v4433
        %v4855 = vadd.f32 %v4087, %v4433
        %v4856 = vadd.f32 %v4088, %v4433
        %v4857 = vadd.f32 %v4089, %v4438
        %v4858 = vadd.f32 %v4090, %v4438
        %v4859 = vadd.f32 %v4091, %v4438
        %v4860 = vadd.f32 %v4092, %v4438
        %v4861 = vadd.f32 %v4093, %v4438
        %v4862 = vadd.f32 %v4094, %v4438
        %v4863 = vadd.f32 %v4095, %v4438
        %v4864 = vadd.f32 %v4096, %v4443
        %v4865 = vadd.f32 %v4097, %v4443
        %v4866 = vadd.f32 %v4098, %v4443
        %v4867 = vadd.f32 %v4099, %v4443
        %v4868 = vadd.f32 %v4100, %v4443
        %v4869 = vadd.f32 %v4101, %v4443
        %v4870 = vadd.f32 %v4102, %v4443
        %v4871 = vadd.f32 %v4103, %v4448
        %v4872 = vadd.f32 %v4104, %v4448
        %v4873 = vadd.f32 %v4105, %v4448
        %v4874 = vadd.f32 %v4106, %v4448
        %v4875 = vadd.f32 %v4107, %v4448
        %v4876 = vadd.f32 %v4108, %v4448
        %v4877 = vadd.f32 %v4109, %v4448
        %v4878 = vadd.f32 %v4110, %v4453
        %v4879 = vadd.f32 %v4111, %v4453
        %v4880 = vadd.f32 %v4112, %v4453
        %v4881 = vadd.f32 %v4113, %v4453
        %v4882 = vadd.f32 %v4114, %v4453
        %v4883 = vadd.f32 %v4115, %v4453
        %v4884 = vadd.f32 %v4116, %v4453
        %v4885 = vadd.f32 %v4117, %v4458
        %v4886 = vadd.f32 %v4118, %v4458
        %v4887 = vadd.f32 %v4119, %v4458
        %v4888 = vadd.f32 %v4120, %v4458
        %v4889 = vadd.f32 %v4121, %v4458
        %v4890 = vadd.f32 %v4122, %v4458
        %v4891 = vadd.f32 %v4123, %v4458
        %v4892 = vadd.f32 %v4124, %v4463
        %v4893 = vadd.f32 %v4125, %v4463
        %v4894 = vadd.f32 %v4126, %v4463
        %v4895 = vadd.f32 %v4127, %v4463
        %v4896 = vadd.f32 %v4128, %v4463
        %v4897 = vadd.f32 %v4129, %v4463
        %v4898 = vadd.f32 %v4130, %v4463
        %v4899 = vadd.f32 %v4131, %v4468
        %v4900 = vadd.f32 %v4132, %v4468
        %v4901 = vadd.f32 %v4133, %v4468
        %v4902 = vadd.f32 %v4134, %v4468
        %v4903 = vadd.f32 %v4135, %v4468
        %v4904 = vadd.f32 %v4136, %v4468
        %v4905 = vadd.f32 %v4137, %v4468
        %v4906 = vadd.f32 %v4138, %v4473
        %v4907 = vadd.f32 %v4139, %v4473
        %v4908 = vadd.f32 %v4140, %v4473
        %v4909 = vadd.f32 %v4141, %v4473
        %v4910 = vadd.f32 %v4142, %v4473
        %v4911 = vadd.f32 %v4143, %v4473
        %v4912 = vadd.f32 %v4144, %v4473
        %v4913 = vadd.f32 %v4145, %v4478
        %v4914 = vadd.f32 %v4146, %v4478
        %v4915 = vadd.f32 %v4147, %v4478
        %v4916 = vadd.f32 %v4148, %v4478
        %v4917 = vadd.f32 %v4149, %v4478
        %v4918 = vadd.f32 %v4150, %v4478
        %v4919 = vadd.f32 %v4151, %v4478
        %v4920 = vadd.f32 %v4152, %v4483
        %v4921 = vadd.f32 %v4153, %v4483
        %v4922 = vadd.f32 %v4154, %v4483
        %v4923 = vadd.f32 %v4155, %v4483
        %v4924 = vadd.f32 %v4156, %v4483
        %v4925 = vadd.f32 %v4157, %v4483
        %v4926 = vadd.f32 %v4158, %v4483
        %v4927 = vadd.f32 %v4159, %v4488
        %v4928 = vadd.f32 %v4160, %v4488
        %v4929 = vadd.f32 %v4161, %v4488
        %v4930 = vadd.f32 %v4162, %v4488
        %v4931 = vadd.f32 %v4163, %v4488
        %v4932 = vadd.f32 %v4164, %v4488
        %v4933 = vadd.f32 %v4165, %v4488
        %v4934 = vadd.f32 %v4166, %v4493
        %v4935 = vadd.f32 %v4167, %v4493
        %v4936 = vadd.f32 %v4168, %v4493
        %v4937 = vadd.f32 %v4169, %v4493
        %v4938 = vadd.f32 %v4170, %v4493
        %v4939 = vadd.f32 %v4171, %v4493
        %v4940 = vadd.f32 %v4172, %v4493
        %v4941 = vadd.f32 %v4173, %v4498
        %v4942 = vadd.f32 %v4174, %v4498
        %v4943 = vadd.f32 %v4175, %v4498
        %v4944 = vadd.f32 %v4176, %v4498
        %v4945 = vadd.f32 %v4177, %v4498
        %v4946 = vadd.f32 %v4178, %v4498
        %v4947 = vadd.f32 %v4179, %v4498
        %v4948 = vld [vmem:[%s521] sm:$0xff]
        %v4949 = vld [vmem:[%s521 + $0x8] sm:$0xff]
        %v4950 = vld [vmem:[%s521 + $0x10] sm:$0xff]
        %v4951 = vld [vmem:[%s521 + $0x18] sm:$0xff]
        %v4952 = vld [vmem:[%s521 + $0x20] sm:$0xff]
        %v4953 = vld [vmem:[%s521 + $0x28] sm:$0xff]
        %v4954 = vld [vmem:[%s521 + $0x30] sm:$0xff]
        %v4955 = vld [vmem:[%s521 + $0x38] sm:$0xff]
        %v4956 = vld [vmem:[%s521 + $0x40] sm:$0xff]
        %v4957 = vld [vmem:[%s521 + $0x48] sm:$0xff]
        %v4958 = vld [vmem:[%s521 + $0x50] sm:$0xff]
        %v4959 = vld [vmem:[%s521 + $0x58] sm:$0xff]
        %v4960 = vld [vmem:[%s521 + $0x60] sm:$0xff]
        %v4961 = vld [vmem:[%s521 + $0x68] sm:$0xff]
        %v4962 = vld [vmem:[%s521 + $0x70] sm:$0xff]
        %v4963 = vld [vmem:[%s521 + $0x78] sm:$0xff]
        %v4964 = vld [vmem:[%s521 + $0x80] sm:$0xff]
        %v4965 = vld [vmem:[%s521 + $0x88] sm:$0xff]
        %v4966 = vld [vmem:[%s521 + $0x90] sm:$0xff]
        %v4967 = vld [vmem:[%s521 + $0x98] sm:$0xff]
        %v4968 = vld [vmem:[%s521 + $0xa0] sm:$0xff]
        %v4969 = vld [vmem:[%s521 + $0xa8] sm:$0xff]
        %v4970 = vld [vmem:[%s521 + $0xb0] sm:$0xff]
        %v4971 = vld [vmem:[%s521 + $0xb8] sm:$0xff]
        %v4972 = vld [vmem:[%s521 + $0xc0] sm:$0xff]
        %v4973 = vld [vmem:[%s521 + $0xc8] sm:$0xff]
        %v4974 = vld [vmem:[%s521 + $0xd0] sm:$0xff]
        %v4975 = vld [vmem:[%s521 + $0xd8] sm:$0xff]
        %v4976 = vld [vmem:[%s521 + $0xe0] sm:$0xff]
        %v4977 = vld [vmem:[%s521 + $0xe8] sm:$0xff]
        %v4978 = vld [vmem:[%s521 + $0xf0] sm:$0xff]
        %v4979 = vld [vmem:[%s521 + $0xf8] sm:$0xff]
        %v4980 = vld [vmem:[%s521 + $0x100] sm:$0xff]
        %v4981 = vld [vmem:[%s521 + $0x108] sm:$0xff]
        %v4982 = vld [vmem:[%s521 + $0x110] sm:$0xff]
        %v4983 = vld [vmem:[%s521 + $0x118] sm:$0xff]
        %v4984 = vld [vmem:[%s521 + $0x120] sm:$0xff]
        %v4985 = vld [vmem:[%s521 + $0x128] sm:$0xff]
        %v4986 = vld [vmem:[%s521 + $0x130] sm:$0xff]
        %v4987 = vld [vmem:[%s521 + $0x138] sm:$0xff]
        %v4988 = vld [vmem:[%s521 + $0x140] sm:$0xff]
        %v4989 = vld [vmem:[%s521 + $0x148] sm:$0xff]
        %v4990 = vld [vmem:[%s521 + $0x150] sm:$0xff]
        %v4991 = vld [vmem:[%s521 + $0x158] sm:$0xff]
        %v4992 = vld [vmem:[%s521 + $0x160] sm:$0xff]
        %v4993 = vld [vmem:[%s521 + $0x168] sm:$0xff]
        %v4994 = vld [vmem:[%s521 + $0x170] sm:$0xff]
        %v4995 = vld [vmem:[%s521 + $0x178] sm:$0xff]
        %v4996 = vld [vmem:[%s521 + $0x180] sm:$0xff]
        %v4997 = vld [vmem:[%s521 + $0x188] sm:$0xff]
        %v4998 = vld [vmem:[%s521 + $0x190] sm:$0xff]
        %v4999 = vld [vmem:[%s521 + $0x198] sm:$0xff]
        %v5000 = vld [vmem:[%s521 + $0x1a0] sm:$0xff]
        %v5001 = vld [vmem:[%s521 + $0x1a8] sm:$0xff]
        %v5002 = vld [vmem:[%s521 + $0x1b0] sm:$0xff]
        %v5003 = vld [vmem:[%s521 + $0x1b8] sm:$0xff]
        %v5004 = vld [vmem:[%s521 + $0x1c0] sm:$0xff]
        %v5005 = vld [vmem:[%s521 + $0x1c8] sm:$0xff]
        %v5006 = vld [vmem:[%s521 + $0x1d0] sm:$0xff]
        %v5007 = vld [vmem:[%s521 + $0x1d8] sm:$0xff]
        %v5008 = vld [vmem:[%s521 + $0x1e0] sm:$0xff]
        %v5009 = vld [vmem:[%s521 + $0x1e8] sm:$0xff]
        %v5010 = vld [vmem:[%s521 + $0x1f0] sm:$0xff]
        %v5011 = vld [vmem:[%s521 + $0x1f8] sm:$0xff]
        %v5012 = vld [vmem:[%s521 + $0x200] sm:$0xff]
        %v5013 = vld [vmem:[%s521 + $0x208] sm:$0xff]
        %v5014 = vld [vmem:[%s521 + $0x210] sm:$0xff]
        %v5015 = vld [vmem:[%s521 + $0x218] sm:$0xff]
        %v5016 = vld [vmem:[%s521 + $0x220] sm:$0xff]
        %v5017 = vld [vmem:[%s521 + $0x228] sm:$0xff]
        %v5018 = vld [vmem:[%s521 + $0x230] sm:$0xff]
        %v5019 = vld [vmem:[%s521 + $0x238] sm:$0xff]
        %v5020 = vld [vmem:[%s521 + $0x240] sm:$0xff]
        %v5021 = vld [vmem:[%s521 + $0x248] sm:$0xff]
        %v5022 = vld [vmem:[%s521 + $0x250] sm:$0xff]
        %v5023 = vld [vmem:[%s521 + $0x258] sm:$0xff]
        %v5024 = vld [vmem:[%s521 + $0x260] sm:$0xff]
        %v5025 = vld [vmem:[%s521 + $0x268] sm:$0xff]
        %v5026 = vld [vmem:[%s521 + $0x270] sm:$0xff]
        %v5027 = vld [vmem:[%s521 + $0x278] sm:$0xff]
        %v5028 = vld [vmem:[%s521 + $0x280] sm:$0xff]
        %v5029 = vld [vmem:[%s521 + $0x288] sm:$0xff]
        %v5030 = vld [vmem:[%s521 + $0x290] sm:$0xff]
        %v5031 = vld [vmem:[%s521 + $0x298] sm:$0xff]
        %v5032 = vld [vmem:[%s521 + $0x2a0] sm:$0xff]
        %v5033 = vld [vmem:[%s521 + $0x2a8] sm:$0xff]
        %v5034 = vld [vmem:[%s521 + $0x2b0] sm:$0xff]
        %v5035 = vld [vmem:[%s521 + $0x2b8] sm:$0xff]
        %v5036 = vld [vmem:[%s521 + $0x2c0] sm:$0xff]
        %v5037 = vld [vmem:[%s521 + $0x2c8] sm:$0xff]
        %v5038 = vld [vmem:[%s521 + $0x2d0] sm:$0xff]
        %v5039 = vld [vmem:[%s521 + $0x2d8] sm:$0xff]
        %v5040 = vld [vmem:[%s521 + $0x2e0] sm:$0xff]
        %v5041 = vld [vmem:[%s521 + $0x2e8] sm:$0xff]
        %v5042 = vld [vmem:[%s521 + $0x2f0] sm:$0xff]
        %v5043 = vld [vmem:[%s521 + $0x2f8] sm:$0xff]
        %v5044 = vld [vmem:[%s521 + $0x300] sm:$0xff]
        %v5045 = vld [vmem:[%s521 + $0x308] sm:$0xff]
        %v5046 = vld [vmem:[%s521 + $0x310] sm:$0xff]
        %v5047 = vld [vmem:[%s521 + $0x318] sm:$0xff]
        %v5048 = vld [vmem:[%s521 + $0x320] sm:$0xff]
        %v5049 = vld [vmem:[%s521 + $0x328] sm:$0xff]
        %v5050 = vld [vmem:[%s521 + $0x330] sm:$0xff]
        %v5051 = vld [vmem:[%s521 + $0x338] sm:$0xff]
        %v5052 = vld [vmem:[%s521 + $0x340] sm:$0xff]
        %v5053 = vld [vmem:[%s521 + $0x348] sm:$0xff]
        %v5054 = vld [vmem:[%s521 + $0x350] sm:$0xff]
        %v5055 = vld [vmem:[%s521 + $0x358] sm:$0xff]
        %v5056 = vld [vmem:[%s521 + $0x360] sm:$0xff]
        %v5057 = vld [vmem:[%s521 + $0x368] sm:$0xff]
        %v5058 = vld [vmem:[%s521 + $0x370] sm:$0xff]
        %v5059 = vld [vmem:[%s521 + $0x378] sm:$0xff]
        %v5060 = vld [vmem:[%s521 + $0x380] sm:$0xff]
        %v5061 = vld [vmem:[%s521 + $0x388] sm:$0xff]
        %v5062 = vld [vmem:[%s521 + $0x390] sm:$0xff]
        %v5063 = vld [vmem:[%s521 + $0x398] sm:$0xff]
        %v5064 = vld [vmem:[%s521 + $0x3a0] sm:$0xff]
        %v5065 = vld [vmem:[%s521 + $0x3a8] sm:$0xff]
        %v5066 = vld [vmem:[%s521 + $0x3b0] sm:$0xff]
        %v5067 = vld [vmem:[%s521 + $0x3b8] sm:$0xff]
        %v5068 = vld [vmem:[%s521 + $0x3c0] sm:$0xff]
        %v5069 = vld [vmem:[%s521 + $0x3c8] sm:$0xff]
        %v5070 = vld [vmem:[%s521 + $0x3d0] sm:$0xff]
        %v5071 = vld [vmem:[%s521 + $0x3d8] sm:$0xff]
        %v5072 = vld [vmem:[%s521 + $0x3e0] sm:$0xff]
        %v5073 = vld [vmem:[%s521 + $0x3e8] sm:$0xff]
        %v5074 = vld [vmem:[%s521 + $0x3f0] sm:$0xff]
        %v5075 = vld [vmem:[%s521 + $0x3f8] sm:$0xff]
        %v5076 = vld [vmem:[%s521 + $0x400] sm:$0xff]
        %v5077 = vld [vmem:[%s521 + $0x408] sm:$0xff]
        %v5078 = vld [vmem:[%s521 + $0x410] sm:$0xff]
        %v5079 = vld [vmem:[%s521 + $0x418] sm:$0xff]
        %v5080 = vld [vmem:[%s521 + $0x420] sm:$0xff]
        %v5081 = vld [vmem:[%s521 + $0x428] sm:$0xff]
        %v5082 = vld [vmem:[%s521 + $0x430] sm:$0xff]
        %v5083 = vld [vmem:[%s521 + $0x438] sm:$0xff]
        %v5084 = vld [vmem:[%s521 + $0x440] sm:$0xff]
        %v5085 = vld [vmem:[%s521 + $0x448] sm:$0xff]
        %v5086 = vld [vmem:[%s521 + $0x450] sm:$0xff]
        %v5087 = vld [vmem:[%s521 + $0x458] sm:$0xff]
        %v5088 = vld [vmem:[%s521 + $0x460] sm:$0xff]
        %v5089 = vld [vmem:[%s521 + $0x468] sm:$0xff]
        %v5090 = vld [vmem:[%s521 + $0x470] sm:$0xff]
        %v5091 = vld [vmem:[%s521 + $0x478] sm:$0xff]
        %v5092 = vld [vmem:[%s521 + $0x480] sm:$0xff]
        %v5093 = vld [vmem:[%s521 + $0x488] sm:$0xff]
        %v5094 = vld [vmem:[%s521 + $0x490] sm:$0xff]
        %v5095 = vld [vmem:[%s521 + $0x498] sm:$0xff]
        %v5096 = vld [vmem:[%s521 + $0x4a0] sm:$0xff]
        %v5097 = vld [vmem:[%s521 + $0x4a8] sm:$0xff]
        %v5098 = vld [vmem:[%s521 + $0x4b0] sm:$0xff]
        %v5099 = vld [vmem:[%s521 + $0x4b8] sm:$0xff]
        %v5100 = vld [vmem:[%s521 + $0x4c0] sm:$0xff]
        %v5101 = vld [vmem:[%s521 + $0x4c8] sm:$0xff]
        %v5102 = vld [vmem:[%s521 + $0x4d0] sm:$0xff]
        %v5103 = vld [vmem:[%s521 + $0x4d8] sm:$0xff]
        %v5104 = vld [vmem:[%s521 + $0x4e0] sm:$0xff]
        %v5105 = vld [vmem:[%s521 + $0x4e8] sm:$0xff]
        %v5106 = vld [vmem:[%s521 + $0x4f0] sm:$0xff]
        %v5107 = vld [vmem:[%s521 + $0x4f8] sm:$0xff]
        %v5108 = vld [vmem:[%s521 + $0x500] sm:$0xff]
        %v5109 = vld [vmem:[%s521 + $0x508] sm:$0xff]
        %v5110 = vld [vmem:[%s521 + $0x510] sm:$0xff]
        %v5111 = vld [vmem:[%s521 + $0x518] sm:$0xff]
        %v5112 = vld [vmem:[%s521 + $0x520] sm:$0xff]
        %v5113 = vld [vmem:[%s521 + $0x528] sm:$0xff]
        %v5114 = vld [vmem:[%s521 + $0x530] sm:$0xff]
        %v5115 = vld [vmem:[%s521 + $0x538] sm:$0xff]
        %v5116 = vld [vmem:[%s521 + $0x540] sm:$0xff]
        %v5117 = vld [vmem:[%s521 + $0x548] sm:$0xff]
        %v5118 = vld [vmem:[%s521 + $0x550] sm:$0xff]
        %v5119 = vld [vmem:[%s521 + $0x558] sm:$0xff]
        %v5120 = vld [vmem:[%s521 + $0x560] sm:$0xff]
        %v5121 = vld [vmem:[%s521 + $0x568] sm:$0xff]
        %v5122 = vld [vmem:[%s521 + $0x570] sm:$0xff]
        %v5123 = vld [vmem:[%s521 + $0x578] sm:$0xff]
        %v5124 = vld [vmem:[%s521 + $0x580] sm:$0xff]
        %v5125 = vld [vmem:[%s521 + $0x588] sm:$0xff]
        %v5126 = vld [vmem:[%s521 + $0x590] sm:$0xff]
        %v5127 = vld [vmem:[%s521 + $0x598] sm:$0xff]
        %v5128 = vld [vmem:[%s521 + $0x5a0] sm:$0xff]
        %v5129 = vld [vmem:[%s521 + $0x5a8] sm:$0xff]
        %v5130 = vld [vmem:[%s521 + $0x5b0] sm:$0xff]
        %v5131 = vld [vmem:[%s521 + $0x5b8] sm:$0xff]
        %v5132 = vld [vmem:[%s521 + $0x5c0] sm:$0xff]
        %v5133 = vld [vmem:[%s521 + $0x5c8] sm:$0xff]
        %v5134 = vld [vmem:[%s521 + $0x5d0] sm:$0xff]
        %v5135 = vld [vmem:[%s521 + $0x5d8] sm:$0xff]
        %v5136 = vld [vmem:[%s521 + $0x5e0] sm:$0xff]
        %v5137 = vld [vmem:[%s521 + $0x5e8] sm:$0xff]
        %v5138 = vld [vmem:[%s521 + $0x5f0] sm:$0xff]
        %v5139 = vld [vmem:[%s521 + $0x5f8] sm:$0xff]
        %v5140 = vld [vmem:[%s521 + $0x600] sm:$0xff]
        %v5141 = vld [vmem:[%s521 + $0x608] sm:$0xff]
        %v5142 = vld [vmem:[%s521 + $0x610] sm:$0xff]
        %v5143 = vld [vmem:[%s521 + $0x618] sm:$0xff]
        %v5144 = vld [vmem:[%s521 + $0x620] sm:$0xff]
        %v5145 = vld [vmem:[%s521 + $0x628] sm:$0xff]
        %v5146 = vld [vmem:[%s521 + $0x630] sm:$0xff]
        %v5147 = vld [vmem:[%s521 + $0x638] sm:$0xff]
        %v5148 = vld [vmem:[%s521 + $0x640] sm:$0xff]
        %v5149 = vld [vmem:[%s521 + $0x648] sm:$0xff]
        %v5150 = vld [vmem:[%s521 + $0x650] sm:$0xff]
        %v5151 = vld [vmem:[%s521 + $0x658] sm:$0xff]
        %v5152 = vld [vmem:[%s521 + $0x660] sm:$0xff]
        %v5153 = vld [vmem:[%s521 + $0x668] sm:$0xff]
        %v5154 = vld [vmem:[%s521 + $0x670] sm:$0xff]
        %v5155 = vld [vmem:[%s521 + $0x678] sm:$0xff]
        %v5156 = vld [vmem:[%s521 + $0x680] sm:$0xff]
        %v5157 = vld [vmem:[%s521 + $0x688] sm:$0xff]
        %v5158 = vld [vmem:[%s521 + $0x690] sm:$0xff]
        %v5159 = vld [vmem:[%s521 + $0x698] sm:$0xff]
        %v5160 = vld [vmem:[%s521 + $0x6a0] sm:$0xff]
        %v5161 = vld [vmem:[%s521 + $0x6a8] sm:$0xff]
        %v5162 = vld [vmem:[%s521 + $0x6b0] sm:$0xff]
        %v5163 = vld [vmem:[%s521 + $0x6b8] sm:$0xff]
        %v5164 = vld [vmem:[%s521 + $0x6c0] sm:$0xff]
        %v5165 = vld [vmem:[%s521 + $0x6c8] sm:$0xff]
        %v5166 = vld [vmem:[%s521 + $0x6d0] sm:$0xff]
        %v5167 = vld [vmem:[%s521 + $0x6d8] sm:$0xff]
        %v5168 = vld [vmem:[%s521 + $0x6e0] sm:$0xff]
        %v5169 = vld [vmem:[%s521 + $0x6e8] sm:$0xff]
        %v5170 = vld [vmem:[%s521 + $0x6f0] sm:$0xff]
        %v5171 = vld [vmem:[%s521 + $0x6f8] sm:$0xff]
        %v5172 = vld [vmem:[%s521 + $0x700] sm:$0xff]
        %v5173 = vld [vmem:[%s521 + $0x708] sm:$0xff]
        %v5174 = vld [vmem:[%s521 + $0x710] sm:$0xff]
        %v5175 = vld [vmem:[%s521 + $0x718] sm:$0xff]
        %v5176 = vld [vmem:[%s521 + $0x720] sm:$0xff]
        %v5177 = vld [vmem:[%s521 + $0x728] sm:$0xff]
        %v5178 = vld [vmem:[%s521 + $0x730] sm:$0xff]
        %v5179 = vld [vmem:[%s521 + $0x738] sm:$0xff]
        %v5180 = vld [vmem:[%s521 + $0x740] sm:$0xff]
        %v5181 = vld [vmem:[%s521 + $0x748] sm:$0xff]
        %v5182 = vld [vmem:[%s521 + $0x750] sm:$0xff]
        %v5183 = vld [vmem:[%s521 + $0x758] sm:$0xff]
        %v5184 = vld [vmem:[%s521 + $0x760] sm:$0xff]
        %v5185 = vld [vmem:[%s521 + $0x768] sm:$0xff]
        %v5186 = vld [vmem:[%s521 + $0x770] sm:$0xff]
        %v5187 = vld [vmem:[%s521 + $0x778] sm:$0xff]
        %v5188 = vld [vmem:[%s521 + $0x780] sm:$0xff]
        %v5189 = vld [vmem:[%s521 + $0x788] sm:$0xff]
        %v5190 = vld [vmem:[%s521 + $0x790] sm:$0xff]
        %v5191 = vld [vmem:[%s521 + $0x798] sm:$0xff]
        %v5192 = vld [vmem:[%s521 + $0x7a0] sm:$0xff]
        %v5193 = vld [vmem:[%s521 + $0x7a8] sm:$0xff]
        %v5194 = vld [vmem:[%s521 + $0x7b0] sm:$0xff]
        %v5195 = vld [vmem:[%s521 + $0x7b8] sm:$0xff]
        %v5196 = vld [vmem:[%s521 + $0x7c0] sm:$0xff]
        %v5197 = vld [vmem:[%s521 + $0x7c8] sm:$0xff]
        %v5198 = vld [vmem:[%s521 + $0x7d0] sm:$0xff]
        %v5199 = vld [vmem:[%s521 + $0x7d8] sm:$0xff]
        %v5200 = vld [vmem:[%s521 + $0x7e0] sm:$0xff]
        %v5201 = vld [vmem:[%s521 + $0x7e8] sm:$0xff]
        %v5202 = vld [vmem:[%s521 + $0x7f0] sm:$0xff]
        %v5203 = vld [vmem:[%s521 + $0x7f8] sm:$0xff]
        %v5204 = vld [vmem:[%s521 + $0x800] sm:$0xff]
        %v5205 = vld [vmem:[%s521 + $0x808] sm:$0xff]
        %v5206 = vld [vmem:[%s521 + $0x810] sm:$0xff]
        %v5207 = vld [vmem:[%s521 + $0x818] sm:$0xff]
        %v5208 = vld [vmem:[%s521 + $0x820] sm:$0xff]
        %v5209 = vld [vmem:[%s521 + $0x828] sm:$0xff]
        %v5210 = vld [vmem:[%s521 + $0x830] sm:$0xff]
        %v5211 = vld [vmem:[%s521 + $0x838] sm:$0xff]
        %v5212 = vld [vmem:[%s521 + $0x840] sm:$0xff]
        %v5213 = vld [vmem:[%s521 + $0x848] sm:$0xff]
        %v5214 = vld [vmem:[%s521 + $0x850] sm:$0xff]
        %v5215 = vld [vmem:[%s521 + $0x858] sm:$0xff]
        %v5216 = vld [vmem:[%s521 + $0x860] sm:$0xff]
        %v5217 = vld [vmem:[%s521 + $0x868] sm:$0xff]
        %v5218 = vld [vmem:[%s521 + $0x870] sm:$0xff]
        %v5219 = vld [vmem:[%s521 + $0x878] sm:$0xff]
        %v5220 = vld [vmem:[%s521 + $0x880] sm:$0xff]
        %v5221 = vld [vmem:[%s521 + $0x888] sm:$0xff]
        %v5222 = vld [vmem:[%s521 + $0x890] sm:$0xff]
        %v5223 = vld [vmem:[%s521 + $0x898] sm:$0xff]
        %v5224 = vld [vmem:[%s521 + $0x8a0] sm:$0xff]
        %v5225 = vld [vmem:[%s521 + $0x8a8] sm:$0xff]
        %v5226 = vld [vmem:[%s521 + $0x8b0] sm:$0xff]
        %v5227 = vld [vmem:[%s521 + $0x8b8] sm:$0xff]
        %v5228 = vld [vmem:[%s521 + $0x8c0] sm:$0xff]
        %v5229 = vld [vmem:[%s521 + $0x8c8] sm:$0xff]
        %v5230 = vld [vmem:[%s521 + $0x8d0] sm:$0xff]
        %v5231 = vld [vmem:[%s521 + $0x8d8] sm:$0xff]
        %v5232 = vld [vmem:[%s521 + $0x8e0] sm:$0xff]
        %v5233 = vld [vmem:[%s521 + $0x8e8] sm:$0xff]
        %v5234 = vld [vmem:[%s521 + $0x8f0] sm:$0xff]
        %v5235 = vld [vmem:[%s521 + $0x8f8] sm:$0xff]
        %v5236 = vld [vmem:[%s521 + $0x900] sm:$0xff]
        %v5237 = vld [vmem:[%s521 + $0x908] sm:$0xff]
        %v5238 = vld [vmem:[%s521 + $0x910] sm:$0xff]
        %v5239 = vld [vmem:[%s521 + $0x918] sm:$0xff]
        %v5240 = vld [vmem:[%s521 + $0x920] sm:$0xff]
        %v5241 = vld [vmem:[%s521 + $0x928] sm:$0xff]
        %v5242 = vld [vmem:[%s521 + $0x930] sm:$0xff]
        %v5243 = vld [vmem:[%s521 + $0x938] sm:$0xff]
        %v5244 = vld [vmem:[%s521 + $0x940] sm:$0xff]
        %v5245 = vld [vmem:[%s521 + $0x948] sm:$0xff]
        %v5246 = vld [vmem:[%s521 + $0x950] sm:$0xff]
        %v5247 = vld [vmem:[%s521 + $0x958] sm:$0xff]
        %v5248 = vld [vmem:[%s521 + $0x960] sm:$0xff]
        %v5249 = vld [vmem:[%s521 + $0x968] sm:$0xff]
        %v5250 = vld [vmem:[%s521 + $0x970] sm:$0xff]
        %v5251 = vld [vmem:[%s521 + $0x978] sm:$0xff]
        %v5252 = vld [vmem:[%s521 + $0x980] sm:$0xff]
        %v5253 = vld [vmem:[%s521 + $0x988] sm:$0xff]
        %v5254 = vld [vmem:[%s521 + $0x990] sm:$0xff]
        %v5255 = vld [vmem:[%s521 + $0x998] sm:$0xff]
        %v5256 = vld [vmem:[%s521 + $0x9a0] sm:$0xff]
        %v5257 = vld [vmem:[%s521 + $0x9a8] sm:$0xff]
        %v5258 = vld [vmem:[%s521 + $0x9b0] sm:$0xff]
        %v5259 = vld [vmem:[%s521 + $0x9b8] sm:$0xff]
        %v5260 = vld [vmem:[%s521 + $0x9c0] sm:$0xff]
        %v5261 = vld [vmem:[%s521 + $0x9c8] sm:$0xff]
        %v5262 = vld [vmem:[%s521 + $0x9d0] sm:$0xff]
        %v5263 = vld [vmem:[%s521 + $0x9d8] sm:$0xff]
        %v5264 = vld [vmem:[%s521 + $0x9e0] sm:$0xff]
        %v5265 = vld [vmem:[%s521 + $0x9e8] sm:$0xff]
        %v5266 = vld [vmem:[%s521 + $0x9f0] sm:$0xff]
        %v5267 = vld [vmem:[%s521 + $0x9f8] sm:$0xff]
        %v5268 = vld [vmem:[%s521 + $0xa00] sm:$0xff]
        %v5269 = vld [vmem:[%s521 + $0xa08] sm:$0xff]
        %v5270 = vld [vmem:[%s521 + $0xa10] sm:$0xff]
        %v5271 = vld [vmem:[%s521 + $0xa18] sm:$0xff]
        %v5272 = vld [vmem:[%s521 + $0xa20] sm:$0xff]
        %v5273 = vld [vmem:[%s521 + $0xa28] sm:$0xff]
        %v5274 = vld [vmem:[%s521 + $0xa30] sm:$0xff]
        %v5275 = vld [vmem:[%s521 + $0xa38] sm:$0xff]
        %v5276 = vld [vmem:[%s521 + $0xa40] sm:$0xff]
        %v5277 = vld [vmem:[%s521 + $0xa48] sm:$0xff]
        %v5278 = vld [vmem:[%s521 + $0xa50] sm:$0xff]
        %v5279 = vld [vmem:[%s521 + $0xa58] sm:$0xff]
        %v5280 = vld [vmem:[%s521 + $0xa60] sm:$0xff]
        %v5281 = vld [vmem:[%s521 + $0xa68] sm:$0xff]
        %v5282 = vld [vmem:[%s521 + $0xa70] sm:$0xff]
        %v5283 = vld [vmem:[%s521 + $0xa78] sm:$0xff]
        %v5284 = vld [vmem:[%s521 + $0xa80] sm:$0xff]
        %v5285 = vld [vmem:[%s521 + $0xa88] sm:$0xff]
        %v5286 = vld [vmem:[%s521 + $0xa90] sm:$0xff]
        %v5287 = vld [vmem:[%s521 + $0xa98] sm:$0xff]
        %v5288 = vld [vmem:[%s521 + $0xaa0] sm:$0xff]
        %v5289 = vld [vmem:[%s521 + $0xaa8] sm:$0xff]
        %v5290 = vld [vmem:[%s521 + $0xab0] sm:$0xff]
        %v5291 = vld [vmem:[%s521 + $0xab8] sm:$0xff]
        %v5292 = vld [vmem:[%s521 + $0xac0] sm:$0xff]
        %v5293 = vld [vmem:[%s521 + $0xac8] sm:$0xff]
        %v5294 = vld [vmem:[%s521 + $0xad0] sm:$0xff]
        %v5295 = vld [vmem:[%s521 + $0xad8] sm:$0xff]
        %v5296 = vld [vmem:[%s521 + $0xae0] sm:$0xff]
        %v5297 = vld [vmem:[%s521 + $0xae8] sm:$0xff]
        %v5298 = vld [vmem:[%s521 + $0xaf0] sm:$0xff]
        %v5299 = vld [vmem:[%s521 + $0xaf8] sm:$0xff]
        %v5300 = vld [vmem:[%s521 + $0xb00] sm:$0xff]
        %v5301 = vld [vmem:[%s521 + $0xb08] sm:$0xff]
        %v5302 = vld [vmem:[%s521 + $0xb10] sm:$0xff]
        %v5303 = vld [vmem:[%s521 + $0xb18] sm:$0xff]
        %v5304 = vld [vmem:[%s521 + $0xb20] sm:$0xff]
        %v5305 = vld [vmem:[%s521 + $0xb28] sm:$0xff]
        %v5306 = vld [vmem:[%s521 + $0xb30] sm:$0xff]
        %v5307 = vld [vmem:[%s521 + $0xb38] sm:$0xff]
        %v5308 = vld [vmem:[%s521 + $0xb40] sm:$0xff]
        %v5309 = vld [vmem:[%s521 + $0xb48] sm:$0xff]
        %v5310 = vld [vmem:[%s521 + $0xb50] sm:$0xff]
        %v5311 = vld [vmem:[%s521 + $0xb58] sm:$0xff]
        %v5312 = vld [vmem:[%s521 + $0xb60] sm:$0xff]
        %v5313 = vld [vmem:[%s521 + $0xb68] sm:$0xff]
        %v5314 = vld [vmem:[%s521 + $0xb70] sm:$0xff]
        %v5315 = vld [vmem:[%s521 + $0xb78] sm:$0xff]
        %v5316 = vld [vmem:[%s521 + $0xb80] sm:$0xff]
        %v5317 = vld [vmem:[%s521 + $0xb88] sm:$0xff]
        %v5318 = vld [vmem:[%s521 + $0xb90] sm:$0xff]
        %v5319 = vld [vmem:[%s521 + $0xb98] sm:$0xff]
        %v5320 = vld [vmem:[%s521 + $0xba0] sm:$0xff]
        %v5321 = vld [vmem:[%s521 + $0xba8] sm:$0xff]
        %v5322 = vld [vmem:[%s521 + $0xbb0] sm:$0xff]
        %v5323 = vld [vmem:[%s521 + $0xbb8] sm:$0xff]
        %v5324 = vld [vmem:[%s521 + $0xbc0] sm:$0xff]
        %v5325 = vld [vmem:[%s521 + $0xbc8] sm:$0xff]
        %v5326 = vld [vmem:[%s521 + $0xbd0] sm:$0xff]
        %v5327 = vld [vmem:[%s521 + $0xbd8] sm:$0xff]
        %v5328 = vld [vmem:[%s521 + $0xbe0] sm:$0xff]
        %v5329 = vld [vmem:[%s521 + $0xbe8] sm:$0xff]
        %v5330 = vld [vmem:[%s521 + $0xbf0] sm:$0xff]
        %v5331 = vld [vmem:[%s521 + $0xbf8] sm:$0xff]
        %v5332 = vld [vmem:[%s521 + $0xc00] sm:$0xff]
        %v5333 = vld [vmem:[%s521 + $0xc08] sm:$0xff]
        %v5334 = vld [vmem:[%s521 + $0xc10] sm:$0xff]
        %v5335 = vld [vmem:[%s521 + $0xc18] sm:$0xff]
        %v5336 = vld [vmem:[%s521 + $0xc20] sm:$0xff]
        %v5337 = vld [vmem:[%s521 + $0xc28] sm:$0xff]
        %v5338 = vld [vmem:[%s521 + $0xc30] sm:$0xff]
        %v5339 = vld [vmem:[%s521 + $0xc38] sm:$0xff]
        %v5340 = vld [vmem:[%s521 + $0xc40] sm:$0xff]
        %v5341 = vld [vmem:[%s521 + $0xc48] sm:$0xff]
        %v5342 = vld [vmem:[%s521 + $0xc50] sm:$0xff]
        %v5343 = vld [vmem:[%s521 + $0xc58] sm:$0xff]
        %v5344 = vld [vmem:[%s521 + $0xc60] sm:$0xff]
        %v5345 = vld [vmem:[%s521 + $0xc68] sm:$0xff]
        %v5346 = vld [vmem:[%s521 + $0xc70] sm:$0xff]
        %v5347 = vld [vmem:[%s521 + $0xc78] sm:$0xff]
        %v5348 = vld [vmem:[%s521 + $0xc80] sm:$0xff]
        %v5349 = vld [vmem:[%s521 + $0xc88] sm:$0xff]
        %v5350 = vld [vmem:[%s521 + $0xc90] sm:$0xff]
        %v5351 = vld [vmem:[%s521 + $0xc98] sm:$0xff]
        %v5352 = vld [vmem:[%s521 + $0xca0] sm:$0xff]
        %v5353 = vld [vmem:[%s521 + $0xca8] sm:$0xff]
        %v5354 = vld [vmem:[%s521 + $0xcb0] sm:$0xff]
        %v5355 = vld [vmem:[%s521 + $0xcb8] sm:$0xff]
        %v5356 = vld [vmem:[%s521 + $0xcc0] sm:$0xff]
        %v5357 = vld [vmem:[%s521 + $0xcc8] sm:$0xff]
        %v5358 = vld [vmem:[%s521 + $0xcd0] sm:$0xff]
        %v5359 = vld [vmem:[%s521 + $0xcd8] sm:$0xff]
        %v5360 = vld [vmem:[%s521 + $0xce0] sm:$0xff]
        %v5361 = vld [vmem:[%s521 + $0xce8] sm:$0xff]
        %v5362 = vld [vmem:[%s521 + $0xcf0] sm:$0xff]
        %v5363 = vld [vmem:[%s521 + $0xcf8] sm:$0xff]
        %v5364 = vld [vmem:[%s521 + $0xd00] sm:$0xff]
        %v5365 = vld [vmem:[%s521 + $0xd08] sm:$0xff]
        %v5366 = vld [vmem:[%s521 + $0xd10] sm:$0xff]
        %v5367 = vld [vmem:[%s521 + $0xd18] sm:$0xff]
        %v5368 = vld [vmem:[%s521 + $0xd20] sm:$0xff]
        %v5369 = vld [vmem:[%s521 + $0xd28] sm:$0xff]
        %v5370 = vld [vmem:[%s521 + $0xd30] sm:$0xff]
        %v5371 = vld [vmem:[%s521 + $0xd38] sm:$0xff]
        %v5372 = vld [vmem:[%s521 + $0xd40] sm:$0xff]
        %v5373 = vld [vmem:[%s521 + $0xd48] sm:$0xff]
        %v5374 = vld [vmem:[%s521 + $0xd50] sm:$0xff]
        %v5375 = vld [vmem:[%s521 + $0xd58] sm:$0xff]
        %v5376 = vld [vmem:[%s521 + $0xd60] sm:$0xff]
        %v5377 = vld [vmem:[%s521 + $0xd68] sm:$0xff]
        %v5378 = vld [vmem:[%s521 + $0xd70] sm:$0xff]
        %v5379 = vld [vmem:[%s521 + $0xd78] sm:$0xff]
        %v5380 = vld [vmem:[%s521 + $0xd80] sm:$0xff]
        %v5381 = vld [vmem:[%s521 + $0xd88] sm:$0xff]
        %v5382 = vld [vmem:[%s521 + $0xd90] sm:$0xff]
        %v5383 = vld [vmem:[%s521 + $0xd98] sm:$0xff]
        %v5384 = vld [vmem:[%s521 + $0xda0] sm:$0xff]
        %v5385 = vld [vmem:[%s521 + $0xda8] sm:$0xff]
        %v5386 = vld [vmem:[%s521 + $0xdb0] sm:$0xff]
        %v5387 = vld [vmem:[%s521 + $0xdb8] sm:$0xff]
        %v5388 = vld [vmem:[%s521 + $0xdc0] sm:$0xff]
        %v5389 = vld [vmem:[%s521 + $0xdc8] sm:$0xff]
        %v5390 = vld [vmem:[%s521 + $0xdd0] sm:$0xff]
        %v5391 = vld [vmem:[%s521 + $0xdd8] sm:$0xff]
        %v5392 = vld [vmem:[%s521 + $0xde0] sm:$0xff]
        %v5393 = vld [vmem:[%s521 + $0xde8] sm:$0xff]
        %v5394 = vld [vmem:[%s521 + $0xdf0] sm:$0xff]
        %v5395 = vld [vmem:[%s521 + $0xdf8] sm:$0xff]
        %v5396 = vadd.f32 %v4500, %v4948
        %v5397 = vadd.f32 %v4501, %v4949
        %v5398 = vadd.f32 %v4502, %v4950
        %v5399 = vadd.f32 %v4503, %v4951
        %v5400 = vadd.f32 %v4504, %v4952
        %v5401 = vadd.f32 %v4505, %v4953
        %v5402 = vadd.f32 %v4506, %v4954
        %v5403 = vadd.f32 %v4507, %v4955
        %v5404 = vadd.f32 %v4508, %v4956
        %v5405 = vadd.f32 %v4509, %v4957
        %v5406 = vadd.f32 %v4510, %v4958
        %v5407 = vadd.f32 %v4511, %v4959
        %v5408 = vadd.f32 %v4512, %v4960
        %v5409 = vadd.f32 %v4513, %v4961
        %v5410 = vadd.f32 %v4514, %v4962
        %v5411 = vadd.f32 %v4515, %v4963
        %v5412 = vadd.f32 %v4516, %v4964
        %v5413 = vadd.f32 %v4517, %v4965
        %v5414 = vadd.f32 %v4518, %v4966
        %v5415 = vadd.f32 %v4519, %v4967
        %v5416 = vadd.f32 %v4520, %v4968
        %v5417 = vadd.f32 %v4521, %v4969
        %v5418 = vadd.f32 %v4522, %v4970
        %v5419 = vadd.f32 %v4523, %v4971
        %v5420 = vadd.f32 %v4524, %v4972
        %v5421 = vadd.f32 %v4525, %v4973
        %v5422 = vadd.f32 %v4526, %v4974
        %v5423 = vadd.f32 %v4527, %v4975
        %v5424 = vadd.f32 %v4528, %v4976
        %v5425 = vadd.f32 %v4529, %v4977
        %v5426 = vadd.f32 %v4530, %v4978
        %v5427 = vadd.f32 %v4531, %v4979
        %v5428 = vadd.f32 %v4532, %v4980
        %v5429 = vadd.f32 %v4533, %v4981
        %v5430 = vadd.f32 %v4534, %v4982
        %v5431 = vadd.f32 %v4535, %v4983
        %v5432 = vadd.f32 %v4536, %v4984
        %v5433 = vadd.f32 %v4537, %v4985
        %v5434 = vadd.f32 %v4538, %v4986
        %v5435 = vadd.f32 %v4539, %v4987
        %v5436 = vadd.f32 %v4540, %v4988
        %v5437 = vadd.f32 %v4541, %v4989
        %v5438 = vadd.f32 %v4542, %v4990
        %v5439 = vadd.f32 %v4543, %v4991
        %v5440 = vadd.f32 %v4544, %v4992
        %v5441 = vadd.f32 %v4545, %v4993
        %v5442 = vadd.f32 %v4546, %v4994
        %v5443 = vadd.f32 %v4547, %v4995
        %v5444 = vadd.f32 %v4548, %v4996
        %v5445 = vadd.f32 %v4549, %v4997
        %v5446 = vadd.f32 %v4550, %v4998
        %v5447 = vadd.f32 %v4551, %v4999
        %v5448 = vadd.f32 %v4552, %v5000
        %v5449 = vadd.f32 %v4553, %v5001
        %v5450 = vadd.f32 %v4554, %v5002
        %v5451 = vadd.f32 %v4555, %v5003
        %v5452 = vadd.f32 %v4556, %v5004
        %v5453 = vadd.f32 %v4557, %v5005
        %v5454 = vadd.f32 %v4558, %v5006
        %v5455 = vadd.f32 %v4559, %v5007
        %v5456 = vadd.f32 %v4560, %v5008
        %v5457 = vadd.f32 %v4561, %v5009
        %v5458 = vadd.f32 %v4562, %v5010
        %v5459 = vadd.f32 %v4563, %v5011
        %v5460 = vadd.f32 %v4564, %v5012
        %v5461 = vadd.f32 %v4565, %v5013
        %v5462 = vadd.f32 %v4566, %v5014
        %v5463 = vadd.f32 %v4567, %v5015
        %v5464 = vadd.f32 %v4568, %v5016
        %v5465 = vadd.f32 %v4569, %v5017
        %v5466 = vadd.f32 %v4570, %v5018
        %v5467 = vadd.f32 %v4571, %v5019
        %v5468 = vadd.f32 %v4572, %v5020
        %v5469 = vadd.f32 %v4573, %v5021
        %v5470 = vadd.f32 %v4574, %v5022
        %v5471 = vadd.f32 %v4575, %v5023
        %v5472 = vadd.f32 %v4576, %v5024
        %v5473 = vadd.f32 %v4577, %v5025
        %v5474 = vadd.f32 %v4578, %v5026
        %v5475 = vadd.f32 %v4579, %v5027
        %v5476 = vadd.f32 %v4580, %v5028
        %v5477 = vadd.f32 %v4581, %v5029
        %v5478 = vadd.f32 %v4582, %v5030
        %v5479 = vadd.f32 %v4583, %v5031
        %v5480 = vadd.f32 %v4584, %v5032
        %v5481 = vadd.f32 %v4585, %v5033
        %v5482 = vadd.f32 %v4586, %v5034
        %v5483 = vadd.f32 %v4587, %v5035
        %v5484 = vadd.f32 %v4588, %v5036
        %v5485 = vadd.f32 %v4589, %v5037
        %v5486 = vadd.f32 %v4590, %v5038
        %v5487 = vadd.f32 %v4591, %v5039
        %v5488 = vadd.f32 %v4592, %v5040
        %v5489 = vadd.f32 %v4593, %v5041
        %v5490 = vadd.f32 %v4594, %v5042
        %v5491 = vadd.f32 %v4595, %v5043
        %v5492 = vadd.f32 %v4596, %v5044
        %v5493 = vadd.f32 %v4597, %v5045
        %v5494 = vadd.f32 %v4598, %v5046
        %v5495 = vadd.f32 %v4599, %v5047
        %v5496 = vadd.f32 %v4600, %v5048
        %v5497 = vadd.f32 %v4601, %v5049
        %v5498 = vadd.f32 %v4602, %v5050
        %v5499 = vadd.f32 %v4603, %v5051
        %v5500 = vadd.f32 %v4604, %v5052
        %v5501 = vadd.f32 %v4605, %v5053
        %v5502 = vadd.f32 %v4606, %v5054
        %v5503 = vadd.f32 %v4607, %v5055
        %v5504 = vadd.f32 %v4608, %v5056
        %v5505 = vadd.f32 %v4609, %v5057
        %v5506 = vadd.f32 %v4610, %v5058
        %v5507 = vadd.f32 %v4611, %v5059
        %v5508 = vadd.f32 %v4612, %v5060
        %v5509 = vadd.f32 %v4613, %v5061
        %v5510 = vadd.f32 %v4614, %v5062
        %v5511 = vadd.f32 %v4615, %v5063
        %v5512 = vadd.f32 %v4616, %v5064
        %v5513 = vadd.f32 %v4617, %v5065
        %v5514 = vadd.f32 %v4618, %v5066
        %v5515 = vadd.f32 %v4619, %v5067
        %v5516 = vadd.f32 %v4620, %v5068
        %v5517 = vadd.f32 %v4621, %v5069
        %v5518 = vadd.f32 %v4622, %v5070
        %v5519 = vadd.f32 %v4623, %v5071
        %v5520 = vadd.f32 %v4624, %v5072
        %v5521 = vadd.f32 %v4625, %v5073
        %v5522 = vadd.f32 %v4626, %v5074
        %v5523 = vadd.f32 %v4627, %v5075
        %v5524 = vadd.f32 %v4628, %v5076
        %v5525 = vadd.f32 %v4629, %v5077
        %v5526 = vadd.f32 %v4630, %v5078
        %v5527 = vadd.f32 %v4631, %v5079
        %v5528 = vadd.f32 %v4632, %v5080
        %v5529 = vadd.f32 %v4633, %v5081
        %v5530 = vadd.f32 %v4634, %v5082
        %v5531 = vadd.f32 %v4635, %v5083
        %v5532 = vadd.f32 %v4636, %v5084
        %v5533 = vadd.f32 %v4637, %v5085
        %v5534 = vadd.f32 %v4638, %v5086
        %v5535 = vadd.f32 %v4639, %v5087
        %v5536 = vadd.f32 %v4640, %v5088
        %v5537 = vadd.f32 %v4641, %v5089
        %v5538 = vadd.f32 %v4642, %v5090
        %v5539 = vadd.f32 %v4643, %v5091
        %v5540 = vadd.f32 %v4644, %v5092
        %v5541 = vadd.f32 %v4645, %v5093
        %v5542 = vadd.f32 %v4646, %v5094
        %v5543 = vadd.f32 %v4647, %v5095
        %v5544 = vadd.f32 %v4648, %v5096
        %v5545 = vadd.f32 %v4649, %v5097
        %v5546 = vadd.f32 %v4650, %v5098
        %v5547 = vadd.f32 %v4651, %v5099
        %v5548 = vadd.f32 %v4652, %v5100
        %v5549 = vadd.f32 %v4653, %v5101
        %v5550 = vadd.f32 %v4654, %v5102
        %v5551 = vadd.f32 %v4655, %v5103
        %v5552 = vadd.f32 %v4656, %v5104
        %v5553 = vadd.f32 %v4657, %v5105
        %v5554 = vadd.f32 %v4658, %v5106
        %v5555 = vadd.f32 %v4659, %v5107
        %v5556 = vadd.f32 %v4660, %v5108
        %v5557 = vadd.f32 %v4661, %v5109
        %v5558 = vadd.f32 %v4662, %v5110
        %v5559 = vadd.f32 %v4663, %v5111
        %v5560 = vadd.f32 %v4664, %v5112
        %v5561 = vadd.f32 %v4665, %v5113
        %v5562 = vadd.f32 %v4666, %v5114
        %v5563 = vadd.f32 %v4667, %v5115
        %v5564 = vadd.f32 %v4668, %v5116
        %v5565 = vadd.f32 %v4669, %v5117
        %v5566 = vadd.f32 %v4670, %v5118
        %v5567 = vadd.f32 %v4671, %v5119
        %v5568 = vadd.f32 %v4672, %v5120
        %v5569 = vadd.f32 %v4673, %v5121
        %v5570 = vadd.f32 %v4674, %v5122
        %v5571 = vadd.f32 %v4675, %v5123
        %v5572 = vadd.f32 %v4676, %v5124
        %v5573 = vadd.f32 %v4677, %v5125
        %v5574 = vadd.f32 %v4678, %v5126
        %v5575 = vadd.f32 %v4679, %v5127
        %v5576 = vadd.f32 %v4680, %v5128
        %v5577 = vadd.f32 %v4681, %v5129
        %v5578 = vadd.f32 %v4682, %v5130
        %v5579 = vadd.f32 %v4683, %v5131
        %v5580 = vadd.f32 %v4684, %v5132
        %v5581 = vadd.f32 %v4685, %v5133
        %v5582 = vadd.f32 %v4686, %v5134
        %v5583 = vadd.f32 %v4687, %v5135
        %v5584 = vadd.f32 %v4688, %v5136
        %v5585 = vadd.f32 %v4689, %v5137
        %v5586 = vadd.f32 %v4690, %v5138
        %v5587 = vadd.f32 %v4691, %v5139
        %v5588 = vadd.f32 %v4692, %v5140
        %v5589 = vadd.f32 %v4693, %v5141
        %v5590 = vadd.f32 %v4694, %v5142
        %v5591 = vadd.f32 %v4695, %v5143
        %v5592 = vadd.f32 %v4696, %v5144
        %v5593 = vadd.f32 %v4697, %v5145
        %v5594 = vadd.f32 %v4698, %v5146
        %v5595 = vadd.f32 %v4699, %v5147
        %v5596 = vadd.f32 %v4700, %v5148
        %v5597 = vadd.f32 %v4701, %v5149
        %v5598 = vadd.f32 %v4702, %v5150
        %v5599 = vadd.f32 %v4703, %v5151
        %v5600 = vadd.f32 %v4704, %v5152
        %v5601 = vadd.f32 %v4705, %v5153
        %v5602 = vadd.f32 %v4706, %v5154
        %v5603 = vadd.f32 %v4707, %v5155
        %v5604 = vadd.f32 %v4708, %v5156
        %v5605 = vadd.f32 %v4709, %v5157
        %v5606 = vadd.f32 %v4710, %v5158
        %v5607 = vadd.f32 %v4711, %v5159
        %v5608 = vadd.f32 %v4712, %v5160
        %v5609 = vadd.f32 %v4713, %v5161
        %v5610 = vadd.f32 %v4714, %v5162
        %v5611 = vadd.f32 %v4715, %v5163
        %v5612 = vadd.f32 %v4716, %v5164
        %v5613 = vadd.f32 %v4717, %v5165
        %v5614 = vadd.f32 %v4718, %v5166
        %v5615 = vadd.f32 %v4719, %v5167
        %v5616 = vadd.f32 %v4720, %v5168
        %v5617 = vadd.f32 %v4721, %v5169
        %v5618 = vadd.f32 %v4722, %v5170
        %v5619 = vadd.f32 %v4723, %v5171
        %v5620 = vadd.f32 %v4724, %v5172
        %v5621 = vadd.f32 %v4725, %v5173
        %v5622 = vadd.f32 %v4726, %v5174
        %v5623 = vadd.f32 %v4727, %v5175
        %v5624 = vadd.f32 %v4728, %v5176
        %v5625 = vadd.f32 %v4729, %v5177
        %v5626 = vadd.f32 %v4730, %v5178
        %v5627 = vadd.f32 %v4731, %v5179
        %v5628 = vadd.f32 %v4732, %v5180
        %v5629 = vadd.f32 %v4733, %v5181
        %v5630 = vadd.f32 %v4734, %v5182
        %v5631 = vadd.f32 %v4735, %v5183
        %v5632 = vadd.f32 %v4736, %v5184
        %v5633 = vadd.f32 %v4737, %v5185
        %v5634 = vadd.f32 %v4738, %v5186
        %v5635 = vadd.f32 %v4739, %v5187
        %v5636 = vadd.f32 %v4740, %v5188
        %v5637 = vadd.f32 %v4741, %v5189
        %v5638 = vadd.f32 %v4742, %v5190
        %v5639 = vadd.f32 %v4743, %v5191
        %v5640 = vadd.f32 %v4744, %v5192
        %v5641 = vadd.f32 %v4745, %v5193
        %v5642 = vadd.f32 %v4746, %v5194
        %v5643 = vadd.f32 %v4747, %v5195
        %v5644 = vadd.f32 %v4748, %v5196
        %v5645 = vadd.f32 %v4749, %v5197
        %v5646 = vadd.f32 %v4750, %v5198
        %v5647 = vadd.f32 %v4751, %v5199
        %v5648 = vadd.f32 %v4752, %v5200
        %v5649 = vadd.f32 %v4753, %v5201
        %v5650 = vadd.f32 %v4754, %v5202
        %v5651 = vadd.f32 %v4755, %v5203
        %v5652 = vadd.f32 %v4756, %v5204
        %v5653 = vadd.f32 %v4757, %v5205
        %v5654 = vadd.f32 %v4758, %v5206
        %v5655 = vadd.f32 %v4759, %v5207
        %v5656 = vadd.f32 %v4760, %v5208
        %v5657 = vadd.f32 %v4761, %v5209
        %v5658 = vadd.f32 %v4762, %v5210
        %v5659 = vadd.f32 %v4763, %v5211
        %v5660 = vadd.f32 %v4764, %v5212
        %v5661 = vadd.f32 %v4765, %v5213
        %v5662 = vadd.f32 %v4766, %v5214
        %v5663 = vadd.f32 %v4767, %v5215
        %v5664 = vadd.f32 %v4768, %v5216
        %v5665 = vadd.f32 %v4769, %v5217
        %v5666 = vadd.f32 %v4770, %v5218
        %v5667 = vadd.f32 %v4771, %v5219
        %v5668 = vadd.f32 %v4772, %v5220
        %v5669 = vadd.f32 %v4773, %v5221
        %v5670 = vadd.f32 %v4774, %v5222
        %v5671 = vadd.f32 %v4775, %v5223
        %v5672 = vadd.f32 %v4776, %v5224
        %v5673 = vadd.f32 %v4777, %v5225
        %v5674 = vadd.f32 %v4778, %v5226
        %v5675 = vadd.f32 %v4779, %v5227
        %v5676 = vadd.f32 %v4780, %v5228
        %v5677 = vadd.f32 %v4781, %v5229
        %v5678 = vadd.f32 %v4782, %v5230
        %v5679 = vadd.f32 %v4783, %v5231
        %v5680 = vadd.f32 %v4784, %v5232
        %v5681 = vadd.f32 %v4785, %v5233
        %v5682 = vadd.f32 %v4786, %v5234
        %v5683 = vadd.f32 %v4787, %v5235
        %v5684 = vadd.f32 %v4788, %v5236
        %v5685 = vadd.f32 %v4789, %v5237
        %v5686 = vadd.f32 %v4790, %v5238
        %v5687 = vadd.f32 %v4791, %v5239
        %v5688 = vadd.f32 %v4792, %v5240
        %v5689 = vadd.f32 %v4793, %v5241
        %v5690 = vadd.f32 %v4794, %v5242
        %v5691 = vadd.f32 %v4795, %v5243
        %v5692 = vadd.f32 %v4796, %v5244
        %v5693 = vadd.f32 %v4797, %v5245
        %v5694 = vadd.f32 %v4798, %v5246
        %v5695 = vadd.f32 %v4799, %v5247
        %v5696 = vadd.f32 %v4800, %v5248
        %v5697 = vadd.f32 %v4801, %v5249
        %v5698 = vadd.f32 %v4802, %v5250
        %v5699 = vadd.f32 %v4803, %v5251
        %v5700 = vadd.f32 %v4804, %v5252
        %v5701 = vadd.f32 %v4805, %v5253
        %v5702 = vadd.f32 %v4806, %v5254
        %v5703 = vadd.f32 %v4807, %v5255
        %v5704 = vadd.f32 %v4808, %v5256
        %v5705 = vadd.f32 %v4809, %v5257
        %v5706 = vadd.f32 %v4810, %v5258
        %v5707 = vadd.f32 %v4811, %v5259
        %v5708 = vadd.f32 %v4812, %v5260
        %v5709 = vadd.f32 %v4813, %v5261
        %v5710 = vadd.f32 %v4814, %v5262
        %v5711 = vadd.f32 %v4815, %v5263
        %v5712 = vadd.f32 %v4816, %v5264
        %v5713 = vadd.f32 %v4817, %v5265
        %v5714 = vadd.f32 %v4818, %v5266
        %v5715 = vadd.f32 %v4819, %v5267
        %v5716 = vadd.f32 %v4820, %v5268
        %v5717 = vadd.f32 %v4821, %v5269
        %v5718 = vadd.f32 %v4822, %v5270
        %v5719 = vadd.f32 %v4823, %v5271
        %v5720 = vadd.f32 %v4824, %v5272
        %v5721 = vadd.f32 %v4825, %v5273
        %v5722 = vadd.f32 %v4826, %v5274
        %v5723 = vadd.f32 %v4827, %v5275
        %v5724 = vadd.f32 %v4828, %v5276
        %v5725 = vadd.f32 %v4829, %v5277
        %v5726 = vadd.f32 %v4830, %v5278
        %v5727 = vadd.f32 %v4831, %v5279
        %v5728 = vadd.f32 %v4832, %v5280
        %v5729 = vadd.f32 %v4833, %v5281
        %v5730 = vadd.f32 %v4834, %v5282
        %v5731 = vadd.f32 %v4835, %v5283
        %v5732 = vadd.f32 %v4836, %v5284
        %v5733 = vadd.f32 %v4837, %v5285
        %v5734 = vadd.f32 %v4838, %v5286
        %v5735 = vadd.f32 %v4839, %v5287
        %v5736 = vadd.f32 %v4840, %v5288
        %v5737 = vadd.f32 %v4841, %v5289
        %v5738 = vadd.f32 %v4842, %v5290
        %v5739 = vadd.f32 %v4843, %v5291
        %v5740 = vadd.f32 %v4844, %v5292
        %v5741 = vadd.f32 %v4845, %v5293
        %v5742 = vadd.f32 %v4846, %v5294
        %v5743 = vadd.f32 %v4847, %v5295
        %v5744 = vadd.f32 %v4848, %v5296
        %v5745 = vadd.f32 %v4849, %v5297
        %v5746 = vadd.f32 %v4850, %v5298
        %v5747 = vadd.f32 %v4851, %v5299
        %v5748 = vadd.f32 %v4852, %v5300
        %v5749 = vadd.f32 %v4853, %v5301
        %v5750 = vadd.f32 %v4854, %v5302
        %v5751 = vadd.f32 %v4855, %v5303
        %v5752 = vadd.f32 %v4856, %v5304
        %v5753 = vadd.f32 %v4857, %v5305
        %v5754 = vadd.f32 %v4858, %v5306
        %v5755 = vadd.f32 %v4859, %v5307
        %v5756 = vadd.f32 %v4860, %v5308
        %v5757 = vadd.f32 %v4861, %v5309
        %v5758 = vadd.f32 %v4862, %v5310
        %v5759 = vadd.f32 %v4863, %v5311
        %v5760 = vadd.f32 %v4864, %v5312
        %v5761 = vadd.f32 %v4865, %v5313
        %v5762 = vadd.f32 %v4866, %v5314
        %v5763 = vadd.f32 %v4867, %v5315
        %v5764 = vadd.f32 %v4868, %v5316
        %v5765 = vadd.f32 %v4869, %v5317
        %v5766 = vadd.f32 %v4870, %v5318
        %v5767 = vadd.f32 %v4871, %v5319
        %v5768 = vadd.f32 %v4872, %v5320
        %v5769 = vadd.f32 %v4873, %v5321
        %v5770 = vadd.f32 %v4874, %v5322
        %v5771 = vadd.f32 %v4875, %v5323
        %v5772 = vadd.f32 %v4876, %v5324
        %v5773 = vadd.f32 %v4877, %v5325
        %v5774 = vadd.f32 %v4878, %v5326
        %v5775 = vadd.f32 %v4879, %v5327
        %v5776 = vadd.f32 %v4880, %v5328
        %v5777 = vadd.f32 %v4881, %v5329
        %v5778 = vadd.f32 %v4882, %v5330
        %v5779 = vadd.f32 %v4883, %v5331
        %v5780 = vadd.f32 %v4884, %v5332
        %v5781 = vadd.f32 %v4885, %v5333
        %v5782 = vadd.f32 %v4886, %v5334
        %v5783 = vadd.f32 %v4887, %v5335
        %v5784 = vadd.f32 %v4888, %v5336
        %v5785 = vadd.f32 %v4889, %v5337
        %v5786 = vadd.f32 %v4890, %v5338
        %v5787 = vadd.f32 %v4891, %v5339
        %v5788 = vadd.f32 %v4892, %v5340
        %v5789 = vadd.f32 %v4893, %v5341
        %v5790 = vadd.f32 %v4894, %v5342
        %v5791 = vadd.f32 %v4895, %v5343
        %v5792 = vadd.f32 %v4896, %v5344
        %v5793 = vadd.f32 %v4897, %v5345
        %v5794 = vadd.f32 %v4898, %v5346
        %v5795 = vadd.f32 %v4899, %v5347
        %v5796 = vadd.f32 %v4900, %v5348
        %v5797 = vadd.f32 %v4901, %v5349
        %v5798 = vadd.f32 %v4902, %v5350
        %v5799 = vadd.f32 %v4903, %v5351
        %v5800 = vadd.f32 %v4904, %v5352
        %v5801 = vadd.f32 %v4905, %v5353
        %v5802 = vadd.f32 %v4906, %v5354
        %v5803 = vadd.f32 %v4907, %v5355
        %v5804 = vadd.f32 %v4908, %v5356
        %v5805 = vadd.f32 %v4909, %v5357
        %v5806 = vadd.f32 %v4910, %v5358
        %v5807 = vadd.f32 %v4911, %v5359
        %v5808 = vadd.f32 %v4912, %v5360
        %v5809 = vadd.f32 %v4913, %v5361
        %v5810 = vadd.f32 %v4914, %v5362
        %v5811 = vadd.f32 %v4915, %v5363
        %v5812 = vadd.f32 %v4916, %v5364
        %v5813 = vadd.f32 %v4917, %v5365
        %v5814 = vadd.f32 %v4918, %v5366
        %v5815 = vadd.f32 %v4919, %v5367
        %v5816 = vadd.f32 %v4920, %v5368
        %v5817 = vadd.f32 %v4921, %v5369
        %v5818 = vadd.f32 %v4922, %v5370
        %v5819 = vadd.f32 %v4923, %v5371
        %v5820 = vadd.f32 %v4924, %v5372
        %v5821 = vadd.f32 %v4925, %v5373
        %v5822 = vadd.f32 %v4926, %v5374
        %v5823 = vadd.f32 %v4927, %v5375
        %v5824 = vadd.f32 %v4928, %v5376
        %v5825 = vadd.f32 %v4929, %v5377
        %v5826 = vadd.f32 %v4930, %v5378
        %v5827 = vadd.f32 %v4931, %v5379
        %v5828 = vadd.f32 %v4932, %v5380
        %v5829 = vadd.f32 %v4933, %v5381
        %v5830 = vadd.f32 %v4934, %v5382
        %v5831 = vadd.f32 %v4935, %v5383
        %v5832 = vadd.f32 %v4936, %v5384
        %v5833 = vadd.f32 %v4937, %v5385
        %v5834 = vadd.f32 %v4938, %v5386
        %v5835 = vadd.f32 %v4939, %v5387
        %v5836 = vadd.f32 %v4940, %v5388
        %v5837 = vadd.f32 %v4941, %v5389
        %v5838 = vadd.f32 %v4942, %v5390
        %v5839 = vadd.f32 %v4943, %v5391
        %v5840 = vadd.f32 %v4944, %v5392
        %v5841 = vadd.f32 %v4945, %v5393
        %v5842 = vadd.f32 %v4946, %v5394
        %v5843 = vadd.f32 %v4947, %v5395
        %v5844 = vmax.f32 %v5396, 0.0
        %v5845 = vmax.f32 %v5397, 0.0
        %v5846 = vmax.f32 %v5398, 0.0
        %v5847 = vmax.f32 %v5399, 0.0
        %v5848 = vmax.f32 %v5400, 0.0
        %v5849 = vmax.f32 %v5401, 0.0
        %v5850 = vmax.f32 %v5402, 0.0
        %v5851 = vmax.f32 %v5403, 0.0
        %v5852 = vmax.f32 %v5404, 0.0
        %v5853 = vmax.f32 %v5405, 0.0
        %v5854 = vmax.f32 %v5406, 0.0
        %v5855 = vmax.f32 %v5407, 0.0
        %v5856 = vmax.f32 %v5408, 0.0
        %v5857 = vmax.f32 %v5409, 0.0
        %v5858 = vmax.f32 %v5410, 0.0
        %v5859 = vmax.f32 %v5411, 0.0
        %v5860 = vmax.f32 %v5412, 0.0
        %v5861 = vmax.f32 %v5413, 0.0
        %v5862 = vmax.f32 %v5414, 0.0
        %v5863 = vmax.f32 %v5415, 0.0
        %v5864 = vmax.f32 %v5416, 0.0
        %v5865 = vmax.f32 %v5417, 0.0
        %v5866 = vmax.f32 %v5418, 0.0
        %v5867 = vmax.f32 %v5419, 0.0
        %v5868 = vmax.f32 %v5420, 0.0
        %v5869 = vmax.f32 %v5421, 0.0
        %v5870 = vmax.f32 %v5422, 0.0
        %v5871 = vmax.f32 %v5423, 0.0
        %v5872 = vmax.f32 %v5424, 0.0
        %v5873 = vmax.f32 %v5425, 0.0
        %v5874 = vmax.f32 %v5426, 0.0
        %v5875 = vmax.f32 %v5427, 0.0
        %v5876 = vmax.f32 %v5428, 0.0
        %v5877 = vmax.f32 %v5429, 0.0
        %v5878 = vmax.f32 %v5430, 0.0
        %v5879 = vmax.f32 %v5431, 0.0
        %v5880 = vmax.f32 %v5432, 0.0
        %v5881 = vmax.f32 %v5433, 0.0
        %v5882 = vmax.f32 %v5434, 0.0
        %v5883 = vmax.f32 %v5435, 0.0
        %v5884 = vmax.f32 %v5436, 0.0
        %v5885 = vmax.f32 %v5437, 0.0
        %v5886 = vmax.f32 %v5438, 0.0
        %v5887 = vmax.f32 %v5439, 0.0
        %v5888 = vmax.f32 %v5440, 0.0
        %v5889 = vmax.f32 %v5441, 0.0
        %v5890 = vmax.f32 %v5442, 0.0
        %v5891 = vmax.f32 %v5443, 0.0
        %v5892 = vmax.f32 %v5444, 0.0
        %v5893 = vmax.f32 %v5445, 0.0
        %v5894 = vmax.f32 %v5446, 0.0
        %v5895 = vmax.f32 %v5447, 0.0
        %v5896 = vmax.f32 %v5448, 0.0
        %v5897 = vmax.f32 %v5449, 0.0
        %v5898 = vmax.f32 %v5450, 0.0
        %v5899 = vmax.f32 %v5451, 0.0
        %v5900 = vmax.f32 %v5452, 0.0
        %v5901 = vmax.f32 %v5453, 0.0
        %v5902 = vmax.f32 %v5454, 0.0
        %v5903 = vmax.f32 %v5455, 0.0
        %v5904 = vmax.f32 %v5456, 0.0
        %v5905 = vmax.f32 %v5457, 0.0
        %v5906 = vmax.f32 %v5458, 0.0
        %v5907 = vmax.f32 %v5459, 0.0
        %v5908 = vmax.f32 %v5460, 0.0
        %v5909 = vmax.f32 %v5461, 0.0
        %v5910 = vmax.f32 %v5462, 0.0
        %v5911 = vmax.f32 %v5463, 0.0
        %v5912 = vmax.f32 %v5464, 0.0
        %v5913 = vmax.f32 %v5465, 0.0
        %v5914 = vmax.f32 %v5466, 0.0
        %v5915 = vmax.f32 %v5467, 0.0
        %v5916 = vmax.f32 %v5468, 0.0
        %v5917 = vmax.f32 %v5469, 0.0
        %v5918 = vmax.f32 %v5470, 0.0
        %v5919 = vmax.f32 %v5471, 0.0
        %v5920 = vmax.f32 %v5472, 0.0
        %v5921 = vmax.f32 %v5473, 0.0
        %v5922 = vmax.f32 %v5474, 0.0
        %v5923 = vmax.f32 %v5475, 0.0
        %v5924 = vmax.f32 %v5476, 0.0
        %v5925 = vmax.f32 %v5477, 0.0
        %v5926 = vmax.f32 %v5478, 0.0
        %v5927 = vmax.f32 %v5479, 0.0
        %v5928 = vmax.f32 %v5480, 0.0
        %v5929 = vmax.f32 %v5481, 0.0
        %v5930 = vmax.f32 %v5482, 0.0
        %v5931 = vmax.f32 %v5483, 0.0
        %v5932 = vmax.f32 %v5484, 0.0
        %v5933 = vmax.f32 %v5485, 0.0
        %v5934 = vmax.f32 %v5486, 0.0
        %v5935 = vmax.f32 %v5487, 0.0
        %v5936 = vmax.f32 %v5488, 0.0
        %v5937 = vmax.f32 %v5489, 0.0
        %v5938 = vmax.f32 %v5490, 0.0
        %v5939 = vmax.f32 %v5491, 0.0
        %v5940 = vmax.f32 %v5492, 0.0
        %v5941 = vmax.f32 %v5493, 0.0
        %v5942 = vmax.f32 %v5494, 0.0
        %v5943 = vmax.f32 %v5495, 0.0
        %v5944 = vmax.f32 %v5496, 0.0
        %v5945 = vmax.f32 %v5497, 0.0
        %v5946 = vmax.f32 %v5498, 0.0
        %v5947 = vmax.f32 %v5499, 0.0
        %v5948 = vmax.f32 %v5500, 0.0
        %v5949 = vmax.f32 %v5501, 0.0
        %v5950 = vmax.f32 %v5502, 0.0
        %v5951 = vmax.f32 %v5503, 0.0
        %v5952 = vmax.f32 %v5504, 0.0
        %v5953 = vmax.f32 %v5505, 0.0
        %v5954 = vmax.f32 %v5506, 0.0
        %v5955 = vmax.f32 %v5507, 0.0
        %v5956 = vmax.f32 %v5508, 0.0
        %v5957 = vmax.f32 %v5509, 0.0
        %v5958 = vmax.f32 %v5510, 0.0
        %v5959 = vmax.f32 %v5511, 0.0
        %v5960 = vmax.f32 %v5512, 0.0
        %v5961 = vmax.f32 %v5513, 0.0
        %v5962 = vmax.f32 %v5514, 0.0
        %v5963 = vmax.f32 %v5515, 0.0
        %v5964 = vmax.f32 %v5516, 0.0
        %v5965 = vmax.f32 %v5517, 0.0
        %v5966 = vmax.f32 %v5518, 0.0
        %v5967 = vmax.f32 %v5519, 0.0
        %v5968 = vmax.f32 %v5520, 0.0
        %v5969 = vmax.f32 %v5521, 0.0
        %v5970 = vmax.f32 %v5522, 0.0
        %v5971 = vmax.f32 %v5523, 0.0
        %v5972 = vmax.f32 %v5524, 0.0
        %v5973 = vmax.f32 %v5525, 0.0
        %v5974 = vmax.f32 %v5526, 0.0
        %v5975 = vmax.f32 %v5527, 0.0
        %v5976 = vmax.f32 %v5528, 0.0
        %v5977 = vmax.f32 %v5529, 0.0
        %v5978 = vmax.f32 %v5530, 0.0
        %v5979 = vmax.f32 %v5531, 0.0
        %v5980 = vmax.f32 %v5532, 0.0
        %v5981 = vmax.f32 %v5533, 0.0
        %v5982 = vmax.f32 %v5534, 0.0
        %v5983 = vmax.f32 %v5535, 0.0
        %v5984 = vmax.f32 %v5536, 0.0
        %v5985 = vmax.f32 %v5537, 0.0
        %v5986 = vmax.f32 %v5538, 0.0
        %v5987 = vmax.f32 %v5539, 0.0
        %v5988 = vmax.f32 %v5540, 0.0
        %v5989 = vmax.f32 %v5541, 0.0
        %v5990 = vmax.f32 %v5542, 0.0
        %v5991 = vmax.f32 %v5543, 0.0
        %v5992 = vmax.f32 %v5544, 0.0
        %v5993 = vmax.f32 %v5545, 0.0
        %v5994 = vmax.f32 %v5546, 0.0
        %v5995 = vmax.f32 %v5547, 0.0
        %v5996 = vmax.f32 %v5548, 0.0
        %v5997 = vmax.f32 %v5549, 0.0
        %v5998 = vmax.f32 %v5550, 0.0
        %v5999 = vmax.f32 %v5551, 0.0
        %v6000 = vmax.f32 %v5552, 0.0
        %v6001 = vmax.f32 %v5553, 0.0
        %v6002 = vmax.f32 %v5554, 0.0
        %v6003 = vmax.f32 %v5555, 0.0
        %v6004 = vmax.f32 %v5556, 0.0
        %v6005 = vmax.f32 %v5557, 0.0
        %v6006 = vmax.f32 %v5558, 0.0
        %v6007 = vmax.f32 %v5559, 0.0
        %v6008 = vmax.f32 %v5560, 0.0
        %v6009 = vmax.f32 %v5561, 0.0
        %v6010 = vmax.f32 %v5562, 0.0
        %v6011 = vmax.f32 %v5563, 0.0
        %v6012 = vmax.f32 %v5564, 0.0
        %v6013 = vmax.f32 %v5565, 0.0
        %v6014 = vmax.f32 %v5566, 0.0
        %v6015 = vmax.f32 %v5567, 0.0
        %v6016 = vmax.f32 %v5568, 0.0
        %v6017 = vmax.f32 %v5569, 0.0
        %v6018 = vmax.f32 %v5570, 0.0
        %v6019 = vmax.f32 %v5571, 0.0
        %v6020 = vmax.f32 %v5572, 0.0
        %v6021 = vmax.f32 %v5573, 0.0
        %v6022 = vmax.f32 %v5574, 0.0
        %v6023 = vmax.f32 %v5575, 0.0
        %v6024 = vmax.f32 %v5576, 0.0
        %v6025 = vmax.f32 %v5577, 0.0
        %v6026 = vmax.f32 %v5578, 0.0
        %v6027 = vmax.f32 %v5579, 0.0
        %v6028 = vmax.f32 %v5580, 0.0
        %v6029 = vmax.f32 %v5581, 0.0
        %v6030 = vmax.f32 %v5582, 0.0
        %v6031 = vmax.f32 %v5583, 0.0
        %v6032 = vmax.f32 %v5584, 0.0
        %v6033 = vmax.f32 %v5585, 0.0
        %v6034 = vmax.f32 %v5586, 0.0
        %v6035 = vmax.f32 %v5587, 0.0
        %v6036 = vmax.f32 %v5588, 0.0
        %v6037 = vmax.f32 %v5589, 0.0
        %v6038 = vmax.f32 %v5590, 0.0
        %v6039 = vmax.f32 %v5591, 0.0
        %v6040 = vmax.f32 %v5592, 0.0
        %v6041 = vmax.f32 %v5593, 0.0
        %v6042 = vmax.f32 %v5594, 0.0
        %v6043 = vmax.f32 %v5595, 0.0
        %v6044 = vmax.f32 %v5596, 0.0
        %v6045 = vmax.f32 %v5597, 0.0
        %v6046 = vmax.f32 %v5598, 0.0
        %v6047 = vmax.f32 %v5599, 0.0
        %v6048 = vmax.f32 %v5600, 0.0
        %v6049 = vmax.f32 %v5601, 0.0
        %v6050 = vmax.f32 %v5602, 0.0
        %v6051 = vmax.f32 %v5603, 0.0
        %v6052 = vmax.f32 %v5604, 0.0
        %v6053 = vmax.f32 %v5605, 0.0
        %v6054 = vmax.f32 %v5606, 0.0
        %v6055 = vmax.f32 %v5607, 0.0
        %v6056 = vmax.f32 %v5608, 0.0
        %v6057 = vmax.f32 %v5609, 0.0
        %v6058 = vmax.f32 %v5610, 0.0
        %v6059 = vmax.f32 %v5611, 0.0
        %v6060 = vmax.f32 %v5612, 0.0
        %v6061 = vmax.f32 %v5613, 0.0
        %v6062 = vmax.f32 %v5614, 0.0
        %v6063 = vmax.f32 %v5615, 0.0
        %v6064 = vmax.f32 %v5616, 0.0
        %v6065 = vmax.f32 %v5617, 0.0
        %v6066 = vmax.f32 %v5618, 0.0
        %v6067 = vmax.f32 %v5619, 0.0
        %v6068 = vmax.f32 %v5620, 0.0
        %v6069 = vmax.f32 %v5621, 0.0
        %v6070 = vmax.f32 %v5622, 0.0
        %v6071 = vmax.f32 %v5623, 0.0
        %v6072 = vmax.f32 %v5624, 0.0
        %v6073 = vmax.f32 %v5625, 0.0
        %v6074 = vmax.f32 %v5626, 0.0
        %v6075 = vmax.f32 %v5627, 0.0
        %v6076 = vmax.f32 %v5628, 0.0
        %v6077 = vmax.f32 %v5629, 0.0
        %v6078 = vmax.f32 %v5630, 0.0
        %v6079 = vmax.f32 %v5631, 0.0
        %v6080 = vmax.f32 %v5632, 0.0
        %v6081 = vmax.f32 %v5633, 0.0
        %v6082 = vmax.f32 %v5634, 0.0
        %v6083 = vmax.f32 %v5635, 0.0
        %v6084 = vmax.f32 %v5636, 0.0
        %v6085 = vmax.f32 %v5637, 0.0
        %v6086 = vmax.f32 %v5638, 0.0
        %v6087 = vmax.f32 %v5639, 0.0
        %v6088 = vmax.f32 %v5640, 0.0
        %v6089 = vmax.f32 %v5641, 0.0
        %v6090 = vmax.f32 %v5642, 0.0
        %v6091 = vmax.f32 %v5643, 0.0
        %v6092 = vmax.f32 %v5644, 0.0
        %v6093 = vmax.f32 %v5645, 0.0
        %v6094 = vmax.f32 %v5646, 0.0
        %v6095 = vmax.f32 %v5647, 0.0
        %v6096 = vmax.f32 %v5648, 0.0
        %v6097 = vmax.f32 %v5649, 0.0
        %v6098 = vmax.f32 %v5650, 0.0
        %v6099 = vmax.f32 %v5651, 0.0
        %v6100 = vmax.f32 %v5652, 0.0
        %v6101 = vmax.f32 %v5653, 0.0
        %v6102 = vmax.f32 %v5654, 0.0
        %v6103 = vmax.f32 %v5655, 0.0
        %v6104 = vmax.f32 %v5656, 0.0
        %v6105 = vmax.f32 %v5657, 0.0
        %v6106 = vmax.f32 %v5658, 0.0
        %v6107 = vmax.f32 %v5659, 0.0
        %v6108 = vmax.f32 %v5660, 0.0
        %v6109 = vmax.f32 %v5661, 0.0
        %v6110 = vmax.f32 %v5662, 0.0
        %v6111 = vmax.f32 %v5663, 0.0
        %v6112 = vmax.f32 %v5664, 0.0
        %v6113 = vmax.f32 %v5665, 0.0
        %v6114 = vmax.f32 %v5666, 0.0
        %v6115 = vmax.f32 %v5667, 0.0
        %v6116 = vmax.f32 %v5668, 0.0
        %v6117 = vmax.f32 %v5669, 0.0
        %v6118 = vmax.f32 %v5670, 0.0
        %v6119 = vmax.f32 %v5671, 0.0
        %v6120 = vmax.f32 %v5672, 0.0
        %v6121 = vmax.f32 %v5673, 0.0
        %v6122 = vmax.f32 %v5674, 0.0
        %v6123 = vmax.f32 %v5675, 0.0
        %v6124 = vmax.f32 %v5676, 0.0
        %v6125 = vmax.f32 %v5677, 0.0
        %v6126 = vmax.f32 %v5678, 0.0
        %v6127 = vmax.f32 %v5679, 0.0
        %v6128 = vmax.f32 %v5680, 0.0
        %v6129 = vmax.f32 %v5681, 0.0
        %v6130 = vmax.f32 %v5682, 0.0
        %v6131 = vmax.f32 %v5683, 0.0
        %v6132 = vmax.f32 %v5684, 0.0
        %v6133 = vmax.f32 %v5685, 0.0
        %v6134 = vmax.f32 %v5686, 0.0
        %v6135 = vmax.f32 %v5687, 0.0
        %v6136 = vmax.f32 %v5688, 0.0
        %v6137 = vmax.f32 %v5689, 0.0
        %v6138 = vmax.f32 %v5690, 0.0
        %v6139 = vmax.f32 %v5691, 0.0
        %v6140 = vmax.f32 %v5692, 0.0
        %v6141 = vmax.f32 %v5693, 0.0
        %v6142 = vmax.f32 %v5694, 0.0
        %v6143 = vmax.f32 %v5695, 0.0
        %v6144 = vmax.f32 %v5696, 0.0
        %v6145 = vmax.f32 %v5697, 0.0
        %v6146 = vmax.f32 %v5698, 0.0
        %v6147 = vmax.f32 %v5699, 0.0
        %v6148 = vmax.f32 %v5700, 0.0
        %v6149 = vmax.f32 %v5701, 0.0
        %v6150 = vmax.f32 %v5702, 0.0
        %v6151 = vmax.f32 %v5703, 0.0
        %v6152 = vmax.f32 %v5704, 0.0
        %v6153 = vmax.f32 %v5705, 0.0
        %v6154 = vmax.f32 %v5706, 0.0
        %v6155 = vmax.f32 %v5707, 0.0
        %v6156 = vmax.f32 %v5708, 0.0
        %v6157 = vmax.f32 %v5709, 0.0
        %v6158 = vmax.f32 %v5710, 0.0
        %v6159 = vmax.f32 %v5711, 0.0
        %v6160 = vmax.f32 %v5712, 0.0
        %v6161 = vmax.f32 %v5713, 0.0
        %v6162 = vmax.f32 %v5714, 0.0
        %v6163 = vmax.f32 %v5715, 0.0
        %v6164 = vmax.f32 %v5716, 0.0
        %v6165 = vmax.f32 %v5717, 0.0
        %v6166 = vmax.f32 %v5718, 0.0
        %v6167 = vmax.f32 %v5719, 0.0
        %v6168 = vmax.f32 %v5720, 0.0
        %v6169 = vmax.f32 %v5721, 0.0
        %v6170 = vmax.f32 %v5722, 0.0
        %v6171 = vmax.f32 %v5723, 0.0
        %v6172 = vmax.f32 %v5724, 0.0
        %v6173 = vmax.f32 %v5725, 0.0
        %v6174 = vmax.f32 %v5726, 0.0
        %v6175 = vmax.f32 %v5727, 0.0
        %v6176 = vmax.f32 %v5728, 0.0
        %v6177 = vmax.f32 %v5729, 0.0
        %v6178 = vmax.f32 %v5730, 0.0
        %v6179 = vmax.f32 %v5731, 0.0
        %v6180 = vmax.f32 %v5732, 0.0
        %v6181 = vmax.f32 %v5733, 0.0
        %v6182 = vmax.f32 %v5734, 0.0
        %v6183 = vmax.f32 %v5735, 0.0
        %v6184 = vmax.f32 %v5736, 0.0
        %v6185 = vmax.f32 %v5737, 0.0
        %v6186 = vmax.f32 %v5738, 0.0
        %v6187 = vmax.f32 %v5739, 0.0
        %v6188 = vmax.f32 %v5740, 0.0
        %v6189 = vmax.f32 %v5741, 0.0
        %v6190 = vmax.f32 %v5742, 0.0
        %v6191 = vmax.f32 %v5743, 0.0
        %v6192 = vmax.f32 %v5744, 0.0
        %v6193 = vmax.f32 %v5745, 0.0
        %v6194 = vmax.f32 %v5746, 0.0
        %v6195 = vmax.f32 %v5747, 0.0
        %v6196 = vmax.f32 %v5748, 0.0
        %v6197 = vmax.f32 %v5749, 0.0
        %v6198 = vmax.f32 %v5750, 0.0
        %v6199 = vmax.f32 %v5751, 0.0
        %v6200 = vmax.f32 %v5752, 0.0
        %v6201 = vmax.f32 %v5753, 0.0
        %v6202 = vmax.f32 %v5754, 0.0
        %v6203 = vmax.f32 %v5755, 0.0
        %v6204 = vmax.f32 %v5756, 0.0
        %v6205 = vmax.f32 %v5757, 0.0
        %v6206 = vmax.f32 %v5758, 0.0
        %v6207 = vmax.f32 %v5759, 0.0
        %v6208 = vmax.f32 %v5760, 0.0
        %v6209 = vmax.f32 %v5761, 0.0
        %v6210 = vmax.f32 %v5762, 0.0
        %v6211 = vmax.f32 %v5763, 0.0
        %v6212 = vmax.f32 %v5764, 0.0
        %v6213 = vmax.f32 %v5765, 0.0
        %v6214 = vmax.f32 %v5766, 0.0
        %v6215 = vmax.f32 %v5767, 0.0
        %v6216 = vmax.f32 %v5768, 0.0
        %v6217 = vmax.f32 %v5769, 0.0
        %v6218 = vmax.f32 %v5770, 0.0
        %v6219 = vmax.f32 %v5771, 0.0
        %v6220 = vmax.f32 %v5772, 0.0
        %v6221 = vmax.f32 %v5773, 0.0
        %v6222 = vmax.f32 %v5774, 0.0
        %v6223 = vmax.f32 %v5775, 0.0
        %v6224 = vmax.f32 %v5776, 0.0
        %v6225 = vmax.f32 %v5777, 0.0
        %v6226 = vmax.f32 %v5778, 0.0
        %v6227 = vmax.f32 %v5779, 0.0
        %v6228 = vmax.f32 %v5780, 0.0
        %v6229 = vmax.f32 %v5781, 0.0
        %v6230 = vmax.f32 %v5782, 0.0
        %v6231 = vmax.f32 %v5783, 0.0
        %v6232 = vmax.f32 %v5784, 0.0
        %v6233 = vmax.f32 %v5785, 0.0
        %v6234 = vmax.f32 %v5786, 0.0
        %v6235 = vmax.f32 %v5787, 0.0
        %v6236 = vmax.f32 %v5788, 0.0
        %v6237 = vmax.f32 %v5789, 0.0
        %v6238 = vmax.f32 %v5790, 0.0
        %v6239 = vmax.f32 %v5791, 0.0
        %v6240 = vmax.f32 %v5792, 0.0
        %v6241 = vmax.f32 %v5793, 0.0
        %v6242 = vmax.f32 %v5794, 0.0
        %v6243 = vmax.f32 %v5795, 0.0
        %v6244 = vmax.f32 %v5796, 0.0
        %v6245 = vmax.f32 %v5797, 0.0
        %v6246 = vmax.f32 %v5798, 0.0
        %v6247 = vmax.f32 %v5799, 0.0
        %v6248 = vmax.f32 %v5800, 0.0
        %v6249 = vmax.f32 %v5801, 0.0
        %v6250 = vmax.f32 %v5802, 0.0
        %v6251 = vmax.f32 %v5803, 0.0
        %v6252 = vmax.f32 %v5804, 0.0
        %v6253 = vmax.f32 %v5805, 0.0
        %v6254 = vmax.f32 %v5806, 0.0
        %v6255 = vmax.f32 %v5807, 0.0
        %v6256 = vmax.f32 %v5808, 0.0
        %v6257 = vmax.f32 %v5809, 0.0
        %v6258 = vmax.f32 %v5810, 0.0
        %v6259 = vmax.f32 %v5811, 0.0
        %v6260 = vmax.f32 %v5812, 0.0
        %v6261 = vmax.f32 %v5813, 0.0
        %v6262 = vmax.f32 %v5814, 0.0
        %v6263 = vmax.f32 %v5815, 0.0
        %v6264 = vmax.f32 %v5816, 0.0
        %v6265 = vmax.f32 %v5817, 0.0
        %v6266 = vmax.f32 %v5818, 0.0
        %v6267 = vmax.f32 %v5819, 0.0
        %v6268 = vmax.f32 %v5820, 0.0
        %v6269 = vmax.f32 %v5821, 0.0
        %v6270 = vmax.f32 %v5822, 0.0
        %v6271 = vmax.f32 %v5823, 0.0
        %v6272 = vmax.f32 %v5824, 0.0
        %v6273 = vmax.f32 %v5825, 0.0
        %v6274 = vmax.f32 %v5826, 0.0
        %v6275 = vmax.f32 %v5827, 0.0
        %v6276 = vmax.f32 %v5828, 0.0
        %v6277 = vmax.f32 %v5829, 0.0
        %v6278 = vmax.f32 %v5830, 0.0
        %v6279 = vmax.f32 %v5831, 0.0
        %v6280 = vmax.f32 %v5832, 0.0
        %v6281 = vmax.f32 %v5833, 0.0
        %v6282 = vmax.f32 %v5834, 0.0
        %v6283 = vmax.f32 %v5835, 0.0
        %v6284 = vmax.f32 %v5836, 0.0
        %v6285 = vmax.f32 %v5837, 0.0
        %v6286 = vmax.f32 %v5838, 0.0
        %v6287 = vmax.f32 %v5839, 0.0
        %v6288 = vmax.f32 %v5840, 0.0
        %v6289 = vmax.f32 %v5841, 0.0
        %v6290 = vmax.f32 %v5842, 0.0
        %v6291 = vmax.f32 %v5843, 0.0
        %v6292 = vld [vmem:[%s474] sm:$0xff]
        %v6293 = vld [vmem:[%s474 + $0x8] sm:$0xff]
        %v6294 = vld [vmem:[%s474 + $0x10] sm:$0xff]
        %v6295 = vld [vmem:[%s474 + $0x18] sm:$0xff]
        %v6296 = vld [vmem:[%s474 + $0x20] sm:$0xff]
        %v6297 = vld [vmem:[%s474 + $0x28] sm:$0xff]
        %v6298 = vld [vmem:[%s474 + $0x30] sm:$0xff]
        %v6299 = vld [vmem:[%s474 + $0x38] sm:$0xff]
        %v6300 = vld [vmem:[%s474 + $0x40] sm:$0xff]
        %v6301 = vld [vmem:[%s474 + $0x48] sm:$0xff]
        %v6302 = vld [vmem:[%s474 + $0x50] sm:$0xff]
        %v6303 = vld [vmem:[%s474 + $0x58] sm:$0xff]
        %v6304 = vld [vmem:[%s474 + $0x60] sm:$0xff]
        %v6305 = vld [vmem:[%s474 + $0x68] sm:$0xff]
        %v6306 = vld [vmem:[%s474 + $0x70] sm:$0xff]
        %v6307 = vld [vmem:[%s474 + $0x78] sm:$0xff]
        %v6308 = vld [vmem:[%s474 + $0x80] sm:$0xff]
        %v6309 = vld [vmem:[%s474 + $0x88] sm:$0xff]
        %v6310 = vld [vmem:[%s474 + $0x90] sm:$0xff]
        %v6311 = vld [vmem:[%s474 + $0x98] sm:$0xff]
        %v6312 = vld [vmem:[%s474 + $0xa0] sm:$0xff]
        %v6313 = vld [vmem:[%s474 + $0xa8] sm:$0xff]
        %v6314 = vld [vmem:[%s474 + $0xb0] sm:$0xff]
        %v6315 = vld [vmem:[%s474 + $0xb8] sm:$0xff]
        %v6316 = vld [vmem:[%s474 + $0xc0] sm:$0xff]
        %v6317 = vld [vmem:[%s474 + $0xc8] sm:$0xff]
        %v6318 = vld [vmem:[%s474 + $0xd0] sm:$0xff]
        %v6319 = vld [vmem:[%s474 + $0xd8] sm:$0xff]
        %v6320 = vld [vmem:[%s474 + $0xe0] sm:$0xff]
        %v6321 = vld [vmem:[%s474 + $0xe8] sm:$0xff]
        %v6322 = vld [vmem:[%s474 + $0xf0] sm:$0xff]
        %v6323 = vld [vmem:[%s474 + $0xf8] sm:$0xff]
        %v6324 = vld [vmem:[%s474 + $0x100] sm:$0xff]
        %v6325 = vld [vmem:[%s474 + $0x108] sm:$0xff]
        %v6326 = vld [vmem:[%s474 + $0x110] sm:$0xff]
        %v6327 = vld [vmem:[%s474 + $0x118] sm:$0xff]
        %v6328 = vld [vmem:[%s474 + $0x120] sm:$0xff]
        %v6329 = vld [vmem:[%s474 + $0x128] sm:$0xff]
        %v6330 = vld [vmem:[%s474 + $0x130] sm:$0xff]
        %v6331 = vld [vmem:[%s474 + $0x138] sm:$0xff]
        %v6332 = vld [vmem:[%s474 + $0x140] sm:$0xff]
        %v6333 = vld [vmem:[%s474 + $0x148] sm:$0xff]
        %v6334 = vld [vmem:[%s474 + $0x150] sm:$0xff]
        %v6335 = vld [vmem:[%s474 + $0x158] sm:$0xff]
        %v6336 = vld [vmem:[%s474 + $0x160] sm:$0xff]
        %v6337 = vld [vmem:[%s474 + $0x168] sm:$0xff]
        %v6338 = vld [vmem:[%s474 + $0x170] sm:$0xff]
        %v6339 = vld [vmem:[%s474 + $0x178] sm:$0xff]
        %v6340 = vld [vmem:[%s474 + $0x180] sm:$0xff]
        %v6341 = vld [vmem:[%s474 + $0x188] sm:$0xff]
        %v6342 = vld [vmem:[%s474 + $0x190] sm:$0xff]
        %v6343 = vld [vmem:[%s474 + $0x198] sm:$0xff]
        %v6344 = vld [vmem:[%s474 + $0x1a0] sm:$0xff]
        %v6345 = vld [vmem:[%s474 + $0x1a8] sm:$0xff]
        %v6346 = vld [vmem:[%s474 + $0x1b0] sm:$0xff]
        %v6347 = vld [vmem:[%s474 + $0x1b8] sm:$0xff]
        %v6348 = vld [vmem:[%s474 + $0x1c0] sm:$0xff]
        %v6349 = vld [vmem:[%s474 + $0x1c8] sm:$0xff]
        %v6350 = vld [vmem:[%s474 + $0x1d0] sm:$0xff]
        %v6351 = vld [vmem:[%s474 + $0x1d8] sm:$0xff]
        %v6352 = vld [vmem:[%s474 + $0x1e0] sm:$0xff]
        %v6353 = vld [vmem:[%s474 + $0x1e8] sm:$0xff]
        %v6354 = vld [vmem:[%s474 + $0x1f0] sm:$0xff]
        %v6355 = vld [vmem:[%s474 + $0x1f8] sm:$0xff]
        %v6356 = vld [vmem:[%s474 + $0x200] sm:$0xff]
        %v6357 = vld [vmem:[%s474 + $0x208] sm:$0xff]
        %v6358 = vld [vmem:[%s474 + $0x210] sm:$0xff]
        %v6359 = vld [vmem:[%s474 + $0x218] sm:$0xff]
        %v6360 = vld [vmem:[%s474 + $0x220] sm:$0xff]
        %v6361 = vld [vmem:[%s474 + $0x228] sm:$0xff]
        %v6362 = vld [vmem:[%s474 + $0x230] sm:$0xff]
        %v6363 = vld [vmem:[%s474 + $0x238] sm:$0xff]
        %v6364 = vld [vmem:[%s474 + $0x240] sm:$0xff]
        %v6365 = vld [vmem:[%s474 + $0x248] sm:$0xff]
        %v6366 = vld [vmem:[%s474 + $0x250] sm:$0xff]
        %v6367 = vld [vmem:[%s474 + $0x258] sm:$0xff]
        %v6368 = vld [vmem:[%s474 + $0x260] sm:$0xff]
        %v6369 = vld [vmem:[%s474 + $0x268] sm:$0xff]
        %v6370 = vld [vmem:[%s474 + $0x270] sm:$0xff]
        %v6371 = vld [vmem:[%s474 + $0x278] sm:$0xff]
        %v6372 = vld [vmem:[%s474 + $0x280] sm:$0xff]
        %v6373 = vld [vmem:[%s474 + $0x288] sm:$0xff]
        %v6374 = vld [vmem:[%s474 + $0x290] sm:$0xff]
        %v6375 = vld [vmem:[%s474 + $0x298] sm:$0xff]
        %v6376 = vld [vmem:[%s474 + $0x2a0] sm:$0xff]
        %v6377 = vld [vmem:[%s474 + $0x2a8] sm:$0xff]
        %v6378 = vld [vmem:[%s474 + $0x2b0] sm:$0xff]
        %v6379 = vld [vmem:[%s474 + $0x2b8] sm:$0xff]
        %v6380 = vld [vmem:[%s474 + $0x2c0] sm:$0xff]
        %v6381 = vld [vmem:[%s474 + $0x2c8] sm:$0xff]
        %v6382 = vld [vmem:[%s474 + $0x2d0] sm:$0xff]
        %v6383 = vld [vmem:[%s474 + $0x2d8] sm:$0xff]
        %v6384 = vld [vmem:[%s474 + $0x2e0] sm:$0xff]
        %v6385 = vld [vmem:[%s474 + $0x2e8] sm:$0xff]
        %v6386 = vld [vmem:[%s474 + $0x2f0] sm:$0xff]
        %v6387 = vld [vmem:[%s474 + $0x2f8] sm:$0xff]
        %v6388 = vld [vmem:[%s474 + $0x300] sm:$0xff]
        %v6389 = vld [vmem:[%s474 + $0x308] sm:$0xff]
        %v6390 = vld [vmem:[%s474 + $0x310] sm:$0xff]
        %v6391 = vld [vmem:[%s474 + $0x318] sm:$0xff]
        %v6392 = vld [vmem:[%s474 + $0x320] sm:$0xff]
        %v6393 = vld [vmem:[%s474 + $0x328] sm:$0xff]
        %v6394 = vld [vmem:[%s474 + $0x330] sm:$0xff]
        %v6395 = vld [vmem:[%s474 + $0x338] sm:$0xff]
        %v6396 = vld [vmem:[%s474 + $0x340] sm:$0xff]
        %v6397 = vld [vmem:[%s474 + $0x348] sm:$0xff]
        %v6398 = vld [vmem:[%s474 + $0x350] sm:$0xff]
        %v6399 = vld [vmem:[%s474 + $0x358] sm:$0xff]
        %v6400 = vld [vmem:[%s474 + $0x360] sm:$0xff]
        %v6401 = vld [vmem:[%s474 + $0x368] sm:$0xff]
        %v6402 = vld [vmem:[%s474 + $0x370] sm:$0xff]
        %v6403 = vld [vmem:[%s474 + $0x378] sm:$0xff]
        %v6404 = vld [vmem:[%s474 + $0x380] sm:$0xff]
        %v6405 = vld [vmem:[%s474 + $0x388] sm:$0xff]
        %v6406 = vld [vmem:[%s474 + $0x390] sm:$0xff]
        %v6407 = vld [vmem:[%s474 + $0x398] sm:$0xff]
        %v6408 = vld [vmem:[%s474 + $0x3a0] sm:$0xff]
        %v6409 = vld [vmem:[%s474 + $0x3a8] sm:$0xff]
        %v6410 = vld [vmem:[%s474 + $0x3b0] sm:$0xff]
        %v6411 = vld [vmem:[%s474 + $0x3b8] sm:$0xff]
        %v6412 = vld [vmem:[%s474 + $0x3c0] sm:$0xff]
        %v6413 = vld [vmem:[%s474 + $0x3c8] sm:$0xff]
        %v6414 = vld [vmem:[%s474 + $0x3d0] sm:$0xff]
        %v6415 = vld [vmem:[%s474 + $0x3d8] sm:$0xff]
        %v6416 = vld [vmem:[%s474 + $0x3e0] sm:$0xff]
        %v6417 = vld [vmem:[%s474 + $0x3e8] sm:$0xff]
        %v6418 = vld [vmem:[%s474 + $0x3f0] sm:$0xff]
        %v6419 = vld [vmem:[%s474 + $0x3f8] sm:$0xff]
        %v6420 = vpack.c.bf16 %v6296, %v6292
        %v6421 = vpack.c.bf16 %v6297, %v6293
        %v6422 = vpack.c.bf16 %v6298, %v6294
        %v6423 = vpack.c.bf16 %v6299, %v6295
        %v6424 = vpack.c.bf16 %v6304, %v6300
        %v6425 = vpack.c.bf16 %v6305, %v6301
        %v6426 = vpack.c.bf16 %v6306, %v6302
        %v6427 = vpack.c.bf16 %v6307, %v6303
        %v6428 = vpack.c.bf16 %v6312, %v6308
        %v6429 = vpack.c.bf16 %v6313, %v6309
        %v6430 = vpack.c.bf16 %v6314, %v6310
        %v6431 = vpack.c.bf16 %v6315, %v6311
        %v6432 = vpack.c.bf16 %v6320, %v6316
        %v6433 = vpack.c.bf16 %v6321, %v6317
        %v6434 = vpack.c.bf16 %v6322, %v6318
        %v6435 = vpack.c.bf16 %v6323, %v6319
        %v6436 = vpack.c.bf16 %v6328, %v6324
        %v6437 = vpack.c.bf16 %v6329, %v6325
        %v6438 = vpack.c.bf16 %v6330, %v6326
        %v6439 = vpack.c.bf16 %v6331, %v6327
        %v6440 = vpack.c.bf16 %v6336, %v6332
        %v6441 = vpack.c.bf16 %v6337, %v6333
        %v6442 = vpack.c.bf16 %v6338, %v6334
        %v6443 = vpack.c.bf16 %v6339, %v6335
        %v6444 = vpack.c.bf16 %v6344, %v6340
        %v6445 = vpack.c.bf16 %v6345, %v6341
        %v6446 = vpack.c.bf16 %v6346, %v6342
        %v6447 = vpack.c.bf16 %v6347, %v6343
        %v6448 = vpack.c.bf16 %v6352, %v6348
        %v6449 = vpack.c.bf16 %v6353, %v6349
        %v6450 = vpack.c.bf16 %v6354, %v6350
        %v6451 = vpack.c.bf16 %v6355, %v6351
        %v6452 = vpack.c.bf16 %v6360, %v6356
        %v6453 = vpack.c.bf16 %v6361, %v6357
        %v6454 = vpack.c.bf16 %v6362, %v6358
        %v6455 = vpack.c.bf16 %v6363, %v6359
        %v6456 = vpack.c.bf16 %v6368, %v6364
        %v6457 = vpack.c.bf16 %v6369, %v6365
        %v6458 = vpack.c.bf16 %v6370, %v6366
        %v6459 = vpack.c.bf16 %v6371, %v6367
        %v6460 = vpack.c.bf16 %v6376, %v6372
        %v6461 = vpack.c.bf16 %v6377, %v6373
        %v6462 = vpack.c.bf16 %v6378, %v6374
        %v6463 = vpack.c.bf16 %v6379, %v6375
        %v6464 = vpack.c.bf16 %v6384, %v6380
        %v6465 = vpack.c.bf16 %v6385, %v6381
        %v6466 = vpack.c.bf16 %v6386, %v6382
        %v6467 = vpack.c.bf16 %v6387, %v6383
        %v6468 = vpack.c.bf16 %v6392, %v6388
        %v6469 = vpack.c.bf16 %v6393, %v6389
        %v6470 = vpack.c.bf16 %v6394, %v6390
        %v6471 = vpack.c.bf16 %v6395, %v6391
        %v6472 = vpack.c.bf16 %v6400, %v6396
        %v6473 = vpack.c.bf16 %v6401, %v6397
        %v6474 = vpack.c.bf16 %v6402, %v6398
        %v6475 = vpack.c.bf16 %v6403, %v6399
        %v6476 = vpack.c.bf16 %v6408, %v6404
        %v6477 = vpack.c.bf16 %v6409, %v6405
        %v6478 = vpack.c.bf16 %v6410, %v6406
        %v6479 = vpack.c.bf16 %v6411, %v6407
        %v6480 = vpack.c.bf16 %v6416, %v6412
        %v6481 = vpack.c.bf16 %v6417, %v6413
        %v6482 = vpack.c.bf16 %v6418, %v6414
        %v6483 = vpack.c.bf16 %v6419, %v6415
        %v6484 = vpack.c.bf16 %v5851, %v5844
        %v6485 = vpack.c.bf16 %v5852, %v5845
        %v6486 = vpack.c.bf16 %v5853, %v5846
        %v6487 = vpack.c.bf16 %v5854, %v5847
        %v6488 = vpack.c.bf16 %v5855, %v5848
        %v6489 = vpack.c.bf16 %v5856, %v5849
        %v6490 = vpack.c.bf16 %v5857, %v5850
        %v6491 = vpack.c.bf16 %v5865, %v5858
        %v6492 = vpack.c.bf16 %v5866, %v5859
        %v6493 = vpack.c.bf16 %v5867, %v5860
        %v6494 = vpack.c.bf16 %v5868, %v5861
        %v6495 = vpack.c.bf16 %v5869, %v5862
        %v6496 = vpack.c.bf16 %v5870, %v5863
        %v6497 = vpack.c.bf16 %v5871, %v5864
        %v6498 = vpack.c.bf16 %v5879, %v5872
        %v6499 = vpack.c.bf16 %v5880, %v5873
        %v6500 = vpack.c.bf16 %v5881, %v5874
        %v6501 = vpack.c.bf16 %v5882, %v5875
        %v6502 = vpack.c.bf16 %v5883, %v5876
        %v6503 = vpack.c.bf16 %v5884, %v5877
        %v6504 = vpack.c.bf16 %v5885, %v5878
        %v6505 = vpack.c.bf16 %v5893, %v5886
        %v6506 = vpack.c.bf16 %v5894, %v5887
        %v6507 = vpack.c.bf16 %v5895, %v5888
        %v6508 = vpack.c.bf16 %v5896, %v5889
        %v6509 = vpack.c.bf16 %v5897, %v5890
        %v6510 = vpack.c.bf16 %v5898, %v5891
        %v6511 = vpack.c.bf16 %v5899, %v5892
        %v6512 = vpack.c.bf16 %v5907, %v5900
        %v6513 = vpack.c.bf16 %v5908, %v5901
        %v6514 = vpack.c.bf16 %v5909, %v5902
        %v6515 = vpack.c.bf16 %v5910, %v5903
        %v6516 = vpack.c.bf16 %v5911, %v5904
        %v6517 = vpack.c.bf16 %v5912, %v5905
        %v6518 = vpack.c.bf16 %v5913, %v5906
        %v6519 = vpack.c.bf16 %v5921, %v5914
        %v6520 = vpack.c.bf16 %v5922, %v5915
        %v6521 = vpack.c.bf16 %v5923, %v5916
        %v6522 = vpack.c.bf16 %v5924, %v5917
        %v6523 = vpack.c.bf16 %v5925, %v5918
        %v6524 = vpack.c.bf16 %v5926, %v5919
        %v6525 = vpack.c.bf16 %v5927, %v5920
        %v6526 = vpack.c.bf16 %v5935, %v5928
        %v6527 = vpack.c.bf16 %v5936, %v5929
        %v6528 = vpack.c.bf16 %v5937, %v5930
        %v6529 = vpack.c.bf16 %v5938, %v5931
        %v6530 = vpack.c.bf16 %v5939, %v5932
        %v6531 = vpack.c.bf16 %v5940, %v5933
        %v6532 = vpack.c.bf16 %v5941, %v5934
        %v6533 = vpack.c.bf16 %v5949, %v5942
        %v6534 = vpack.c.bf16 %v5950, %v5943
        %v6535 = vpack.c.bf16 %v5951, %v5944
        %v6536 = vpack.c.bf16 %v5952, %v5945
        %v6537 = vpack.c.bf16 %v5953, %v5946
        %v6538 = vpack.c.bf16 %v5954, %v5947
        %v6539 = vpack.c.bf16 %v5955, %v5948
        %v6540 = vpack.c.bf16 %v5963, %v5956
        %v6541 = vpack.c.bf16 %v5964, %v5957
        %v6542 = vpack.c.bf16 %v5965, %v5958
        %v6543 = vpack.c.bf16 %v5966, %v5959
        %v6544 = vpack.c.bf16 %v5967, %v5960
        %v6545 = vpack.c.bf16 %v5968, %v5961
        %v6546 = vpack.c.bf16 %v5969, %v5962
        %v6547 = vpack.c.bf16 %v5977, %v5970
        %v6548 = vpack.c.bf16 %v5978, %v5971
        %v6549 = vpack.c.bf16 %v5979, %v5972
        %v6550 = vpack.c.bf16 %v5980, %v5973
        %v6551 = vpack.c.bf16 %v5981, %v5974
        %v6552 = vpack.c.bf16 %v5982, %v5975
        %v6553 = vpack.c.bf16 %v5983, %v5976
        %v6554 = vpack.c.bf16 %v5991, %v5984
        %v6555 = vpack.c.bf16 %v5992, %v5985
        %v6556 = vpack.c.bf16 %v5993, %v5986
        %v6557 = vpack.c.bf16 %v5994, %v5987
        %v6558 = vpack.c.bf16 %v5995, %v5988
        %v6559 = vpack.c.bf16 %v5996, %v5989
        %v6560 = vpack.c.bf16 %v5997, %v5990
        %v6561 = vpack.c.bf16 %v6005, %v5998
        %v6562 = vpack.c.bf16 %v6006, %v5999
        %v6563 = vpack.c.bf16 %v6007, %v6000
        %v6564 = vpack.c.bf16 %v6008, %v6001
        %v6565 = vpack.c.bf16 %v6009, %v6002
        %v6566 = vpack.c.bf16 %v6010, %v6003
        %v6567 = vpack.c.bf16 %v6011, %v6004
        %v6568 = vpack.c.bf16 %v6019, %v6012
        %v6569 = vpack.c.bf16 %v6020, %v6013
        %v6570 = vpack.c.bf16 %v6021, %v6014
        %v6571 = vpack.c.bf16 %v6022, %v6015
        %v6572 = vpack.c.bf16 %v6023, %v6016
        %v6573 = vpack.c.bf16 %v6024, %v6017
        %v6574 = vpack.c.bf16 %v6025, %v6018
        %v6575 = vpack.c.bf16 %v6033, %v6026
        %v6576 = vpack.c.bf16 %v6034, %v6027
        %v6577 = vpack.c.bf16 %v6035, %v6028
        %v6578 = vpack.c.bf16 %v6036, %v6029
        %v6579 = vpack.c.bf16 %v6037, %v6030
        %v6580 = vpack.c.bf16 %v6038, %v6031
        %v6581 = vpack.c.bf16 %v6039, %v6032
        %v6582 = vpack.c.bf16 %v6047, %v6040
        %v6583 = vpack.c.bf16 %v6048, %v6041
        %v6584 = vpack.c.bf16 %v6049, %v6042
        %v6585 = vpack.c.bf16 %v6050, %v6043
        %v6586 = vpack.c.bf16 %v6051, %v6044
        %v6587 = vpack.c.bf16 %v6052, %v6045
        %v6588 = vpack.c.bf16 %v6053, %v6046
        %v6589 = vpack.c.bf16 %v6061, %v6054
        %v6590 = vpack.c.bf16 %v6062, %v6055
        %v6591 = vpack.c.bf16 %v6063, %v6056
        %v6592 = vpack.c.bf16 %v6064, %v6057
        %v6593 = vpack.c.bf16 %v6065, %v6058
        %v6594 = vpack.c.bf16 %v6066, %v6059
        %v6595 = vpack.c.bf16 %v6067, %v6060
        %v6596 = vpack.c.bf16 %v6075, %v6068
        %v6597 = vpack.c.bf16 %v6076, %v6069
        %v6598 = vpack.c.bf16 %v6077, %v6070
        %v6599 = vpack.c.bf16 %v6078, %v6071
        %v6600 = vpack.c.bf16 %v6079, %v6072
        %v6601 = vpack.c.bf16 %v6080, %v6073
        %v6602 = vpack.c.bf16 %v6081, %v6074
        %v6603 = vpack.c.bf16 %v6089, %v6082
        %v6604 = vpack.c.bf16 %v6090, %v6083
        %v6605 = vpack.c.bf16 %v6091, %v6084
        %v6606 = vpack.c.bf16 %v6092, %v6085
        %v6607 = vpack.c.bf16 %v6093, %v6086
        %v6608 = vpack.c.bf16 %v6094, %v6087
        %v6609 = vpack.c.bf16 %v6095, %v6088
        %v6610 = vpack.c.bf16 %v6103, %v6096
        %v6611 = vpack.c.bf16 %v6104, %v6097
        %v6612 = vpack.c.bf16 %v6105, %v6098
        %v6613 = vpack.c.bf16 %v6106, %v6099
        %v6614 = vpack.c.bf16 %v6107, %v6100
        %v6615 = vpack.c.bf16 %v6108, %v6101
        %v6616 = vpack.c.bf16 %v6109, %v6102
        %v6617 = vpack.c.bf16 %v6117, %v6110
        %v6618 = vpack.c.bf16 %v6118, %v6111
        %v6619 = vpack.c.bf16 %v6119, %v6112
        %v6620 = vpack.c.bf16 %v6120, %v6113
        %v6621 = vpack.c.bf16 %v6121, %v6114
        %v6622 = vpack.c.bf16 %v6122, %v6115
        %v6623 = vpack.c.bf16 %v6123, %v6116
        %v6624 = vpack.c.bf16 %v6131, %v6124
        %v6625 = vpack.c.bf16 %v6132, %v6125
        %v6626 = vpack.c.bf16 %v6133, %v6126
        %v6627 = vpack.c.bf16 %v6134, %v6127
        %v6628 = vpack.c.bf16 %v6135, %v6128
        %v6629 = vpack.c.bf16 %v6136, %v6129
        %v6630 = vpack.c.bf16 %v6137, %v6130
        %v6631 = vpack.c.bf16 %v6145, %v6138
        %v6632 = vpack.c.bf16 %v6146, %v6139
        %v6633 = vpack.c.bf16 %v6147, %v6140
        %v6634 = vpack.c.bf16 %v6148, %v6141
        %v6635 = vpack.c.bf16 %v6149, %v6142
        %v6636 = vpack.c.bf16 %v6150, %v6143
        %v6637 = vpack.c.bf16 %v6151, %v6144
        %v6638 = vpack.c.bf16 %v6159, %v6152
        %v6639 = vpack.c.bf16 %v6160, %v6153
        %v6640 = vpack.c.bf16 %v6161, %v6154
        %v6641 = vpack.c.bf16 %v6162, %v6155
        %v6642 = vpack.c.bf16 %v6163, %v6156
        %v6643 = vpack.c.bf16 %v6164, %v6157
        %v6644 = vpack.c.bf16 %v6165, %v6158
        %v6645 = vpack.c.bf16 %v6173, %v6166
        %v6646 = vpack.c.bf16 %v6174, %v6167
        %v6647 = vpack.c.bf16 %v6175, %v6168
        %v6648 = vpack.c.bf16 %v6176, %v6169
        %v6649 = vpack.c.bf16 %v6177, %v6170
        %v6650 = vpack.c.bf16 %v6178, %v6171
        %v6651 = vpack.c.bf16 %v6179, %v6172
        %v6652 = vpack.c.bf16 %v6187, %v6180
        %v6653 = vpack.c.bf16 %v6188, %v6181
        %v6654 = vpack.c.bf16 %v6189, %v6182
        %v6655 = vpack.c.bf16 %v6190, %v6183
        %v6656 = vpack.c.bf16 %v6191, %v6184
        %v6657 = vpack.c.bf16 %v6192, %v6185
        %v6658 = vpack.c.bf16 %v6193, %v6186
        %v6659 = vpack.c.bf16 %v6201, %v6194
        %v6660 = vpack.c.bf16 %v6202, %v6195
        %v6661 = vpack.c.bf16 %v6203, %v6196
        %v6662 = vpack.c.bf16 %v6204, %v6197
        %v6663 = vpack.c.bf16 %v6205, %v6198
        %v6664 = vpack.c.bf16 %v6206, %v6199
        %v6665 = vpack.c.bf16 %v6207, %v6200
        %v6666 = vpack.c.bf16 %v6215, %v6208
        %v6667 = vpack.c.bf16 %v6216, %v6209
        %v6668 = vpack.c.bf16 %v6217, %v6210
        %v6669 = vpack.c.bf16 %v6218, %v6211
        %v6670 = vpack.c.bf16 %v6219, %v6212
        %v6671 = vpack.c.bf16 %v6220, %v6213
        %v6672 = vpack.c.bf16 %v6221, %v6214
        %v6673 = vpack.c.bf16 %v6229, %v6222
        %v6674 = vpack.c.bf16 %v6230, %v6223
        %v6675 = vpack.c.bf16 %v6231, %v6224
        %v6676 = vpack.c.bf16 %v6232, %v6225
        %v6677 = vpack.c.bf16 %v6233, %v6226
        %v6678 = vpack.c.bf16 %v6234, %v6227
        %v6679 = vpack.c.bf16 %v6235, %v6228
        %v6680 = vpack.c.bf16 %v6243, %v6236
        %v6681 = vpack.c.bf16 %v6244, %v6237
        %v6682 = vpack.c.bf16 %v6245, %v6238
        %v6683 = vpack.c.bf16 %v6246, %v6239
        %v6684 = vpack.c.bf16 %v6247, %v6240
        %v6685 = vpack.c.bf16 %v6248, %v6241
        %v6686 = vpack.c.bf16 %v6249, %v6242
        %v6687 = vpack.c.bf16 %v6257, %v6250
        %v6688 = vpack.c.bf16 %v6258, %v6251
        %v6689 = vpack.c.bf16 %v6259, %v6252
        %v6690 = vpack.c.bf16 %v6260, %v6253
        %v6691 = vpack.c.bf16 %v6261, %v6254
        %v6692 = vpack.c.bf16 %v6262, %v6255
        %v6693 = vpack.c.bf16 %v6263, %v6256
        %v6694 = vpack.c.bf16 %v6271, %v6264
        %v6695 = vpack.c.bf16 %v6272, %v6265
        %v6696 = vpack.c.bf16 %v6273, %v6266
        %v6697 = vpack.c.bf16 %v6274, %v6267
        %v6698 = vpack.c.bf16 %v6275, %v6268
        %v6699 = vpack.c.bf16 %v6276, %v6269
        %v6700 = vpack.c.bf16 %v6277, %v6270
        %v6701 = vpack.c.bf16 %v6285, %v6278
        %v6702 = vpack.c.bf16 %v6286, %v6279
        %v6703 = vpack.c.bf16 %v6287, %v6280
        %v6704 = vpack.c.bf16 %v6288, %v6281
        %v6705 = vpack.c.bf16 %v6289, %v6282
        %v6706 = vpack.c.bf16 %v6290, %v6283
        %v6707 = vpack.c.bf16 %v6291, %v6284
        %6708 = vmatprep.subr.bf16.mxu0 %v6485
        %6709 = vmatpush1.bf16.msra.mxu0 %v6484
        %6710 = vmatprep.subr.bf16.mxu0 %v6492
        %6711 = vmatpush1.bf16.msra.mxu0 %v6491
        %6712 = vmatprep.subr.bf16.mxu0 %v6499
        %6713 = vmatpush1.bf16.msra.mxu0 %v6498
        %6714 = vmatprep.subr.bf16.mxu0 %v6506
        %6715 = vmatpush1.bf16.msra.mxu0 %v6505
        %6716 = vmatprep.subr.bf16.mxu0 %v6513
        %6717 = vmatpush1.bf16.msra.mxu0 %v6512
        %6718 = vmatprep.subr.bf16.mxu0 %v6520
        %6719 = vmatpush1.bf16.msra.mxu0 %v6519
        %6720 = vmatprep.subr.bf16.mxu0 %v6527
        %6721 = vmatpush1.bf16.msra.mxu0 %v6526
        %6722 = vmatprep.subr.bf16.mxu0 %v6534
        %6723 = vmatpush1.bf16.msra.mxu0 %v6533
        %6724 = vmatprep.subr.bf16.mxu0 %v6541
        %6725 = vmatpush1.bf16.msra.mxu0 %v6540
        %6726 = vmatprep.subr.bf16.mxu0 %v6548
        %6727 = vmatpush1.bf16.msra.mxu0 %v6547
        %6728 = vmatprep.subr.bf16.mxu0 %v6555
        %6729 = vmatpush1.bf16.msra.mxu0 %v6554
        %6730 = vmatprep.subr.bf16.mxu0 %v6562
        %6731 = vmatpush1.bf16.msra.mxu0 %v6561
        %6732 = vmatprep.subr.bf16.mxu0 %v6569
        %6733 = vmatpush1.bf16.msra.mxu0 %v6568
        %6734 = vmatprep.subr.bf16.mxu0 %v6576
        %6735 = vmatpush1.bf16.msra.mxu0 %v6575
        %6736 = vmatprep.subr.bf16.mxu0 %v6583
        %6737 = vmatpush1.bf16.msra.mxu0 %v6582
        %6738 = vmatprep.subr.bf16.mxu0 %v6590
        %6739 = vmatpush1.bf16.msra.mxu0 %v6589
        %6740 = vmatprep.mubr.bf16.mxu0 %v6421
        %6741 = vmatmul.mubr.bf16.gmra.mrb[0].mxu0 %v6420
        %v6742 = vpop.f32.mrb[0].mxu0
        %v6743 = vadd.f32 0.0, %v6742
        %v6744 = vpop.f32.mrb[0].mxu0
        %v6745 = vadd.f32 0.0, %v6744
        %v6746 = vpop.f32.mrb[0].mxu0
        %v6747 = vadd.f32 0.0, %v6746
        %v6748 = vpop.f32.mrb[0].mxu0
        %v6749 = vadd.f32 0.0, %v6748
        %6750 = vmatprep.mubr.bf16.mxu0 %v6425
        %6751 = vmatmul.mubr.bf16.gmra.mrb[0].mxu0 %v6424
        %v6752 = vpop.f32.mrb[0].mxu0
        %v6753 = vadd.f32 0.0, %v6752
        %v6754 = vpop.f32.mrb[0].mxu0
        %v6755 = vadd.f32 0.0, %v6754
        %v6756 = vpop.f32.mrb[0].mxu0
        %v6757 = vadd.f32 0.0, %v6756
        %v6758 = vpop.f32.mrb[0].mxu0
        %v6759 = vadd.f32 0.0, %v6758
        %6760 = vmatprep.mubr.bf16.mxu0 %v6429
        %6761 = vmatmul.mubr.bf16.gmra.mrb[0].mxu0 %v6428
        %v6762 = vpop.f32.mrb[0].mxu0
        %v6763 = vadd.f32 0.0, %v6762
        %v6764 = vpop.f32.mrb[0].mxu0
        %v6765 = vadd.f32 0.0, %v6764
        %v6766 = vpop.f32.mrb[0].mxu0
        %v6767 = vadd.f32 0.0, %v6766
        %v6768 = vpop.f32.mrb[0].mxu0
        %v6769 = vadd.f32 0.0, %v6768
        %6770 = vmatprep.mubr.bf16.mxu0 %v6433
        %6771 = vmatmul.mubr.bf16.gmra.mrb[0].mxu0 %v6432
        %v6772 = vpop.f32.mrb[0].mxu0
        %v6773 = vadd.f32 0.0, %v6772
        %v6774 = vpop.f32.mrb[0].mxu0
        %v6775 = vadd.f32 0.0, %v6774
        %v6776 = vpop.f32.mrb[0].mxu0
        %v6777 = vadd.f32 0.0, %v6776
        %v6778 = vpop.f32.mrb[0].mxu0
        %v6779 = vadd.f32 0.0, %v6778
        %6780 = vmatprep.mubr.bf16.mxu0 %v6437
        %6781 = vmatmul.mubr.bf16.gmra.mrb[0].mxu0 %v6436
        %v6782 = vpop.f32.mrb[0].mxu0
        %v6783 = vadd.f32 0.0, %v6782
        %v6784 = vpop.f32.mrb[0].mxu0
        %v6785 = vadd.f32 0.0, %v6784
        %v6786 = vpop.f32.mrb[0].mxu0
        %v6787 = vadd.f32 0.0, %v6786
        %v6788 = vpop.f32.mrb[0].mxu0
        %v6789 = vadd.f32 0.0, %v6788
        %6790 = vmatprep.mubr.bf16.mxu0 %v6441
        %6791 = vmatmul.mubr.bf16.gmra.mrb[0].mxu0 %v6440
        %v6792 = vpop.f32.mrb[0].mxu0
        %v6793 = vadd.f32 0.0, %v6792
        %v6794 = vpop.f32.mrb[0].mxu0
        %v6795 = vadd.f32 0.0, %v6794
        %v6796 = vpop.f32.mrb[0].mxu0
        %v6797 = vadd.f32 0.0, %v6796
        %v6798 = vpop.f32.mrb[0].mxu0
        %v6799 = vadd.f32 0.0, %v6798
        %6800 = vmatprep.mubr.bf16.mxu0 %v6445
        %6801 = vmatmul.mubr.bf16.gmra.mrb[0].mxu0 %v6444
        %v6802 = vpop.f32.mrb[0].mxu0
        %v6803 = vadd.f32 0.0, %v6802
        %v6804 = vpop.f32.mrb[0].mxu0
        %v6805 = vadd.f32 0.0, %v6804
        %v6806 = vpop.f32.mrb[0].mxu0
        %v6807 = vadd.f32 0.0, %v6806
        %v6808 = vpop.f32.mrb[0].mxu0
        %v6809 = vadd.f32 0.0, %v6808
        %6810 = vmatprep.mubr.bf16.mxu0 %v6449
        %6811 = vmatmul.mubr.bf16.gmra.mrb[0].mxu0 %v6448
        %v6812 = vpop.f32.mrb[0].mxu0
        %v6813 = vadd.f32 0.0, %v6812
        %v6814 = vpop.f32.mrb[0].mxu0
        %v6815 = vadd.f32 0.0, %v6814
        %v6816 = vpop.f32.mrb[0].mxu0
        %v6817 = vadd.f32 0.0, %v6816
        %v6818 = vpop.f32.mrb[0].mxu0
        %v6819 = vadd.f32 0.0, %v6818
        %6820 = vmatprep.mubr.bf16.mxu0 %v6453
        %6821 = vmatmul.mubr.bf16.gmra.mrb[0].mxu0 %v6452
        %v6822 = vpop.f32.mrb[0].mxu0
        %v6823 = vadd.f32 0.0, %v6822
        %v6824 = vpop.f32.mrb[0].mxu0
        %v6825 = vadd.f32 0.0, %v6824
        %v6826 = vpop.f32.mrb[0].mxu0
        %v6827 = vadd.f32 0.0, %v6826
        %v6828 = vpop.f32.mrb[0].mxu0
        %v6829 = vadd.f32 0.0, %v6828
        %6830 = vmatprep.mubr.bf16.mxu0 %v6457
        %6831 = vmatmul.mubr.bf16.gmra.mrb[0].mxu0 %v6456
        %v6832 = vpop.f32.mrb[0].mxu0
        %v6833 = vadd.f32 0.0, %v6832
        %v6834 = vpop.f32.mrb[0].mxu0
        %v6835 = vadd.f32 0.0, %v6834
        %v6836 = vpop.f32.mrb[0].mxu0
        %v6837 = vadd.f32 0.0, %v6836
        %v6838 = vpop.f32.mrb[0].mxu0
        %v6839 = vadd.f32 0.0, %v6838
        %6840 = vmatprep.mubr.bf16.mxu0 %v6461
        %6841 = vmatmul.mubr.bf16.gmra.mrb[0].mxu0 %v6460
        %v6842 = vpop.f32.mrb[0].mxu0
        %v6843 = vadd.f32 0.0, %v6842
        %v6844 = vpop.f32.mrb[0].mxu0
        %v6845 = vadd.f32 0.0, %v6844
        %v6846 = vpop.f32.mrb[0].mxu0
        %v6847 = vadd.f32 0.0, %v6846
        %v6848 = vpop.f32.mrb[0].mxu0
        %v6849 = vadd.f32 0.0, %v6848
        %6850 = vmatprep.mubr.bf16.mxu0 %v6465
        %6851 = vmatmul.mubr.bf16.gmra.mrb[0].mxu0 %v6464
        %v6852 = vpop.f32.mrb[0].mxu0
        %v6853 = vadd.f32 0.0, %v6852
        %v6854 = vpop.f32.mrb[0].mxu0
        %v6855 = vadd.f32 0.0, %v6854
        %v6856 = vpop.f32.mrb[0].mxu0
        %v6857 = vadd.f32 0.0, %v6856
        %v6858 = vpop.f32.mrb[0].mxu0
        %v6859 = vadd.f32 0.0, %v6858
        %6860 = vmatprep.mubr.bf16.mxu0 %v6469
        %6861 = vmatmul.mubr.bf16.gmra.mrb[0].mxu0 %v6468
        %v6862 = vpop.f32.mrb[0].mxu0
        %v6863 = vadd.f32 0.0, %v6862
        %v6864 = vpop.f32.mrb[0].mxu0
        %v6865 = vadd.f32 0.0, %v6864
        %v6866 = vpop.f32.mrb[0].mxu0
        %v6867 = vadd.f32 0.0, %v6866
        %v6868 = vpop.f32.mrb[0].mxu0
        %v6869 = vadd.f32 0.0, %v6868
        %6870 = vmatprep.mubr.bf16.mxu0 %v6473
        %6871 = vmatmul.mubr.bf16.gmra.mrb[0].mxu0 %v6472
        %v6872 = vpop.f32.mrb[0].mxu0
        %v6873 = vadd.f32 0.0, %v6872
        %v6874 = vpop.f32.mrb[0].mxu0
        %v6875 = vadd.f32 0.0, %v6874
        %v6876 = vpop.f32.mrb[0].mxu0
        %v6877 = vadd.f32 0.0, %v6876
        %v6878 = vpop.f32.mrb[0].mxu0
        %v6879 = vadd.f32 0.0, %v6878
        %6880 = vmatprep.mubr.bf16.mxu0 %v6477
        %6881 = vmatmul.mubr.bf16.gmra.mrb[0].mxu0 %v6476
        %v6882 = vpop.f32.mrb[0].mxu0
        %v6883 = vadd.f32 0.0, %v6882
        %v6884 = vpop.f32.mrb[0].mxu0
        %v6885 = vadd.f32 0.0, %v6884
        %v6886 = vpop.f32.mrb[0].mxu0
        %v6887 = vadd.f32 0.0, %v6886
        %v6888 = vpop.f32.mrb[0].mxu0
        %v6889 = vadd.f32 0.0, %v6888
        %6890 = vmatprep.mubr.bf16.mxu0 %v6481
        %6891 = vmatmul.mubr.bf16.gmra.mrb[0].mxu0 %v6480
        %v6892 = vpop.f32.mrb[0].mxu0
        %v6893 = vadd.f32 0.0, %v6892
        %v6894 = vpop.f32.mrb[0].mxu0
        %v6895 = vadd.f32 0.0, %v6894
        %v6896 = vpop.f32.mrb[0].mxu0
        %v6897 = vadd.f32 0.0, %v6896
        %v6898 = vpop.f32.mrb[0].mxu0
        %v6899 = vadd.f32 0.0, %v6898
        %6900 = vdwg.mxu0
        %6901 = vmatprep.subr.bf16.mxu0 %v6597
        %6902 = vmatpush1.bf16.msra.mxu0 %v6596
        %6903 = vmatprep.subr.bf16.mxu0 %v6604
        %6904 = vmatpush1.bf16.msra.mxu0 %v6603
        %6905 = vmatprep.subr.bf16.mxu0 %v6611
        %6906 = vmatpush1.bf16.msra.mxu0 %v6610
        %6907 = vmatprep.subr.bf16.mxu0 %v6618
        %6908 = vmatpush1.bf16.msra.mxu0 %v6617
        %6909 = vmatprep.subr.bf16.mxu0 %v6625
        %6910 = vmatpush1.bf16.msra.mxu0 %v6624
        %6911 = vmatprep.subr.bf16.mxu0 %v6632
        %6912 = vmatpush1.bf16.msra.mxu0 %v6631
        %6913 = vmatprep.subr.bf16.mxu0 %v6639
        %6914 = vmatpush1.bf16.msra.mxu0 %v6638
        %6915 = vmatprep.subr.bf16.mxu0 %v6646
        %6916 = vmatpush1.bf16.msra.mxu0 %v6645
        %6917 = vmatprep.subr.bf16.mxu0 %v6653
        %6918 = vmatpush1.bf16.msra.mxu0 %v6652
        %6919 = vmatprep.subr.bf16.mxu0 %v6660
        %6920 = vmatpush1.bf16.msra.mxu0 %v6659
        %6921 = vmatprep.subr.bf16.mxu0 %v6667
        %6922 = vmatpush1.bf16.msra.mxu0 %v6666
        %6923 = vmatprep.subr.bf16.mxu0 %v6674
        %6924 = vmatpush1.bf16.msra.mxu0 %v6673
        %6925 = vmatprep.subr.bf16.mxu0 %v6681
        %6926 = vmatpush1.bf16.msra.mxu0 %v6680
        %6927 = vmatprep.subr.bf16.mxu0 %v6688
        %6928 = vmatpush1.bf16.msra.mxu0 %v6687
        %6929 = vmatprep.subr.bf16.mxu0 %v6695
        %6930 = vmatpush1.bf16.msra.mxu0 %v6694
        %6931 = vmatprep.subr.bf16.mxu0 %v6702
        %6932 = vmatpush1.bf16.msra.mxu0 %v6701
        %6933 = vmatprep.mubr.bf16.mxu0 %v6423
        %6934 = vmatmul.mubr.bf16.gmra.mrb[0].mxu0 %v6422
        %v6935 = vpop.f32.mrb[0].mxu0
        %v6936 = vadd.f32 %v6743, %v6935
        %v6937 = vpop.f32.mrb[0].mxu0
        %v6938 = vadd.f32 %v6745, %v6937
        %v6939 = vpop.f32.mrb[0].mxu0
        %v6940 = vadd.f32 %v6747, %v6939
        %v6941 = vpop.f32.mrb[0].mxu0
        %v6942 = vadd.f32 %v6749, %v6941
        %6943 = vmatprep.mubr.bf16.mxu0 %v6427
        %6944 = vmatmul.mubr.bf16.gmra.mrb[0].mxu0 %v6426
        %v6945 = vpop.f32.mrb[0].mxu0
        %v6946 = vadd.f32 %v6753, %v6945
        %v6947 = vpop.f32.mrb[0].mxu0
        %v6948 = vadd.f32 %v6755, %v6947
        %v6949 = vpop.f32.mrb[0].mxu0
        %v6950 = vadd.f32 %v6757, %v6949
        %v6951 = vpop.f32.mrb[0].mxu0
        %v6952 = vadd.f32 %v6759, %v6951
        %6953 = vmatprep.mubr.bf16.mxu0 %v6431
        %6954 = vmatmul.mubr.bf16.gmra.mrb[0].mxu0 %v6430
        %v6955 = vpop.f32.mrb[0].mxu0
        %v6956 = vadd.f32 %v6763, %v6955
        %v6957 = vpop.f32.mrb[0].mxu0
        %v6958 = vadd.f32 %v6765, %v6957
        %v6959 = vpop.f32.mrb[0].mxu0
        %v6960 = vadd.f32 %v6767, %v6959
        %v6961 = vpop.f32.mrb[0].mxu0
        %v6962 = vadd.f32 %v6769, %v6961
        %6963 = vmatprep.mubr.bf16.mxu0 %v6435
        %6964 = vmatmul.mubr.bf16.gmra.mrb[0].mxu0 %v6434
        %v6965 = vpop.f32.mrb[0].mxu0
        %v6966 = vadd.f32 %v6773, %v6965
        %v6967 = vpop.f32.mrb[0].mxu0
        %v6968 = vadd.f32 %v6775, %v6967
        %v6969 = vpop.f32.mrb[0].mxu0
        %v6970 = vadd.f32 %v6777, %v6969
        %v6971 = vpop.f32.mrb[0].mxu0
        %v6972 = vadd.f32 %v6779, %v6971
        %6973 = vmatprep.mubr.bf16.mxu0 %v6439
        %6974 = vmatmul.mubr.bf16.gmra.mrb[0].mxu0 %v6438
        %v6975 = vpop.f32.mrb[0].mxu0
        %v6976 = vadd.f32 %v6783, %v6975
        %v6977 = vpop.f32.mrb[0].mxu0
        %v6978 = vadd.f32 %v6785, %v6977
        %v6979 = vpop.f32.mrb[0].mxu0
        %v6980 = vadd.f32 %v6787, %v6979
        %v6981 = vpop.f32.mrb[0].mxu0
        %v6982 = vadd.f32 %v6789, %v6981
        %6983 = vmatprep.mubr.bf16.mxu0 %v6443
        %6984 = vmatmul.mubr.bf16.gmra.mrb[0].mxu0 %v6442
        %v6985 = vpop.f32.mrb[0].mxu0
        %v6986 = vadd.f32 %v6793, %v6985
        %v6987 = vpop.f32.mrb[0].mxu0
        %v6988 = vadd.f32 %v6795, %v6987
        %v6989 = vpop.f32.mrb[0].mxu0
        %v6990 = vadd.f32 %v6797, %v6989
        %v6991 = vpop.f32.mrb[0].mxu0
        %v6992 = vadd.f32 %v6799, %v6991
        %6993 = vmatprep.mubr.bf16.mxu0 %v6447
        %6994 = vmatmul.mubr.bf16.gmra.mrb[0].mxu0 %v6446
        %v6995 = vpop.f32.mrb[0].mxu0
        %v6996 = vadd.f32 %v6803, %v6995
        %v6997 = vpop.f32.mrb[0].mxu0
        %v6998 = vadd.f32 %v6805, %v6997
        %v6999 = vpop.f32.mrb[0].mxu0
        %v7000 = vadd.f32 %v6807, %v6999
        %v7001 = vpop.f32.mrb[0].mxu0
        %v7002 = vadd.f32 %v6809, %v7001
        %7003 = vmatprep.mubr.bf16.mxu0 %v6451
        %7004 = vmatmul.mubr.bf16.gmra.mrb[0].mxu0 %v6450
        %v7005 = vpop.f32.mrb[0].mxu0
        %v7006 = vadd.f32 %v6813, %v7005
        %v7007 = vpop.f32.mrb[0].mxu0
        %v7008 = vadd.f32 %v6815, %v7007
        %v7009 = vpop.f32.mrb[0].mxu0
        %v7010 = vadd.f32 %v6817, %v7009
        %v7011 = vpop.f32.mrb[0].mxu0
        %v7012 = vadd.f32 %v6819, %v7011
        %7013 = vmatprep.mubr.bf16.mxu0 %v6455
        %7014 = vmatmul.mubr.bf16.gmra.mrb[0].mxu0 %v6454
        %v7015 = vpop.f32.mrb[0].mxu0
        %v7016 = vadd.f32 %v6823, %v7015
        %v7017 = vpop.f32.mrb[0].mxu0
        %v7018 = vadd.f32 %v6825, %v7017
        %v7019 = vpop.f32.mrb[0].mxu0
        %v7020 = vadd.f32 %v6827, %v7019
        %v7021 = vpop.f32.mrb[0].mxu0
        %v7022 = vadd.f32 %v6829, %v7021
        %7023 = vmatprep.mubr.bf16.mxu0 %v6459
        %7024 = vmatmul.mubr.bf16.gmra.mrb[0].mxu0 %v6458
        %v7025 = vpop.f32.mrb[0].mxu0
        %v7026 = vadd.f32 %v6833, %v7025
        %v7027 = vpop.f32.mrb[0].mxu0
        %v7028 = vadd.f32 %v6835, %v7027
        %v7029 = vpop.f32.mrb[0].mxu0
        %v7030 = vadd.f32 %v6837, %v7029
        %v7031 = vpop.f32.mrb[0].mxu0
        %v7032 = vadd.f32 %v6839, %v7031
        %7033 = vmatprep.mubr.bf16.mxu0 %v6463
        %7034 = vmatmul.mubr.bf16.gmra.mrb[0].mxu0 %v6462
        %v7035 = vpop.f32.mrb[0].mxu0
        %v7036 = vadd.f32 %v6843, %v7035
        %v7037 = vpop.f32.mrb[0].mxu0
        %v7038 = vadd.f32 %v6845, %v7037
        %v7039 = vpop.f32.mrb[0].mxu0
        %v7040 = vadd.f32 %v6847, %v7039
        %v7041 = vpop.f32.mrb[0].mxu0
        %v7042 = vadd.f32 %v6849, %v7041
        %7043 = vmatprep.mubr.bf16.mxu0 %v6467
        %7044 = vmatmul.mubr.bf16.gmra.mrb[0].mxu0 %v6466
        %v7045 = vpop.f32.mrb[0].mxu0
        %v7046 = vadd.f32 %v6853, %v7045
        %v7047 = vpop.f32.mrb[0].mxu0
        %v7048 = vadd.f32 %v6855, %v7047
        %v7049 = vpop.f32.mrb[0].mxu0
        %v7050 = vadd.f32 %v6857, %v7049
        %v7051 = vpop.f32.mrb[0].mxu0
        %v7052 = vadd.f32 %v6859, %v7051
        %7053 = vmatprep.mubr.bf16.mxu0 %v6471
        %7054 = vmatmul.mubr.bf16.gmra.mrb[0].mxu0 %v6470
        %v7055 = vpop.f32.mrb[0].mxu0
        %v7056 = vadd.f32 %v6863, %v7055
        %v7057 = vpop.f32.mrb[0].mxu0
        %v7058 = vadd.f32 %v6865, %v7057
        %v7059 = vpop.f32.mrb[0].mxu0
        %v7060 = vadd.f32 %v6867, %v7059
        %v7061 = vpop.f32.mrb[0].mxu0
        %v7062 = vadd.f32 %v6869, %v7061
        %7063 = vmatprep.mubr.bf16.mxu0 %v6475
        %7064 = vmatmul.mubr.bf16.gmra.mrb[0].mxu0 %v6474
        %v7065 = vpop.f32.mrb[0].mxu0
        %v7066 = vadd.f32 %v6873, %v7065
        %v7067 = vpop.f32.mrb[0].mxu0
        %v7068 = vadd.f32 %v6875, %v7067
        %v7069 = vpop.f32.mrb[0].mxu0
        %v7070 = vadd.f32 %v6877, %v7069
        %v7071 = vpop.f32.mrb[0].mxu0
        %v7072 = vadd.f32 %v6879, %v7071
        %7073 = vmatprep.mubr.bf16.mxu0 %v6479
        %7074 = vmatmul.mubr.bf16.gmra.mrb[0].mxu0 %v6478
        %v7075 = vpop.f32.mrb[0].mxu0
        %v7076 = vadd.f32 %v6883, %v7075
        %v7077 = vpop.f32.mrb[0].mxu0
        %v7078 = vadd.f32 %v6885, %v7077
        %v7079 = vpop.f32.mrb[0].mxu0
        %v7080 = vadd.f32 %v6887, %v7079
        %v7081 = vpop.f32.mrb[0].mxu0
        %v7082 = vadd.f32 %v6889, %v7081
        %7083 = vmatprep.mubr.bf16.mxu0 %v6483
        %7084 = vmatmul.mubr.bf16.gmra.mrb[0].mxu0 %v6482
        %v7085 = vpop.f32.mrb[0].mxu0
        %v7086 = vadd.f32 %v6893, %v7085
        %v7087 = vpop.f32.mrb[0].mxu0
        %v7088 = vadd.f32 %v6895, %v7087
        %v7089 = vpop.f32.mrb[0].mxu0
        %v7090 = vadd.f32 %v6897, %v7089
        %v7091 = vpop.f32.mrb[0].mxu0
        %v7092 = vadd.f32 %v6899, %v7091
        %7093 = vdwg.mxu0
        %7094 = vmatprep.subr.bf16.mxu0 %v6487
        %7095 = vmatpush1.bf16.msra.mxu0 %v6486
        %7096 = vmatprep.subr.bf16.mxu0 %v6494
        %7097 = vmatpush1.bf16.msra.mxu0 %v6493
        %7098 = vmatprep.subr.bf16.mxu0 %v6501
        %7099 = vmatpush1.bf16.msra.mxu0 %v6500
        %7100 = vmatprep.subr.bf16.mxu0 %v6508
        %7101 = vmatpush1.bf16.msra.mxu0 %v6507
        %7102 = vmatprep.subr.bf16.mxu0 %v6515
        %7103 = vmatpush1.bf16.msra.mxu0 %v6514
        %7104 = vmatprep.subr.bf16.mxu0 %v6522
        %7105 = vmatpush1.bf16.msra.mxu0 %v6521
        %7106 = vmatprep.subr.bf16.mxu0 %v6529
        %7107 = vmatpush1.bf16.msra.mxu0 %v6528
        %7108 = vmatprep.subr.bf16.mxu0 %v6536
        %7109 = vmatpush1.bf16.msra.mxu0 %v6535
        %7110 = vmatprep.subr.bf16.mxu0 %v6543
        %7111 = vmatpush1.bf16.msra.mxu0 %v6542
        %7112 = vmatprep.subr.bf16.mxu0 %v6550
        %7113 = vmatpush1.bf16.msra.mxu0 %v6549
        %7114 = vmatprep.subr.bf16.mxu0 %v6557
        %7115 = vmatpush1.bf16.msra.mxu0 %v6556
        %7116 = vmatprep.subr.bf16.mxu0 %v6564
        %7117 = vmatpush1.bf16.msra.mxu0 %v6563
        %7118 = vmatprep.subr.bf16.mxu0 %v6571
        %7119 = vmatpush1.bf16.msra.mxu0 %v6570
        %7120 = vmatprep.subr.bf16.mxu0 %v6578
        %7121 = vmatpush1.bf16.msra.mxu0 %v6577
        %7122 = vmatprep.subr.bf16.mxu0 %v6585
        %7123 = vmatpush1.bf16.msra.mxu0 %v6584
        %7124 = vmatprep.subr.bf16.mxu0 %v6592
        %7125 = vmatpush1.bf16.msra.mxu0 %v6591
        %7126 = vmatprep.mubr.bf16.mxu0 %v6421
        %7127 = vmatmul.mubr.bf16.gmra.mrb[0].mxu0 %v6420
        %v7128 = vpop.f32.mrb[0].mxu0
        %v7129 = vadd.f32 0.0, %v7128
        %v7130 = vpop.f32.mrb[0].mxu0
        %v7131 = vadd.f32 0.0, %v7130
        %v7132 = vpop.f32.mrb[0].mxu0
        %v7133 = vadd.f32 0.0, %v7132
        %v7134 = vpop.f32.mrb[0].mxu0
        %v7135 = vadd.f32 0.0, %v7134
        %7136 = vmatprep.mubr.bf16.mxu0 %v6425
        %7137 = vmatmul.mubr.bf16.gmra.mrb[0].mxu0 %v6424
        %v7138 = vpop.f32.mrb[0].mxu0
        %v7139 = vadd.f32 0.0, %v7138
        %v7140 = vpop.f32.mrb[0].mxu0
        %v7141 = vadd.f32 0.0, %v7140
        %v7142 = vpop.f32.mrb[0].mxu0
        %v7143 = vadd.f32 0.0, %v7142
        %v7144 = vpop.f32.mrb[0].mxu0
        %v7145 = vadd.f32 0.0, %v7144
        %7146 = vmatprep.mubr.bf16.mxu0 %v6429
        %7147 = vmatmul.mubr.bf16.gmra.mrb[0].mxu0 %v6428
        %v7148 = vpop.f32.mrb[0].mxu0
        %v7149 = vadd.f32 0.0, %v7148
        %v7150 = vpop.f32.mrb[0].mxu0
        %v7151 = vadd.f32 0.0, %v7150
        %v7152 = vpop.f32.mrb[0].mxu0
        %v7153 = vadd.f32 0.0, %v7152
        %v7154 = vpop.f32.mrb[0].mxu0
        %v7155 = vadd.f32 0.0, %v7154
        %7156 = vmatprep.mubr.bf16.mxu0 %v6433
        %7157 = vmatmul.mubr.bf16.gmra.mrb[0].mxu0 %v6432
        %v7158 = vpop.f32.mrb[0].mxu0
        %v7159 = vadd.f32 0.0, %v7158
        %v7160 = vpop.f32.mrb[0].mxu0
        %v7161 = vadd.f32 0.0, %v7160
        %v7162 = vpop.f32.mrb[0].mxu0
        %v7163 = vadd.f32 0.0, %v7162
        %v7164 = vpop.f32.mrb[0].mxu0
        %v7165 = vadd.f32 0.0, %v7164
        %7166 = vmatprep.mubr.bf16.mxu0 %v6437
        %7167 = vmatmul.mubr.bf16.gmra.mrb[0].mxu0 %v6436
        %v7168 = vpop.f32.mrb[0].mxu0
        %v7169 = vadd.f32 0.0, %v7168
        %v7170 = vpop.f32.mrb[0].mxu0
        %v7171 = vadd.f32 0.0, %v7170
        %v7172 = vpop.f32.mrb[0].mxu0
        %v7173 = vadd.f32 0.0, %v7172
        %v7174 = vpop.f32.mrb[0].mxu0
        %v7175 = vadd.f32 0.0, %v7174
        %7176 = vmatprep.mubr.bf16.mxu0 %v6441
        %7177 = vmatmul.mubr.bf16.gmra.mrb[0].mxu0 %v6440
        %v7178 = vpop.f32.mrb[0].mxu0
        %v7179 = vadd.f32 0.0, %v7178
        %v7180 = vpop.f32.mrb[0].mxu0
        %v7181 = vadd.f32 0.0, %v7180
        %v7182 = vpop.f32.mrb[0].mxu0
        %v7183 = vadd.f32 0.0, %v7182
        %v7184 = vpop.f32.mrb[0].mxu0
        %v7185 = vadd.f32 0.0, %v7184
        %7186 = vmatprep.mubr.bf16.mxu0 %v6445
        %7187 = vmatmul.mubr.bf16.gmra.mrb[0].mxu0 %v6444
        %v7188 = vpop.f32.mrb[0].mxu0
        %v7189 = vadd.f32 0.0, %v7188
        %v7190 = vpop.f32.mrb[0].mxu0
        %v7191 = vadd.f32 0.0, %v7190
        %v7192 = vpop.f32.mrb[0].mxu0
        %v7193 = vadd.f32 0.0, %v7192
        %v7194 = vpop.f32.mrb[0].mxu0
        %v7195 = vadd.f32 0.0, %v7194
        %7196 = vmatprep.mubr.bf16.mxu0 %v6449
        %7197 = vmatmul.mubr.bf16.gmra.mrb[0].mxu0 %v6448
        %v7198 = vpop.f32.mrb[0].mxu0
        %v7199 = vadd.f32 0.0, %v7198
        %v7200 = vpop.f32.mrb[0].mxu0
        %v7201 = vadd.f32 0.0, %v7200
        %v7202 = vpop.f32.mrb[0].mxu0
        %v7203 = vadd.f32 0.0, %v7202
        %v7204 = vpop.f32.mrb[0].mxu0
        %v7205 = vadd.f32 0.0, %v7204
        %7206 = vmatprep.mubr.bf16.mxu0 %v6453
        %7207 = vmatmul.mubr.bf16.gmra.mrb[0].mxu0 %v6452
        %v7208 = vpop.f32.mrb[0].mxu0
        %v7209 = vadd.f32 0.0, %v7208
        %v7210 = vpop.f32.mrb[0].mxu0
        %v7211 = vadd.f32 0.0, %v7210
        %v7212 = vpop.f32.mrb[0].mxu0
        %v7213 = vadd.f32 0.0, %v7212
        %v7214 = vpop.f32.mrb[0].mxu0
        %v7215 = vadd.f32 0.0, %v7214
        %7216 = vmatprep.mubr.bf16.mxu0 %v6457
        %7217 = vmatmul.mubr.bf16.gmra.mrb[0].mxu0 %v6456
        %v7218 = vpop.f32.mrb[0].mxu0
        %v7219 = vadd.f32 0.0, %v7218
        %v7220 = vpop.f32.mrb[0].mxu0
        %v7221 = vadd.f32 0.0, %v7220
        %v7222 = vpop.f32.mrb[0].mxu0
        %v7223 = vadd.f32 0.0, %v7222
        %v7224 = vpop.f32.mrb[0].mxu0
        %v7225 = vadd.f32 0.0, %v7224
        %7226 = vmatprep.mubr.bf16.mxu0 %v6461
        %7227 = vmatmul.mubr.bf16.gmra.mrb[0].mxu0 %v6460
        %v7228 = vpop.f32.mrb[0].mxu0
        %v7229 = vadd.f32 0.0, %v7228
        %v7230 = vpop.f32.mrb[0].mxu0
        %v7231 = vadd.f32 0.0, %v7230
        %v7232 = vpop.f32.mrb[0].mxu0
        %v7233 = vadd.f32 0.0, %v7232
        %v7234 = vpop.f32.mrb[0].mxu0
        %v7235 = vadd.f32 0.0, %v7234
        %7236 = vmatprep.mubr.bf16.mxu0 %v6465
        %7237 = vmatmul.mubr.bf16.gmra.mrb[0].mxu0 %v6464
        %v7238 = vpop.f32.mrb[0].mxu0
        %v7239 = vadd.f32 0.0, %v7238
        %v7240 = vpop.f32.mrb[0].mxu0
        %v7241 = vadd.f32 0.0, %v7240
        %v7242 = vpop.f32.mrb[0].mxu0
        %v7243 = vadd.f32 0.0, %v7242
        %v7244 = vpop.f32.mrb[0].mxu0
        %v7245 = vadd.f32 0.0, %v7244
        %7246 = vmatprep.mubr.bf16.mxu0 %v6469
        %7247 = vmatmul.mubr.bf16.gmra.mrb[0].mxu0 %v6468
        %v7248 = vpop.f32.mrb[0].mxu0
        %v7249 = vadd.f32 0.0, %v7248
        %v7250 = vpop.f32.mrb[0].mxu0
        %v7251 = vadd.f32 0.0, %v7250
        %v7252 = vpop.f32.mrb[0].mxu0
        %v7253 = vadd.f32 0.0, %v7252
        %v7254 = vpop.f32.mrb[0].mxu0
        %v7255 = vadd.f32 0.0, %v7254
        %7256 = vmatprep.mubr.bf16.mxu0 %v6473
        %7257 = vmatmul.mubr.bf16.gmra.mrb[0].mxu0 %v6472
        %v7258 = vpop.f32.mrb[0].mxu0
        %v7259 = vadd.f32 0.0, %v7258
        %v7260 = vpop.f32.mrb[0].mxu0
        %v7261 = vadd.f32 0.0, %v7260
        %v7262 = vpop.f32.mrb[0].mxu0
        %v7263 = vadd.f32 0.0, %v7262
        %v7264 = vpop.f32.mrb[0].mxu0
        %v7265 = vadd.f32 0.0, %v7264
        %7266 = vmatprep.mubr.bf16.mxu0 %v6477
        %7267 = vmatmul.mubr.bf16.gmra.mrb[0].mxu0 %v6476
        %v7268 = vpop.f32.mrb[0].mxu0
        %v7269 = vadd.f32 0.0, %v7268
        %v7270 = vpop.f32.mrb[0].mxu0
        %v7271 = vadd.f32 0.0, %v7270
        %v7272 = vpop.f32.mrb[0].mxu0
        %v7273 = vadd.f32 0.0, %v7272
        %v7274 = vpop.f32.mrb[0].mxu0
        %v7275 = vadd.f32 0.0, %v7274
        %7276 = vmatprep.mubr.bf16.mxu0 %v6481
        %7277 = vmatmul.mubr.bf16.gmra.mrb[0].mxu0 %v6480
        %v7278 = vpop.f32.mrb[0].mxu0
        %v7279 = vadd.f32 0.0, %v7278
        %v7280 = vpop.f32.mrb[0].mxu0
        %v7281 = vadd.f32 0.0, %v7280
        %v7282 = vpop.f32.mrb[0].mxu0
        %v7283 = vadd.f32 0.0, %v7282
        %v7284 = vpop.f32.mrb[0].mxu0
        %v7285 = vadd.f32 0.0, %v7284
        %7286 = vdwg.mxu0
        %7287 = vmatprep.subr.bf16.mxu0 %v6599
        %7288 = vmatpush1.bf16.msra.mxu0 %v6598
        %7289 = vmatprep.subr.bf16.mxu0 %v6606
        %7290 = vmatpush1.bf16.msra.mxu0 %v6605
        %7291 = vmatprep.subr.bf16.mxu0 %v6613
        %7292 = vmatpush1.bf16.msra.mxu0 %v6612
        %7293 = vmatprep.subr.bf16.mxu0 %v6620
        %7294 = vmatpush1.bf16.msra.mxu0 %v6619
        %7295 = vmatprep.subr.bf16.mxu0 %v6627
        %7296 = vmatpush1.bf16.msra.mxu0 %v6626
        %7297 = vmatprep.subr.bf16.mxu0 %v6634
        %7298 = vmatpush1.bf16.msra.mxu0 %v6633
        %7299 = vmatprep.subr.bf16.mxu0 %v6641
        %7300 = vmatpush1.bf16.msra.mxu0 %v6640
        %7301 = vmatprep.subr.bf16.mxu0 %v6648
        %7302 = vmatpush1.bf16.msra.mxu0 %v6647
        %7303 = vmatprep.subr.bf16.mxu0 %v6655
        %7304 = vmatpush1.bf16.msra.mxu0 %v6654
        %7305 = vmatprep.subr.bf16.mxu0 %v6662
        %7306 = vmatpush1.bf16.msra.mxu0 %v6661
        %7307 = vmatprep.subr.bf16.mxu0 %v6669
        %7308 = vmatpush1.bf16.msra.mxu0 %v6668
        %7309 = vmatprep.subr.bf16.mxu0 %v6676
        %7310 = vmatpush1.bf16.msra.mxu0 %v6675
        %7311 = vmatprep.subr.bf16.mxu0 %v6683
        %7312 = vmatpush1.bf16.msra.mxu0 %v6682
        %7313 = vmatprep.subr.bf16.mxu0 %v6690
        %7314 = vmatpush1.bf16.msra.mxu0 %v6689
        %7315 = vmatprep.subr.bf16.mxu0 %v6697
        %7316 = vmatpush1.bf16.msra.mxu0 %v6696
        %7317 = vmatprep.subr.bf16.mxu0 %v6704
        %7318 = vmatpush1.bf16.msra.mxu0 %v6703
        %7319 = vmatprep.mubr.bf16.mxu0 %v6423
        %7320 = vmatmul.mubr.bf16.gmra.mrb[0].mxu0 %v6422
        %v7321 = vpop.f32.mrb[0].mxu0
        %v7322 = vadd.f32 %v7129, %v7321
        %v7323 = vpop.f32.mrb[0].mxu0
        %v7324 = vadd.f32 %v7131, %v7323
        %v7325 = vpop.f32.mrb[0].mxu0
        %v7326 = vadd.f32 %v7133, %v7325
        %v7327 = vpop.f32.mrb[0].mxu0
        %v7328 = vadd.f32 %v7135, %v7327
        %7329 = vmatprep.mubr.bf16.mxu0 %v6427
        %7330 = vmatmul.mubr.bf16.gmra.mrb[0].mxu0 %v6426
        %v7331 = vpop.f32.mrb[0].mxu0
        %v7332 = vadd.f32 %v7139, %v7331
        %v7333 = vpop.f32.mrb[0].mxu0
        %v7334 = vadd.f32 %v7141, %v7333
        %v7335 = vpop.f32.mrb[0].mxu0
        %v7336 = vadd.f32 %v7143, %v7335
        %v7337 = vpop.f32.mrb[0].mxu0
        %v7338 = vadd.f32 %v7145, %v7337
        %7339 = vmatprep.mubr.bf16.mxu0 %v6431
        %7340 = vmatmul.mubr.bf16.gmra.mrb[0].mxu0 %v6430
        %v7341 = vpop.f32.mrb[0].mxu0
        %v7342 = vadd.f32 %v7149, %v7341
        %v7343 = vpop.f32.mrb[0].mxu0
        %v7344 = vadd.f32 %v7151, %v7343
        %v7345 = vpop.f32.mrb[0].mxu0
        %v7346 = vadd.f32 %v7153, %v7345
        %v7347 = vpop.f32.mrb[0].mxu0
        %v7348 = vadd.f32 %v7155, %v7347
        %7349 = vmatprep.mubr.bf16.mxu0 %v6435
        %7350 = vmatmul.mubr.bf16.gmra.mrb[0].mxu0 %v6434
        %v7351 = vpop.f32.mrb[0].mxu0
        %v7352 = vadd.f32 %v7159, %v7351
        %v7353 = vpop.f32.mrb[0].mxu0
        %v7354 = vadd.f32 %v7161, %v7353
        %v7355 = vpop.f32.mrb[0].mxu0
        %v7356 = vadd.f32 %v7163, %v7355
        %v7357 = vpop.f32.mrb[0].mxu0
        %v7358 = vadd.f32 %v7165, %v7357
        %7359 = vmatprep.mubr.bf16.mxu0 %v6439
        %7360 = vmatmul.mubr.bf16.gmra.mrb[0].mxu0 %v6438
        %v7361 = vpop.f32.mrb[0].mxu0
        %v7362 = vadd.f32 %v7169, %v7361
        %v7363 = vpop.f32.mrb[0].mxu0
        %v7364 = vadd.f32 %v7171, %v7363
        %v7365 = vpop.f32.mrb[0].mxu0
        %v7366 = vadd.f32 %v7173, %v7365
        %v7367 = vpop.f32.mrb[0].mxu0
        %v7368 = vadd.f32 %v7175, %v7367
        %7369 = vmatprep.mubr.bf16.mxu0 %v6443
        %7370 = vmatmul.mubr.bf16.gmra.mrb[0].mxu0 %v6442
        %v7371 = vpop.f32.mrb[0].mxu0
        %v7372 = vadd.f32 %v7179, %v7371
        %v7373 = vpop.f32.mrb[0].mxu0
        %v7374 = vadd.f32 %v7181, %v7373
        %v7375 = vpop.f32.mrb[0].mxu0
        %v7376 = vadd.f32 %v7183, %v7375
        %v7377 = vpop.f32.mrb[0].mxu0
        %v7378 = vadd.f32 %v7185, %v7377
        %7379 = vmatprep.mubr.bf16.mxu0 %v6447
        %7380 = vmatmul.mubr.bf16.gmra.mrb[0].mxu0 %v6446
        %v7381 = vpop.f32.mrb[0].mxu0
        %v7382 = vadd.f32 %v7189, %v7381
        %v7383 = vpop.f32.mrb[0].mxu0
        %v7384 = vadd.f32 %v7191, %v7383
        %v7385 = vpop.f32.mrb[0].mxu0
        %v7386 = vadd.f32 %v7193, %v7385
        %v7387 = vpop.f32.mrb[0].mxu0
        %v7388 = vadd.f32 %v7195, %v7387
        %7389 = vmatprep.mubr.bf16.mxu0 %v6451
        %7390 = vmatmul.mubr.bf16.gmra.mrb[0].mxu0 %v6450
        %v7391 = vpop.f32.mrb[0].mxu0
        %v7392 = vadd.f32 %v7199, %v7391
        %v7393 = vpop.f32.mrb[0].mxu0
        %v7394 = vadd.f32 %v7201, %v7393
        %v7395 = vpop.f32.mrb[0].mxu0
        %v7396 = vadd.f32 %v7203, %v7395
        %v7397 = vpop.f32.mrb[0].mxu0
        %v7398 = vadd.f32 %v7205, %v7397
        %7399 = vmatprep.mubr.bf16.mxu0 %v6455
        %7400 = vmatmul.mubr.bf16.gmra.mrb[0].mxu0 %v6454
        %v7401 = vpop.f32.mrb[0].mxu0
        %v7402 = vadd.f32 %v7209, %v7401
        %v7403 = vpop.f32.mrb[0].mxu0
        %v7404 = vadd.f32 %v7211, %v7403
        %v7405 = vpop.f32.mrb[0].mxu0
        %v7406 = vadd.f32 %v7213, %v7405
        %v7407 = vpop.f32.mrb[0].mxu0
        %v7408 = vadd.f32 %v7215, %v7407
        %7409 = vmatprep.mubr.bf16.mxu0 %v6459
        %7410 = vmatmul.mubr.bf16.gmra.mrb[0].mxu0 %v6458
        %v7411 = vpop.f32.mrb[0].mxu0
        %v7412 = vadd.f32 %v7219, %v7411
        %v7413 = vpop.f32.mrb[0].mxu0
        %v7414 = vadd.f32 %v7221, %v7413
        %v7415 = vpop.f32.mrb[0].mxu0
        %v7416 = vadd.f32 %v7223, %v7415
        %v7417 = vpop.f32.mrb[0].mxu0
        %v7418 = vadd.f32 %v7225, %v7417
        %7419 = vmatprep.mubr.bf16.mxu0 %v6463
        %7420 = vmatmul.mubr.bf16.gmra.mrb[0].mxu0 %v6462
        %v7421 = vpop.f32.mrb[0].mxu0
        %v7422 = vadd.f32 %v7229, %v7421
        %v7423 = vpop.f32.mrb[0].mxu0
        %v7424 = vadd.f32 %v7231, %v7423
        %v7425 = vpop.f32.mrb[0].mxu0
        %v7426 = vadd.f32 %v7233, %v7425
        %v7427 = vpop.f32.mrb[0].mxu0
        %v7428 = vadd.f32 %v7235, %v7427
        %7429 = vmatprep.mubr.bf16.mxu0 %v6467
        %7430 = vmatmul.mubr.bf16.gmra.mrb[0].mxu0 %v6466
        %v7431 = vpop.f32.mrb[0].mxu0
        %v7432 = vadd.f32 %v7239, %v7431
        %v7433 = vpop.f32.mrb[0].mxu0
        %v7434 = vadd.f32 %v7241, %v7433
        %v7435 = vpop.f32.mrb[0].mxu0
        %v7436 = vadd.f32 %v7243, %v7435
        %v7437 = vpop.f32.mrb[0].mxu0
        %v7438 = vadd.f32 %v7245, %v7437
        %7439 = vmatprep.mubr.bf16.mxu0 %v6471
        %7440 = vmatmul.mubr.bf16.gmra.mrb[0].mxu0 %v6470
        %v7441 = vpop.f32.mrb[0].mxu0
        %v7442 = vadd.f32 %v7249, %v7441
        %v7443 = vpop.f32.mrb[0].mxu0
        %v7444 = vadd.f32 %v7251, %v7443
        %v7445 = vpop.f32.mrb[0].mxu0
        %v7446 = vadd.f32 %v7253, %v7445
        %v7447 = vpop.f32.mrb[0].mxu0
        %v7448 = vadd.f32 %v7255, %v7447
        %7449 = vmatprep.mubr.bf16.mxu0 %v6475
        %7450 = vmatmul.mubr.bf16.gmra.mrb[0].mxu0 %v6474
        %v7451 = vpop.f32.mrb[0].mxu0
        %v7452 = vadd.f32 %v7259, %v7451
        %v7453 = vpop.f32.mrb[0].mxu0
        %v7454 = vadd.f32 %v7261, %v7453
        %v7455 = vpop.f32.mrb[0].mxu0
        %v7456 = vadd.f32 %v7263, %v7455
        %v7457 = vpop.f32.mrb[0].mxu0
        %v7458 = vadd.f32 %v7265, %v7457
        %7459 = vmatprep.mubr.bf16.mxu0 %v6479
        %7460 = vmatmul.mubr.bf16.gmra.mrb[0].mxu0 %v6478
        %v7461 = vpop.f32.mrb[0].mxu0
        %v7462 = vadd.f32 %v7269, %v7461
        %v7463 = vpop.f32.mrb[0].mxu0
        %v7464 = vadd.f32 %v7271, %v7463
        %v7465 = vpop.f32.mrb[0].mxu0
        %v7466 = vadd.f32 %v7273, %v7465
        %v7467 = vpop.f32.mrb[0].mxu0
        %v7468 = vadd.f32 %v7275, %v7467
        %7469 = vmatprep.mubr.bf16.mxu0 %v6483
        %7470 = vmatmul.mubr.bf16.gmra.mrb[0].mxu0 %v6482
        %v7471 = vpop.f32.mrb[0].mxu0
        %v7472 = vadd.f32 %v7279, %v7471
        %v7473 = vpop.f32.mrb[0].mxu0
        %v7474 = vadd.f32 %v7281, %v7473
        %v7475 = vpop.f32.mrb[0].mxu0
        %v7476 = vadd.f32 %v7283, %v7475
        %v7477 = vpop.f32.mrb[0].mxu0
        %v7478 = vadd.f32 %v7285, %v7477
        %7479 = vdwg.mxu0
        %7480 = vmatprep.subr.bf16.mxu0 %v6489
        %7481 = vmatpush1.bf16.msra.mxu0 %v6488
        %7482 = vmatprep.subr.bf16.mxu0 %v6496
        %7483 = vmatpush1.bf16.msra.mxu0 %v6495
        %7484 = vmatprep.subr.bf16.mxu0 %v6503
        %7485 = vmatpush1.bf16.msra.mxu0 %v6502
        %7486 = vmatprep.subr.bf16.mxu0 %v6510
        %7487 = vmatpush1.bf16.msra.mxu0 %v6509
        %7488 = vmatprep.subr.bf16.mxu0 %v6517
        %7489 = vmatpush1.bf16.msra.mxu0 %v6516
        %7490 = vmatprep.subr.bf16.mxu0 %v6524
        %7491 = vmatpush1.bf16.msra.mxu0 %v6523
        %7492 = vmatprep.subr.bf16.mxu0 %v6531
        %7493 = vmatpush1.bf16.msra.mxu0 %v6530
        %7494 = vmatprep.subr.bf16.mxu0 %v6538
        %7495 = vmatpush1.bf16.msra.mxu0 %v6537
        %7496 = vmatprep.subr.bf16.mxu0 %v6545
        %7497 = vmatpush1.bf16.msra.mxu0 %v6544
        %7498 = vmatprep.subr.bf16.mxu0 %v6552
        %7499 = vmatpush1.bf16.msra.mxu0 %v6551
        %7500 = vmatprep.subr.bf16.mxu0 %v6559
        %7501 = vmatpush1.bf16.msra.mxu0 %v6558
        %7502 = vmatprep.subr.bf16.mxu0 %v6566
        %7503 = vmatpush1.bf16.msra.mxu0 %v6565
        %7504 = vmatprep.subr.bf16.mxu0 %v6573
        %7505 = vmatpush1.bf16.msra.mxu0 %v6572
        %7506 = vmatprep.subr.bf16.mxu0 %v6580
        %7507 = vmatpush1.bf16.msra.mxu0 %v6579
        %7508 = vmatprep.subr.bf16.mxu0 %v6587
        %7509 = vmatpush1.bf16.msra.mxu0 %v6586
        %7510 = vmatprep.subr.bf16.mxu0 %v6594
        %7511 = vmatpush1.bf16.msra.mxu0 %v6593
        %7512 = vmatprep.mubr.bf16.mxu0 %v6421
        %7513 = vmatmul.mubr.bf16.gmra.mrb[0].mxu0 %v6420
        %v7514 = vpop.f32.mrb[0].mxu0
        %v7515 = vadd.f32 0.0, %v7514
        %v7516 = vpop.f32.mrb[0].mxu0
        %v7517 = vadd.f32 0.0, %v7516
        %v7518 = vpop.f32.mrb[0].mxu0
        %v7519 = vadd.f32 0.0, %v7518
        %v7520 = vpop.f32.mrb[0].mxu0
        %v7521 = vadd.f32 0.0, %v7520
        %7522 = vmatprep.mubr.bf16.mxu0 %v6425
        %7523 = vmatmul.mubr.bf16.gmra.mrb[0].mxu0 %v6424
        %v7524 = vpop.f32.mrb[0].mxu0
        %v7525 = vadd.f32 0.0, %v7524
        %v7526 = vpop.f32.mrb[0].mxu0
        %v7527 = vadd.f32 0.0, %v7526
        %v7528 = vpop.f32.mrb[0].mxu0
        %v7529 = vadd.f32 0.0, %v7528
        %v7530 = vpop.f32.mrb[0].mxu0
        %v7531 = vadd.f32 0.0, %v7530
        %7532 = vmatprep.mubr.bf16.mxu0 %v6429
        %7533 = vmatmul.mubr.bf16.gmra.mrb[0].mxu0 %v6428
        %v7534 = vpop.f32.mrb[0].mxu0
        %v7535 = vadd.f32 0.0, %v7534
        %v7536 = vpop.f32.mrb[0].mxu0
        %v7537 = vadd.f32 0.0, %v7536
        %v7538 = vpop.f32.mrb[0].mxu0
        %v7539 = vadd.f32 0.0, %v7538
        %v7540 = vpop.f32.mrb[0].mxu0
        %v7541 = vadd.f32 0.0, %v7540
        %7542 = vmatprep.mubr.bf16.mxu0 %v6433
        %7543 = vmatmul.mubr.bf16.gmra.mrb[0].mxu0 %v6432
        %v7544 = vpop.f32.mrb[0].mxu0
        %v7545 = vadd.f32 0.0, %v7544
        %v7546 = vpop.f32.mrb[0].mxu0
        %v7547 = vadd.f32 0.0, %v7546
        %v7548 = vpop.f32.mrb[0].mxu0
        %v7549 = vadd.f32 0.0, %v7548
        %v7550 = vpop.f32.mrb[0].mxu0
        %v7551 = vadd.f32 0.0, %v7550
        %7552 = vmatprep.mubr.bf16.mxu0 %v6437
        %7553 = vmatmul.mubr.bf16.gmra.mrb[0].mxu0 %v6436
        %v7554 = vpop.f32.mrb[0].mxu0
        %v7555 = vadd.f32 0.0, %v7554
        %v7556 = vpop.f32.mrb[0].mxu0
        %v7557 = vadd.f32 0.0, %v7556
        %v7558 = vpop.f32.mrb[0].mxu0
        %v7559 = vadd.f32 0.0, %v7558
        %v7560 = vpop.f32.mrb[0].mxu0
        %v7561 = vadd.f32 0.0, %v7560
        %7562 = vmatprep.mubr.bf16.mxu0 %v6441
        %7563 = vmatmul.mubr.bf16.gmra.mrb[0].mxu0 %v6440
        %v7564 = vpop.f32.mrb[0].mxu0
        %v7565 = vadd.f32 0.0, %v7564
        %v7566 = vpop.f32.mrb[0].mxu0
        %v7567 = vadd.f32 0.0, %v7566
        %v7568 = vpop.f32.mrb[0].mxu0
        %v7569 = vadd.f32 0.0, %v7568
        %v7570 = vpop.f32.mrb[0].mxu0
        %v7571 = vadd.f32 0.0, %v7570
        %7572 = vmatprep.mubr.bf16.mxu0 %v6445
        %7573 = vmatmul.mubr.bf16.gmra.mrb[0].mxu0 %v6444
        %v7574 = vpop.f32.mrb[0].mxu0
        %v7575 = vadd.f32 0.0, %v7574
        %v7576 = vpop.f32.mrb[0].mxu0
        %v7577 = vadd.f32 0.0, %v7576
        %v7578 = vpop.f32.mrb[0].mxu0
        %v7579 = vadd.f32 0.0, %v7578
        %v7580 = vpop.f32.mrb[0].mxu0
        %v7581 = vadd.f32 0.0, %v7580
        %7582 = vmatprep.mubr.bf16.mxu0 %v6449
        %7583 = vmatmul.mubr.bf16.gmra.mrb[0].mxu0 %v6448
        %v7584 = vpop.f32.mrb[0].mxu0
        %v7585 = vadd.f32 0.0, %v7584
        %v7586 = vpop.f32.mrb[0].mxu0
        %v7587 = vadd.f32 0.0, %v7586
        %v7588 = vpop.f32.mrb[0].mxu0
        %v7589 = vadd.f32 0.0, %v7588
        %v7590 = vpop.f32.mrb[0].mxu0
        %v7591 = vadd.f32 0.0, %v7590
        %7592 = vmatprep.mubr.bf16.mxu0 %v6453
        %7593 = vmatmul.mubr.bf16.gmra.mrb[0].mxu0 %v6452
        %v7594 = vpop.f32.mrb[0].mxu0
        %v7595 = vadd.f32 0.0, %v7594
        %v7596 = vpop.f32.mrb[0].mxu0
        %v7597 = vadd.f32 0.0, %v7596
        %v7598 = vpop.f32.mrb[0].mxu0
        %v7599 = vadd.f32 0.0, %v7598
        %v7600 = vpop.f32.mrb[0].mxu0
        %v7601 = vadd.f32 0.0, %v7600
        %7602 = vmatprep.mubr.bf16.mxu0 %v6457
        %7603 = vmatmul.mubr.bf16.gmra.mrb[0].mxu0 %v6456
        %v7604 = vpop.f32.mrb[0].mxu0
        %v7605 = vadd.f32 0.0, %v7604
        %v7606 = vpop.f32.mrb[0].mxu0
        %v7607 = vadd.f32 0.0, %v7606
        %v7608 = vpop.f32.mrb[0].mxu0
        %v7609 = vadd.f32 0.0, %v7608
        %v7610 = vpop.f32.mrb[0].mxu0
        %v7611 = vadd.f32 0.0, %v7610
        %7612 = vmatprep.mubr.bf16.mxu0 %v6461
        %7613 = vmatmul.mubr.bf16.gmra.mrb[0].mxu0 %v6460
        %v7614 = vpop.f32.mrb[0].mxu0
        %v7615 = vadd.f32 0.0, %v7614
        %v7616 = vpop.f32.mrb[0].mxu0
        %v7617 = vadd.f32 0.0, %v7616
        %v7618 = vpop.f32.mrb[0].mxu0
        %v7619 = vadd.f32 0.0, %v7618
        %v7620 = vpop.f32.mrb[0].mxu0
        %v7621 = vadd.f32 0.0, %v7620
        %7622 = vmatprep.mubr.bf16.mxu0 %v6465
        %7623 = vmatmul.mubr.bf16.gmra.mrb[0].mxu0 %v6464
        %v7624 = vpop.f32.mrb[0].mxu0
        %v7625 = vadd.f32 0.0, %v7624
        %v7626 = vpop.f32.mrb[0].mxu0
        %v7627 = vadd.f32 0.0, %v7626
        %v7628 = vpop.f32.mrb[0].mxu0
        %v7629 = vadd.f32 0.0, %v7628
        %v7630 = vpop.f32.mrb[0].mxu0
        %v7631 = vadd.f32 0.0, %v7630
        %7632 = vmatprep.mubr.bf16.mxu0 %v6469
        %7633 = vmatmul.mubr.bf16.gmra.mrb[0].mxu0 %v6468
        %v7634 = vpop.f32.mrb[0].mxu0
        %v7635 = vadd.f32 0.0, %v7634
        %v7636 = vpop.f32.mrb[0].mxu0
        %v7637 = vadd.f32 0.0, %v7636
        %v7638 = vpop.f32.mrb[0].mxu0
        %v7639 = vadd.f32 0.0, %v7638
        %v7640 = vpop.f32.mrb[0].mxu0
        %v7641 = vadd.f32 0.0, %v7640
        %7642 = vmatprep.mubr.bf16.mxu0 %v6473
        %7643 = vmatmul.mubr.bf16.gmra.mrb[0].mxu0 %v6472
        %v7644 = vpop.f32.mrb[0].mxu0
        %v7645 = vadd.f32 0.0, %v7644
        %v7646 = vpop.f32.mrb[0].mxu0
        %v7647 = vadd.f32 0.0, %v7646
        %v7648 = vpop.f32.mrb[0].mxu0
        %v7649 = vadd.f32 0.0, %v7648
        %v7650 = vpop.f32.mrb[0].mxu0
        %v7651 = vadd.f32 0.0, %v7650
        %7652 = vmatprep.mubr.bf16.mxu0 %v6477
        %7653 = vmatmul.mubr.bf16.gmra.mrb[0].mxu0 %v6476
        %v7654 = vpop.f32.mrb[0].mxu0
        %v7655 = vadd.f32 0.0, %v7654
        %v7656 = vpop.f32.mrb[0].mxu0
        %v7657 = vadd.f32 0.0, %v7656
        %v7658 = vpop.f32.mrb[0].mxu0
        %v7659 = vadd.f32 0.0, %v7658
        %v7660 = vpop.f32.mrb[0].mxu0
        %v7661 = vadd.f32 0.0, %v7660
        %7662 = vmatprep.mubr.bf16.mxu0 %v6481
        %7663 = vmatmul.mubr.bf16.gmra.mrb[0].mxu0 %v6480
        %v7664 = vpop.f32.mrb[0].mxu0
        %v7665 = vadd.f32 0.0, %v7664
        %v7666 = vpop.f32.mrb[0].mxu0
        %v7667 = vadd.f32 0.0, %v7666
        %v7668 = vpop.f32.mrb[0].mxu0
        %v7669 = vadd.f32 0.0, %v7668
        %v7670 = vpop.f32.mrb[0].mxu0
        %v7671 = vadd.f32 0.0, %v7670
        %7672 = vdwg.mxu0
        %7673 = vmatprep.subr.bf16.mxu0 %v6601
        %7674 = vmatpush1.bf16.msra.mxu0 %v6600
        %7675 = vmatprep.subr.bf16.mxu0 %v6608
        %7676 = vmatpush1.bf16.msra.mxu0 %v6607
        %7677 = vmatprep.subr.bf16.mxu0 %v6615
        %7678 = vmatpush1.bf16.msra.mxu0 %v6614
        %7679 = vmatprep.subr.bf16.mxu0 %v6622
        %7680 = vmatpush1.bf16.msra.mxu0 %v6621
        %7681 = vmatprep.subr.bf16.mxu0 %v6629
        %7682 = vmatpush1.bf16.msra.mxu0 %v6628
        %7683 = vmatprep.subr.bf16.mxu0 %v6636
        %7684 = vmatpush1.bf16.msra.mxu0 %v6635
        %7685 = vmatprep.subr.bf16.mxu0 %v6643
        %7686 = vmatpush1.bf16.msra.mxu0 %v6642
        %7687 = vmatprep.subr.bf16.mxu0 %v6650
        %7688 = vmatpush1.bf16.msra.mxu0 %v6649
        %7689 = vmatprep.subr.bf16.mxu0 %v6657
        %7690 = vmatpush1.bf16.msra.mxu0 %v6656
        %7691 = vmatprep.subr.bf16.mxu0 %v6664
        %7692 = vmatpush1.bf16.msra.mxu0 %v6663
        %7693 = vmatprep.subr.bf16.mxu0 %v6671
        %7694 = vmatpush1.bf16.msra.mxu0 %v6670
        %7695 = vmatprep.subr.bf16.mxu0 %v6678
        %7696 = vmatpush1.bf16.msra.mxu0 %v6677
        %7697 = vmatprep.subr.bf16.mxu0 %v6685
        %7698 = vmatpush1.bf16.msra.mxu0 %v6684
        %7699 = vmatprep.subr.bf16.mxu0 %v6692
        %7700 = vmatpush1.bf16.msra.mxu0 %v6691
        %7701 = vmatprep.subr.bf16.mxu0 %v6699
        %7702 = vmatpush1.bf16.msra.mxu0 %v6698
        %7703 = vmatprep.subr.bf16.mxu0 %v6706
        %7704 = vmatpush1.bf16.msra.mxu0 %v6705
        %7705 = vmatprep.mubr.bf16.mxu0 %v6423
        %7706 = vmatmul.mubr.bf16.gmra.mrb[0].mxu0 %v6422
        %v7707 = vpop.f32.mrb[0].mxu0
        %v7708 = vadd.f32 %v7515, %v7707
        %v7709 = vpop.f32.mrb[0].mxu0
        %v7710 = vadd.f32 %v7517, %v7709
        %v7711 = vpop.f32.mrb[0].mxu0
        %v7712 = vadd.f32 %v7519, %v7711
        %v7713 = vpop.f32.mrb[0].mxu0
        %v7714 = vadd.f32 %v7521, %v7713
        %7715 = vmatprep.mubr.bf16.mxu0 %v6427
        %7716 = vmatmul.mubr.bf16.gmra.mrb[0].mxu0 %v6426
        %v7717 = vpop.f32.mrb[0].mxu0
        %v7718 = vadd.f32 %v7525, %v7717
        %v7719 = vpop.f32.mrb[0].mxu0
        %v7720 = vadd.f32 %v7527, %v7719
        %v7721 = vpop.f32.mrb[0].mxu0
        %v7722 = vadd.f32 %v7529, %v7721
        %v7723 = vpop.f32.mrb[0].mxu0
        %v7724 = vadd.f32 %v7531, %v7723
        %7725 = vmatprep.mubr.bf16.mxu0 %v6431
        %7726 = vmatmul.mubr.bf16.gmra.mrb[0].mxu0 %v6430
        %v7727 = vpop.f32.mrb[0].mxu0
        %v7728 = vadd.f32 %v7535, %v7727
        %v7729 = vpop.f32.mrb[0].mxu0
        %v7730 = vadd.f32 %v7537, %v7729
        %v7731 = vpop.f32.mrb[0].mxu0
        %v7732 = vadd.f32 %v7539, %v7731
        %v7733 = vpop.f32.mrb[0].mxu0
        %v7734 = vadd.f32 %v7541, %v7733
        %7735 = vmatprep.mubr.bf16.mxu0 %v6435
        %7736 = vmatmul.mubr.bf16.gmra.mrb[0].mxu0 %v6434
        %v7737 = vpop.f32.mrb[0].mxu0
        %v7738 = vadd.f32 %v7545, %v7737
        %v7739 = vpop.f32.mrb[0].mxu0
        %v7740 = vadd.f32 %v7547, %v7739
        %v7741 = vpop.f32.mrb[0].mxu0
        %v7742 = vadd.f32 %v7549, %v7741
        %v7743 = vpop.f32.mrb[0].mxu0
        %v7744 = vadd.f32 %v7551, %v7743
        %7745 = vmatprep.mubr.bf16.mxu0 %v6439
        %7746 = vmatmul.mubr.bf16.gmra.mrb[0].mxu0 %v6438
        %v7747 = vpop.f32.mrb[0].mxu0
        %v7748 = vadd.f32 %v7555, %v7747
        %v7749 = vpop.f32.mrb[0].mxu0
        %v7750 = vadd.f32 %v7557, %v7749
        %v7751 = vpop.f32.mrb[0].mxu0
        %v7752 = vadd.f32 %v7559, %v7751
        %v7753 = vpop.f32.mrb[0].mxu0
        %v7754 = vadd.f32 %v7561, %v7753
        %7755 = vmatprep.mubr.bf16.mxu0 %v6443
        %7756 = vmatmul.mubr.bf16.gmra.mrb[0].mxu0 %v6442
        %v7757 = vpop.f32.mrb[0].mxu0
        %v7758 = vadd.f32 %v7565, %v7757
        %v7759 = vpop.f32.mrb[0].mxu0
        %v7760 = vadd.f32 %v7567, %v7759
        %v7761 = vpop.f32.mrb[0].mxu0
        %v7762 = vadd.f32 %v7569, %v7761
        %v7763 = vpop.f32.mrb[0].mxu0
        %v7764 = vadd.f32 %v7571, %v7763
        %7765 = vmatprep.mubr.bf16.mxu0 %v6447
        %7766 = vmatmul.mubr.bf16.gmra.mrb[0].mxu0 %v6446
        %v7767 = vpop.f32.mrb[0].mxu0
        %v7768 = vadd.f32 %v7575, %v7767
        %v7769 = vpop.f32.mrb[0].mxu0
        %v7770 = vadd.f32 %v7577, %v7769
        %v7771 = vpop.f32.mrb[0].mxu0
        %v7772 = vadd.f32 %v7579, %v7771
        %v7773 = vpop.f32.mrb[0].mxu0
        %v7774 = vadd.f32 %v7581, %v7773
        %7775 = vmatprep.mubr.bf16.mxu0 %v6451
        %7776 = vmatmul.mubr.bf16.gmra.mrb[0].mxu0 %v6450
        %v7777 = vpop.f32.mrb[0].mxu0
        %v7778 = vadd.f32 %v7585, %v7777
        %v7779 = vpop.f32.mrb[0].mxu0
        %v7780 = vadd.f32 %v7587, %v7779
        %v7781 = vpop.f32.mrb[0].mxu0
        %v7782 = vadd.f32 %v7589, %v7781
        %v7783 = vpop.f32.mrb[0].mxu0
        %v7784 = vadd.f32 %v7591, %v7783
        %7785 = vmatprep.mubr.bf16.mxu0 %v6455
        %7786 = vmatmul.mubr.bf16.gmra.mrb[0].mxu0 %v6454
        %v7787 = vpop.f32.mrb[0].mxu0
        %v7788 = vadd.f32 %v7595, %v7787
        %v7789 = vpop.f32.mrb[0].mxu0
        %v7790 = vadd.f32 %v7597, %v7789
        %v7791 = vpop.f32.mrb[0].mxu0
        %v7792 = vadd.f32 %v7599, %v7791
        %v7793 = vpop.f32.mrb[0].mxu0
        %v7794 = vadd.f32 %v7601, %v7793
        %7795 = vmatprep.mubr.bf16.mxu0 %v6459
        %7796 = vmatmul.mubr.bf16.gmra.mrb[0].mxu0 %v6458
        %v7797 = vpop.f32.mrb[0].mxu0
        %v7798 = vadd.f32 %v7605, %v7797
        %v7799 = vpop.f32.mrb[0].mxu0
        %v7800 = vadd.f32 %v7607, %v7799
        %v7801 = vpop.f32.mrb[0].mxu0
        %v7802 = vadd.f32 %v7609, %v7801
        %v7803 = vpop.f32.mrb[0].mxu0
        %v7804 = vadd.f32 %v7611, %v7803
        %7805 = vmatprep.mubr.bf16.mxu0 %v6463
        %7806 = vmatmul.mubr.bf16.gmra.mrb[0].mxu0 %v6462
        %v7807 = vpop.f32.mrb[0].mxu0
        %v7808 = vadd.f32 %v7615, %v7807
        %v7809 = vpop.f32.mrb[0].mxu0
        %v7810 = vadd.f32 %v7617, %v7809
        %v7811 = vpop.f32.mrb[0].mxu0
        %v7812 = vadd.f32 %v7619, %v7811
        %v7813 = vpop.f32.mrb[0].mxu0
        %v7814 = vadd.f32 %v7621, %v7813
        %7815 = vmatprep.mubr.bf16.mxu0 %v6467
        %7816 = vmatmul.mubr.bf16.gmra.mrb[0].mxu0 %v6466
        %v7817 = vpop.f32.mrb[0].mxu0
        %v7818 = vadd.f32 %v7625, %v7817
        %v7819 = vpop.f32.mrb[0].mxu0
        %v7820 = vadd.f32 %v7627, %v7819
        %v7821 = vpop.f32.mrb[0].mxu0
        %v7822 = vadd.f32 %v7629, %v7821
        %v7823 = vpop.f32.mrb[0].mxu0
        %v7824 = vadd.f32 %v7631, %v7823
        %7825 = vmatprep.mubr.bf16.mxu0 %v6471
        %7826 = vmatmul.mubr.bf16.gmra.mrb[0].mxu0 %v6470
        %v7827 = vpop.f32.mrb[0].mxu0
        %v7828 = vadd.f32 %v7635, %v7827
        %v7829 = vpop.f32.mrb[0].mxu0
        %v7830 = vadd.f32 %v7637, %v7829
        %v7831 = vpop.f32.mrb[0].mxu0
        %v7832 = vadd.f32 %v7639, %v7831
        %v7833 = vpop.f32.mrb[0].mxu0
        %v7834 = vadd.f32 %v7641, %v7833
        %7835 = vmatprep.mubr.bf16.mxu0 %v6475
        %7836 = vmatmul.mubr.bf16.gmra.mrb[0].mxu0 %v6474
        %v7837 = vpop.f32.mrb[0].mxu0
        %v7838 = vadd.f32 %v7645, %v7837
        %v7839 = vpop.f32.mrb[0].mxu0
        %v7840 = vadd.f32 %v7647, %v7839
        %v7841 = vpop.f32.mrb[0].mxu0
        %v7842 = vadd.f32 %v7649, %v7841
        %v7843 = vpop.f32.mrb[0].mxu0
        %v7844 = vadd.f32 %v7651, %v7843
        %7845 = vmatprep.mubr.bf16.mxu0 %v6479
        %7846 = vmatmul.mubr.bf16.gmra.mrb[0].mxu0 %v6478
        %v7847 = vpop.f32.mrb[0].mxu0
        %v7848 = vadd.f32 %v7655, %v7847
        %v7849 = vpop.f32.mrb[0].mxu0
        %v7850 = vadd.f32 %v7657, %v7849
        %v7851 = vpop.f32.mrb[0].mxu0
        %v7852 = vadd.f32 %v7659, %v7851
        %v7853 = vpop.f32.mrb[0].mxu0
        %v7854 = vadd.f32 %v7661, %v7853
        %7855 = vmatprep.mubr.bf16.mxu0 %v6483
        %7856 = vmatmul.mubr.bf16.gmra.mrb[0].mxu0 %v6482
        %v7857 = vpop.f32.mrb[0].mxu0
        %v7858 = vadd.f32 %v7665, %v7857
        %v7859 = vpop.f32.mrb[0].mxu0
        %v7860 = vadd.f32 %v7667, %v7859
        %v7861 = vpop.f32.mrb[0].mxu0
        %v7862 = vadd.f32 %v7669, %v7861
        %v7863 = vpop.f32.mrb[0].mxu0
        %v7864 = vadd.f32 %v7671, %v7863
        %7865 = vdwg.mxu0
        %7866 = vmatprep.subr.bf16.mxu0 0
        %7867 = vmatpush1.bf16.msra.mxu0 %v6490
        %7868 = vmatprep.subr.bf16.mxu0 0
        %7869 = vmatpush1.bf16.msra.mxu0 %v6497
        %7870 = vmatprep.subr.bf16.mxu0 0
        %7871 = vmatpush1.bf16.msra.mxu0 %v6504
        %7872 = vmatprep.subr.bf16.mxu0 0
        %7873 = vmatpush1.bf16.msra.mxu0 %v6511
        %7874 = vmatprep.subr.bf16.mxu0 0
        %7875 = vmatpush1.bf16.msra.mxu0 %v6518
        %7876 = vmatprep.subr.bf16.mxu0 0
        %7877 = vmatpush1.bf16.msra.mxu0 %v6525
        %7878 = vmatprep.subr.bf16.mxu0 0
        %7879 = vmatpush1.bf16.msra.mxu0 %v6532
        %7880 = vmatprep.subr.bf16.mxu0 0
        %7881 = vmatpush1.bf16.msra.mxu0 %v6539
        %7882 = vmatprep.subr.bf16.mxu0 0
        %7883 = vmatpush1.bf16.msra.mxu0 %v6546
        %7884 = vmatprep.subr.bf16.mxu0 0
        %7885 = vmatpush1.bf16.msra.mxu0 %v6553
        %7886 = vmatprep.subr.bf16.mxu0 0
        %7887 = vmatpush1.bf16.msra.mxu0 %v6560
        %7888 = vmatprep.subr.bf16.mxu0 0
        %7889 = vmatpush1.bf16.msra.mxu0 %v6567
        %7890 = vmatprep.subr.bf16.mxu0 0
        %7891 = vmatpush1.bf16.msra.mxu0 %v6574
        %7892 = vmatprep.subr.bf16.mxu0 0
        %7893 = vmatpush1.bf16.msra.mxu0 %v6581
        %7894 = vmatprep.subr.bf16.mxu0 0
        %7895 = vmatpush1.bf16.msra.mxu0 %v6588
        %7896 = vmatprep.subr.bf16.mxu0 0
        %7897 = vmatpush1.bf16.msra.mxu0 %v6595
        %7898 = vmatprep.mubr.bf16.mxu0 %v6421
        %7899 = vmatmul.mubr.bf16.gmra.mrb[0].mxu0 %v6420
        %v7900 = vpop.f32.mrb[0].mxu0
        %v7901 = vadd.f32 0.0, %v7900
        %v7902 = vpop.f32.mrb[0].mxu0
        %v7903 = vpop.f32.mrb[0].mxu0
        %v7904 = vadd.f32 0.0, %v7903
        %v7905 = vpop.f32.mrb[0].mxu0
        %7906 = vmatprep.mubr.bf16.mxu0 %v6425
        %7907 = vmatmul.mubr.bf16.gmra.mrb[0].mxu0 %v6424
        %v7908 = vpop.f32.mrb[0].mxu0
        %v7909 = vadd.f32 0.0, %v7908
        %v7910 = vpop.f32.mrb[0].mxu0
        %v7911 = vpop.f32.mrb[0].mxu0
        %v7912 = vadd.f32 0.0, %v7911
        %v7913 = vpop.f32.mrb[0].mxu0
        %7914 = vmatprep.mubr.bf16.mxu0 %v6429
        %7915 = vmatmul.mubr.bf16.gmra.mrb[0].mxu0 %v6428
        %v7916 = vpop.f32.mrb[0].mxu0
        %v7917 = vadd.f32 0.0, %v7916
        %v7918 = vpop.f32.mrb[0].mxu0
        %v7919 = vpop.f32.mrb[0].mxu0
        %v7920 = vadd.f32 0.0, %v7919
        %v7921 = vpop.f32.mrb[0].mxu0
        %7922 = vmatprep.mubr.bf16.mxu0 %v6433
        %7923 = vmatmul.mubr.bf16.gmra.mrb[0].mxu0 %v6432
        %v7924 = vpop.f32.mrb[0].mxu0
        %v7925 = vadd.f32 0.0, %v7924
        %v7926 = vpop.f32.mrb[0].mxu0
        %v7927 = vpop.f32.mrb[0].mxu0
        %v7928 = vadd.f32 0.0, %v7927
        %v7929 = vpop.f32.mrb[0].mxu0
        %7930 = vmatprep.mubr.bf16.mxu0 %v6437
        %7931 = vmatmul.mubr.bf16.gmra.mrb[0].mxu0 %v6436
        %v7932 = vpop.f32.mrb[0].mxu0
        %v7933 = vadd.f32 0.0, %v7932
        %v7934 = vpop.f32.mrb[0].mxu0
        %v7935 = vpop.f32.mrb[0].mxu0
        %v7936 = vadd.f32 0.0, %v7935
        %v7937 = vpop.f32.mrb[0].mxu0
        %7938 = vmatprep.mubr.bf16.mxu0 %v6441
        %7939 = vmatmul.mubr.bf16.gmra.mrb[0].mxu0 %v6440
        %v7940 = vpop.f32.mrb[0].mxu0
        %v7941 = vadd.f32 0.0, %v7940
        %v7942 = vpop.f32.mrb[0].mxu0
        %v7943 = vpop.f32.mrb[0].mxu0
        %v7944 = vadd.f32 0.0, %v7943
        %v7945 = vpop.f32.mrb[0].mxu0
        %7946 = vmatprep.mubr.bf16.mxu0 %v6445
        %7947 = vmatmul.mubr.bf16.gmra.mrb[0].mxu0 %v6444
        %v7948 = vpop.f32.mrb[0].mxu0
        %v7949 = vadd.f32 0.0, %v7948
        %v7950 = vpop.f32.mrb[0].mxu0
        %v7951 = vpop.f32.mrb[0].mxu0
        %v7952 = vadd.f32 0.0, %v7951
        %v7953 = vpop.f32.mrb[0].mxu0
        %7954 = vmatprep.mubr.bf16.mxu0 %v6449
        %7955 = vmatmul.mubr.bf16.gmra.mrb[0].mxu0 %v6448
        %v7956 = vpop.f32.mrb[0].mxu0
        %v7957 = vadd.f32 0.0, %v7956
        %v7958 = vpop.f32.mrb[0].mxu0
        %v7959 = vpop.f32.mrb[0].mxu0
        %v7960 = vadd.f32 0.0, %v7959
        %v7961 = vpop.f32.mrb[0].mxu0
        %7962 = vmatprep.mubr.bf16.mxu0 %v6453
        %7963 = vmatmul.mubr.bf16.gmra.mrb[0].mxu0 %v6452
        %v7964 = vpop.f32.mrb[0].mxu0
        %v7965 = vadd.f32 0.0, %v7964
        %v7966 = vpop.f32.mrb[0].mxu0
        %v7967 = vpop.f32.mrb[0].mxu0
        %v7968 = vadd.f32 0.0, %v7967
        %v7969 = vpop.f32.mrb[0].mxu0
        %7970 = vmatprep.mubr.bf16.mxu0 %v6457
        %7971 = vmatmul.mubr.bf16.gmra.mrb[0].mxu0 %v6456
        %v7972 = vpop.f32.mrb[0].mxu0
        %v7973 = vadd.f32 0.0, %v7972
        %v7974 = vpop.f32.mrb[0].mxu0
        %v7975 = vpop.f32.mrb[0].mxu0
        %v7976 = vadd.f32 0.0, %v7975
        %v7977 = vpop.f32.mrb[0].mxu0
        %7978 = vmatprep.mubr.bf16.mxu0 %v6461
        %7979 = vmatmul.mubr.bf16.gmra.mrb[0].mxu0 %v6460
        %v7980 = vpop.f32.mrb[0].mxu0
        %v7981 = vadd.f32 0.0, %v7980
        %v7982 = vpop.f32.mrb[0].mxu0
        %v7983 = vpop.f32.mrb[0].mxu0
        %v7984 = vadd.f32 0.0, %v7983
        %v7985 = vpop.f32.mrb[0].mxu0
        %7986 = vmatprep.mubr.bf16.mxu0 %v6465
        %7987 = vmatmul.mubr.bf16.gmra.mrb[0].mxu0 %v6464
        %v7988 = vpop.f32.mrb[0].mxu0
        %v7989 = vadd.f32 0.0, %v7988
        %v7990 = vpop.f32.mrb[0].mxu0
        %v7991 = vpop.f32.mrb[0].mxu0
        %v7992 = vadd.f32 0.0, %v7991
        %v7993 = vpop.f32.mrb[0].mxu0
        %7994 = vmatprep.mubr.bf16.mxu0 %v6469
        %7995 = vmatmul.mubr.bf16.gmra.mrb[0].mxu0 %v6468
        %v7996 = vpop.f32.mrb[0].mxu0
        %v7997 = vadd.f32 0.0, %v7996
        %v7998 = vpop.f32.mrb[0].mxu0
        %v7999 = vpop.f32.mrb[0].mxu0
        %v8000 = vadd.f32 0.0, %v7999
        %v8001 = vpop.f32.mrb[0].mxu0
        %8002 = vmatprep.mubr.bf16.mxu0 %v6473
        %8003 = vmatmul.mubr.bf16.gmra.mrb[0].mxu0 %v6472
        %v8004 = vpop.f32.mrb[0].mxu0
        %v8005 = vadd.f32 0.0, %v8004
        %v8006 = vpop.f32.mrb[0].mxu0
        %v8007 = vpop.f32.mrb[0].mxu0
        %v8008 = vadd.f32 0.0, %v8007
        %v8009 = vpop.f32.mrb[0].mxu0
        %8010 = vmatprep.mubr.bf16.mxu0 %v6477
        %8011 = vmatmul.mubr.bf16.gmra.mrb[0].mxu0 %v6476
        %v8012 = vpop.f32.mrb[0].mxu0
        %v8013 = vadd.f32 0.0, %v8012
        %v8014 = vpop.f32.mrb[0].mxu0
        %v8015 = vpop.f32.mrb[0].mxu0
        %v8016 = vadd.f32 0.0, %v8015
        %v8017 = vpop.f32.mrb[0].mxu0
        %8018 = vmatprep.mubr.bf16.mxu0 %v6481
        %8019 = vmatmul.mubr.bf16.gmra.mrb[0].mxu0 %v6480
        %v8020 = vpop.f32.mrb[0].mxu0
        %v8021 = vadd.f32 0.0, %v8020
        %v8022 = vpop.f32.mrb[0].mxu0
        %v8023 = vpop.f32.mrb[0].mxu0
        %v8024 = vadd.f32 0.0, %v8023
        %v8025 = vpop.f32.mrb[0].mxu0
        %8026 = vdwg.mxu0
        %8027 = vmatprep.subr.bf16.mxu0 0
        %8028 = vmatpush1.bf16.msra.mxu0 %v6602
        %8029 = vmatprep.subr.bf16.mxu0 0
        %8030 = vmatpush1.bf16.msra.mxu0 %v6609
        %8031 = vmatprep.subr.bf16.mxu0 0
        %8032 = vmatpush1.bf16.msra.mxu0 %v6616
        %8033 = vmatprep.subr.bf16.mxu0 0
        %8034 = vmatpush1.bf16.msra.mxu0 %v6623
        %8035 = vmatprep.subr.bf16.mxu0 0
        %8036 = vmatpush1.bf16.msra.mxu0 %v6630
        %8037 = vmatprep.subr.bf16.mxu0 0
        %8038 = vmatpush1.bf16.msra.mxu0 %v6637
        %8039 = vmatprep.subr.bf16.mxu0 0
        %8040 = vmatpush1.bf16.msra.mxu0 %v6644
        %8041 = vmatprep.subr.bf16.mxu0 0
        %8042 = vmatpush1.bf16.msra.mxu0 %v6651
        %8043 = vmatprep.subr.bf16.mxu0 0
        %8044 = vmatpush1.bf16.msra.mxu0 %v6658
        %8045 = vmatprep.subr.bf16.mxu0 0
        %8046 = vmatpush1.bf16.msra.mxu0 %v6665
        %8047 = vmatprep.subr.bf16.mxu0 0
        %8048 = vmatpush1.bf16.msra.mxu0 %v6672
        %8049 = vmatprep.subr.bf16.mxu0 0
        %8050 = vmatpush1.bf16.msra.mxu0 %v6679
        %8051 = vmatprep.subr.bf16.mxu0 0
        %8052 = vmatpush1.bf16.msra.mxu0 %v6686
        %8053 = vmatprep.subr.bf16.mxu0 0
        %8054 = vmatpush1.bf16.msra.mxu0 %v6693
        %8055 = vmatprep.subr.bf16.mxu0 0
        %8056 = vmatpush1.bf16.msra.mxu0 %v6700
        %8057 = vmatprep.subr.bf16.mxu0 0
        %8058 = vmatpush1.bf16.msra.mxu0 %v6707
        %8059 = vmatprep.mubr.bf16.mxu0 %v6423
        %8060 = vmatmul.mubr.bf16.gmra.mrb[0].mxu0 %v6422
        %v8061 = vpop.f32.mrb[0].mxu0
        %v8062 = vadd.f32 %v7901, %v8061
        %v8063 = vpop.f32.mrb[0].mxu0
        %v8064 = vpop.f32.mrb[0].mxu0
        %v8065 = vadd.f32 %v7904, %v8064
        %v8066 = vpop.f32.mrb[0].mxu0
        %8067 = vmatprep.mubr.bf16.mxu0 %v6427
        %8068 = vmatmul.mubr.bf16.gmra.mrb[0].mxu0 %v6426
        %v8069 = vpop.f32.mrb[0].mxu0
        %v8070 = vadd.f32 %v7909, %v8069
        %v8071 = vpop.f32.mrb[0].mxu0
        %v8072 = vpop.f32.mrb[0].mxu0
        %v8073 = vadd.f32 %v7912, %v8072
        %v8074 = vpop.f32.mrb[0].mxu0
        %8075 = vmatprep.mubr.bf16.mxu0 %v6431
        %8076 = vmatmul.mubr.bf16.gmra.mrb[0].mxu0 %v6430
        %v8077 = vpop.f32.mrb[0].mxu0
        %v8078 = vadd.f32 %v7917, %v8077
        %v8079 = vpop.f32.mrb[0].mxu0
        %v8080 = vpop.f32.mrb[0].mxu0
        %v8081 = vadd.f32 %v7920, %v8080
        %v8082 = vpop.f32.mrb[0].mxu0
        %8083 = vmatprep.mubr.bf16.mxu0 %v6435
        %8084 = vmatmul.mubr.bf16.gmra.mrb[0].mxu0 %v6434
        %v8085 = vpop.f32.mrb[0].mxu0
        %v8086 = vadd.f32 %v7925, %v8085
        %v8087 = vpop.f32.mrb[0].mxu0
        %v8088 = vpop.f32.mrb[0].mxu0
        %v8089 = vadd.f32 %v7928, %v8088
        %v8090 = vpop.f32.mrb[0].mxu0
        %8091 = vmatprep.mubr.bf16.mxu0 %v6439
        %8092 = vmatmul.mubr.bf16.gmra.mrb[0].mxu0 %v6438
        %v8093 = vpop.f32.mrb[0].mxu0
        %v8094 = vadd.f32 %v7933, %v8093
        %v8095 = vpop.f32.mrb[0].mxu0
        %v8096 = vpop.f32.mrb[0].mxu0
        %v8097 = vadd.f32 %v7936, %v8096
        %v8098 = vpop.f32.mrb[0].mxu0
        %8099 = vmatprep.mubr.bf16.mxu0 %v6443
        %8100 = vmatmul.mubr.bf16.gmra.mrb[0].mxu0 %v6442
        %v8101 = vpop.f32.mrb[0].mxu0
        %v8102 = vadd.f32 %v7941, %v8101
        %v8103 = vpop.f32.mrb[0].mxu0
        %v8104 = vpop.f32.mrb[0].mxu0
        %v8105 = vadd.f32 %v7944, %v8104
        %v8106 = vpop.f32.mrb[0].mxu0
        %8107 = vmatprep.mubr.bf16.mxu0 %v6447
        %8108 = vmatmul.mubr.bf16.gmra.mrb[0].mxu0 %v6446
        %v8109 = vpop.f32.mrb[0].mxu0
        %v8110 = vadd.f32 %v7949, %v8109
        %v8111 = vpop.f32.mrb[0].mxu0
        %v8112 = vpop.f32.mrb[0].mxu0
        %v8113 = vadd.f32 %v7952, %v8112
        %v8114 = vpop.f32.mrb[0].mxu0
        %8115 = vmatprep.mubr.bf16.mxu0 %v6451
        %8116 = vmatmul.mubr.bf16.gmra.mrb[0].mxu0 %v6450
        %v8117 = vpop.f32.mrb[0].mxu0
        %v8118 = vadd.f32 %v7957, %v8117
        %v8119 = vpop.f32.mrb[0].mxu0
        %v8120 = vpop.f32.mrb[0].mxu0
        %v8121 = vadd.f32 %v7960, %v8120
        %v8122 = vpop.f32.mrb[0].mxu0
        %8123 = vmatprep.mubr.bf16.mxu0 %v6455
        %8124 = vmatmul.mubr.bf16.gmra.mrb[0].mxu0 %v6454
        %v8125 = vpop.f32.mrb[0].mxu0
        %v8126 = vadd.f32 %v7965, %v8125
        %v8127 = vpop.f32.mrb[0].mxu0
        %v8128 = vpop.f32.mrb[0].mxu0
        %v8129 = vadd.f32 %v7968, %v8128
        %v8130 = vpop.f32.mrb[0].mxu0
        %8131 = vmatprep.mubr.bf16.mxu0 %v6459
        %8132 = vmatmul.mubr.bf16.gmra.mrb[0].mxu0 %v6458
        %v8133 = vpop.f32.mrb[0].mxu0
        %v8134 = vadd.f32 %v7973, %v8133
        %v8135 = vpop.f32.mrb[0].mxu0
        %v8136 = vpop.f32.mrb[0].mxu0
        %v8137 = vadd.f32 %v7976, %v8136
        %v8138 = vpop.f32.mrb[0].mxu0
        %8139 = vmatprep.mubr.bf16.mxu0 %v6463
        %8140 = vmatmul.mubr.bf16.gmra.mrb[0].mxu0 %v6462
        %v8141 = vpop.f32.mrb[0].mxu0
        %v8142 = vadd.f32 %v7981, %v8141
        %v8143 = vpop.f32.mrb[0].mxu0
        %v8144 = vpop.f32.mrb[0].mxu0
        %v8145 = vadd.f32 %v7984, %v8144
        %v8146 = vpop.f32.mrb[0].mxu0
        %8147 = vmatprep.mubr.bf16.mxu0 %v6467
        %8148 = vmatmul.mubr.bf16.gmra.mrb[0].mxu0 %v6466
        %v8149 = vpop.f32.mrb[0].mxu0
        %v8150 = vadd.f32 %v7989, %v8149
        %v8151 = vpop.f32.mrb[0].mxu0
        %v8152 = vpop.f32.mrb[0].mxu0
        %v8153 = vadd.f32 %v7992, %v8152
        %v8154 = vpop.f32.mrb[0].mxu0
        %8155 = vmatprep.mubr.bf16.mxu0 %v6471
        %8156 = vmatmul.mubr.bf16.gmra.mrb[0].mxu0 %v6470
        %v8157 = vpop.f32.mrb[0].mxu0
        %v8158 = vadd.f32 %v7997, %v8157
        %v8159 = vpop.f32.mrb[0].mxu0
        %v8160 = vpop.f32.mrb[0].mxu0
        %v8161 = vadd.f32 %v8000, %v8160
        %v8162 = vpop.f32.mrb[0].mxu0
        %8163 = vmatprep.mubr.bf16.mxu0 %v6475
        %8164 = vmatmul.mubr.bf16.gmra.mrb[0].mxu0 %v6474
        %v8165 = vpop.f32.mrb[0].mxu0
        %v8166 = vadd.f32 %v8005, %v8165
        %v8167 = vpop.f32.mrb[0].mxu0
        %v8168 = vpop.f32.mrb[0].mxu0
        %v8169 = vadd.f32 %v8008, %v8168
        %v8170 = vpop.f32.mrb[0].mxu0
        %8171 = vmatprep.mubr.bf16.mxu0 %v6479
        %8172 = vmatmul.mubr.bf16.gmra.mrb[0].mxu0 %v6478
        %v8173 = vpop.f32.mrb[0].mxu0
        %v8174 = vadd.f32 %v8013, %v8173
        %v8175 = vpop.f32.mrb[0].mxu0
        %v8176 = vpop.f32.mrb[0].mxu0
        %v8177 = vadd.f32 %v8016, %v8176
        %v8178 = vpop.f32.mrb[0].mxu0
        %8179 = vmatprep.mubr.bf16.mxu0 %v6483
        %8180 = vmatmul.mubr.bf16.gmra.mrb[0].mxu0 %v6482
        %v8181 = vpop.f32.mrb[0].mxu0
        %v8182 = vadd.f32 %v8021, %v8181
        %v8183 = vpop.f32.mrb[0].mxu0
        %v8184 = vpop.f32.mrb[0].mxu0
        %v8185 = vadd.f32 %v8024, %v8184
        %v8186 = vpop.f32.mrb[0].mxu0
        %8187 = vdwg.mxu0
        %p8188 = scmp.eq.s32.totalorder %s15, 0
        // Predicated region
        $region60: #{fused_forward.1} parent=54 // pred_check
          %p8189 = pneg %p8188
        $region61: #{fused_forward.1} parent=54 // pred_check_branch
          %8191 = sbr.rel (%p8189) target = $region63
        $region62: #{fused_forward.1} parent=54 // pred_region
          %8192 = vst [vmem:[%s4] sm:$0xff] 0.0
          %8193 = vst [vmem:[%s4 + $0x8] sm:$0xff] 0.0
          %8194 = vst [vmem:[%s4 + $0x10] sm:$0xff] 0.0
          %8195 = vst [vmem:[%s4 + $0x18] sm:$0xff] 0.0
          %8196 = vst [vmem:[%s4 + $0x20] sm:$0xff] 0.0
          %8197 = vst [vmem:[%s4 + $0x28] sm:$0xff] 0.0
          %8198 = vst.msk [vmem:[%s4 + $0x30] sm:$0xff] %vm1048, 0.0
          %8199 = vst [vmem:[%s4 + $0x38] sm:$0xff] 0.0
          %8200 = vst [vmem:[%s4 + $0x40] sm:$0xff] 0.0
          %8201 = vst [vmem:[%s4 + $0x48] sm:$0xff] 0.0
          %8202 = vst [vmem:[%s4 + $0x50] sm:$0xff] 0.0
          %8203 = vst [vmem:[%s4 + $0x58] sm:$0xff] 0.0
          %8204 = vst [vmem:[%s4 + $0x60] sm:$0xff] 0.0
          %8205 = vst.msk [vmem:[%s4 + $0x68] sm:$0xff] %vm1048, 0.0
          %8206 = vst [vmem:[%s4 + $0x70] sm:$0xff] 0.0
          %8207 = vst [vmem:[%s4 + $0x78] sm:$0xff] 0.0
          %8208 = vst [vmem:[%s4 + $0x80] sm:$0xff] 0.0
          %8209 = vst [vmem:[%s4 + $0x88] sm:$0xff] 0.0
          %8210 = vst [vmem:[%s4 + $0x90] sm:$0xff] 0.0
          %8211 = vst [vmem:[%s4 + $0x98] sm:$0xff] 0.0
          %8212 = vst.msk [vmem:[%s4 + $0xa0] sm:$0xff] %vm1048, 0.0
          %8213 = vst [vmem:[%s4 + $0xa8] sm:$0xff] 0.0
          %8214 = vst [vmem:[%s4 + $0xb0] sm:$0xff] 0.0
          %8215 = vst [vmem:[%s4 + $0xb8] sm:$0xff] 0.0
          %8216 = vst [vmem:[%s4 + $0xc0] sm:$0xff] 0.0
          %8217 = vst [vmem:[%s4 + $0xc8] sm:$0xff] 0.0
          %8218 = vst [vmem:[%s4 + $0xd0] sm:$0xff] 0.0
          %8219 = vst.msk [vmem:[%s4 + $0xd8] sm:$0xff] %vm1048, 0.0
          %8220 = vst [vmem:[%s4 + $0xe0] sm:$0xff] 0.0
          %8221 = vst [vmem:[%s4 + $0xe8] sm:$0xff] 0.0
          %8222 = vst [vmem:[%s4 + $0xf0] sm:$0xff] 0.0
          %8223 = vst [vmem:[%s4 + $0xf8] sm:$0xff] 0.0
          %8224 = vst [vmem:[%s4 + $0x100] sm:$0xff] 0.0
          %8225 = vst [vmem:[%s4 + $0x108] sm:$0xff] 0.0
          %8226 = vst.msk [vmem:[%s4 + $0x110] sm:$0xff] %vm1048, 0.0
          %8227 = vst [vmem:[%s4 + $0x118] sm:$0xff] 0.0
          %8228 = vst [vmem:[%s4 + $0x120] sm:$0xff] 0.0
          %8229 = vst [vmem:[%s4 + $0x128] sm:$0xff] 0.0
          %8230 = vst [vmem:[%s4 + $0x130] sm:$0xff] 0.0
          %8231 = vst [vmem:[%s4 + $0x138] sm:$0xff] 0.0
          %8232 = vst [vmem:[%s4 + $0x140] sm:$0xff] 0.0
          %8233 = vst.msk [vmem:[%s4 + $0x148] sm:$0xff] %vm1048, 0.0
          %8234 = vst [vmem:[%s4 + $0x150] sm:$0xff] 0.0
          %8235 = vst [vmem:[%s4 + $0x158] sm:$0xff] 0.0
          %8236 = vst [vmem:[%s4 + $0x160] sm:$0xff] 0.0
          %8237 = vst [vmem:[%s4 + $0x168] sm:$0xff] 0.0
          %8238 = vst [vmem:[%s4 + $0x170] sm:$0xff] 0.0
          %8239 = vst [vmem:[%s4 + $0x178] sm:$0xff] 0.0
          %8240 = vst.msk [vmem:[%s4 + $0x180] sm:$0xff] %vm1048, 0.0
          %8241 = vst [vmem:[%s4 + $0x188] sm:$0xff] 0.0
          %8242 = vst [vmem:[%s4 + $0x190] sm:$0xff] 0.0
          %8243 = vst [vmem:[%s4 + $0x198] sm:$0xff] 0.0
          %8244 = vst [vmem:[%s4 + $0x1a0] sm:$0xff] 0.0
          %8245 = vst [vmem:[%s4 + $0x1a8] sm:$0xff] 0.0
          %8246 = vst [vmem:[%s4 + $0x1b0] sm:$0xff] 0.0
          %8247 = vst.msk [vmem:[%s4 + $0x1b8] sm:$0xff] %vm1048, 0.0
          %8248 = vst [vmem:[%s4 + $0x1c0] sm:$0xff] 0.0
          %8249 = vst [vmem:[%s4 + $0x1c8] sm:$0xff] 0.0
          %8250 = vst [vmem:[%s4 + $0x1d0] sm:$0xff] 0.0
          %8251 = vst [vmem:[%s4 + $0x1d8] sm:$0xff] 0.0
          %8252 = vst [vmem:[%s4 + $0x1e0] sm:$0xff] 0.0
          %8253 = vst [vmem:[%s4 + $0x1e8] sm:$0xff] 0.0
          %8254 = vst.msk [vmem:[%s4 + $0x1f0] sm:$0xff] %vm1048, 0.0
          %8255 = vst [vmem:[%s4 + $0x1f8] sm:$0xff] 0.0
          %8256 = vst [vmem:[%s4 + $0x200] sm:$0xff] 0.0
          %8257 = vst [vmem:[%s4 + $0x208] sm:$0xff] 0.0
          %8258 = vst [vmem:[%s4 + $0x210] sm:$0xff] 0.0
          %8259 = vst [vmem:[%s4 + $0x218] sm:$0xff] 0.0
          %8260 = vst [vmem:[%s4 + $0x220] sm:$0xff] 0.0
          %8261 = vst.msk [vmem:[%s4 + $0x228] sm:$0xff] %vm1048, 0.0
          %8262 = vst [vmem:[%s4 + $0x230] sm:$0xff] 0.0
          %8263 = vst [vmem:[%s4 + $0x238] sm:$0xff] 0.0
          %8264 = vst [vmem:[%s4 + $0x240] sm:$0xff] 0.0
          %8265 = vst [vmem:[%s4 + $0x248] sm:$0xff] 0.0
          %8266 = vst [vmem:[%s4 + $0x250] sm:$0xff] 0.0
          %8267 = vst [vmem:[%s4 + $0x258] sm:$0xff] 0.0
          %8268 = vst.msk [vmem:[%s4 + $0x260] sm:$0xff] %vm1048, 0.0
          %8269 = vst [vmem:[%s4 + $0x268] sm:$0xff] 0.0
          %8270 = vst [vmem:[%s4 + $0x270] sm:$0xff] 0.0
          %8271 = vst [vmem:[%s4 + $0x278] sm:$0xff] 0.0
          %8272 = vst [vmem:[%s4 + $0x280] sm:$0xff] 0.0
          %8273 = vst [vmem:[%s4 + $0x288] sm:$0xff] 0.0
          %8274 = vst [vmem:[%s4 + $0x290] sm:$0xff] 0.0
          %8275 = vst.msk [vmem:[%s4 + $0x298] sm:$0xff] %vm1048, 0.0
          %8276 = vst [vmem:[%s4 + $0x2a0] sm:$0xff] 0.0
          %8277 = vst [vmem:[%s4 + $0x2a8] sm:$0xff] 0.0
          %8278 = vst [vmem:[%s4 + $0x2b0] sm:$0xff] 0.0
          %8279 = vst [vmem:[%s4 + $0x2b8] sm:$0xff] 0.0
          %8280 = vst [vmem:[%s4 + $0x2c0] sm:$0xff] 0.0
          %8281 = vst [vmem:[%s4 + $0x2c8] sm:$0xff] 0.0
          %8282 = vst.msk [vmem:[%s4 + $0x2d0] sm:$0xff] %vm1048, 0.0
          %8283 = vst [vmem:[%s4 + $0x2d8] sm:$0xff] 0.0
          %8284 = vst [vmem:[%s4 + $0x2e0] sm:$0xff] 0.0
          %8285 = vst [vmem:[%s4 + $0x2e8] sm:$0xff] 0.0
          %8286 = vst [vmem:[%s4 + $0x2f0] sm:$0xff] 0.0
          %8287 = vst [vmem:[%s4 + $0x2f8] sm:$0xff] 0.0
          %8288 = vst [vmem:[%s4 + $0x300] sm:$0xff] 0.0
          %8289 = vst.msk [vmem:[%s4 + $0x308] sm:$0xff] %vm1048, 0.0
          %8290 = vst [vmem:[%s4 + $0x310] sm:$0xff] 0.0
          %8291 = vst [vmem:[%s4 + $0x318] sm:$0xff] 0.0
          %8292 = vst [vmem:[%s4 + $0x320] sm:$0xff] 0.0
          %8293 = vst [vmem:[%s4 + $0x328] sm:$0xff] 0.0
          %8294 = vst [vmem:[%s4 + $0x330] sm:$0xff] 0.0
          %8295 = vst [vmem:[%s4 + $0x338] sm:$0xff] 0.0
          %8296 = vst.msk [vmem:[%s4 + $0x340] sm:$0xff] %vm1048, 0.0
          %8297 = vst [vmem:[%s4 + $0x348] sm:$0xff] 0.0
          %8298 = vst [vmem:[%s4 + $0x350] sm:$0xff] 0.0
          %8299 = vst [vmem:[%s4 + $0x358] sm:$0xff] 0.0
          %8300 = vst [vmem:[%s4 + $0x360] sm:$0xff] 0.0
          %8301 = vst [vmem:[%s4 + $0x368] sm:$0xff] 0.0
          %8302 = vst [vmem:[%s4 + $0x370] sm:$0xff] 0.0
          %8303 = vst.msk [vmem:[%s4 + $0x378] sm:$0xff] %vm1048, 0.0
          %8304 = vst [vmem:[%s4 + $0x380] sm:$0xff] 0.0
          %8305 = vst [vmem:[%s4 + $0x388] sm:$0xff] 0.0
          %8306 = vst [vmem:[%s4 + $0x390] sm:$0xff] 0.0
          %8307 = vst [vmem:[%s4 + $0x398] sm:$0xff] 0.0
          %8308 = vst [vmem:[%s4 + $0x3a0] sm:$0xff] 0.0
          %8309 = vst [vmem:[%s4 + $0x3a8] sm:$0xff] 0.0
          %8310 = vst.msk [vmem:[%s4 + $0x3b0] sm:$0xff] %vm1048, 0.0
          %8311 = vst [vmem:[%s4 + $0x3b8] sm:$0xff] 0.0
          %8312 = vst [vmem:[%s4 + $0x3c0] sm:$0xff] 0.0
          %8313 = vst [vmem:[%s4 + $0x3c8] sm:$0xff] 0.0
          %8314 = vst [vmem:[%s4 + $0x3d0] sm:$0xff] 0.0
          %8315 = vst [vmem:[%s4 + $0x3d8] sm:$0xff] 0.0
          %8316 = vst [vmem:[%s4 + $0x3e0] sm:$0xff] 0.0
          %8317 = vst.msk [vmem:[%s4 + $0x3e8] sm:$0xff] %vm1048, 0.0
          %8318 = vst [vmem:[%s4 + $0x3f0] sm:$0xff] 0.0
          %8319 = vst [vmem:[%s4 + $0x3f8] sm:$0xff] 0.0
          %8320 = vst [vmem:[%s4 + $0x400] sm:$0xff] 0.0
          %8321 = vst [vmem:[%s4 + $0x408] sm:$0xff] 0.0
          %8322 = vst [vmem:[%s4 + $0x410] sm:$0xff] 0.0
          %8323 = vst [vmem:[%s4 + $0x418] sm:$0xff] 0.0
          %8324 = vst.msk [vmem:[%s4 + $0x420] sm:$0xff] %vm1048, 0.0
          %8325 = vst [vmem:[%s4 + $0x428] sm:$0xff] 0.0
          %8326 = vst [vmem:[%s4 + $0x430] sm:$0xff] 0.0
          %8327 = vst [vmem:[%s4 + $0x438] sm:$0xff] 0.0
          %8328 = vst [vmem:[%s4 + $0x440] sm:$0xff] 0.0
          %8329 = vst [vmem:[%s4 + $0x448] sm:$0xff] 0.0
          %8330 = vst [vmem:[%s4 + $0x450] sm:$0xff] 0.0
          %8331 = vst.msk [vmem:[%s4 + $0x458] sm:$0xff] %vm1048, 0.0
          %8332 = vst [vmem:[%s4 + $0x460] sm:$0xff] 0.0
          %8333 = vst [vmem:[%s4 + $0x468] sm:$0xff] 0.0
          %8334 = vst [vmem:[%s4 + $0x470] sm:$0xff] 0.0
          %8335 = vst [vmem:[%s4 + $0x478] sm:$0xff] 0.0
          %8336 = vst [vmem:[%s4 + $0x480] sm:$0xff] 0.0
          %8337 = vst [vmem:[%s4 + $0x488] sm:$0xff] 0.0
          %8338 = vst.msk [vmem:[%s4 + $0x490] sm:$0xff] %vm1048, 0.0
          %8339 = vst [vmem:[%s4 + $0x498] sm:$0xff] 0.0
          %8340 = vst [vmem:[%s4 + $0x4a0] sm:$0xff] 0.0
          %8341 = vst [vmem:[%s4 + $0x4a8] sm:$0xff] 0.0
          %8342 = vst [vmem:[%s4 + $0x4b0] sm:$0xff] 0.0
          %8343 = vst [vmem:[%s4 + $0x4b8] sm:$0xff] 0.0
          %8344 = vst [vmem:[%s4 + $0x4c0] sm:$0xff] 0.0
          %8345 = vst.msk [vmem:[%s4 + $0x4c8] sm:$0xff] %vm1048, 0.0
          %8346 = vst [vmem:[%s4 + $0x4d0] sm:$0xff] 0.0
          %8347 = vst [vmem:[%s4 + $0x4d8] sm:$0xff] 0.0
          %8348 = vst [vmem:[%s4 + $0x4e0] sm:$0xff] 0.0
          %8349 = vst [vmem:[%s4 + $0x4e8] sm:$0xff] 0.0
          %8350 = vst [vmem:[%s4 + $0x4f0] sm:$0xff] 0.0
          %8351 = vst [vmem:[%s4 + $0x4f8] sm:$0xff] 0.0
          %8352 = vst.msk [vmem:[%s4 + $0x500] sm:$0xff] %vm1048, 0.0
          %8353 = vst [vmem:[%s4 + $0x508] sm:$0xff] 0.0
          %8354 = vst [vmem:[%s4 + $0x510] sm:$0xff] 0.0
          %8355 = vst [vmem:[%s4 + $0x518] sm:$0xff] 0.0
          %8356 = vst [vmem:[%s4 + $0x520] sm:$0xff] 0.0
          %8357 = vst [vmem:[%s4 + $0x528] sm:$0xff] 0.0
          %8358 = vst [vmem:[%s4 + $0x530] sm:$0xff] 0.0
          %8359 = vst.msk [vmem:[%s4 + $0x538] sm:$0xff] %vm1048, 0.0
          %8360 = vst [vmem:[%s4 + $0x540] sm:$0xff] 0.0
          %8361 = vst [vmem:[%s4 + $0x548] sm:$0xff] 0.0
          %8362 = vst [vmem:[%s4 + $0x550] sm:$0xff] 0.0
          %8363 = vst [vmem:[%s4 + $0x558] sm:$0xff] 0.0
          %8364 = vst [vmem:[%s4 + $0x560] sm:$0xff] 0.0
          %8365 = vst [vmem:[%s4 + $0x568] sm:$0xff] 0.0
          %8366 = vst.msk [vmem:[%s4 + $0x570] sm:$0xff] %vm1048, 0.0
          %8367 = vst [vmem:[%s4 + $0x578] sm:$0xff] 0.0
          %8368 = vst [vmem:[%s4 + $0x580] sm:$0xff] 0.0
          %8369 = vst [vmem:[%s4 + $0x588] sm:$0xff] 0.0
          %8370 = vst [vmem:[%s4 + $0x590] sm:$0xff] 0.0
          %8371 = vst [vmem:[%s4 + $0x598] sm:$0xff] 0.0
          %8372 = vst [vmem:[%s4 + $0x5a0] sm:$0xff] 0.0
          %8373 = vst.msk [vmem:[%s4 + $0x5a8] sm:$0xff] %vm1048, 0.0
          %8374 = vst [vmem:[%s4 + $0x5b0] sm:$0xff] 0.0
          %8375 = vst [vmem:[%s4 + $0x5b8] sm:$0xff] 0.0
          %8376 = vst [vmem:[%s4 + $0x5c0] sm:$0xff] 0.0
          %8377 = vst [vmem:[%s4 + $0x5c8] sm:$0xff] 0.0
          %8378 = vst [vmem:[%s4 + $0x5d0] sm:$0xff] 0.0
          %8379 = vst [vmem:[%s4 + $0x5d8] sm:$0xff] 0.0
          %8380 = vst.msk [vmem:[%s4 + $0x5e0] sm:$0xff] %vm1048, 0.0
          %8381 = vst [vmem:[%s4 + $0x5e8] sm:$0xff] 0.0
          %8382 = vst [vmem:[%s4 + $0x5f0] sm:$0xff] 0.0
          %8383 = vst [vmem:[%s4 + $0x5f8] sm:$0xff] 0.0
          %8384 = vst [vmem:[%s4 + $0x600] sm:$0xff] 0.0
          %8385 = vst [vmem:[%s4 + $0x608] sm:$0xff] 0.0
          %8386 = vst [vmem:[%s4 + $0x610] sm:$0xff] 0.0
          %8387 = vst.msk [vmem:[%s4 + $0x618] sm:$0xff] %vm1048, 0.0
          %8388 = vst [vmem:[%s4 + $0x620] sm:$0xff] 0.0
          %8389 = vst [vmem:[%s4 + $0x628] sm:$0xff] 0.0
          %8390 = vst [vmem:[%s4 + $0x630] sm:$0xff] 0.0
          %8391 = vst [vmem:[%s4 + $0x638] sm:$0xff] 0.0
          %8392 = vst [vmem:[%s4 + $0x640] sm:$0xff] 0.0
          %8393 = vst [vmem:[%s4 + $0x648] sm:$0xff] 0.0
          %8394 = vst.msk [vmem:[%s4 + $0x650] sm:$0xff] %vm1048, 0.0
          %8395 = vst [vmem:[%s4 + $0x658] sm:$0xff] 0.0
          %8396 = vst [vmem:[%s4 + $0x660] sm:$0xff] 0.0
          %8397 = vst [vmem:[%s4 + $0x668] sm:$0xff] 0.0
          %8398 = vst [vmem:[%s4 + $0x670] sm:$0xff] 0.0
          %8399 = vst [vmem:[%s4 + $0x678] sm:$0xff] 0.0
          %8400 = vst [vmem:[%s4 + $0x680] sm:$0xff] 0.0
          %8401 = vst.msk [vmem:[%s4 + $0x688] sm:$0xff] %vm1048, 0.0
          %8402 = vst [vmem:[%s4 + $0x690] sm:$0xff] 0.0
          %8403 = vst [vmem:[%s4 + $0x698] sm:$0xff] 0.0
          %8404 = vst [vmem:[%s4 + $0x6a0] sm:$0xff] 0.0
          %8405 = vst [vmem:[%s4 + $0x6a8] sm:$0xff] 0.0
          %8406 = vst [vmem:[%s4 + $0x6b0] sm:$0xff] 0.0
          %8407 = vst [vmem:[%s4 + $0x6b8] sm:$0xff] 0.0
          %8408 = vst.msk [vmem:[%s4 + $0x6c0] sm:$0xff] %vm1048, 0.0
          %8409 = vst [vmem:[%s4 + $0x6c8] sm:$0xff] 0.0
          %8410 = vst [vmem:[%s4 + $0x6d0] sm:$0xff] 0.0
          %8411 = vst [vmem:[%s4 + $0x6d8] sm:$0xff] 0.0
          %8412 = vst [vmem:[%s4 + $0x6e0] sm:$0xff] 0.0
          %8413 = vst [vmem:[%s4 + $0x6e8] sm:$0xff] 0.0
          %8414 = vst [vmem:[%s4 + $0x6f0] sm:$0xff] 0.0
          %8415 = vst.msk [vmem:[%s4 + $0x6f8] sm:$0xff] %vm1048, 0.0
        $region63: #{fused_forward.1} parent=54 // pred_fallthru
          _
        %v8416 = vld [vmem:[%s4] sm:$0xff]
        %v8417 = vld [vmem:[%s4 + $0x8] sm:$0xff]
        %v8418 = vld [vmem:[%s4 + $0x10] sm:$0xff]
        %v8419 = vld [vmem:[%s4 + $0x18] sm:$0xff]
        %v8420 = vld [vmem:[%s4 + $0x20] sm:$0xff]
        %v8421 = vld [vmem:[%s4 + $0x28] sm:$0xff]
        %v8422 = vld [vmem:[%s4 + $0x30] sm:$0xff]
        %v8423 = vld [vmem:[%s4 + $0x38] sm:$0xff]
        %v8424 = vld [vmem:[%s4 + $0x40] sm:$0xff]
        %v8425 = vld [vmem:[%s4 + $0x48] sm:$0xff]
        %v8426 = vld [vmem:[%s4 + $0x50] sm:$0xff]
        %v8427 = vld [vmem:[%s4 + $0x58] sm:$0xff]
        %v8428 = vld [vmem:[%s4 + $0x60] sm:$0xff]
        %v8429 = vld [vmem:[%s4 + $0x68] sm:$0xff]
        %v8430 = vld [vmem:[%s4 + $0x70] sm:$0xff]
        %v8431 = vld [vmem:[%s4 + $0x78] sm:$0xff]
        %v8432 = vld [vmem:[%s4 + $0x80] sm:$0xff]
        %v8433 = vld [vmem:[%s4 + $0x88] sm:$0xff]
        %v8434 = vld [vmem:[%s4 + $0x90] sm:$0xff]
        %v8435 = vld [vmem:[%s4 + $0x98] sm:$0xff]
        %v8436 = vld [vmem:[%s4 + $0xa0] sm:$0xff]
        %v8437 = vld [vmem:[%s4 + $0xa8] sm:$0xff]
        %v8438 = vld [vmem:[%s4 + $0xb0] sm:$0xff]
        %v8439 = vld [vmem:[%s4 + $0xb8] sm:$0xff]
        %v8440 = vld [vmem:[%s4 + $0xc0] sm:$0xff]
        %v8441 = vld [vmem:[%s4 + $0xc8] sm:$0xff]
        %v8442 = vld [vmem:[%s4 + $0xd0] sm:$0xff]
        %v8443 = vld [vmem:[%s4 + $0xd8] sm:$0xff]
        %v8444 = vld [vmem:[%s4 + $0xe0] sm:$0xff]
        %v8445 = vld [vmem:[%s4 + $0xe8] sm:$0xff]
        %v8446 = vld [vmem:[%s4 + $0xf0] sm:$0xff]
        %v8447 = vld [vmem:[%s4 + $0xf8] sm:$0xff]
        %v8448 = vld [vmem:[%s4 + $0x100] sm:$0xff]
        %v8449 = vld [vmem:[%s4 + $0x108] sm:$0xff]
        %v8450 = vld [vmem:[%s4 + $0x110] sm:$0xff]
        %v8451 = vld [vmem:[%s4 + $0x118] sm:$0xff]
        %v8452 = vld [vmem:[%s4 + $0x120] sm:$0xff]
        %v8453 = vld [vmem:[%s4 + $0x128] sm:$0xff]
        %v8454 = vld [vmem:[%s4 + $0x130] sm:$0xff]
        %v8455 = vld [vmem:[%s4 + $0x138] sm:$0xff]
        %v8456 = vld [vmem:[%s4 + $0x140] sm:$0xff]
        %v8457 = vld [vmem:[%s4 + $0x148] sm:$0xff]
        %v8458 = vld [vmem:[%s4 + $0x150] sm:$0xff]
        %v8459 = vld [vmem:[%s4 + $0x158] sm:$0xff]
        %v8460 = vld [vmem:[%s4 + $0x160] sm:$0xff]
        %v8461 = vld [vmem:[%s4 + $0x168] sm:$0xff]
        %v8462 = vld [vmem:[%s4 + $0x170] sm:$0xff]
        %v8463 = vld [vmem:[%s4 + $0x178] sm:$0xff]
        %v8464 = vld [vmem:[%s4 + $0x180] sm:$0xff]
        %v8465 = vld [vmem:[%s4 + $0x188] sm:$0xff]
        %v8466 = vld [vmem:[%s4 + $0x190] sm:$0xff]
        %v8467 = vld [vmem:[%s4 + $0x198] sm:$0xff]
        %v8468 = vld [vmem:[%s4 + $0x1a0] sm:$0xff]
        %v8469 = vld [vmem:[%s4 + $0x1a8] sm:$0xff]
        %v8470 = vld [vmem:[%s4 + $0x1b0] sm:$0xff]
        %v8471 = vld [vmem:[%s4 + $0x1b8] sm:$0xff]
        %v8472 = vld [vmem:[%s4 + $0x1c0] sm:$0xff]
        %v8473 = vld [vmem:[%s4 + $0x1c8] sm:$0xff]
        %v8474 = vld [vmem:[%s4 + $0x1d0] sm:$0xff]
        %v8475 = vld [vmem:[%s4 + $0x1d8] sm:$0xff]
        %v8476 = vld [vmem:[%s4 + $0x1e0] sm:$0xff]
        %v8477 = vld [vmem:[%s4 + $0x1e8] sm:$0xff]
        %v8478 = vld [vmem:[%s4 + $0x1f0] sm:$0xff]
        %v8479 = vld [vmem:[%s4 + $0x1f8] sm:$0xff]
        %v8480 = vld [vmem:[%s4 + $0x200] sm:$0xff]
        %v8481 = vld [vmem:[%s4 + $0x208] sm:$0xff]
        %v8482 = vld [vmem:[%s4 + $0x210] sm:$0xff]
        %v8483 = vld [vmem:[%s4 + $0x218] sm:$0xff]
        %v8484 = vld [vmem:[%s4 + $0x220] sm:$0xff]
        %v8485 = vld [vmem:[%s4 + $0x228] sm:$0xff]
        %v8486 = vld [vmem:[%s4 + $0x230] sm:$0xff]
        %v8487 = vld [vmem:[%s4 + $0x238] sm:$0xff]
        %v8488 = vld [vmem:[%s4 + $0x240] sm:$0xff]
        %v8489 = vld [vmem:[%s4 + $0x248] sm:$0xff]
        %v8490 = vld [vmem:[%s4 + $0x250] sm:$0xff]
        %v8491 = vld [vmem:[%s4 + $0x258] sm:$0xff]
        %v8492 = vld [vmem:[%s4 + $0x260] sm:$0xff]
        %v8493 = vld [vmem:[%s4 + $0x268] sm:$0xff]
        %v8494 = vld [vmem:[%s4 + $0x270] sm:$0xff]
        %v8495 = vld [vmem:[%s4 + $0x278] sm:$0xff]
        %v8496 = vld [vmem:[%s4 + $0x280] sm:$0xff]
        %v8497 = vld [vmem:[%s4 + $0x288] sm:$0xff]
        %v8498 = vld [vmem:[%s4 + $0x290] sm:$0xff]
        %v8499 = vld [vmem:[%s4 + $0x298] sm:$0xff]
        %v8500 = vld [vmem:[%s4 + $0x2a0] sm:$0xff]
        %v8501 = vld [vmem:[%s4 + $0x2a8] sm:$0xff]
        %v8502 = vld [vmem:[%s4 + $0x2b0] sm:$0xff]
        %v8503 = vld [vmem:[%s4 + $0x2b8] sm:$0xff]
        %v8504 = vld [vmem:[%s4 + $0x2c0] sm:$0xff]
        %v8505 = vld [vmem:[%s4 + $0x2c8] sm:$0xff]
        %v8506 = vld [vmem:[%s4 + $0x2d0] sm:$0xff]
        %v8507 = vld [vmem:[%s4 + $0x2d8] sm:$0xff]
        %v8508 = vld [vmem:[%s4 + $0x2e0] sm:$0xff]
        %v8509 = vld [vmem:[%s4 + $0x2e8] sm:$0xff]
        %v8510 = vld [vmem:[%s4 + $0x2f0] sm:$0xff]
        %v8511 = vld [vmem:[%s4 + $0x2f8] sm:$0xff]
        %v8512 = vld [vmem:[%s4 + $0x300] sm:$0xff]
        %v8513 = vld [vmem:[%s4 + $0x308] sm:$0xff]
        %v8514 = vld [vmem:[%s4 + $0x310] sm:$0xff]
        %v8515 = vld [vmem:[%s4 + $0x318] sm:$0xff]
        %v8516 = vld [vmem:[%s4 + $0x320] sm:$0xff]
        %v8517 = vld [vmem:[%s4 + $0x328] sm:$0xff]
        %v8518 = vld [vmem:[%s4 + $0x330] sm:$0xff]
        %v8519 = vld [vmem:[%s4 + $0x338] sm:$0xff]
        %v8520 = vld [vmem:[%s4 + $0x340] sm:$0xff]
        %v8521 = vld [vmem:[%s4 + $0x348] sm:$0xff]
        %v8522 = vld [vmem:[%s4 + $0x350] sm:$0xff]
        %v8523 = vld [vmem:[%s4 + $0x358] sm:$0xff]
        %v8524 = vld [vmem:[%s4 + $0x360] sm:$0xff]
        %v8525 = vld [vmem:[%s4 + $0x368] sm:$0xff]
        %v8526 = vld [vmem:[%s4 + $0x370] sm:$0xff]
        %v8527 = vld [vmem:[%s4 + $0x378] sm:$0xff]
        %v8528 = vld [vmem:[%s4 + $0x380] sm:$0xff]
        %v8529 = vld [vmem:[%s4 + $0x388] sm:$0xff]
        %v8530 = vld [vmem:[%s4 + $0x390] sm:$0xff]
        %v8531 = vld [vmem:[%s4 + $0x398] sm:$0xff]
        %v8532 = vld [vmem:[%s4 + $0x3a0] sm:$0xff]
        %v8533 = vld [vmem:[%s4 + $0x3a8] sm:$0xff]
        %v8534 = vld [vmem:[%s4 + $0x3b0] sm:$0xff]
        %v8535 = vld [vmem:[%s4 + $0x3b8] sm:$0xff]
        %v8536 = vld [vmem:[%s4 + $0x3c0] sm:$0xff]
        %v8537 = vld [vmem:[%s4 + $0x3c8] sm:$0xff]
        %v8538 = vld [vmem:[%s4 + $0x3d0] sm:$0xff]
        %v8539 = vld [vmem:[%s4 + $0x3d8] sm:$0xff]
        %v8540 = vld [vmem:[%s4 + $0x3e0] sm:$0xff]
        %v8541 = vld [vmem:[%s4 + $0x3e8] sm:$0xff]
        %v8542 = vld [vmem:[%s4 + $0x3f0] sm:$0xff]
        %v8543 = vld [vmem:[%s4 + $0x3f8] sm:$0xff]
        %v8544 = vld [vmem:[%s4 + $0x400] sm:$0xff]
        %v8545 = vld [vmem:[%s4 + $0x408] sm:$0xff]
        %v8546 = vld [vmem:[%s4 + $0x410] sm:$0xff]
        %v8547 = vld [vmem:[%s4 + $0x418] sm:$0xff]
        %v8548 = vld [vmem:[%s4 + $0x420] sm:$0xff]
        %v8549 = vld [vmem:[%s4 + $0x428] sm:$0xff]
        %v8550 = vld [vmem:[%s4 + $0x430] sm:$0xff]
        %v8551 = vld [vmem:[%s4 + $0x438] sm:$0xff]
        %v8552 = vld [vmem:[%s4 + $0x440] sm:$0xff]
        %v8553 = vld [vmem:[%s4 + $0x448] sm:$0xff]
        %v8554 = vld [vmem:[%s4 + $0x450] sm:$0xff]
        %v8555 = vld [vmem:[%s4 + $0x458] sm:$0xff]
        %v8556 = vld [vmem:[%s4 + $0x460] sm:$0xff]
        %v8557 = vld [vmem:[%s4 + $0x468] sm:$0xff]
        %v8558 = vld [vmem:[%s4 + $0x470] sm:$0xff]
        %v8559 = vld [vmem:[%s4 + $0x478] sm:$0xff]
        %v8560 = vld [vmem:[%s4 + $0x480] sm:$0xff]
        %v8561 = vld [vmem:[%s4 + $0x488] sm:$0xff]
        %v8562 = vld [vmem:[%s4 + $0x490] sm:$0xff]
        %v8563 = vld [vmem:[%s4 + $0x498] sm:$0xff]
        %v8564 = vld [vmem:[%s4 + $0x4a0] sm:$0xff]
        %v8565 = vld [vmem:[%s4 + $0x4a8] sm:$0xff]
        %v8566 = vld [vmem:[%s4 + $0x4b0] sm:$0xff]
        %v8567 = vld [vmem:[%s4 + $0x4b8] sm:$0xff]
        %v8568 = vld [vmem:[%s4 + $0x4c0] sm:$0xff]
        %v8569 = vld [vmem:[%s4 + $0x4c8] sm:$0xff]
        %v8570 = vld [vmem:[%s4 + $0x4d0] sm:$0xff]
        %v8571 = vld [vmem:[%s4 + $0x4d8] sm:$0xff]
        %v8572 = vld [vmem:[%s4 + $0x4e0] sm:$0xff]
        %v8573 = vld [vmem:[%s4 + $0x4e8] sm:$0xff]
        %v8574 = vld [vmem:[%s4 + $0x4f0] sm:$0xff]
        %v8575 = vld [vmem:[%s4 + $0x4f8] sm:$0xff]
        %v8576 = vld [vmem:[%s4 + $0x500] sm:$0xff]
        %v8577 = vld [vmem:[%s4 + $0x508] sm:$0xff]
        %v8578 = vld [vmem:[%s4 + $0x510] sm:$0xff]
        %v8579 = vld [vmem:[%s4 + $0x518] sm:$0xff]
        %v8580 = vld [vmem:[%s4 + $0x520] sm:$0xff]
        %v8581 = vld [vmem:[%s4 + $0x528] sm:$0xff]
        %v8582 = vld [vmem:[%s4 + $0x530] sm:$0xff]
        %v8583 = vld [vmem:[%s4 + $0x538] sm:$0xff]
        %v8584 = vld [vmem:[%s4 + $0x540] sm:$0xff]
        %v8585 = vld [vmem:[%s4 + $0x548] sm:$0xff]
        %v8586 = vld [vmem:[%s4 + $0x550] sm:$0xff]
        %v8587 = vld [vmem:[%s4 + $0x558] sm:$0xff]
        %v8588 = vld [vmem:[%s4 + $0x560] sm:$0xff]
        %v8589 = vld [vmem:[%s4 + $0x568] sm:$0xff]
        %v8590 = vld [vmem:[%s4 + $0x570] sm:$0xff]
        %v8591 = vld [vmem:[%s4 + $0x578] sm:$0xff]
        %v8592 = vld [vmem:[%s4 + $0x580] sm:$0xff]
        %v8593 = vld [vmem:[%s4 + $0x588] sm:$0xff]
        %v8594 = vld [vmem:[%s4 + $0x590] sm:$0xff]
        %v8595 = vld [vmem:[%s4 + $0x598] sm:$0xff]
        %v8596 = vld [vmem:[%s4 + $0x5a0] sm:$0xff]
        %v8597 = vld [vmem:[%s4 + $0x5a8] sm:$0xff]
        %v8598 = vld [vmem:[%s4 + $0x5b0] sm:$0xff]
        %v8599 = vld [vmem:[%s4 + $0x5b8] sm:$0xff]
        %v8600 = vld [vmem:[%s4 + $0x5c0] sm:$0xff]
        %v8601 = vld [vmem:[%s4 + $0x5c8] sm:$0xff]
        %v8602 = vld [vmem:[%s4 + $0x5d0] sm:$0xff]
        %v8603 = vld [vmem:[%s4 + $0x5d8] sm:$0xff]
        %v8604 = vld [vmem:[%s4 + $0x5e0] sm:$0xff]
        %v8605 = vld [vmem:[%s4 + $0x5e8] sm:$0xff]
        %v8606 = vld [vmem:[%s4 + $0x5f0] sm:$0xff]
        %v8607 = vld [vmem:[%s4 + $0x5f8] sm:$0xff]
        %v8608 = vld [vmem:[%s4 + $0x600] sm:$0xff]
        %v8609 = vld [vmem:[%s4 + $0x608] sm:$0xff]
        %v8610 = vld [vmem:[%s4 + $0x610] sm:$0xff]
        %v8611 = vld [vmem:[%s4 + $0x618] sm:$0xff]
        %v8612 = vld [vmem:[%s4 + $0x620] sm:$0xff]
        %v8613 = vld [vmem:[%s4 + $0x628] sm:$0xff]
        %v8614 = vld [vmem:[%s4 + $0x630] sm:$0xff]
        %v8615 = vld [vmem:[%s4 + $0x638] sm:$0xff]
        %v8616 = vld [vmem:[%s4 + $0x640] sm:$0xff]
        %v8617 = vld [vmem:[%s4 + $0x648] sm:$0xff]
        %v8618 = vld [vmem:[%s4 + $0x650] sm:$0xff]
        %v8619 = vld [vmem:[%s4 + $0x658] sm:$0xff]
        %v8620 = vld [vmem:[%s4 + $0x660] sm:$0xff]
        %v8621 = vld [vmem:[%s4 + $0x668] sm:$0xff]
        %v8622 = vld [vmem:[%s4 + $0x670] sm:$0xff]
        %v8623 = vld [vmem:[%s4 + $0x678] sm:$0xff]
        %v8624 = vld [vmem:[%s4 + $0x680] sm:$0xff]
        %v8625 = vld [vmem:[%s4 + $0x688] sm:$0xff]
        %v8626 = vld [vmem:[%s4 + $0x690] sm:$0xff]
        %v8627 = vld [vmem:[%s4 + $0x698] sm:$0xff]
        %v8628 = vld [vmem:[%s4 + $0x6a0] sm:$0xff]
        %v8629 = vld [vmem:[%s4 + $0x6a8] sm:$0xff]
        %v8630 = vld [vmem:[%s4 + $0x6b0] sm:$0xff]
        %v8631 = vld [vmem:[%s4 + $0x6b8] sm:$0xff]
        %v8632 = vld [vmem:[%s4 + $0x6c0] sm:$0xff]
        %v8633 = vld [vmem:[%s4 + $0x6c8] sm:$0xff]
        %v8634 = vld [vmem:[%s4 + $0x6d0] sm:$0xff]
        %v8635 = vld [vmem:[%s4 + $0x6d8] sm:$0xff]
        %v8636 = vld [vmem:[%s4 + $0x6e0] sm:$0xff]
        %v8637 = vld [vmem:[%s4 + $0x6e8] sm:$0xff]
        %v8638 = vld [vmem:[%s4 + $0x6f0] sm:$0xff]
        %v8639 = vld [vmem:[%s4 + $0x6f8] sm:$0xff]
        %v8640 = vadd.f32 %v8416, %v6936
        %v8641 = vadd.f32 %v8417, %v6938
        %v8642 = vadd.f32 %v8418, %v7322
        %v8643 = vadd.f32 %v8419, %v7324
        %v8644 = vadd.f32 %v8420, %v7708
        %v8645 = vadd.f32 %v8421, %v7710
        %v8646 = vadd.f32 %v8422, %v8062
        %v8647 = vadd.f32 %v8423, %v6940
        %v8648 = vadd.f32 %v8424, %v6942
        %v8649 = vadd.f32 %v8425, %v7326
        %v8650 = vadd.f32 %v8426, %v7328
        %v8651 = vadd.f32 %v8427, %v7712
        %v8652 = vadd.f32 %v8428, %v7714
        %v8653 = vadd.f32 %v8429, %v8065
        %v8654 = vadd.f32 %v8430, %v6946
        %v8655 = vadd.f32 %v8431, %v6948
        %v8656 = vadd.f32 %v8432, %v7332
        %v8657 = vadd.f32 %v8433, %v7334
        %v8658 = vadd.f32 %v8434, %v7718
        %v8659 = vadd.f32 %v8435, %v7720
        %v8660 = vadd.f32 %v8436, %v8070
        %v8661 = vadd.f32 %v8437, %v6950
        %v8662 = vadd.f32 %v8438, %v6952
        %v8663 = vadd.f32 %v8439, %v7336
        %v8664 = vadd.f32 %v8440, %v7338
        %v8665 = vadd.f32 %v8441, %v7722
        %v8666 = vadd.f32 %v8442, %v7724
        %v8667 = vadd.f32 %v8443, %v8073
        %v8668 = vadd.f32 %v8444, %v6956
        %v8669 = vadd.f32 %v8445, %v6958
        %v8670 = vadd.f32 %v8446, %v7342
        %v8671 = vadd.f32 %v8447, %v7344
        %v8672 = vadd.f32 %v8448, %v7728
        %v8673 = vadd.f32 %v8449, %v7730
        %v8674 = vadd.f32 %v8450, %v8078
        %v8675 = vadd.f32 %v8451, %v6960
        %v8676 = vadd.f32 %v8452, %v6962
        %v8677 = vadd.f32 %v8453, %v7346
        %v8678 = vadd.f32 %v8454, %v7348
        %v8679 = vadd.f32 %v8455, %v7732
        %v8680 = vadd.f32 %v8456, %v7734
        %v8681 = vadd.f32 %v8457, %v8081
        %v8682 = vadd.f32 %v8458, %v6966
        %v8683 = vadd.f32 %v8459, %v6968
        %v8684 = vadd.f32 %v8460, %v7352
        %v8685 = vadd.f32 %v8461, %v7354
        %v8686 = vadd.f32 %v8462, %v7738
        %v8687 = vadd.f32 %v8463, %v7740
        %v8688 = vadd.f32 %v8464, %v8086
        %v8689 = vadd.f32 %v8465, %v6970
        %v8690 = vadd.f32 %v8466, %v6972
        %v8691 = vadd.f32 %v8467, %v7356
        %v8692 = vadd.f32 %v8468, %v7358
        %v8693 = vadd.f32 %v8469, %v7742
        %v8694 = vadd.f32 %v8470, %v7744
        %v8695 = vadd.f32 %v8471, %v8089
        %v8696 = vadd.f32 %v8472, %v6976
        %v8697 = vadd.f32 %v8473, %v6978
        %v8698 = vadd.f32 %v8474, %v7362
        %v8699 = vadd.f32 %v8475, %v7364
        %v8700 = vadd.f32 %v8476, %v7748
        %v8701 = vadd.f32 %v8477, %v7750
        %v8702 = vadd.f32 %v8478, %v8094
        %v8703 = vadd.f32 %v8479, %v6980
        %v8704 = vadd.f32 %v8480, %v6982
        %v8705 = vadd.f32 %v8481, %v7366
        %v8706 = vadd.f32 %v8482, %v7368
        %v8707 = vadd.f32 %v8483, %v7752
        %v8708 = vadd.f32 %v8484, %v7754
        %v8709 = vadd.f32 %v8485, %v8097
        %v8710 = vadd.f32 %v8486, %v6986
        %v8711 = vadd.f32 %v8487, %v6988
        %v8712 = vadd.f32 %v8488, %v7372
        %v8713 = vadd.f32 %v8489, %v7374
        %v8714 = vadd.f32 %v8490, %v7758
        %v8715 = vadd.f32 %v8491, %v7760
        %v8716 = vadd.f32 %v8492, %v8102
        %v8717 = vadd.f32 %v8493, %v6990
        %v8718 = vadd.f32 %v8494, %v6992
        %v8719 = vadd.f32 %v8495, %v7376
        %v8720 = vadd.f32 %v8496, %v7378
        %v8721 = vadd.f32 %v8497, %v7762
        %v8722 = vadd.f32 %v8498, %v7764
        %v8723 = vadd.f32 %v8499, %v8105
        %v8724 = vadd.f32 %v8500, %v6996
        %v8725 = vadd.f32 %v8501, %v6998
        %v8726 = vadd.f32 %v8502, %v7382
        %v8727 = vadd.f32 %v8503, %v7384
        %v8728 = vadd.f32 %v8504, %v7768
        %v8729 = vadd.f32 %v8505, %v7770
        %v8730 = vadd.f32 %v8506, %v8110
        %v8731 = vadd.f32 %v8507, %v7000
        %v8732 = vadd.f32 %v8508, %v7002
        %v8733 = vadd.f32 %v8509, %v7386
        %v8734 = vadd.f32 %v8510, %v7388
        %v8735 = vadd.f32 %v8511, %v7772
        %v8736 = vadd.f32 %v8512, %v7774
        %v8737 = vadd.f32 %v8513, %v8113
        %v8738 = vadd.f32 %v8514, %v7006
        %v8739 = vadd.f32 %v8515, %v7008
        %v8740 = vadd.f32 %v8516, %v7392
        %v8741 = vadd.f32 %v8517, %v7394
        %v8742 = vadd.f32 %v8518, %v7778
        %v8743 = vadd.f32 %v8519, %v7780
        %v8744 = vadd.f32 %v8520, %v8118
        %v8745 = vadd.f32 %v8521, %v7010
        %v8746 = vadd.f32 %v8522, %v7012
        %v8747 = vadd.f32 %v8523, %v7396
        %v8748 = vadd.f32 %v8524, %v7398
        %v8749 = vadd.f32 %v8525, %v7782
        %v8750 = vadd.f32 %v8526, %v7784
        %v8751 = vadd.f32 %v8527, %v8121
        %v8752 = vadd.f32 %v8528, %v7016
        %v8753 = vadd.f32 %v8529, %v7018
        %v8754 = vadd.f32 %v8530, %v7402
        %v8755 = vadd.f32 %v8531, %v7404
        %v8756 = vadd.f32 %v8532, %v7788
        %v8757 = vadd.f32 %v8533, %v7790
        %v8758 = vadd.f32 %v8534, %v8126
        %v8759 = vadd.f32 %v8535, %v7020
        %v8760 = vadd.f32 %v8536, %v7022
        %v8761 = vadd.f32 %v8537, %v7406
        %v8762 = vadd.f32 %v8538, %v7408
        %v8763 = vadd.f32 %v8539, %v7792
        %v8764 = vadd.f32 %v8540, %v7794
        %v8765 = vadd.f32 %v8541, %v8129
        %v8766 = vadd.f32 %v8542, %v7026
        %v8767 = vadd.f32 %v8543, %v7028
        %v8768 = vadd.f32 %v8544, %v7412
        %v8769 = vadd.f32 %v8545, %v7414
        %v8770 = vadd.f32 %v8546, %v7798
        %v8771 = vadd.f32 %v8547, %v7800
        %v8772 = vadd.f32 %v8548, %v8134
        %v8773 = vadd.f32 %v8549, %v7030
        %v8774 = vadd.f32 %v8550, %v7032
        %v8775 = vadd.f32 %v8551, %v7416
        %v8776 = vadd.f32 %v8552, %v7418
        %v8777 = vadd.f32 %v8553, %v7802
        %v8778 = vadd.f32 %v8554, %v7804
        %v8779 = vadd.f32 %v8555, %v8137
        %v8780 = vadd.f32 %v8556, %v7036
        %v8781 = vadd.f32 %v8557, %v7038
        %v8782 = vadd.f32 %v8558, %v7422
        %v8783 = vadd.f32 %v8559, %v7424
        %v8784 = vadd.f32 %v8560, %v7808
        %v8785 = vadd.f32 %v8561, %v7810
        %v8786 = vadd.f32 %v8562, %v8142
        %v8787 = vadd.f32 %v8563, %v7040
        %v8788 = vadd.f32 %v8564, %v7042
        %v8789 = vadd.f32 %v8565, %v7426
        %v8790 = vadd.f32 %v8566, %v7428
        %v8791 = vadd.f32 %v8567, %v7812
        %v8792 = vadd.f32 %v8568, %v7814
        %v8793 = vadd.f32 %v8569, %v8145
        %v8794 = vadd.f32 %v8570, %v7046
        %v8795 = vadd.f32 %v8571, %v7048
        %v8796 = vadd.f32 %v8572, %v7432
        %v8797 = vadd.f32 %v8573, %v7434
        %v8798 = vadd.f32 %v8574, %v7818
        %v8799 = vadd.f32 %v8575, %v7820
        %v8800 = vadd.f32 %v8576, %v8150
        %v8801 = vadd.f32 %v8577, %v7050
        %v8802 = vadd.f32 %v8578, %v7052
        %v8803 = vadd.f32 %v8579, %v7436
        %v8804 = vadd.f32 %v8580, %v7438
        %v8805 = vadd.f32 %v8581, %v7822
        %v8806 = vadd.f32 %v8582, %v7824
        %v8807 = vadd.f32 %v8583, %v8153
        %v8808 = vadd.f32 %v8584, %v7056
        %v8809 = vadd.f32 %v8585, %v7058
        %v8810 = vadd.f32 %v8586, %v7442
        %v8811 = vadd.f32 %v8587, %v7444
        %v8812 = vadd.f32 %v8588, %v7828
        %v8813 = vadd.f32 %v8589, %v7830
        %v8814 = vadd.f32 %v8590, %v8158
        %v8815 = vadd.f32 %v8591, %v7060
        %v8816 = vadd.f32 %v8592, %v7062
        %v8817 = vadd.f32 %v8593, %v7446
        %v8818 = vadd.f32 %v8594, %v7448
        %v8819 = vadd.f32 %v8595, %v7832
        %v8820 = vadd.f32 %v8596, %v7834
        %v8821 = vadd.f32 %v8597, %v8161
        %v8822 = vadd.f32 %v8598, %v7066
        %v8823 = vadd.f32 %v8599, %v7068
        %v8824 = vadd.f32 %v8600, %v7452
        %v8825 = vadd.f32 %v8601, %v7454
        %v8826 = vadd.f32 %v8602, %v7838
        %v8827 = vadd.f32 %v8603, %v7840
        %v8828 = vadd.f32 %v8604, %v8166
        %v8829 = vadd.f32 %v8605, %v7070
        %v8830 = vadd.f32 %v8606, %v7072
        %v8831 = vadd.f32 %v8607, %v7456
        %v8832 = vadd.f32 %v8608, %v7458
        %v8833 = vadd.f32 %v8609, %v7842
        %v8834 = vadd.f32 %v8610, %v7844
        %v8835 = vadd.f32 %v8611, %v8169
        %v8836 = vadd.f32 %v8612, %v7076
        %v8837 = vadd.f32 %v8613, %v7078
        %v8838 = vadd.f32 %v8614, %v7462
        %v8839 = vadd.f32 %v8615, %v7464
        %v8840 = vadd.f32 %v8616, %v7848
        %v8841 = vadd.f32 %v8617, %v7850
        %v8842 = vadd.f32 %v8618, %v8174
        %v8843 = vadd.f32 %v8619, %v7080
        %v8844 = vadd.f32 %v8620, %v7082
        %v8845 = vadd.f32 %v8621, %v7466
        %v8846 = vadd.f32 %v8622, %v7468
        %v8847 = vadd.f32 %v8623, %v7852
        %v8848 = vadd.f32 %v8624, %v7854
        %v8849 = vadd.f32 %v8625, %v8177
        %v8850 = vadd.f32 %v8626, %v7086
        %v8851 = vadd.f32 %v8627, %v7088
        %v8852 = vadd.f32 %v8628, %v7472
        %v8853 = vadd.f32 %v8629, %v7474
        %v8854 = vadd.f32 %v8630, %v7858
        %v8855 = vadd.f32 %v8631, %v7860
        %v8856 = vadd.f32 %v8632, %v8182
        %v8857 = vadd.f32 %v8633, %v7090
        %v8858 = vadd.f32 %v8634, %v7092
        %v8859 = vadd.f32 %v8635, %v7476
        %v8860 = vadd.f32 %v8636, %v7478
        %v8861 = vadd.f32 %v8637, %v7862
        %v8862 = vadd.f32 %v8638, %v7864
        %v8863 = vadd.f32 %v8639, %v8185
        %8864 = vst [vmem:[%s4] sm:$0xff] %v8640
        %8865 = vst [vmem:[%s4 + $0x8] sm:$0xff] %v8641
        %8866 = vst [vmem:[%s4 + $0x10] sm:$0xff] %v8642
        %8867 = vst [vmem:[%s4 + $0x18] sm:$0xff] %v8643
        %8868 = vst [vmem:[%s4 + $0x20] sm:$0xff] %v8644
        %8869 = vst [vmem:[%s4 + $0x28] sm:$0xff] %v8645
        %8870 = vst.msk [vmem:[%s4 + $0x30] sm:$0xff] %vm1048, %v8646
        %8871 = vst [vmem:[%s4 + $0x38] sm:$0xff] %v8647
        %8872 = vst [vmem:[%s4 + $0x40] sm:$0xff] %v8648
        %8873 = vst [vmem:[%s4 + $0x48] sm:$0xff] %v8649
        %8874 = vst [vmem:[%s4 + $0x50] sm:$0xff] %v8650
        %8875 = vst [vmem:[%s4 + $0x58] sm:$0xff] %v8651
        %8876 = vst [vmem:[%s4 + $0x60] sm:$0xff] %v8652
        %8877 = vst.msk [vmem:[%s4 + $0x68] sm:$0xff] %vm1048, %v8653
        %8878 = vst [vmem:[%s4 + $0x70] sm:$0xff] %v8654
        %8879 = vst [vmem:[%s4 + $0x78] sm:$0xff] %v8655
        %8880 = vst [vmem:[%s4 + $0x80] sm:$0xff] %v8656
        %8881 = vst [vmem:[%s4 + $0x88] sm:$0xff] %v8657
        %8882 = vst [vmem:[%s4 + $0x90] sm:$0xff] %v8658
        %8883 = vst [vmem:[%s4 + $0x98] sm:$0xff] %v8659
        %8884 = vst.msk [vmem:[%s4 + $0xa0] sm:$0xff] %vm1048, %v8660
        %8885 = vst [vmem:[%s4 + $0xa8] sm:$0xff] %v8661
        %8886 = vst [vmem:[%s4 + $0xb0] sm:$0xff] %v8662
        %8887 = vst [vmem:[%s4 + $0xb8] sm:$0xff] %v8663
        %8888 = vst [vmem:[%s4 + $0xc0] sm:$0xff] %v8664
        %8889 = vst [vmem:[%s4 + $0xc8] sm:$0xff] %v8665
        %8890 = vst [vmem:[%s4 + $0xd0] sm:$0xff] %v8666
        %8891 = vst.msk [vmem:[%s4 + $0xd8] sm:$0xff] %vm1048, %v8667
        %8892 = vst [vmem:[%s4 + $0xe0] sm:$0xff] %v8668
        %8893 = vst [vmem:[%s4 + $0xe8] sm:$0xff] %v8669
        %8894 = vst [vmem:[%s4 + $0xf0] sm:$0xff] %v8670
        %8895 = vst [vmem:[%s4 + $0xf8] sm:$0xff] %v8671
        %8896 = vst [vmem:[%s4 + $0x100] sm:$0xff] %v8672
        %8897 = vst [vmem:[%s4 + $0x108] sm:$0xff] %v8673
        %8898 = vst.msk [vmem:[%s4 + $0x110] sm:$0xff] %vm1048, %v8674
        %8899 = vst [vmem:[%s4 + $0x118] sm:$0xff] %v8675
        %8900 = vst [vmem:[%s4 + $0x120] sm:$0xff] %v8676
        %8901 = vst [vmem:[%s4 + $0x128] sm:$0xff] %v8677
        %8902 = vst [vmem:[%s4 + $0x130] sm:$0xff] %v8678
        %8903 = vst [vmem:[%s4 + $0x138] sm:$0xff] %v8679
        %8904 = vst [vmem:[%s4 + $0x140] sm:$0xff] %v8680
        %8905 = vst.msk [vmem:[%s4 + $0x148] sm:$0xff] %vm1048, %v8681
        %8906 = vst [vmem:[%s4 + $0x150] sm:$0xff] %v8682
        %8907 = vst [vmem:[%s4 + $0x158] sm:$0xff] %v8683
        %8908 = vst [vmem:[%s4 + $0x160] sm:$0xff] %v8684
        %8909 = vst [vmem:[%s4 + $0x168] sm:$0xff] %v8685
        %8910 = vst [vmem:[%s4 + $0x170] sm:$0xff] %v8686
        %8911 = vst [vmem:[%s4 + $0x178] sm:$0xff] %v8687
        %8912 = vst.msk [vmem:[%s4 + $0x180] sm:$0xff] %vm1048, %v8688
        %8913 = vst [vmem:[%s4 + $0x188] sm:$0xff] %v8689
        %8914 = vst [vmem:[%s4 + $0x190] sm:$0xff] %v8690
        %8915 = vst [vmem:[%s4 + $0x198] sm:$0xff] %v8691
        %8916 = vst [vmem:[%s4 + $0x1a0] sm:$0xff] %v8692
        %8917 = vst [vmem:[%s4 + $0x1a8] sm:$0xff] %v8693
        %8918 = vst [vmem:[%s4 + $0x1b0] sm:$0xff] %v8694
        %8919 = vst.msk [vmem:[%s4 + $0x1b8] sm:$0xff] %vm1048, %v8695
        %8920 = vst [vmem:[%s4 + $0x1c0] sm:$0xff] %v8696
        %8921 = vst [vmem:[%s4 + $0x1c8] sm:$0xff] %v8697
        %8922 = vst [vmem:[%s4 + $0x1d0] sm:$0xff] %v8698
        %8923 = vst [vmem:[%s4 + $0x1d8] sm:$0xff] %v8699
        %8924 = vst [vmem:[%s4 + $0x1e0] sm:$0xff] %v8700
        %8925 = vst [vmem:[%s4 + $0x1e8] sm:$0xff] %v8701
        %8926 = vst.msk [vmem:[%s4 + $0x1f0] sm:$0xff] %vm1048, %v8702
        %8927 = vst [vmem:[%s4 + $0x1f8] sm:$0xff] %v8703
        %8928 = vst [vmem:[%s4 + $0x200] sm:$0xff] %v8704
        %8929 = vst [vmem:[%s4 + $0x208] sm:$0xff] %v8705
        %8930 = vst [vmem:[%s4 + $0x210] sm:$0xff] %v8706
        %8931 = vst [vmem:[%s4 + $0x218] sm:$0xff] %v8707
        %8932 = vst [vmem:[%s4 + $0x220] sm:$0xff] %v8708
        %8933 = vst.msk [vmem:[%s4 + $0x228] sm:$0xff] %vm1048, %v8709
        %8934 = vst [vmem:[%s4 + $0x230] sm:$0xff] %v8710
        %8935 = vst [vmem:[%s4 + $0x238] sm:$0xff] %v8711
        %8936 = vst [vmem:[%s4 + $0x240] sm:$0xff] %v8712
        %8937 = vst [vmem:[%s4 + $0x248] sm:$0xff] %v8713
        %8938 = vst [vmem:[%s4 + $0x250] sm:$0xff] %v8714
        %8939 = vst [vmem:[%s4 + $0x258] sm:$0xff] %v8715
        %8940 = vst.msk [vmem:[%s4 + $0x260] sm:$0xff] %vm1048, %v8716
        %8941 = vst [vmem:[%s4 + $0x268] sm:$0xff] %v8717
        %8942 = vst [vmem:[%s4 + $0x270] sm:$0xff] %v8718
        %8943 = vst [vmem:[%s4 + $0x278] sm:$0xff] %v8719
        %8944 = vst [vmem:[%s4 + $0x280] sm:$0xff] %v8720
        %8945 = vst [vmem:[%s4 + $0x288] sm:$0xff] %v8721
        %8946 = vst [vmem:[%s4 + $0x290] sm:$0xff] %v8722
        %8947 = vst.msk [vmem:[%s4 + $0x298] sm:$0xff] %vm1048, %v8723
        %8948 = vst [vmem:[%s4 + $0x2a0] sm:$0xff] %v8724
        %8949 = vst [vmem:[%s4 + $0x2a8] sm:$0xff] %v8725
        %8950 = vst [vmem:[%s4 + $0x2b0] sm:$0xff] %v8726
        %8951 = vst [vmem:[%s4 + $0x2b8] sm:$0xff] %v8727
        %8952 = vst [vmem:[%s4 + $0x2c0] sm:$0xff] %v8728
        %8953 = vst [vmem:[%s4 + $0x2c8] sm:$0xff] %v8729
        %8954 = vst.msk [vmem:[%s4 + $0x2d0] sm:$0xff] %vm1048, %v8730
        %8955 = vst [vmem:[%s4 + $0x2d8] sm:$0xff] %v8731
        %8956 = vst [vmem:[%s4 + $0x2e0] sm:$0xff] %v8732
        %8957 = vst [vmem:[%s4 + $0x2e8] sm:$0xff] %v8733
        %8958 = vst [vmem:[%s4 + $0x2f0] sm:$0xff] %v8734
        %8959 = vst [vmem:[%s4 + $0x2f8] sm:$0xff] %v8735
        %8960 = vst [vmem:[%s4 + $0x300] sm:$0xff] %v8736
        %8961 = vst.msk [vmem:[%s4 + $0x308] sm:$0xff] %vm1048, %v8737
        %8962 = vst [vmem:[%s4 + $0x310] sm:$0xff] %v8738
        %8963 = vst [vmem:[%s4 + $0x318] sm:$0xff] %v8739
        %8964 = vst [vmem:[%s4 + $0x320] sm:$0xff] %v8740
        %8965 = vst [vmem:[%s4 + $0x328] sm:$0xff] %v8741
        %8966 = vst [vmem:[%s4 + $0x330] sm:$0xff] %v8742
        %8967 = vst [vmem:[%s4 + $0x338] sm:$0xff] %v8743
        %8968 = vst.msk [vmem:[%s4 + $0x340] sm:$0xff] %vm1048, %v8744
        %8969 = vst [vmem:[%s4 + $0x348] sm:$0xff] %v8745
        %8970 = vst [vmem:[%s4 + $0x350] sm:$0xff] %v8746
        %8971 = vst [vmem:[%s4 + $0x358] sm:$0xff] %v8747
        %8972 = vst [vmem:[%s4 + $0x360] sm:$0xff] %v8748
        %8973 = vst [vmem:[%s4 + $0x368] sm:$0xff] %v8749
        %8974 = vst [vmem:[%s4 + $0x370] sm:$0xff] %v8750
        %8975 = vst.msk [vmem:[%s4 + $0x378] sm:$0xff] %vm1048, %v8751
        %8976 = vst [vmem:[%s4 + $0x380] sm:$0xff] %v8752
        %8977 = vst [vmem:[%s4 + $0x388] sm:$0xff] %v8753
        %8978 = vst [vmem:[%s4 + $0x390] sm:$0xff] %v8754
        %8979 = vst [vmem:[%s4 + $0x398] sm:$0xff] %v8755
        %8980 = vst [vmem:[%s4 + $0x3a0] sm:$0xff] %v8756
        %8981 = vst [vmem:[%s4 + $0x3a8] sm:$0xff] %v8757
        %8982 = vst.msk [vmem:[%s4 + $0x3b0] sm:$0xff] %vm1048, %v8758
        %8983 = vst [vmem:[%s4 + $0x3b8] sm:$0xff] %v8759
        %8984 = vst [vmem:[%s4 + $0x3c0] sm:$0xff] %v8760
        %8985 = vst [vmem:[%s4 + $0x3c8] sm:$0xff] %v8761
        %8986 = vst [vmem:[%s4 + $0x3d0] sm:$0xff] %v8762
        %8987 = vst [vmem:[%s4 + $0x3d8] sm:$0xff] %v8763
        %8988 = vst [vmem:[%s4 + $0x3e0] sm:$0xff] %v8764
        %8989 = vst.msk [vmem:[%s4 + $0x3e8] sm:$0xff] %vm1048, %v8765
        %8990 = vst [vmem:[%s4 + $0x3f0] sm:$0xff] %v8766
        %8991 = vst [vmem:[%s4 + $0x3f8] sm:$0xff] %v8767
        %8992 = vst [vmem:[%s4 + $0x400] sm:$0xff] %v8768
        %8993 = vst [vmem:[%s4 + $0x408] sm:$0xff] %v8769
        %8994 = vst [vmem:[%s4 + $0x410] sm:$0xff] %v8770
        %8995 = vst [vmem:[%s4 + $0x418] sm:$0xff] %v8771
        %8996 = vst.msk [vmem:[%s4 + $0x420] sm:$0xff] %vm1048, %v8772
        %8997 = vst [vmem:[%s4 + $0x428] sm:$0xff] %v8773
        %8998 = vst [vmem:[%s4 + $0x430] sm:$0xff] %v8774
        %8999 = vst [vmem:[%s4 + $0x438] sm:$0xff] %v8775
        %9000 = vst [vmem:[%s4 + $0x440] sm:$0xff] %v8776
        %9001 = vst [vmem:[%s4 + $0x448] sm:$0xff] %v8777
        %9002 = vst [vmem:[%s4 + $0x450] sm:$0xff] %v8778
        %9003 = vst.msk [vmem:[%s4 + $0x458] sm:$0xff] %vm1048, %v8779
        %9004 = vst [vmem:[%s4 + $0x460] sm:$0xff] %v8780
        %9005 = vst [vmem:[%s4 + $0x468] sm:$0xff] %v8781
        %9006 = vst [vmem:[%s4 + $0x470] sm:$0xff] %v8782
        %9007 = vst [vmem:[%s4 + $0x478] sm:$0xff] %v8783
        %9008 = vst [vmem:[%s4 + $0x480] sm:$0xff] %v8784
        %9009 = vst [vmem:[%s4 + $0x488] sm:$0xff] %v8785
        %9010 = vst.msk [vmem:[%s4 + $0x490] sm:$0xff] %vm1048, %v8786
        %9011 = vst [vmem:[%s4 + $0x498] sm:$0xff] %v8787
        %9012 = vst [vmem:[%s4 + $0x4a0] sm:$0xff] %v8788
        %9013 = vst [vmem:[%s4 + $0x4a8] sm:$0xff] %v8789
        %9014 = vst [vmem:[%s4 + $0x4b0] sm:$0xff] %v8790
        %9015 = vst [vmem:[%s4 + $0x4b8] sm:$0xff] %v8791
        %9016 = vst [vmem:[%s4 + $0x4c0] sm:$0xff] %v8792
        %9017 = vst.msk [vmem:[%s4 + $0x4c8] sm:$0xff] %vm1048, %v8793
        %9018 = vst [vmem:[%s4 + $0x4d0] sm:$0xff] %v8794
        %9019 = vst [vmem:[%s4 + $0x4d8] sm:$0xff] %v8795
        %9020 = vst [vmem:[%s4 + $0x4e0] sm:$0xff] %v8796
        %9021 = vst [vmem:[%s4 + $0x4e8] sm:$0xff] %v8797
        %9022 = vst [vmem:[%s4 + $0x4f0] sm:$0xff] %v8798
        %9023 = vst [vmem:[%s4 + $0x4f8] sm:$0xff] %v8799
        %9024 = vst.msk [vmem:[%s4 + $0x500] sm:$0xff] %vm1048, %v8800
        %9025 = vst [vmem:[%s4 + $0x508] sm:$0xff] %v8801
        %9026 = vst [vmem:[%s4 + $0x510] sm:$0xff] %v8802
        %9027 = vst [vmem:[%s4 + $0x518] sm:$0xff] %v8803
        %9028 = vst [vmem:[%s4 + $0x520] sm:$0xff] %v8804
        %9029 = vst [vmem:[%s4 + $0x528] sm:$0xff] %v8805
        %9030 = vst [vmem:[%s4 + $0x530] sm:$0xff] %v8806
        %9031 = vst.msk [vmem:[%s4 + $0x538] sm:$0xff] %vm1048, %v8807
        %9032 = vst [vmem:[%s4 + $0x540] sm:$0xff] %v8808
        %9033 = vst [vmem:[%s4 + $0x548] sm:$0xff] %v8809
        %9034 = vst [vmem:[%s4 + $0x550] sm:$0xff] %v8810
        %9035 = vst [vmem:[%s4 + $0x558] sm:$0xff] %v8811
        %9036 = vst [vmem:[%s4 + $0x560] sm:$0xff] %v8812
        %9037 = vst [vmem:[%s4 + $0x568] sm:$0xff] %v8813
        %9038 = vst.msk [vmem:[%s4 + $0x570] sm:$0xff] %vm1048, %v8814
        %9039 = vst [vmem:[%s4 + $0x578] sm:$0xff] %v8815
        %9040 = vst [vmem:[%s4 + $0x580] sm:$0xff] %v8816
        %9041 = vst [vmem:[%s4 + $0x588] sm:$0xff] %v8817
        %9042 = vst [vmem:[%s4 + $0x590] sm:$0xff] %v8818
        %9043 = vst [vmem:[%s4 + $0x598] sm:$0xff] %v8819
        %9044 = vst [vmem:[%s4 + $0x5a0] sm:$0xff] %v8820
        %9045 = vst.msk [vmem:[%s4 + $0x5a8] sm:$0xff] %vm1048, %v8821
        %9046 = vst [vmem:[%s4 + $0x5b0] sm:$0xff] %v8822
        %9047 = vst [vmem:[%s4 + $0x5b8] sm:$0xff] %v8823
        %9048 = vst [vmem:[%s4 + $0x5c0] sm:$0xff] %v8824
        %9049 = vst [vmem:[%s4 + $0x5c8] sm:$0xff] %v8825
        %9050 = vst [vmem:[%s4 + $0x5d0] sm:$0xff] %v8826
        %9051 = vst [vmem:[%s4 + $0x5d8] sm:$0xff] %v8827
        %9052 = vst.msk [vmem:[%s4 + $0x5e0] sm:$0xff] %vm1048, %v8828
        %9053 = vst [vmem:[%s4 + $0x5e8] sm:$0xff] %v8829
        %9054 = vst [vmem:[%s4 + $0x5f0] sm:$0xff] %v8830
        %9055 = vst [vmem:[%s4 + $0x5f8] sm:$0xff] %v8831
        %9056 = vst [vmem:[%s4 + $0x600] sm:$0xff] %v8832
        %9057 = vst [vmem:[%s4 + $0x608] sm:$0xff] %v8833
        %9058 = vst [vmem:[%s4 + $0x610] sm:$0xff] %v8834
        %9059 = vst.msk [vmem:[%s4 + $0x618] sm:$0xff] %vm1048, %v8835
        %9060 = vst [vmem:[%s4 + $0x620] sm:$0xff] %v8836
        %9061 = vst [vmem:[%s4 + $0x628] sm:$0xff] %v8837
        %9062 = vst [vmem:[%s4 + $0x630] sm:$0xff] %v8838
        %9063 = vst [vmem:[%s4 + $0x638] sm:$0xff] %v8839
        %9064 = vst [vmem:[%s4 + $0x640] sm:$0xff] %v8840
        %9065 = vst [vmem:[%s4 + $0x648] sm:$0xff] %v8841
        %9066 = vst.msk [vmem:[%s4 + $0x650] sm:$0xff] %vm1048, %v8842
        %9067 = vst [vmem:[%s4 + $0x658] sm:$0xff] %v8843
        %9068 = vst [vmem:[%s4 + $0x660] sm:$0xff] %v8844
        %9069 = vst [vmem:[%s4 + $0x668] sm:$0xff] %v8845
        %9070 = vst [vmem:[%s4 + $0x670] sm:$0xff] %v8846
        %9071 = vst [vmem:[%s4 + $0x678] sm:$0xff] %v8847
        %9072 = vst [vmem:[%s4 + $0x680] sm:$0xff] %v8848
        %9073 = vst.msk [vmem:[%s4 + $0x688] sm:$0xff] %vm1048, %v8849
        %9074 = vst [vmem:[%s4 + $0x690] sm:$0xff] %v8850
        %9075 = vst [vmem:[%s4 + $0x698] sm:$0xff] %v8851
        %9076 = vst [vmem:[%s4 + $0x6a0] sm:$0xff] %v8852
        %9077 = vst [vmem:[%s4 + $0x6a8] sm:$0xff] %v8853
        %9078 = vst [vmem:[%s4 + $0x6b0] sm:$0xff] %v8854
        %9079 = vst [vmem:[%s4 + $0x6b8] sm:$0xff] %v8855
        %9080 = vst.msk [vmem:[%s4 + $0x6c0] sm:$0xff] %vm1048, %v8856
        %9081 = vst [vmem:[%s4 + $0x6c8] sm:$0xff] %v8857
        %9082 = vst [vmem:[%s4 + $0x6d0] sm:$0xff] %v8858
        %9083 = vst [vmem:[%s4 + $0x6d8] sm:$0xff] %v8859
        %9084 = vst [vmem:[%s4 + $0x6e0] sm:$0xff] %v8860
        %9085 = vst [vmem:[%s4 + $0x6e8] sm:$0xff] %v8861
        %9086 = vst [vmem:[%s4 + $0x6f0] sm:$0xff] %v8862
        %9087 = vst.msk [vmem:[%s4 + $0x6f8] sm:$0xff] %vm1048, %v8863
        // Predicated region
        $region64: #{fused_forward.1} parent=54 // pred_check
          %p9088 = pneg %p132
        $region65: #{fused_forward.1} parent=54 // pred_check_branch
          %9090 = sbr.rel (%p9088) target = $region67
        $region66: #{fused_forward.1} parent=54 // pred_region
          _
        $region67: #{fused_forward.1} parent=54 // pred_fallthru
          _
        // Predicated region
        $region68: #{fused_forward.1} parent=54 // pred_check
          %p9091 = pneg %p132
        $region69: #{fused_forward.1} parent=54 // pred_check_branch
          %9093 = sbr.rel (%p9091) target = $region71
        $region70: #{fused_forward.1} parent=54 // pred_region
          _
        $region71: #{fused_forward.1} parent=54 // pred_fallthru
          _
      $region55: #{fused_forward.1} parent=5 // pred_fallthru
        _
      %p9094 = scmp.le.s32.totalorder 2, %s10
      // Predicated region
      $region72: #{fused_forward.1} parent=5 // pred_check
        %p9095 = pneg %p9094
      $region73: #{fused_forward.1} parent=5 // pred_check_branch
        %9097 = sbr.rel (%p9095) target = $region75
      $region74: #{fused_forward.1} parent=5 // pred_region
        %s9098 = ssub.s32 %s10, 2
      $region75: #{fused_forward.1} parent=5 // pred_fallthru
        _
    $region6: #{fused_forward.1} parent=1 // loop_footer
      %s14 = sadd.s32 1, %s10
    $region7: #{fused_forward.1} parent=1 // loop_footer_branch
      %9 = sbr.rel target = $region3
    $region8: #{fused_forward.1} parent=1 // loop_exit
      _

</llo_original>
